<compile_context>
chip_gen: v7x
topology: tpu7x:2x2x1
jax: 0.10.0
libtpu: 0.0.40
codegen_flags: <defaults>
</compile_context>

<pallas_src>
import math
import functools

import jax
import jax.numpy as jnp
from jax.experimental import pallas as pl
from jax.experimental.pallas import tpu as pltpu

F32 = jnp.float32
LN_EPS = 1e-5
OUT_HEADS = 12            # out_net SA heads (fixed by the PyTorch module)


# ---------------------------------------------------------------------------
# In-kernel helpers
# ---------------------------------------------------------------------------
def _softmax_lastdim(s):
    """Numerically stable softmax over the last dim (EUP recip + Newton)."""
    m = jnp.max(s, axis=-1, keepdims=True)
    e = jnp.exp(s - m)
    d = jnp.sum(e, axis=-1, keepdims=True)
    r = pl.reciprocal(d, approx=True)     # EUP slot, essentially free
    r = r * (2.0 - d * r)                 # one Newton step -> ~f32 accuracy
    return e * r


def _layer_norm(x, g, b):
    mu = jnp.mean(x, axis=-1, keepdims=True)
    var = jnp.mean(jnp.square(x - mu), axis=-1, keepdims=True)
    return (x - mu) * jax.lax.rsqrt(var + LN_EPS) * g + b


# ---------------------------------------------------------------------------
# Fused IAN kernel: 4x IndexAttnLayer + 2x out_net SA, all layers unrolled.
# ---------------------------------------------------------------------------
def _ian_kernel(p_ref, s_ref,
                pe_w_ref, pe_vec_ref,      # (L,4,Ep,Ep), (L,6,Ep)
                se_w_ref, se_vec_ref,      # (L,2,Es,Es), (L,4,Es)
                sa_w_ref, sa_vec_ref,      # (L2,4,Es,Es), (L2,4,Es)
                out_ref, *, num_layers, num_out, num_heads):
    Bt, S, Ep = p_ref.shape
    Es = s_ref.shape[-1]
    M = Bt * S

    p = p_ref[...].reshape(M, Ep)          # psycho activations, resident in VMEM
    sem = s_ref[...].reshape(M, Es)        # semantic activations, resident in VMEM

    # ---- stacked IndexAttnLayers: psycho SA (1 head, LN) + SemanticEncoder ----
    for l in range(num_layers):
        last = (l == num_layers - 1)
        vec = pe_vec_ref[l]                                # (6, Ep) bq*,bk,bv,bo,g,b
        # Separate Q/K/V matmuls: no lane-misaligned slicing of a fused slab.
        # q-scaling is already folded into Wq / bq at prep time.
        q = (jnp.dot(p, pe_w_ref[l, 0], preferred_element_type=F32)
             + vec[0:1]).reshape(Bt, S, Ep)
        k = (jnp.dot(p, pe_w_ref[l, 1], preferred_element_type=F32)
             + vec[1:2]).reshape(Bt, S, Ep)
        scores = jnp.einsum('bqe,bke->bqk', q, k, preferred_element_type=F32)
        probs = _softmax_lastdim(scores)                   # (Bt,S,S), stays in VMEM
        # TODO(synk): FairseqDropout(0.1) on attn probs is identity in eval
        #             mode; training-mode dropout is not implemented here.

        if not last:
            # The last layer's psycho output is never consumed by IAN.forward,
            # so its v-proj / attn / out-proj / LN / residual are skipped.
            v = (jnp.dot(p, pe_w_ref[l, 2], preferred_element_type=F32)
                 + vec[2:3]).reshape(Bt, S, Ep)
            attn = jnp.einsum('bqk,bke->bqe', probs, v,
                              preferred_element_type=F32)
            o = jnp.dot(attn.reshape(M, Ep), pe_w_ref[l, 3],
                        preferred_element_type=F32) + vec[3:4]
            o = _layer_norm(o, vec[4:5], vec[5:6])         # LN before residual
            p = p + o

        # ---- SemanticEncoder: reuses probs straight from VMEM ----
        svec = se_vec_ref[l]                               # (4, Es) bv,bo,g,b
        vs = (jnp.dot(sem, se_w_ref[l, 0], preferred_element_type=F32)
              + svec[0:1]).reshape(Bt, S, Es)
        attn_s = jnp.einsum('bqk,bke->bqe', probs, vs,
                            preferred_element_type=F32)
        xs = jnp.dot(attn_s.reshape(M, Es), se_w_ref[l, 1],
                     preferred_element_type=F32) + svec[1:2]
        sem = _layer_norm(xs + sem, svec[2:3], svec[3:4])  # residual, then LN

    # ---- out_net: SA with num_heads heads, layer_norm=False -------------------
    hd = Es // num_heads
    for t in range(num_out):
        vec = sa_vec_ref[t]                                # (4, Es) bq*,bk,bv,bo
        q = (jnp.dot(sem, sa_w_ref[t, 0], preferred_element_type=F32)
             + vec[0:1]).reshape(Bt, S, Es)
        k = (jnp.dot(sem, sa_w_ref[t, 1], preferred_element_type=F32)
             + vec[1:2]).reshape(Bt, S, Es)
        v = (jnp.dot(sem, sa_w_ref[t, 2], preferred_element_type=F32)
             + vec[2:3]).reshape(Bt, S, Es)
        heads = []
        for h in range(num_heads):
            lo = h * hd
            sc = jnp.einsum('bqd,bkd->bqk', q[:, :, lo:lo + hd],
                            k[:, :, lo:lo + hd], preferred_element_type=F32)
            ph = _softmax_lastdim(sc)
            heads.append(jnp.einsum('bqk,bkd->bqd', ph, v[:, :, lo:lo + hd],
                                    preferred_element_type=F32))
        # Concat heads along the lane dim -> ONE fused (M,Es)@(Es,Es) out-proj
        # (replaces 12 K=hd matmuls that underfilled the MXU contraction dim).
        attn = jnp.concatenate(heads, axis=-1).reshape(M, Es)
        o = jnp.dot(attn, sa_w_ref[t, 3], preferred_element_type=F32) + vec[3:4]
        sem = sem + o                                      # residual, no LN

    out_ref[...] = sem.reshape(Bt, S, Es)


# ---------------------------------------------------------------------------
# Wrapper: one-time weight prep, block sizing, pallas_call
# ---------------------------------------------------------------------------
def _pick_block_b(B, S, Ep, Es, n_layers, n_out, vmem_budget=24 << 20):
    """Largest Bt dividing B that fits the VMEM budget and (when possible)
    leaves >= 2 grid steps so the "parallel" axis can shard across the two
    TensorCores of v7x."""
    weight_bytes = 4 * (n_layers * (4 * Ep * Ep + 2 * Es * Es + 6 * Ep + 4 * Es)
                        + n_out * (4 * Es * Es + 4 * Es))

    def block_bytes(bt):
        rows = bt * S
        # in/out buffers (double-buffered) + q/k/v + scores/probs + temporaries
        return 4 * (4 * rows * (Ep + Es) + 3 * rows * max(Ep, Es)
                    + 2 * bt * S * S + 2 * rows * max(Ep, Es))

    # TODO(synk): for B not nicely divisible, switch to pl.cdiv grid + masking
    #             instead of restricting to divisors of B.
    divisors = [d for d in range(1, B + 1) if B % d == 0]
    fitting = [d for d in divisors
               if 2 * weight_bytes + block_bytes(d) <= vmem_budget] or [1]
    multi = [d for d in fitting if B // d >= 2]
    return max(multi) if multi else max(fitting)


def _full_spec(shape):
    return pl.BlockSpec(shape, lambda i, _s=shape: (0,) * len(_s))


def prepare_ian_weights(params, num_heads_out=OUT_HEADS):
    """Hoisted, one-time weight prep: transpose to (in,out), fold the q-scaling
    into Wq/bq, and stack per-layer tensors so the kernel sees 6 weight
    operands instead of ~50 small ones."""
    pe_w, pe_vec, se_w, se_vec = [], [], [], []
    for lp in params["layers"]:
        pe, se = lp["pe"], lp["se"]
        Ep = pe["wq"].shape[0]
        scale = float(Ep) ** -0.5                      # psycho SA: num_heads == 1
        pe_w.append(jnp.stack([pe["wq"].T * scale, pe["wk"].T,
                               pe["wv"].T, pe["wo"].T]))
        pe_vec.append(jnp.stack([pe["bq"] * scale, pe["bk"], pe["bv"],
                                 pe["bo"], pe["ln_g"], pe["ln_b"]]))
        se_w.append(jnp.stack([se["wv"].T, se["wo"].T]))
        se_vec.append(jnp.stack([se["bv"], se["bo"], se["ln_g"], se["ln_b"]]))
    sa_w, sa_vec = [], []
    for sp in params["out_sa"]:
        Es = sp["wq"].shape[0]
        scale = float(Es // num_heads_out) ** -0.5
        sa_w.append(jnp.stack([sp["wq"].T * scale, sp["wk"].T,
                               sp["wv"].T, sp["wo"].T]))
        sa_vec.append(jnp.stack([sp["bq"] * scale, sp["bk"], sp["bv"], sp["bo"]]))
    return {
        "pe_w": jnp.stack(pe_w), "pe_vec": jnp.stack(pe_vec),
        "se_w": jnp.stack(se_w), "se_vec": jnp.stack(se_vec),
        "sa_w": jnp.stack(sa_w), "sa_vec": jnp.stack(sa_vec),
    }


def ian_forward(psychos, semantics, weights, *, num_heads_out=OUT_HEADS):
    B, S, Ep = psychos.shape
    Es = semantics.shape[-1]
    L = weights["pe_w"].shape[0]
    L2 = weights["sa_w"].shape[0]
    Bt = _pick_block_b(B, S, Ep, Es, L, L2)

    def act_spec(e):
        return pl.BlockSpec((Bt, S, e), lambda i: (i, 0, 0))

    M = B * S
    flops = (2 * M * (L * (4 * Ep * Ep + 2 * Es * Es) + L2 * 4 * Es * Es)
             + 2 * B * S * S * (L * (2 * Ep + Es) + L2 * 2 * Es))
    transcend = B * S * S * (L + L2 * num_heads_out) + 2 * L * B * S
    weight_bytes = sum(int(v.size) * 4 for v in weights.values())
    bytes_accessed = 4 * B * S * (Ep + 2 * Es) + weight_bytes
    cost = pl.CostEstimate(flops=int(flops), transcendentals=int(transcend),
                           bytes_accessed=int(bytes_accessed))

    kernel = functools.partial(_ian_kernel, num_layers=L, num_out=L2,
                               num_heads=num_heads_out)
    # TODO(synk): for production-sized E, cast matmul operands to bf16 on
    #             v6e/v7x (keep f32 accumulation) for MXU throughput.
    return pl.pallas_call(
        kernel,
        out_shape=jax.ShapeDtypeStruct((B, S, Es), F32),
        grid_spec=pltpu.PrefetchScalarGridSpec(
            num_scalar_prefetch=0,
            grid=(B // Bt,),
            in_specs=[
                act_spec(Ep), act_spec(Es),
                _full_spec((L, 4, Ep, Ep)), _full_spec((L, 6, Ep)),
                _full_spec((L, 2, Es, Es)), _full_spec((L, 4, Es)),
                _full_spec((L2, 4, Es, Es)), _full_spec((L2, 4, Es)),
            ],
            out_specs=act_spec(Es),
        ),
        compiler_params=pltpu.CompilerParams(
            dimension_semantics=("parallel",),
            # ~1 MiB used at toy shapes; raise if Bt/S/E grow (budget 64 MiB
            # physical on v7x, 128 MiB on v5e/v6e).
            vmem_limit_bytes=32 * 1024 * 1024),
        cost_estimate=cost,
    )(psychos, semantics,
      weights["pe_w"], weights["pe_vec"], weights["se_w"], weights["se_vec"],
      weights["sa_w"], weights["sa_vec"])


# ---------------------------------------------------------------------------
# Parameter init (mirrors the PyTorch module's initializers)
# ---------------------------------------------------------------------------
def _xavier_uniform(key, shape, gain=1.0):
    fan_out, fan_in = shape
    a = gain * math.sqrt(6.0 / (fan_in + fan_out))
    return jax.random.uniform(key, shape, F32, -a, a)


def _init_sa(key, E):
    ks = jax.random.split(key, 7)
    g = 1.0 / math.sqrt(2.0)
    bb = 1.0 / math.sqrt(E)
    u = lambda k: jax.random.uniform(k, (E,), F32, -bb, bb)
    return {
        "wq": _xavier_uniform(ks[0], (E, E), g), "bq": u(ks[1]),
        "wk": _xavier_uniform(ks[2], (E, E), g), "bk": u(ks[3]),
        "wv": _xavier_uniform(ks[4], (E, E), g), "bv": u(ks[5]),
        "wo": _xavier_uniform(ks[6], (E, E), 1.0),
        "bo": jnp.zeros((E,), F32),
        "ln_g": jnp.ones((E,), F32), "ln_b": jnp.zeros((E,), F32),
    }


def _init_se(key, E):
    ks = jax.random.split(key, 3)
    bb = 1.0 / math.sqrt(E)
    return {
        "wv": _xavier_uniform(ks[0], (E, E), 1.0 / math.sqrt(2.0)),
        "bv": jax.random.uniform(ks[1], (E,), F32, -bb, bb),
        "wo": _xavier_uniform(ks[2], (E, E), 1.0),
        "bo": jnp.zeros((E,), F32),
        "ln_g": jnp.ones((E,), F32), "ln_b": jnp.zeros((E,), F32),
    }


def init_ian_params(key, psycho_dim, semantic_dim, num_layers=4, num_out=2):
    keys = jax.random.split(key, 2 * num_layers + num_out)
    layers = [{"pe": _init_sa(keys[2 * i], psycho_dim),
               "se": _init_se(keys[2 * i + 1], semantic_dim)}
              for i in range(num_layers)]
    out_sa = [_init_sa(keys[2 * num_layers + i], semantic_dim)
              for i in range(num_out)]
    return {"layers": layers, "out_sa": out_sa}


# ---------------------------------------------------------------------------
# Pure-jnp reference (mirrors the PyTorch forward, eval mode)
# ---------------------------------------------------------------------------
def _ln_ref(x, g, b):
    mu = x.mean(-1, keepdims=True)
    var = ((x - mu) ** 2).mean(-1, keepdims=True)
    return (x - mu) / jnp.sqrt(var + LN_EPS) * g + b


def _sa_ref(x, p, num_heads, layer_norm):
    B, S, E = x.shape
    hd = E // num_heads
    scaling = float(hd) ** -0.5
    q = (x @ p["wq"].T + p["bq"]) * scaling
    k = x @ p["wk"].T + p["bk"]
    v = x @ p["wv"].T + p["bv"]
    qh = q.reshape(B, S, num_heads, hd).transpose(0, 2, 1, 3)
    kh = k.reshape(B, S, num_heads, hd).transpose(0, 2, 1, 3)
    vh = v.reshape(B, S, num_heads, hd).transpose(0, 2, 1, 3)
    s = jnp.einsum('bhqd,bhkd->bhqk', qh, kh)
    probs = jax.nn.softmax(s, axis=-1)
    attn = jnp.einsum('bhqk,bhkd->bhqd', probs, vh)
    attn = attn.transpose(0, 2, 1, 3).reshape(B, S, E)
    o = attn @ p["wo"].T + p["bo"]
    if layer_norm:
        o = _ln_ref(o, p["ln_g"], p["ln_b"])
    return x + o, probs


def _se_ref(sem, probs, p):
    v = sem @ p["wv"].T + p["bv"]
    attn = jnp.einsum('bqk,bke->bqe', probs, v)
    x = attn @ p["wo"].T + p["bo"] + sem
    return _ln_ref(x, p["ln_g"], p["ln_b"])


def ian_reference(psychos, semantics, params):
    with jax.default_matmul_precision("float32"):
        for lp in params["layers"]:
            psychos, probs = _sa_ref(psychos, lp["pe"], 1, True)
            semantics = _se_ref(semantics, probs[:, 0], lp["se"])
        x = semantics
        for sp in params["out_sa"]:
            x, _ = _sa_ref(x, sp, 12, False)
    return x


# ---------------------------------------------------------------------------
if __name__ == "__main__":
    B, S = 2, 8
    PSYCHO_DIM, SEMANTIC_DIM = 32, 96     # semantic_dim % 12 == 0 (out_net heads)

    key = jax.random.PRNGKey(0)
    kp, ks, kw = jax.random.split(key, 3)
    psychos = jax.random.normal(kp, (B, S, PSYCHO_DIM), F32)
    semantics = jax.random.normal(ks, (B, S, SEMANTIC_DIM), F32)
    params = init_ian_params(kw, PSYCHO_DIM, SEMANTIC_DIM)
    weights = prepare_ian_weights(params)          # hoisted one-time weight prep

    out = jax.jit(ian_forward)(psychos, semantics, weights)
    out = jax.block_until_ready(out)

    ref = ian_reference(psychos, semantics, params)
    assert out.shape == (B, S, SEMANTIC_DIM)
    max_diff = float(jnp.max(jnp.abs(out - ref)))
    assert jnp.allclose(out, ref, atol=1e-3, rtol=1e-3), max_diff

    print("KERNEL_OK")
</pallas_src>

<mosaic_0001>
module attributes {stable_mosaic.version = 11 : i64} {
  func.func @_ian_kernel(%arg0: i32, %arg1: memref<1x8x32xf32, #tpu.memory_space<vmem>>, %arg2: memref<1x8x96xf32, #tpu.memory_space<vmem>>, %arg3: memref<4x4x32x32xf32, #tpu.memory_space<vmem>>, %arg4: memref<4x6x32xf32, #tpu.memory_space<vmem>>, %arg5: memref<4x2x96x96xf32, #tpu.memory_space<vmem>>, %arg6: memref<4x4x96xf32, #tpu.memory_space<vmem>>, %arg7: memref<2x4x96x96xf32, #tpu.memory_space<vmem>>, %arg8: memref<2x4x96xf32, #tpu.memory_space<vmem>>, %arg9: memref<1x8x96xf32, #tpu.memory_space<vmem>>) attributes {dimension_semantics = [#tpu.dimension_semantics<parallel>], iteration_bounds = array<i64: 2>, scalar_prefetch = 0 : i64, scratch_operands = 0 : i64, tpu.core_type = #tpu.core_type<tc>, window_params = [{transform_indices = @transform_0, window_bounds = array<i64: 1, 8, 32>}, {transform_indices = @transform_1, window_bounds = array<i64: 1, 8, 96>}, {pipeline_mode = #tpu.pipeline_mode<synchronous>, transform_indices = @transform_2, window_bounds = array<i64: 4, 4, 32, 32>}, {pipeline_mode = #tpu.pipeline_mode<synchronous>, transform_indices = @transform_3, window_bounds = array<i64: 4, 6, 32>}, {pipeline_mode = #tpu.pipeline_mode<synchronous>, transform_indices = @transform_4, window_bounds = array<i64: 4, 2, 96, 96>}, {pipeline_mode = #tpu.pipeline_mode<synchronous>, transform_indices = @transform_5, window_bounds = array<i64: 4, 4, 96>}, {pipeline_mode = #tpu.pipeline_mode<synchronous>, transform_indices = @transform_6, window_bounds = array<i64: 2, 4, 96, 96>}, {pipeline_mode = #tpu.pipeline_mode<synchronous>, transform_indices = @transform_7, window_bounds = array<i64: 2, 4, 96>}, {transform_indices = @transform_8, window_bounds = array<i64: 1, 8, 96>}]} {
    %c0 = arith.constant 0 : index
    %c0_0 = arith.constant 0 : index
    %c0_1 = arith.constant 0 : index
    %0 = vector.load %arg1[%c0, %c0_0, %c0_1] : memref<1x8x32xf32, #tpu.memory_space<vmem>>, vector<1x8x32xf32>
    %1 = vector.shape_cast %0 : vector<1x8x32xf32> to vector<8x32xf32>
    %c0_2 = arith.constant 0 : index
    %c0_3 = arith.constant 0 : index
    %c0_4 = arith.constant 0 : index
    %2 = vector.load %arg2[%c0_2, %c0_3, %c0_4] : memref<1x8x96xf32, #tpu.memory_space<vmem>>, vector<1x8x96xf32>
    %3 = vector.shape_cast %2 : vector<1x8x96xf32> to vector<8x96xf32>
    %c0_5 = arith.constant 0 : index
    %c0_6 = arith.constant 0 : index
    %c0_7 = arith.constant 0 : index
    %4 = vector.load %arg4[%c0_5, %c0_6, %c0_7] : memref<4x6x32xf32, #tpu.memory_space<vmem>>, vector<1x6x32xf32>
    %5 = vector.shape_cast %4 : vector<1x6x32xf32> to vector<6x32xf32>
    %c0_8 = arith.constant 0 : index
    %c0_9 = arith.constant 0 : index
    %c0_10 = arith.constant 0 : index
    %c0_11 = arith.constant 0 : index
    %6 = vector.load %arg3[%c0_8, %c0_9, %c0_10, %c0_11] : memref<4x4x32x32xf32, #tpu.memory_space<vmem>>, vector<1x1x32x32xf32>
    %7 = vector.shape_cast %6 : vector<1x1x32x32xf32> to vector<32x32xf32>
    %cst = arith.constant dense<0.000000e+00> : vector<8x32xf32>
    %8 = tpu.matmul %1, %7, %cst {dimension_numbers = #tpu.dot_dimension_numbers<[1], [0], [0], [1], [0, 0, 1, 1], [], []>} : vector<8x32xf32>, vector<32x32xf32>, vector<8x32xf32> -> vector<8x32xf32>
    %9 = vector.extract_strided_slice %5 {offsets = [0, 0], sizes = [1, 32], strides = [1, 1]} : vector<6x32xf32> to vector<1x32xf32>
    %10 = vector.broadcast %9 : vector<1x32xf32> to vector<8x32xf32>
    %11 = arith.addf %8, %10 : vector<8x32xf32>
    %12 = vector.shape_cast %11 : vector<8x32xf32> to vector<1x8x32xf32>
    %c0_12 = arith.constant 0 : index
    %c1 = arith.constant 1 : index
    %c0_13 = arith.constant 0 : index
    %c0_14 = arith.constant 0 : index
    %13 = vector.load %arg3[%c0_12, %c1, %c0_13, %c0_14] : memref<4x4x32x32xf32, #tpu.memory_space<vmem>>, vector<1x1x32x32xf32>
    %14 = vector.shape_cast %13 : vector<1x1x32x32xf32> to vector<32x32xf32>
    %cst_15 = arith.constant dense<0.000000e+00> : vector<8x32xf32>
    %15 = tpu.matmul %1, %14, %cst_15 {dimension_numbers = #tpu.dot_dimension_numbers<[1], [0], [0], [1], [0, 0, 1, 1], [], []>} : vector<8x32xf32>, vector<32x32xf32>, vector<8x32xf32> -> vector<8x32xf32>
    %16 = vector.extract_strided_slice %5 {offsets = [1, 0], sizes = [1, 32], strides = [1, 1]} : vector<6x32xf32> to vector<1x32xf32>
    %17 = vector.broadcast %16 : vector<1x32xf32> to vector<8x32xf32>
    %18 = arith.addf %15, %17 : vector<8x32xf32>
    %19 = vector.shape_cast %18 : vector<8x32xf32> to vector<1x8x32xf32>
    "tpu.trace_start"() <{level = 10 : i32, message = "bqe,bke->bqk"}> : () -> ()
    %cst_16 = arith.constant dense<0.000000e+00> : vector<1x8x8xf32>
    %20 = tpu.matmul %12, %19, %cst_16 {dimension_numbers = #tpu.dot_dimension_numbers<[2], [2], [1], [1], [0, 0, 0, 1, 1, 1], [0], [0]>} : vector<1x8x32xf32>, vector<1x8x32xf32>, vector<1x8x8xf32> -> vector<1x8x8xf32>
    "tpu.trace_stop"() : () -> ()
    %cst_17 = arith.constant dense<0xFF800000> : vector<1x8xf32>
    %21 = vector.multi_reduction <maximumf>, %20, %cst_17 [2] : vector<1x8x8xf32> to vector<1x8xf32>
    %22 = vector.shape_cast %21 : vector<1x8xf32> to vector<1x8x1xf32>
    %23 = vector.broadcast %22 : vector<1x8x1xf32> to vector<1x8x8xf32>
    %24 = arith.subf %20, %23 : vector<1x8x8xf32>
    %25 = math.exp %24 : vector<1x8x8xf32>
    %cst_18 = arith.constant dense<0.000000e+00> : vector<1x8xf32>
    %26 = vector.multi_reduction <add>, %25, %cst_18 [2] : vector<1x8x8xf32> to vector<1x8xf32>
    %27 = vector.shape_cast %26 : vector<1x8xf32> to vector<1x8x1xf32>
    %28 = tpu.reciprocal %27 {approx = true} : vector<1x8x1xf32> -> vector<1x8x1xf32>
    %29 = arith.mulf %27, %28 : vector<1x8x1xf32>
    %cst_19 = arith.constant 2.000000e+00 : f32
    %30 = vector.broadcast %cst_19 : f32 to vector<1x8x1xf32>
    %31 = arith.subf %30, %29 : vector<1x8x1xf32>
    %32 = arith.mulf %28, %31 : vector<1x8x1xf32>
    %33 = vector.broadcast %32 : vector<1x8x1xf32> to vector<1x8x8xf32>
    %34 = arith.mulf %25, %33 : vector<1x8x8xf32>
    %c0_20 = arith.constant 0 : index
    %c2 = arith.constant 2 : index
    %c0_21 = arith.constant 0 : index
    %c0_22 = arith.constant 0 : index
    %35 = vector.load %arg3[%c0_20, %c2, %c0_21, %c0_22] : memref<4x4x32x32xf32, #tpu.memory_space<vmem>>, vector<1x1x32x32xf32>
    %36 = vector.shape_cast %35 : vector<1x1x32x32xf32> to vector<32x32xf32>
    %cst_23 = arith.constant dense<0.000000e+00> : vector<8x32xf32>
    %37 = tpu.matmul %1, %36, %cst_23 {dimension_numbers = #tpu.dot_dimension_numbers<[1], [0], [0], [1], [0, 0, 1, 1], [], []>} : vector<8x32xf32>, vector<32x32xf32>, vector<8x32xf32> -> vector<8x32xf32>
    %38 = vector.extract_strided_slice %5 {offsets = [2, 0], sizes = [1, 32], strides = [1, 1]} : vector<6x32xf32> to vector<1x32xf32>
    %39 = vector.broadcast %38 : vector<1x32xf32> to vector<8x32xf32>
    %40 = arith.addf %37, %39 : vector<8x32xf32>
    %41 = vector.shape_cast %40 : vector<8x32xf32> to vector<1x8x32xf32>
    "tpu.trace_start"() <{level = 10 : i32, message = "bqk,bke->bqe"}> : () -> ()
    %cst_24 = arith.constant dense<0.000000e+00> : vector<1x8x32xf32>
    %42 = tpu.matmul %34, %41, %cst_24 {dimension_numbers = #tpu.dot_dimension_numbers<[2], [1], [1], [2], [0, 0, 0, 1, 1, 2], [0], [0]>} : vector<1x8x8xf32>, vector<1x8x32xf32>, vector<1x8x32xf32> -> vector<1x8x32xf32>
    "tpu.trace_stop"() : () -> ()
    %43 = vector.shape_cast %42 : vector<1x8x32xf32> to vector<8x32xf32>
    %c0_25 = arith.constant 0 : index
    %c3 = arith.constant 3 : index
    %c0_26 = arith.constant 0 : index
    %c0_27 = arith.constant 0 : index
    %44 = vector.load %arg3[%c0_25, %c3, %c0_26, %c0_27] : memref<4x4x32x32xf32, #tpu.memory_space<vmem>>, vector<1x1x32x32xf32>
    %45 = vector.shape_cast %44 : vector<1x1x32x32xf32> to vector<32x32xf32>
    %cst_28 = arith.constant dense<0.000000e+00> : vector<8x32xf32>
    %46 = tpu.matmul %43, %45, %cst_28 {dimension_numbers = #tpu.dot_dimension_numbers<[1], [0], [0], [1], [0, 0, 1, 1], [], []>} : vector<8x32xf32>, vector<32x32xf32>, vector<8x32xf32> -> vector<8x32xf32>
    %47 = vector.extract_strided_slice %5 {offsets = [3, 0], sizes = [1, 32], strides = [1, 1]} : vector<6x32xf32> to vector<1x32xf32>
    %48 = vector.broadcast %47 : vector<1x32xf32> to vector<8x32xf32>
    %49 = arith.addf %46, %48 : vector<8x32xf32>
    %50 = vector.extract_strided_slice %5 {offsets = [4, 0], sizes = [1, 32], strides = [1, 1]} : vector<6x32xf32> to vector<1x32xf32>
    %51 = vector.extract_strided_slice %5 {offsets = [5, 0], sizes = [1, 32], strides = [1, 1]} : vector<6x32xf32> to vector<1x32xf32>
    %cst_29 = arith.constant dense<0.000000e+00> : vector<8xf32>
    %52 = vector.multi_reduction <add>, %49, %cst_29 [1] : vector<8x32xf32> to vector<8xf32>
    %53 = vector.shape_cast %52 : vector<8xf32> to vector<8x1xf32>
    %cst_30 = arith.constant 3.200000e+01 : f32
    %54 = vector.broadcast %cst_30 : f32 to vector<8x1xf32>
    %55 = arith.divf %53, %54 : vector<8x1xf32>
    %56 = vector.broadcast %55 : vector<8x1xf32> to vector<8x32xf32>
    %57 = arith.subf %49, %56 : vector<8x32xf32>
    %58 = arith.mulf %57, %57 : vector<8x32xf32>
    %cst_31 = arith.constant dense<0.000000e+00> : vector<8xf32>
    %59 = vector.multi_reduction <add>, %58, %cst_31 [1] : vector<8x32xf32> to vector<8xf32>
    %60 = vector.shape_cast %59 : vector<8xf32> to vector<8x1xf32>
    %cst_32 = arith.constant 3.200000e+01 : f32
    %61 = vector.broadcast %cst_32 : f32 to vector<8x1xf32>
    %62 = arith.divf %60, %61 : vector<8x1xf32>
    %63 = vector.broadcast %55 : vector<8x1xf32> to vector<8x32xf32>
    %64 = arith.subf %49, %63 : vector<8x32xf32>
    %cst_33 = arith.constant 9.99999974E-6 : f32
    %65 = vector.broadcast %cst_33 : f32 to vector<8x1xf32>
    %66 = arith.addf %62, %65 : vector<8x1xf32>
    %67 = math.rsqrt %66 : vector<8x1xf32>
    %68 = vector.broadcast %67 : vector<8x1xf32> to vector<8x32xf32>
    %69 = arith.mulf %64, %68 : vector<8x32xf32>
    %70 = vector.broadcast %50 : vector<1x32xf32> to vector<8x32xf32>
    %71 = arith.mulf %69, %70 : vector<8x32xf32>
    %72 = vector.broadcast %51 : vector<1x32xf32> to vector<8x32xf32>
    %73 = arith.addf %71, %72 : vector<8x32xf32>
    %74 = arith.addf %1, %73 : vector<8x32xf32>
    %c0_34 = arith.constant 0 : index
    %c0_35 = arith.constant 0 : index
    %c0_36 = arith.constant 0 : index
    %75 = vector.load %arg6[%c0_34, %c0_35, %c0_36] : memref<4x4x96xf32, #tpu.memory_space<vmem>>, vector<1x4x96xf32>
    %76 = vector.shape_cast %75 : vector<1x4x96xf32> to vector<4x96xf32>
    %c0_37 = arith.constant 0 : index
    %c0_38 = arith.constant 0 : index
    %c0_39 = arith.constant 0 : index
    %c0_40 = arith.constant 0 : index
    %77 = vector.load %arg5[%c0_37, %c0_38, %c0_39, %c0_40] : memref<4x2x96x96xf32, #tpu.memory_space<vmem>>, vector<1x1x96x96xf32>
    %78 = vector.shape_cast %77 : vector<1x1x96x96xf32> to vector<96x96xf32>
    %cst_41 = arith.constant dense<0.000000e+00> : vector<8x96xf32>
    %79 = tpu.matmul %3, %78, %cst_41 {dimension_numbers = #tpu.dot_dimension_numbers<[1], [0], [0], [1], [0, 0, 1, 1], [], []>} : vector<8x96xf32>, vector<96x96xf32>, vector<8x96xf32> -> vector<8x96xf32>
    %80 = vector.extract_strided_slice %76 {offsets = [0, 0], sizes = [1, 96], strides = [1, 1]} : vector<4x96xf32> to vector<1x96xf32>
    %81 = vector.broadcast %80 : vector<1x96xf32> to vector<8x96xf32>
    %82 = arith.addf %79, %81 : vector<8x96xf32>
    %83 = vector.shape_cast %82 : vector<8x96xf32> to vector<1x8x96xf32>
    "tpu.trace_start"() <{level = 10 : i32, message = "bqk,bke->bqe"}> : () -> ()
    %cst_42 = arith.constant dense<0.000000e+00> : vector<1x8x96xf32>
    %84 = tpu.matmul %34, %83, %cst_42 {dimension_numbers = #tpu.dot_dimension_numbers<[2], [1], [1], [2], [0, 0, 0, 1, 1, 2], [0], [0]>} : vector<1x8x8xf32>, vector<1x8x96xf32>, vector<1x8x96xf32> -> vector<1x8x96xf32>
    "tpu.trace_stop"() : () -> ()
    %85 = vector.shape_cast %84 : vector<1x8x96xf32> to vector<8x96xf32>
    %c0_43 = arith.constant 0 : index
    %c1_44 = arith.constant 1 : index
    %c0_45 = arith.constant 0 : index
    %c0_46 = arith.constant 0 : index
    %86 = vector.load %arg5[%c0_43, %c1_44, %c0_45, %c0_46] : memref<4x2x96x96xf32, #tpu.memory_space<vmem>>, vector<1x1x96x96xf32>
    %87 = vector.shape_cast %86 : vector<1x1x96x96xf32> to vector<96x96xf32>
    %cst_47 = arith.constant dense<0.000000e+00> : vector<8x96xf32>
    %88 = tpu.matmul %85, %87, %cst_47 {dimension_numbers = #tpu.dot_dimension_numbers<[1], [0], [0], [1], [0, 0, 1, 1], [], []>} : vector<8x96xf32>, vector<96x96xf32>, vector<8x96xf32> -> vector<8x96xf32>
    %89 = vector.extract_strided_slice %76 {offsets = [1, 0], sizes = [1, 96], strides = [1, 1]} : vector<4x96xf32> to vector<1x96xf32>
    %90 = vector.broadcast %89 : vector<1x96xf32> to vector<8x96xf32>
    %91 = arith.addf %88, %90 : vector<8x96xf32>
    %92 = arith.addf %91, %3 : vector<8x96xf32>
    %93 = vector.extract_strided_slice %76 {offsets = [2, 0], sizes = [1, 96], strides = [1, 1]} : vector<4x96xf32> to vector<1x96xf32>
    %94 = vector.extract_strided_slice %76 {offsets = [3, 0], sizes = [1, 96], strides = [1, 1]} : vector<4x96xf32> to vector<1x96xf32>
    %cst_48 = arith.constant dense<0.000000e+00> : vector<8xf32>
    %95 = vector.multi_reduction <add>, %92, %cst_48 [1] : vector<8x96xf32> to vector<8xf32>
    %96 = vector.shape_cast %95 : vector<8xf32> to vector<8x1xf32>
    %cst_49 = arith.constant 9.600000e+01 : f32
    %97 = vector.broadcast %cst_49 : f32 to vector<8x1xf32>
    %98 = arith.divf %96, %97 : vector<8x1xf32>
    %99 = vector.broadcast %98 : vector<8x1xf32> to vector<8x96xf32>
    %100 = arith.subf %92, %99 : vector<8x96xf32>
    %101 = arith.mulf %100, %100 : vector<8x96xf32>
    %cst_50 = arith.constant dense<0.000000e+00> : vector<8xf32>
    %102 = vector.multi_reduction <add>, %101, %cst_50 [1] : vector<8x96xf32> to vector<8xf32>
    %103 = vector.shape_cast %102 : vector<8xf32> to vector<8x1xf32>
    %cst_51 = arith.constant 9.600000e+01 : f32
    %104 = vector.broadcast %cst_51 : f32 to vector<8x1xf32>
    %105 = arith.divf %103, %104 : vector<8x1xf32>
    %106 = vector.broadcast %98 : vector<8x1xf32> to vector<8x96xf32>
    %107 = arith.subf %92, %106 : vector<8x96xf32>
    %cst_52 = arith.constant 9.99999974E-6 : f32
    %108 = vector.broadcast %cst_52 : f32 to vector<8x1xf32>
    %109 = arith.addf %105, %108 : vector<8x1xf32>
    %110 = math.rsqrt %109 : vector<8x1xf32>
    %111 = vector.broadcast %110 : vector<8x1xf32> to vector<8x96xf32>
    %112 = arith.mulf %107, %111 : vector<8x96xf32>
    %113 = vector.broadcast %93 : vector<1x96xf32> to vector<8x96xf32>
    %114 = arith.mulf %112, %113 : vector<8x96xf32>
    %115 = vector.broadcast %94 : vector<1x96xf32> to vector<8x96xf32>
    %116 = arith.addf %114, %115 : vector<8x96xf32>
    %c1_53 = arith.constant 1 : index
    %c0_54 = arith.constant 0 : index
    %c0_55 = arith.constant 0 : index
    %117 = vector.load %arg4[%c1_53, %c0_54, %c0_55] : memref<4x6x32xf32, #tpu.memory_space<vmem>>, vector<1x6x32xf32>
    %118 = vector.shape_cast %117 : vector<1x6x32xf32> to vector<6x32xf32>
    %c1_56 = arith.constant 1 : index
    %c0_57 = arith.constant 0 : index
    %c0_58 = arith.constant 0 : index
    %c0_59 = arith.constant 0 : index
    %119 = vector.load %arg3[%c1_56, %c0_57, %c0_58, %c0_59] : memref<4x4x32x32xf32, #tpu.memory_space<vmem>>, vector<1x1x32x32xf32>
    %120 = vector.shape_cast %119 : vector<1x1x32x32xf32> to vector<32x32xf32>
    %cst_60 = arith.constant dense<0.000000e+00> : vector<8x32xf32>
    %121 = tpu.matmul %74, %120, %cst_60 {dimension_numbers = #tpu.dot_dimension_numbers<[1], [0], [0], [1], [0, 0, 1, 1], [], []>} : vector<8x32xf32>, vector<32x32xf32>, vector<8x32xf32> -> vector<8x32xf32>
    %122 = vector.extract_strided_slice %118 {offsets = [0, 0], sizes = [1, 32], strides = [1, 1]} : vector<6x32xf32> to vector<1x32xf32>
    %123 = vector.broadcast %122 : vector<1x32xf32> to vector<8x32xf32>
    %124 = arith.addf %121, %123 : vector<8x32xf32>
    %125 = vector.shape_cast %124 : vector<8x32xf32> to vector<1x8x32xf32>
    %c1_61 = arith.constant 1 : index
    %c1_62 = arith.constant 1 : index
    %c0_63 = arith.constant 0 : index
    %c0_64 = arith.constant 0 : index
    %126 = vector.load %arg3[%c1_61, %c1_62, %c0_63, %c0_64] : memref<4x4x32x32xf32, #tpu.memory_space<vmem>>, vector<1x1x32x32xf32>
    %127 = vector.shape_cast %126 : vector<1x1x32x32xf32> to vector<32x32xf32>
    %cst_65 = arith.constant dense<0.000000e+00> : vector<8x32xf32>
    %128 = tpu.matmul %74, %127, %cst_65 {dimension_numbers = #tpu.dot_dimension_numbers<[1], [0], [0], [1], [0, 0, 1, 1], [], []>} : vector<8x32xf32>, vector<32x32xf32>, vector<8x32xf32> -> vector<8x32xf32>
    %129 = vector.extract_strided_slice %118 {offsets = [1, 0], sizes = [1, 32], strides = [1, 1]} : vector<6x32xf32> to vector<1x32xf32>
    %130 = vector.broadcast %129 : vector<1x32xf32> to vector<8x32xf32>
    %131 = arith.addf %128, %130 : vector<8x32xf32>
    %132 = vector.shape_cast %131 : vector<8x32xf32> to vector<1x8x32xf32>
    "tpu.trace_start"() <{level = 10 : i32, message = "bqe,bke->bqk"}> : () -> ()
    %cst_66 = arith.constant dense<0.000000e+00> : vector<1x8x8xf32>
    %133 = tpu.matmul %125, %132, %cst_66 {dimension_numbers = #tpu.dot_dimension_numbers<[2], [2], [1], [1], [0, 0, 0, 1, 1, 1], [0], [0]>} : vector<1x8x32xf32>, vector<1x8x32xf32>, vector<1x8x8xf32> -> vector<1x8x8xf32>
    "tpu.trace_stop"() : () -> ()
    %cst_67 = arith.constant dense<0xFF800000> : vector<1x8xf32>
    %134 = vector.multi_reduction <maximumf>, %133, %cst_67 [2] : vector<1x8x8xf32> to vector<1x8xf32>
    %135 = vector.shape_cast %134 : vector<1x8xf32> to vector<1x8x1xf32>
    %136 = vector.broadcast %135 : vector<1x8x1xf32> to vector<1x8x8xf32>
    %137 = arith.subf %133, %136 : vector<1x8x8xf32>
    %138 = math.exp %137 : vector<1x8x8xf32>
    %cst_68 = arith.constant dense<0.000000e+00> : vector<1x8xf32>
    %139 = vector.multi_reduction <add>, %138, %cst_68 [2] : vector<1x8x8xf32> to vector<1x8xf32>
    %140 = vector.shape_cast %139 : vector<1x8xf32> to vector<1x8x1xf32>
    %141 = tpu.reciprocal %140 {approx = true} : vector<1x8x1xf32> -> vector<1x8x1xf32>
    %142 = arith.mulf %140, %141 : vector<1x8x1xf32>
    %cst_69 = arith.constant 2.000000e+00 : f32
    %143 = vector.broadcast %cst_69 : f32 to vector<1x8x1xf32>
    %144 = arith.subf %143, %142 : vector<1x8x1xf32>
    %145 = arith.mulf %141, %144 : vector<1x8x1xf32>
    %146 = vector.broadcast %145 : vector<1x8x1xf32> to vector<1x8x8xf32>
    %147 = arith.mulf %138, %146 : vector<1x8x8xf32>
    %c1_70 = arith.constant 1 : index
    %c2_71 = arith.constant 2 : index
    %c0_72 = arith.constant 0 : index
    %c0_73 = arith.constant 0 : index
    %148 = vector.load %arg3[%c1_70, %c2_71, %c0_72, %c0_73] : memref<4x4x32x32xf32, #tpu.memory_space<vmem>>, vector<1x1x32x32xf32>
    %149 = vector.shape_cast %148 : vector<1x1x32x32xf32> to vector<32x32xf32>
    %cst_74 = arith.constant dense<0.000000e+00> : vector<8x32xf32>
    %150 = tpu.matmul %74, %149, %cst_74 {dimension_numbers = #tpu.dot_dimension_numbers<[1], [0], [0], [1], [0, 0, 1, 1], [], []>} : vector<8x32xf32>, vector<32x32xf32>, vector<8x32xf32> -> vector<8x32xf32>
    %151 = vector.extract_strided_slice %118 {offsets = [2, 0], sizes = [1, 32], strides = [1, 1]} : vector<6x32xf32> to vector<1x32xf32>
    %152 = vector.broadcast %151 : vector<1x32xf32> to vector<8x32xf32>
    %153 = arith.addf %150, %152 : vector<8x32xf32>
    %154 = vector.shape_cast %153 : vector<8x32xf32> to vector<1x8x32xf32>
    "tpu.trace_start"() <{level = 10 : i32, message = "bqk,bke->bqe"}> : () -> ()
    %cst_75 = arith.constant dense<0.000000e+00> : vector<1x8x32xf32>
    %155 = tpu.matmul %147, %154, %cst_75 {dimension_numbers = #tpu.dot_dimension_numbers<[2], [1], [1], [2], [0, 0, 0, 1, 1, 2], [0], [0]>} : vector<1x8x8xf32>, vector<1x8x32xf32>, vector<1x8x32xf32> -> vector<1x8x32xf32>
    "tpu.trace_stop"() : () -> ()
    %156 = vector.shape_cast %155 : vector<1x8x32xf32> to vector<8x32xf32>
    %c1_76 = arith.constant 1 : index
    %c3_77 = arith.constant 3 : index
    %c0_78 = arith.constant 0 : index
    %c0_79 = arith.constant 0 : index
    %157 = vector.load %arg3[%c1_76, %c3_77, %c0_78, %c0_79] : memref<4x4x32x32xf32, #tpu.memory_space<vmem>>, vector<1x1x32x32xf32>
    %158 = vector.shape_cast %157 : vector<1x1x32x32xf32> to vector<32x32xf32>
    %cst_80 = arith.constant dense<0.000000e+00> : vector<8x32xf32>
    %159 = tpu.matmul %156, %158, %cst_80 {dimension_numbers = #tpu.dot_dimension_numbers<[1], [0], [0], [1], [0, 0, 1, 1], [], []>} : vector<8x32xf32>, vector<32x32xf32>, vector<8x32xf32> -> vector<8x32xf32>
    %160 = vector.extract_strided_slice %118 {offsets = [3, 0], sizes = [1, 32], strides = [1, 1]} : vector<6x32xf32> to vector<1x32xf32>
    %161 = vector.broadcast %160 : vector<1x32xf32> to vector<8x32xf32>
    %162 = arith.addf %159, %161 : vector<8x32xf32>
    %163 = vector.extract_strided_slice %118 {offsets = [4, 0], sizes = [1, 32], strides = [1, 1]} : vector<6x32xf32> to vector<1x32xf32>
    %164 = vector.extract_strided_slice %118 {offsets = [5, 0], sizes = [1, 32], strides = [1, 1]} : vector<6x32xf32> to vector<1x32xf32>
    %cst_81 = arith.constant dense<0.000000e+00> : vector<8xf32>
    %165 = vector.multi_reduction <add>, %162, %cst_81 [1] : vector<8x32xf32> to vector<8xf32>
    %166 = vector.shape_cast %165 : vector<8xf32> to vector<8x1xf32>
    %cst_82 = arith.constant 3.200000e+01 : f32
    %167 = vector.broadcast %cst_82 : f32 to vector<8x1xf32>
    %168 = arith.divf %166, %167 : vector<8x1xf32>
    %169 = vector.broadcast %168 : vector<8x1xf32> to vector<8x32xf32>
    %170 = arith.subf %162, %169 : vector<8x32xf32>
    %171 = arith.mulf %170, %170 : vector<8x32xf32>
    %cst_83 = arith.constant dense<0.000000e+00> : vector<8xf32>
    %172 = vector.multi_reduction <add>, %171, %cst_83 [1] : vector<8x32xf32> to vector<8xf32>
    %173 = vector.shape_cast %172 : vector<8xf32> to vector<8x1xf32>
    %cst_84 = arith.constant 3.200000e+01 : f32
    %174 = vector.broadcast %cst_84 : f32 to vector<8x1xf32>
    %175 = arith.divf %173, %174 : vector<8x1xf32>
    %176 = vector.broadcast %168 : vector<8x1xf32> to vector<8x32xf32>
    %177 = arith.subf %162, %176 : vector<8x32xf32>
    %cst_85 = arith.constant 9.99999974E-6 : f32
    %178 = vector.broadcast %cst_85 : f32 to vector<8x1xf32>
    %179 = arith.addf %175, %178 : vector<8x1xf32>
    %180 = math.rsqrt %179 : vector<8x1xf32>
    %181 = vector.broadcast %180 : vector<8x1xf32> to vector<8x32xf32>
    %182 = arith.mulf %177, %181 : vector<8x32xf32>
    %183 = vector.broadcast %163 : vector<1x32xf32> to vector<8x32xf32>
    %184 = arith.mulf %182, %183 : vector<8x32xf32>
    %185 = vector.broadcast %164 : vector<1x32xf32> to vector<8x32xf32>
    %186 = arith.addf %184, %185 : vector<8x32xf32>
    %187 = arith.addf %74, %186 : vector<8x32xf32>
    %c1_86 = arith.constant 1 : index
    %c0_87 = arith.constant 0 : index
    %c0_88 = arith.constant 0 : index
    %188 = vector.load %arg6[%c1_86, %c0_87, %c0_88] : memref<4x4x96xf32, #tpu.memory_space<vmem>>, vector<1x4x96xf32>
    %189 = vector.shape_cast %188 : vector<1x4x96xf32> to vector<4x96xf32>
    %c1_89 = arith.constant 1 : index
    %c0_90 = arith.constant 0 : index
    %c0_91 = arith.constant 0 : index
    %c0_92 = arith.constant 0 : index
    %190 = vector.load %arg5[%c1_89, %c0_90, %c0_91, %c0_92] : memref<4x2x96x96xf32, #tpu.memory_space<vmem>>, vector<1x1x96x96xf32>
    %191 = vector.shape_cast %190 : vector<1x1x96x96xf32> to vector<96x96xf32>
    %cst_93 = arith.constant dense<0.000000e+00> : vector<8x96xf32>
    %192 = tpu.matmul %116, %191, %cst_93 {dimension_numbers = #tpu.dot_dimension_numbers<[1], [0], [0], [1], [0, 0, 1, 1], [], []>} : vector<8x96xf32>, vector<96x96xf32>, vector<8x96xf32> -> vector<8x96xf32>
    %193 = vector.extract_strided_slice %189 {offsets = [0, 0], sizes = [1, 96], strides = [1, 1]} : vector<4x96xf32> to vector<1x96xf32>
    %194 = vector.broadcast %193 : vector<1x96xf32> to vector<8x96xf32>
    %195 = arith.addf %192, %194 : vector<8x96xf32>
    %196 = vector.shape_cast %195 : vector<8x96xf32> to vector<1x8x96xf32>
    "tpu.trace_start"() <{level = 10 : i32, message = "bqk,bke->bqe"}> : () -> ()
    %cst_94 = arith.constant dense<0.000000e+00> : vector<1x8x96xf32>
    %197 = tpu.matmul %147, %196, %cst_94 {dimension_numbers = #tpu.dot_dimension_numbers<[2], [1], [1], [2], [0, 0, 0, 1, 1, 2], [0], [0]>} : vector<1x8x8xf32>, vector<1x8x96xf32>, vector<1x8x96xf32> -> vector<1x8x96xf32>
    "tpu.trace_stop"() : () -> ()
    %198 = vector.shape_cast %197 : vector<1x8x96xf32> to vector<8x96xf32>
    %c1_95 = arith.constant 1 : index
    %c1_96 = arith.constant 1 : index
    %c0_97 = arith.constant 0 : index
    %c0_98 = arith.constant 0 : index
    %199 = vector.load %arg5[%c1_95, %c1_96, %c0_97, %c0_98] : memref<4x2x96x96xf32, #tpu.memory_space<vmem>>, vector<1x1x96x96xf32>
    %200 = vector.shape_cast %199 : vector<1x1x96x96xf32> to vector<96x96xf32>
    %cst_99 = arith.constant dense<0.000000e+00> : vector<8x96xf32>
    %201 = tpu.matmul %198, %200, %cst_99 {dimension_numbers = #tpu.dot_dimension_numbers<[1], [0], [0], [1], [0, 0, 1, 1], [], []>} : vector<8x96xf32>, vector<96x96xf32>, vector<8x96xf32> -> vector<8x96xf32>
    %202 = vector.extract_strided_slice %189 {offsets = [1, 0], sizes = [1, 96], strides = [1, 1]} : vector<4x96xf32> to vector<1x96xf32>
    %203 = vector.broadcast %202 : vector<1x96xf32> to vector<8x96xf32>
    %204 = arith.addf %201, %203 : vector<8x96xf32>
    %205 = arith.addf %204, %116 : vector<8x96xf32>
    %206 = vector.extract_strided_slice %189 {offsets = [2, 0], sizes = [1, 96], strides = [1, 1]} : vector<4x96xf32> to vector<1x96xf32>
    %207 = vector.extract_strided_slice %189 {offsets = [3, 0], sizes = [1, 96], strides = [1, 1]} : vector<4x96xf32> to vector<1x96xf32>
    %cst_100 = arith.constant dense<0.000000e+00> : vector<8xf32>
    %208 = vector.multi_reduction <add>, %205, %cst_100 [1] : vector<8x96xf32> to vector<8xf32>
    %209 = vector.shape_cast %208 : vector<8xf32> to vector<8x1xf32>
    %cst_101 = arith.constant 9.600000e+01 : f32
    %210 = vector.broadcast %cst_101 : f32 to vector<8x1xf32>
    %211 = arith.divf %209, %210 : vector<8x1xf32>
    %212 = vector.broadcast %211 : vector<8x1xf32> to vector<8x96xf32>
    %213 = arith.subf %205, %212 : vector<8x96xf32>
    %214 = arith.mulf %213, %213 : vector<8x96xf32>
    %cst_102 = arith.constant dense<0.000000e+00> : vector<8xf32>
    %215 = vector.multi_reduction <add>, %214, %cst_102 [1] : vector<8x96xf32> to vector<8xf32>
    %216 = vector.shape_cast %215 : vector<8xf32> to vector<8x1xf32>
    %cst_103 = arith.constant 9.600000e+01 : f32
    %217 = vector.broadcast %cst_103 : f32 to vector<8x1xf32>
    %218 = arith.divf %216, %217 : vector<8x1xf32>
    %219 = vector.broadcast %211 : vector<8x1xf32> to vector<8x96xf32>
    %220 = arith.subf %205, %219 : vector<8x96xf32>
    %cst_104 = arith.constant 9.99999974E-6 : f32
    %221 = vector.broadcast %cst_104 : f32 to vector<8x1xf32>
    %222 = arith.addf %218, %221 : vector<8x1xf32>
    %223 = math.rsqrt %222 : vector<8x1xf32>
    %224 = vector.broadcast %223 : vector<8x1xf32> to vector<8x96xf32>
    %225 = arith.mulf %220, %224 : vector<8x96xf32>
    %226 = vector.broadcast %206 : vector<1x96xf32> to vector<8x96xf32>
    %227 = arith.mulf %225, %226 : vector<8x96xf32>
    %228 = vector.broadcast %207 : vector<1x96xf32> to vector<8x96xf32>
    %229 = arith.addf %227, %228 : vector<8x96xf32>
    %c2_105 = arith.constant 2 : index
    %c0_106 = arith.constant 0 : index
    %c0_107 = arith.constant 0 : index
    %230 = vector.load %arg4[%c2_105, %c0_106, %c0_107] : memref<4x6x32xf32, #tpu.memory_space<vmem>>, vector<1x6x32xf32>
    %231 = vector.shape_cast %230 : vector<1x6x32xf32> to vector<6x32xf32>
    %c2_108 = arith.constant 2 : index
    %c0_109 = arith.constant 0 : index
    %c0_110 = arith.constant 0 : index
    %c0_111 = arith.constant 0 : index
    %232 = vector.load %arg3[%c2_108, %c0_109, %c0_110, %c0_111] : memref<4x4x32x32xf32, #tpu.memory_space<vmem>>, vector<1x1x32x32xf32>
    %233 = vector.shape_cast %232 : vector<1x1x32x32xf32> to vector<32x32xf32>
    %cst_112 = arith.constant dense<0.000000e+00> : vector<8x32xf32>
    %234 = tpu.matmul %187, %233, %cst_112 {dimension_numbers = #tpu.dot_dimension_numbers<[1], [0], [0], [1], [0, 0, 1, 1], [], []>} : vector<8x32xf32>, vector<32x32xf32>, vector<8x32xf32> -> vector<8x32xf32>
    %235 = vector.extract_strided_slice %231 {offsets = [0, 0], sizes = [1, 32], strides = [1, 1]} : vector<6x32xf32> to vector<1x32xf32>
    %236 = vector.broadcast %235 : vector<1x32xf32> to vector<8x32xf32>
    %237 = arith.addf %234, %236 : vector<8x32xf32>
    %238 = vector.shape_cast %237 : vector<8x32xf32> to vector<1x8x32xf32>
    %c2_113 = arith.constant 2 : index
    %c1_114 = arith.constant 1 : index
    %c0_115 = arith.constant 0 : index
    %c0_116 = arith.constant 0 : index
    %239 = vector.load %arg3[%c2_113, %c1_114, %c0_115, %c0_116] : memref<4x4x32x32xf32, #tpu.memory_space<vmem>>, vector<1x1x32x32xf32>
    %240 = vector.shape_cast %239 : vector<1x1x32x32xf32> to vector<32x32xf32>
    %cst_117 = arith.constant dense<0.000000e+00> : vector<8x32xf32>
    %241 = tpu.matmul %187, %240, %cst_117 {dimension_numbers = #tpu.dot_dimension_numbers<[1], [0], [0], [1], [0, 0, 1, 1], [], []>} : vector<8x32xf32>, vector<32x32xf32>, vector<8x32xf32> -> vector<8x32xf32>
    %242 = vector.extract_strided_slice %231 {offsets = [1, 0], sizes = [1, 32], strides = [1, 1]} : vector<6x32xf32> to vector<1x32xf32>
    %243 = vector.broadcast %242 : vector<1x32xf32> to vector<8x32xf32>
    %244 = arith.addf %241, %243 : vector<8x32xf32>
    %245 = vector.shape_cast %244 : vector<8x32xf32> to vector<1x8x32xf32>
    "tpu.trace_start"() <{level = 10 : i32, message = "bqe,bke->bqk"}> : () -> ()
    %cst_118 = arith.constant dense<0.000000e+00> : vector<1x8x8xf32>
    %246 = tpu.matmul %238, %245, %cst_118 {dimension_numbers = #tpu.dot_dimension_numbers<[2], [2], [1], [1], [0, 0, 0, 1, 1, 1], [0], [0]>} : vector<1x8x32xf32>, vector<1x8x32xf32>, vector<1x8x8xf32> -> vector<1x8x8xf32>
    "tpu.trace_stop"() : () -> ()
    %cst_119 = arith.constant dense<0xFF800000> : vector<1x8xf32>
    %247 = vector.multi_reduction <maximumf>, %246, %cst_119 [2] : vector<1x8x8xf32> to vector<1x8xf32>
    %248 = vector.shape_cast %247 : vector<1x8xf32> to vector<1x8x1xf32>
    %249 = vector.broadcast %248 : vector<1x8x1xf32> to vector<1x8x8xf32>
    %250 = arith.subf %246, %249 : vector<1x8x8xf32>
    %251 = math.exp %250 : vector<1x8x8xf32>
    %cst_120 = arith.constant dense<0.000000e+00> : vector<1x8xf32>
    %252 = vector.multi_reduction <add>, %251, %cst_120 [2] : vector<1x8x8xf32> to vector<1x8xf32>
    %253 = vector.shape_cast %252 : vector<1x8xf32> to vector<1x8x1xf32>
    %254 = tpu.reciprocal %253 {approx = true} : vector<1x8x1xf32> -> vector<1x8x1xf32>
    %255 = arith.mulf %253, %254 : vector<1x8x1xf32>
    %cst_121 = arith.constant 2.000000e+00 : f32
    %256 = vector.broadcast %cst_121 : f32 to vector<1x8x1xf32>
    %257 = arith.subf %256, %255 : vector<1x8x1xf32>
    %258 = arith.mulf %254, %257 : vector<1x8x1xf32>
    %259 = vector.broadcast %258 : vector<1x8x1xf32> to vector<1x8x8xf32>
    %260 = arith.mulf %251, %259 : vector<1x8x8xf32>
    %c2_122 = arith.constant 2 : index
    %c2_123 = arith.constant 2 : index
    %c0_124 = arith.constant 0 : index
    %c0_125 = arith.constant 0 : index
    %261 = vector.load %arg3[%c2_122, %c2_123, %c0_124, %c0_125] : memref<4x4x32x32xf32, #tpu.memory_space<vmem>>, vector<1x1x32x32xf32>
    %262 = vector.shape_cast %261 : vector<1x1x32x32xf32> to vector<32x32xf32>
    %cst_126 = arith.constant dense<0.000000e+00> : vector<8x32xf32>
    %263 = tpu.matmul %187, %262, %cst_126 {dimension_numbers = #tpu.dot_dimension_numbers<[1], [0], [0], [1], [0, 0, 1, 1], [], []>} : vector<8x32xf32>, vector<32x32xf32>, vector<8x32xf32> -> vector<8x32xf32>
    %264 = vector.extract_strided_slice %231 {offsets = [2, 0], sizes = [1, 32], strides = [1, 1]} : vector<6x32xf32> to vector<1x32xf32>
    %265 = vector.broadcast %264 : vector<1x32xf32> to vector<8x32xf32>
    %266 = arith.addf %263, %265 : vector<8x32xf32>
    %267 = vector.shape_cast %266 : vector<8x32xf32> to vector<1x8x32xf32>
    "tpu.trace_start"() <{level = 10 : i32, message = "bqk,bke->bqe"}> : () -> ()
    %cst_127 = arith.constant dense<0.000000e+00> : vector<1x8x32xf32>
    %268 = tpu.matmul %260, %267, %cst_127 {dimension_numbers = #tpu.dot_dimension_numbers<[2], [1], [1], [2], [0, 0, 0, 1, 1, 2], [0], [0]>} : vector<1x8x8xf32>, vector<1x8x32xf32>, vector<1x8x32xf32> -> vector<1x8x32xf32>
    "tpu.trace_stop"() : () -> ()
    %269 = vector.shape_cast %268 : vector<1x8x32xf32> to vector<8x32xf32>
    %c2_128 = arith.constant 2 : index
    %c3_129 = arith.constant 3 : index
    %c0_130 = arith.constant 0 : index
    %c0_131 = arith.constant 0 : index
    %270 = vector.load %arg3[%c2_128, %c3_129, %c0_130, %c0_131] : memref<4x4x32x32xf32, #tpu.memory_space<vmem>>, vector<1x1x32x32xf32>
    %271 = vector.shape_cast %270 : vector<1x1x32x32xf32> to vector<32x32xf32>
    %cst_132 = arith.constant dense<0.000000e+00> : vector<8x32xf32>
    %272 = tpu.matmul %269, %271, %cst_132 {dimension_numbers = #tpu.dot_dimension_numbers<[1], [0], [0], [1], [0, 0, 1, 1], [], []>} : vector<8x32xf32>, vector<32x32xf32>, vector<8x32xf32> -> vector<8x32xf32>
    %273 = vector.extract_strided_slice %231 {offsets = [3, 0], sizes = [1, 32], strides = [1, 1]} : vector<6x32xf32> to vector<1x32xf32>
    %274 = vector.broadcast %273 : vector<1x32xf32> to vector<8x32xf32>
    %275 = arith.addf %272, %274 : vector<8x32xf32>
    %276 = vector.extract_strided_slice %231 {offsets = [4, 0], sizes = [1, 32], strides = [1, 1]} : vector<6x32xf32> to vector<1x32xf32>
    %277 = vector.extract_strided_slice %231 {offsets = [5, 0], sizes = [1, 32], strides = [1, 1]} : vector<6x32xf32> to vector<1x32xf32>
    %cst_133 = arith.constant dense<0.000000e+00> : vector<8xf32>
    %278 = vector.multi_reduction <add>, %275, %cst_133 [1] : vector<8x32xf32> to vector<8xf32>
    %279 = vector.shape_cast %278 : vector<8xf32> to vector<8x1xf32>
    %cst_134 = arith.constant 3.200000e+01 : f32
    %280 = vector.broadcast %cst_134 : f32 to vector<8x1xf32>
    %281 = arith.divf %279, %280 : vector<8x1xf32>
    %282 = vector.broadcast %281 : vector<8x1xf32> to vector<8x32xf32>
    %283 = arith.subf %275, %282 : vector<8x32xf32>
    %284 = arith.mulf %283, %283 : vector<8x32xf32>
    %cst_135 = arith.constant dense<0.000000e+00> : vector<8xf32>
    %285 = vector.multi_reduction <add>, %284, %cst_135 [1] : vector<8x32xf32> to vector<8xf32>
    %286 = vector.shape_cast %285 : vector<8xf32> to vector<8x1xf32>
    %cst_136 = arith.constant 3.200000e+01 : f32
    %287 = vector.broadcast %cst_136 : f32 to vector<8x1xf32>
    %288 = arith.divf %286, %287 : vector<8x1xf32>
    %289 = vector.broadcast %281 : vector<8x1xf32> to vector<8x32xf32>
    %290 = arith.subf %275, %289 : vector<8x32xf32>
    %cst_137 = arith.constant 9.99999974E-6 : f32
    %291 = vector.broadcast %cst_137 : f32 to vector<8x1xf32>
    %292 = arith.addf %288, %291 : vector<8x1xf32>
    %293 = math.rsqrt %292 : vector<8x1xf32>
    %294 = vector.broadcast %293 : vector<8x1xf32> to vector<8x32xf32>
    %295 = arith.mulf %290, %294 : vector<8x32xf32>
    %296 = vector.broadcast %276 : vector<1x32xf32> to vector<8x32xf32>
    %297 = arith.mulf %295, %296 : vector<8x32xf32>
    %298 = vector.broadcast %277 : vector<1x32xf32> to vector<8x32xf32>
    %299 = arith.addf %297, %298 : vector<8x32xf32>
    %300 = arith.addf %187, %299 : vector<8x32xf32>
    %c2_138 = arith.constant 2 : index
    %c0_139 = arith.constant 0 : index
    %c0_140 = arith.constant 0 : index
    %301 = vector.load %arg6[%c2_138, %c0_139, %c0_140] : memref<4x4x96xf32, #tpu.memory_space<vmem>>, vector<1x4x96xf32>
    %302 = vector.shape_cast %301 : vector<1x4x96xf32> to vector<4x96xf32>
    %c2_141 = arith.constant 2 : index
    %c0_142 = arith.constant 0 : index
    %c0_143 = arith.constant 0 : index
    %c0_144 = arith.constant 0 : index
    %303 = vector.load %arg5[%c2_141, %c0_142, %c0_143, %c0_144] : memref<4x2x96x96xf32, #tpu.memory_space<vmem>>, vector<1x1x96x96xf32>
    %304 = vector.shape_cast %303 : vector<1x1x96x96xf32> to vector<96x96xf32>
    %cst_145 = arith.constant dense<0.000000e+00> : vector<8x96xf32>
    %305 = tpu.matmul %229, %304, %cst_145 {dimension_numbers = #tpu.dot_dimension_numbers<[1], [0], [0], [1], [0, 0, 1, 1], [], []>} : vector<8x96xf32>, vector<96x96xf32>, vector<8x96xf32> -> vector<8x96xf32>
    %306 = vector.extract_strided_slice %302 {offsets = [0, 0], sizes = [1, 96], strides = [1, 1]} : vector<4x96xf32> to vector<1x96xf32>
    %307 = vector.broadcast %306 : vector<1x96xf32> to vector<8x96xf32>
    %308 = arith.addf %305, %307 : vector<8x96xf32>
    %309 = vector.shape_cast %308 : vector<8x96xf32> to vector<1x8x96xf32>
    "tpu.trace_start"() <{level = 10 : i32, message = "bqk,bke->bqe"}> : () -> ()
    %cst_146 = arith.constant dense<0.000000e+00> : vector<1x8x96xf32>
    %310 = tpu.matmul %260, %309, %cst_146 {dimension_numbers = #tpu.dot_dimension_numbers<[2], [1], [1], [2], [0, 0, 0, 1, 1, 2], [0], [0]>} : vector<1x8x8xf32>, vector<1x8x96xf32>, vector<1x8x96xf32> -> vector<1x8x96xf32>
    "tpu.trace_stop"() : () -> ()
    %311 = vector.shape_cast %310 : vector<1x8x96xf32> to vector<8x96xf32>
    %c2_147 = arith.constant 2 : index
    %c1_148 = arith.constant 1 : index
    %c0_149 = arith.constant 0 : index
    %c0_150 = arith.constant 0 : index
    %312 = vector.load %arg5[%c2_147, %c1_148, %c0_149, %c0_150] : memref<4x2x96x96xf32, #tpu.memory_space<vmem>>, vector<1x1x96x96xf32>
    %313 = vector.shape_cast %312 : vector<1x1x96x96xf32> to vector<96x96xf32>
    %cst_151 = arith.constant dense<0.000000e+00> : vector<8x96xf32>
    %314 = tpu.matmul %311, %313, %cst_151 {dimension_numbers = #tpu.dot_dimension_numbers<[1], [0], [0], [1], [0, 0, 1, 1], [], []>} : vector<8x96xf32>, vector<96x96xf32>, vector<8x96xf32> -> vector<8x96xf32>
    %315 = vector.extract_strided_slice %302 {offsets = [1, 0], sizes = [1, 96], strides = [1, 1]} : vector<4x96xf32> to vector<1x96xf32>
    %316 = vector.broadcast %315 : vector<1x96xf32> to vector<8x96xf32>
    %317 = arith.addf %314, %316 : vector<8x96xf32>
    %318 = arith.addf %317, %229 : vector<8x96xf32>
    %319 = vector.extract_strided_slice %302 {offsets = [2, 0], sizes = [1, 96], strides = [1, 1]} : vector<4x96xf32> to vector<1x96xf32>
    %320 = vector.extract_strided_slice %302 {offsets = [3, 0], sizes = [1, 96], strides = [1, 1]} : vector<4x96xf32> to vector<1x96xf32>
    %cst_152 = arith.constant dense<0.000000e+00> : vector<8xf32>
    %321 = vector.multi_reduction <add>, %318, %cst_152 [1] : vector<8x96xf32> to vector<8xf32>
    %322 = vector.shape_cast %321 : vector<8xf32> to vector<8x1xf32>
    %cst_153 = arith.constant 9.600000e+01 : f32
    %323 = vector.broadcast %cst_153 : f32 to vector<8x1xf32>
    %324 = arith.divf %322, %323 : vector<8x1xf32>
    %325 = vector.broadcast %324 : vector<8x1xf32> to vector<8x96xf32>
    %326 = arith.subf %318, %325 : vector<8x96xf32>
    %327 = arith.mulf %326, %326 : vector<8x96xf32>
    %cst_154 = arith.constant dense<0.000000e+00> : vector<8xf32>
    %328 = vector.multi_reduction <add>, %327, %cst_154 [1] : vector<8x96xf32> to vector<8xf32>
    %329 = vector.shape_cast %328 : vector<8xf32> to vector<8x1xf32>
    %cst_155 = arith.constant 9.600000e+01 : f32
    %330 = vector.broadcast %cst_155 : f32 to vector<8x1xf32>
    %331 = arith.divf %329, %330 : vector<8x1xf32>
    %332 = vector.broadcast %324 : vector<8x1xf32> to vector<8x96xf32>
    %333 = arith.subf %318, %332 : vector<8x96xf32>
    %cst_156 = arith.constant 9.99999974E-6 : f32
    %334 = vector.broadcast %cst_156 : f32 to vector<8x1xf32>
    %335 = arith.addf %331, %334 : vector<8x1xf32>
    %336 = math.rsqrt %335 : vector<8x1xf32>
    %337 = vector.broadcast %336 : vector<8x1xf32> to vector<8x96xf32>
    %338 = arith.mulf %333, %337 : vector<8x96xf32>
    %339 = vector.broadcast %319 : vector<1x96xf32> to vector<8x96xf32>
    %340 = arith.mulf %338, %339 : vector<8x96xf32>
    %341 = vector.broadcast %320 : vector<1x96xf32> to vector<8x96xf32>
    %342 = arith.addf %340, %341 : vector<8x96xf32>
    %c3_157 = arith.constant 3 : index
    %c0_158 = arith.constant 0 : index
    %c0_159 = arith.constant 0 : index
    %343 = vector.load %arg4[%c3_157, %c0_158, %c0_159] : memref<4x6x32xf32, #tpu.memory_space<vmem>>, vector<1x6x32xf32>
    %344 = vector.shape_cast %343 : vector<1x6x32xf32> to vector<6x32xf32>
    %c3_160 = arith.constant 3 : index
    %c0_161 = arith.constant 0 : index
    %c0_162 = arith.constant 0 : index
    %c0_163 = arith.constant 0 : index
    %345 = vector.load %arg3[%c3_160, %c0_161, %c0_162, %c0_163] : memref<4x4x32x32xf32, #tpu.memory_space<vmem>>, vector<1x1x32x32xf32>
    %346 = vector.shape_cast %345 : vector<1x1x32x32xf32> to vector<32x32xf32>
    %cst_164 = arith.constant dense<0.000000e+00> : vector<8x32xf32>
    %347 = tpu.matmul %300, %346, %cst_164 {dimension_numbers = #tpu.dot_dimension_numbers<[1], [0], [0], [1], [0, 0, 1, 1], [], []>} : vector<8x32xf32>, vector<32x32xf32>, vector<8x32xf32> -> vector<8x32xf32>
    %348 = vector.extract_strided_slice %344 {offsets = [0, 0], sizes = [1, 32], strides = [1, 1]} : vector<6x32xf32> to vector<1x32xf32>
    %349 = vector.broadcast %348 : vector<1x32xf32> to vector<8x32xf32>
    %350 = arith.addf %347, %349 : vector<8x32xf32>
    %351 = vector.shape_cast %350 : vector<8x32xf32> to vector<1x8x32xf32>
    %c3_165 = arith.constant 3 : index
    %c1_166 = arith.constant 1 : index
    %c0_167 = arith.constant 0 : index
    %c0_168 = arith.constant 0 : index
    %352 = vector.load %arg3[%c3_165, %c1_166, %c0_167, %c0_168] : memref<4x4x32x32xf32, #tpu.memory_space<vmem>>, vector<1x1x32x32xf32>
    %353 = vector.shape_cast %352 : vector<1x1x32x32xf32> to vector<32x32xf32>
    %cst_169 = arith.constant dense<0.000000e+00> : vector<8x32xf32>
    %354 = tpu.matmul %300, %353, %cst_169 {dimension_numbers = #tpu.dot_dimension_numbers<[1], [0], [0], [1], [0, 0, 1, 1], [], []>} : vector<8x32xf32>, vector<32x32xf32>, vector<8x32xf32> -> vector<8x32xf32>
    %355 = vector.extract_strided_slice %344 {offsets = [1, 0], sizes = [1, 32], strides = [1, 1]} : vector<6x32xf32> to vector<1x32xf32>
    %356 = vector.broadcast %355 : vector<1x32xf32> to vector<8x32xf32>
    %357 = arith.addf %354, %356 : vector<8x32xf32>
    %358 = vector.shape_cast %357 : vector<8x32xf32> to vector<1x8x32xf32>
    "tpu.trace_start"() <{level = 10 : i32, message = "bqe,bke->bqk"}> : () -> ()
    %cst_170 = arith.constant dense<0.000000e+00> : vector<1x8x8xf32>
    %359 = tpu.matmul %351, %358, %cst_170 {dimension_numbers = #tpu.dot_dimension_numbers<[2], [2], [1], [1], [0, 0, 0, 1, 1, 1], [0], [0]>} : vector<1x8x32xf32>, vector<1x8x32xf32>, vector<1x8x8xf32> -> vector<1x8x8xf32>
    "tpu.trace_stop"() : () -> ()
    %cst_171 = arith.constant dense<0xFF800000> : vector<1x8xf32>
    %360 = vector.multi_reduction <maximumf>, %359, %cst_171 [2] : vector<1x8x8xf32> to vector<1x8xf32>
    %361 = vector.shape_cast %360 : vector<1x8xf32> to vector<1x8x1xf32>
    %362 = vector.broadcast %361 : vector<1x8x1xf32> to vector<1x8x8xf32>
    %363 = arith.subf %359, %362 : vector<1x8x8xf32>
    %364 = math.exp %363 : vector<1x8x8xf32>
    %cst_172 = arith.constant dense<0.000000e+00> : vector<1x8xf32>
    %365 = vector.multi_reduction <add>, %364, %cst_172 [2] : vector<1x8x8xf32> to vector<1x8xf32>
    %366 = vector.shape_cast %365 : vector<1x8xf32> to vector<1x8x1xf32>
    %367 = tpu.reciprocal %366 {approx = true} : vector<1x8x1xf32> -> vector<1x8x1xf32>
    %368 = arith.mulf %366, %367 : vector<1x8x1xf32>
    %cst_173 = arith.constant 2.000000e+00 : f32
    %369 = vector.broadcast %cst_173 : f32 to vector<1x8x1xf32>
    %370 = arith.subf %369, %368 : vector<1x8x1xf32>
    %371 = arith.mulf %367, %370 : vector<1x8x1xf32>
    %372 = vector.broadcast %371 : vector<1x8x1xf32> to vector<1x8x8xf32>
    %373 = arith.mulf %364, %372 : vector<1x8x8xf32>
    %c3_174 = arith.constant 3 : index
    %c0_175 = arith.constant 0 : index
    %c0_176 = arith.constant 0 : index
    %374 = vector.load %arg6[%c3_174, %c0_175, %c0_176] : memref<4x4x96xf32, #tpu.memory_space<vmem>>, vector<1x4x96xf32>
    %375 = vector.shape_cast %374 : vector<1x4x96xf32> to vector<4x96xf32>
    %c3_177 = arith.constant 3 : index
    %c0_178 = arith.constant 0 : index
    %c0_179 = arith.constant 0 : index
    %c0_180 = arith.constant 0 : index
    %376 = vector.load %arg5[%c3_177, %c0_178, %c0_179, %c0_180] : memref<4x2x96x96xf32, #tpu.memory_space<vmem>>, vector<1x1x96x96xf32>
    %377 = vector.shape_cast %376 : vector<1x1x96x96xf32> to vector<96x96xf32>
    %cst_181 = arith.constant dense<0.000000e+00> : vector<8x96xf32>
    %378 = tpu.matmul %342, %377, %cst_181 {dimension_numbers = #tpu.dot_dimension_numbers<[1], [0], [0], [1], [0, 0, 1, 1], [], []>} : vector<8x96xf32>, vector<96x96xf32>, vector<8x96xf32> -> vector<8x96xf32>
    %379 = vector.extract_strided_slice %375 {offsets = [0, 0], sizes = [1, 96], strides = [1, 1]} : vector<4x96xf32> to vector<1x96xf32>
    %380 = vector.broadcast %379 : vector<1x96xf32> to vector<8x96xf32>
    %381 = arith.addf %378, %380 : vector<8x96xf32>
    %382 = vector.shape_cast %381 : vector<8x96xf32> to vector<1x8x96xf32>
    "tpu.trace_start"() <{level = 10 : i32, message = "bqk,bke->bqe"}> : () -> ()
    %cst_182 = arith.constant dense<0.000000e+00> : vector<1x8x96xf32>
    %383 = tpu.matmul %373, %382, %cst_182 {dimension_numbers = #tpu.dot_dimension_numbers<[2], [1], [1], [2], [0, 0, 0, 1, 1, 2], [0], [0]>} : vector<1x8x8xf32>, vector<1x8x96xf32>, vector<1x8x96xf32> -> vector<1x8x96xf32>
    "tpu.trace_stop"() : () -> ()
    %384 = vector.shape_cast %383 : vector<1x8x96xf32> to vector<8x96xf32>
    %c3_183 = arith.constant 3 : index
    %c1_184 = arith.constant 1 : index
    %c0_185 = arith.constant 0 : index
    %c0_186 = arith.constant 0 : index
    %385 = vector.load %arg5[%c3_183, %c1_184, %c0_185, %c0_186] : memref<4x2x96x96xf32, #tpu.memory_space<vmem>>, vector<1x1x96x96xf32>
    %386 = vector.shape_cast %385 : vector<1x1x96x96xf32> to vector<96x96xf32>
    %cst_187 = arith.constant dense<0.000000e+00> : vector<8x96xf32>
    %387 = tpu.matmul %384, %386, %cst_187 {dimension_numbers = #tpu.dot_dimension_numbers<[1], [0], [0], [1], [0, 0, 1, 1], [], []>} : vector<8x96xf32>, vector<96x96xf32>, vector<8x96xf32> -> vector<8x96xf32>
    %388 = vector.extract_strided_slice %375 {offsets = [1, 0], sizes = [1, 96], strides = [1, 1]} : vector<4x96xf32> to vector<1x96xf32>
    %389 = vector.broadcast %388 : vector<1x96xf32> to vector<8x96xf32>
    %390 = arith.addf %387, %389 : vector<8x96xf32>
    %391 = arith.addf %390, %342 : vector<8x96xf32>
    %392 = vector.extract_strided_slice %375 {offsets = [2, 0], sizes = [1, 96], strides = [1, 1]} : vector<4x96xf32> to vector<1x96xf32>
    %393 = vector.extract_strided_slice %375 {offsets = [3, 0], sizes = [1, 96], strides = [1, 1]} : vector<4x96xf32> to vector<1x96xf32>
    %cst_188 = arith.constant dense<0.000000e+00> : vector<8xf32>
    %394 = vector.multi_reduction <add>, %391, %cst_188 [1] : vector<8x96xf32> to vector<8xf32>
    %395 = vector.shape_cast %394 : vector<8xf32> to vector<8x1xf32>
    %cst_189 = arith.constant 9.600000e+01 : f32
    %396 = vector.broadcast %cst_189 : f32 to vector<8x1xf32>
    %397 = arith.divf %395, %396 : vector<8x1xf32>
    %398 = vector.broadcast %397 : vector<8x1xf32> to vector<8x96xf32>
    %399 = arith.subf %391, %398 : vector<8x96xf32>
    %400 = arith.mulf %399, %399 : vector<8x96xf32>
    %cst_190 = arith.constant dense<0.000000e+00> : vector<8xf32>
    %401 = vector.multi_reduction <add>, %400, %cst_190 [1] : vector<8x96xf32> to vector<8xf32>
    %402 = vector.shape_cast %401 : vector<8xf32> to vector<8x1xf32>
    %cst_191 = arith.constant 9.600000e+01 : f32
    %403 = vector.broadcast %cst_191 : f32 to vector<8x1xf32>
    %404 = arith.divf %402, %403 : vector<8x1xf32>
    %405 = vector.broadcast %397 : vector<8x1xf32> to vector<8x96xf32>
    %406 = arith.subf %391, %405 : vector<8x96xf32>
    %cst_192 = arith.constant 9.99999974E-6 : f32
    %407 = vector.broadcast %cst_192 : f32 to vector<8x1xf32>
    %408 = arith.addf %404, %407 : vector<8x1xf32>
    %409 = math.rsqrt %408 : vector<8x1xf32>
    %410 = vector.broadcast %409 : vector<8x1xf32> to vector<8x96xf32>
    %411 = arith.mulf %406, %410 : vector<8x96xf32>
    %412 = vector.broadcast %392 : vector<1x96xf32> to vector<8x96xf32>
    %413 = arith.mulf %411, %412 : vector<8x96xf32>
    %414 = vector.broadcast %393 : vector<1x96xf32> to vector<8x96xf32>
    %415 = arith.addf %413, %414 : vector<8x96xf32>
    %c0_193 = arith.constant 0 : index
    %c0_194 = arith.constant 0 : index
    %c0_195 = arith.constant 0 : index
    %416 = vector.load %arg8[%c0_193, %c0_194, %c0_195] : memref<2x4x96xf32, #tpu.memory_space<vmem>>, vector<1x4x96xf32>
    %417 = vector.shape_cast %416 : vector<1x4x96xf32> to vector<4x96xf32>
    %c0_196 = arith.constant 0 : index
    %c0_197 = arith.constant 0 : index
    %c0_198 = arith.constant 0 : index
    %c0_199 = arith.constant 0 : index
    %418 = vector.load %arg7[%c0_196, %c0_197, %c0_198, %c0_199] : memref<2x4x96x96xf32, #tpu.memory_space<vmem>>, vector<1x1x96x96xf32>
    %419 = vector.shape_cast %418 : vector<1x1x96x96xf32> to vector<96x96xf32>
    %cst_200 = arith.constant dense<0.000000e+00> : vector<8x96xf32>
    %420 = tpu.matmul %415, %419, %cst_200 {dimension_numbers = #tpu.dot_dimension_numbers<[1], [0], [0], [1], [0, 0, 1, 1], [], []>} : vector<8x96xf32>, vector<96x96xf32>, vector<8x96xf32> -> vector<8x96xf32>
    %421 = vector.extract_strided_slice %417 {offsets = [0, 0], sizes = [1, 96], strides = [1, 1]} : vector<4x96xf32> to vector<1x96xf32>
    %422 = vector.broadcast %421 : vector<1x96xf32> to vector<8x96xf32>
    %423 = arith.addf %420, %422 : vector<8x96xf32>
    %424 = vector.shape_cast %423 : vector<8x96xf32> to vector<1x8x96xf32>
    %c0_201 = arith.constant 0 : index
    %c1_202 = arith.constant 1 : index
    %c0_203 = arith.constant 0 : index
    %c0_204 = arith.constant 0 : index
    %425 = vector.load %arg7[%c0_201, %c1_202, %c0_203, %c0_204] : memref<2x4x96x96xf32, #tpu.memory_space<vmem>>, vector<1x1x96x96xf32>
    %426 = vector.shape_cast %425 : vector<1x1x96x96xf32> to vector<96x96xf32>
    %cst_205 = arith.constant dense<0.000000e+00> : vector<8x96xf32>
    %427 = tpu.matmul %415, %426, %cst_205 {dimension_numbers = #tpu.dot_dimension_numbers<[1], [0], [0], [1], [0, 0, 1, 1], [], []>} : vector<8x96xf32>, vector<96x96xf32>, vector<8x96xf32> -> vector<8x96xf32>
    %428 = vector.extract_strided_slice %417 {offsets = [1, 0], sizes = [1, 96], strides = [1, 1]} : vector<4x96xf32> to vector<1x96xf32>
    %429 = vector.broadcast %428 : vector<1x96xf32> to vector<8x96xf32>
    %430 = arith.addf %427, %429 : vector<8x96xf32>
    %431 = vector.shape_cast %430 : vector<8x96xf32> to vector<1x8x96xf32>
    %c0_206 = arith.constant 0 : index
    %c2_207 = arith.constant 2 : index
    %c0_208 = arith.constant 0 : index
    %c0_209 = arith.constant 0 : index
    %432 = vector.load %arg7[%c0_206, %c2_207, %c0_208, %c0_209] : memref<2x4x96x96xf32, #tpu.memory_space<vmem>>, vector<1x1x96x96xf32>
    %433 = vector.shape_cast %432 : vector<1x1x96x96xf32> to vector<96x96xf32>
    %cst_210 = arith.constant dense<0.000000e+00> : vector<8x96xf32>
    %434 = tpu.matmul %415, %433, %cst_210 {dimension_numbers = #tpu.dot_dimension_numbers<[1], [0], [0], [1], [0, 0, 1, 1], [], []>} : vector<8x96xf32>, vector<96x96xf32>, vector<8x96xf32> -> vector<8x96xf32>
    %435 = vector.extract_strided_slice %417 {offsets = [2, 0], sizes = [1, 96], strides = [1, 1]} : vector<4x96xf32> to vector<1x96xf32>
    %436 = vector.broadcast %435 : vector<1x96xf32> to vector<8x96xf32>
    %437 = arith.addf %434, %436 : vector<8x96xf32>
    %438 = vector.shape_cast %437 : vector<8x96xf32> to vector<1x8x96xf32>
    %439 = vector.extract_strided_slice %424 {offsets = [0, 0, 0], sizes = [1, 8, 8], strides = [1, 1, 1]} : vector<1x8x96xf32> to vector<1x8x8xf32>
    %440 = vector.extract_strided_slice %431 {offsets = [0, 0, 0], sizes = [1, 8, 8], strides = [1, 1, 1]} : vector<1x8x96xf32> to vector<1x8x8xf32>
    "tpu.trace_start"() <{level = 10 : i32, message = "bqd,bkd->bqk"}> : () -> ()
    %cst_211 = arith.constant dense<0.000000e+00> : vector<1x8x8xf32>
    %441 = tpu.matmul %439, %440, %cst_211 {dimension_numbers = #tpu.dot_dimension_numbers<[2], [2], [1], [1], [0, 0, 0, 1, 1, 1], [0], [0]>} : vector<1x8x8xf32>, vector<1x8x8xf32>, vector<1x8x8xf32> -> vector<1x8x8xf32>
    "tpu.trace_stop"() : () -> ()
    %cst_212 = arith.constant dense<0xFF800000> : vector<1x8xf32>
    %442 = vector.multi_reduction <maximumf>, %441, %cst_212 [2] : vector<1x8x8xf32> to vector<1x8xf32>
    %443 = vector.shape_cast %442 : vector<1x8xf32> to vector<1x8x1xf32>
    %444 = vector.broadcast %443 : vector<1x8x1xf32> to vector<1x8x8xf32>
    %445 = arith.subf %441, %444 : vector<1x8x8xf32>
    %446 = math.exp %445 : vector<1x8x8xf32>
    %cst_213 = arith.constant dense<0.000000e+00> : vector<1x8xf32>
    %447 = vector.multi_reduction <add>, %446, %cst_213 [2] : vector<1x8x8xf32> to vector<1x8xf32>
    %448 = vector.shape_cast %447 : vector<1x8xf32> to vector<1x8x1xf32>
    %449 = tpu.reciprocal %448 {approx = true} : vector<1x8x1xf32> -> vector<1x8x1xf32>
    %450 = arith.mulf %448, %449 : vector<1x8x1xf32>
    %cst_214 = arith.constant 2.000000e+00 : f32
    %451 = vector.broadcast %cst_214 : f32 to vector<1x8x1xf32>
    %452 = arith.subf %451, %450 : vector<1x8x1xf32>
    %453 = arith.mulf %449, %452 : vector<1x8x1xf32>
    %454 = vector.broadcast %453 : vector<1x8x1xf32> to vector<1x8x8xf32>
    %455 = arith.mulf %446, %454 : vector<1x8x8xf32>
    %456 = vector.extract_strided_slice %438 {offsets = [0, 0, 0], sizes = [1, 8, 8], strides = [1, 1, 1]} : vector<1x8x96xf32> to vector<1x8x8xf32>
    "tpu.trace_start"() <{level = 10 : i32, message = "bqk,bkd->bqd"}> : () -> ()
    %cst_215 = arith.constant dense<0.000000e+00> : vector<1x8x8xf32>
    %457 = tpu.matmul %455, %456, %cst_215 {dimension_numbers = #tpu.dot_dimension_numbers<[2], [1], [1], [2], [0, 0, 0, 1, 1, 2], [0], [0]>} : vector<1x8x8xf32>, vector<1x8x8xf32>, vector<1x8x8xf32> -> vector<1x8x8xf32>
    "tpu.trace_stop"() : () -> ()
    %458 = vector.extract_strided_slice %424 {offsets = [0, 0, 8], sizes = [1, 8, 8], strides = [1, 1, 1]} : vector<1x8x96xf32> to vector<1x8x8xf32>
    %459 = vector.extract_strided_slice %431 {offsets = [0, 0, 8], sizes = [1, 8, 8], strides = [1, 1, 1]} : vector<1x8x96xf32> to vector<1x8x8xf32>
    "tpu.trace_start"() <{level = 10 : i32, message = "bqd,bkd->bqk"}> : () -> ()
    %cst_216 = arith.constant dense<0.000000e+00> : vector<1x8x8xf32>
    %460 = tpu.matmul %458, %459, %cst_216 {dimension_numbers = #tpu.dot_dimension_numbers<[2], [2], [1], [1], [0, 0, 0, 1, 1, 1], [0], [0]>} : vector<1x8x8xf32>, vector<1x8x8xf32>, vector<1x8x8xf32> -> vector<1x8x8xf32>
    "tpu.trace_stop"() : () -> ()
    %cst_217 = arith.constant dense<0xFF800000> : vector<1x8xf32>
    %461 = vector.multi_reduction <maximumf>, %460, %cst_217 [2] : vector<1x8x8xf32> to vector<1x8xf32>
    %462 = vector.shape_cast %461 : vector<1x8xf32> to vector<1x8x1xf32>
    %463 = vector.broadcast %462 : vector<1x8x1xf32> to vector<1x8x8xf32>
    %464 = arith.subf %460, %463 : vector<1x8x8xf32>
    %465 = math.exp %464 : vector<1x8x8xf32>
    %cst_218 = arith.constant dense<0.000000e+00> : vector<1x8xf32>
    %466 = vector.multi_reduction <add>, %465, %cst_218 [2] : vector<1x8x8xf32> to vector<1x8xf32>
    %467 = vector.shape_cast %466 : vector<1x8xf32> to vector<1x8x1xf32>
    %468 = tpu.reciprocal %467 {approx = true} : vector<1x8x1xf32> -> vector<1x8x1xf32>
    %469 = arith.mulf %467, %468 : vector<1x8x1xf32>
    %cst_219 = arith.constant 2.000000e+00 : f32
    %470 = vector.broadcast %cst_219 : f32 to vector<1x8x1xf32>
    %471 = arith.subf %470, %469 : vector<1x8x1xf32>
    %472 = arith.mulf %468, %471 : vector<1x8x1xf32>
    %473 = vector.broadcast %472 : vector<1x8x1xf32> to vector<1x8x8xf32>
    %474 = arith.mulf %465, %473 : vector<1x8x8xf32>
    %475 = vector.extract_strided_slice %438 {offsets = [0, 0, 8], sizes = [1, 8, 8], strides = [1, 1, 1]} : vector<1x8x96xf32> to vector<1x8x8xf32>
    "tpu.trace_start"() <{level = 10 : i32, message = "bqk,bkd->bqd"}> : () -> ()
    %cst_220 = arith.constant dense<0.000000e+00> : vector<1x8x8xf32>
    %476 = tpu.matmul %474, %475, %cst_220 {dimension_numbers = #tpu.dot_dimension_numbers<[2], [1], [1], [2], [0, 0, 0, 1, 1, 2], [0], [0]>} : vector<1x8x8xf32>, vector<1x8x8xf32>, vector<1x8x8xf32> -> vector<1x8x8xf32>
    "tpu.trace_stop"() : () -> ()
    %477 = vector.extract_strided_slice %424 {offsets = [0, 0, 16], sizes = [1, 8, 8], strides = [1, 1, 1]} : vector<1x8x96xf32> to vector<1x8x8xf32>
    %478 = vector.extract_strided_slice %431 {offsets = [0, 0, 16], sizes = [1, 8, 8], strides = [1, 1, 1]} : vector<1x8x96xf32> to vector<1x8x8xf32>
    "tpu.trace_start"() <{level = 10 : i32, message = "bqd,bkd->bqk"}> : () -> ()
    %cst_221 = arith.constant dense<0.000000e+00> : vector<1x8x8xf32>
    %479 = tpu.matmul %477, %478, %cst_221 {dimension_numbers = #tpu.dot_dimension_numbers<[2], [2], [1], [1], [0, 0, 0, 1, 1, 1], [0], [0]>} : vector<1x8x8xf32>, vector<1x8x8xf32>, vector<1x8x8xf32> -> vector<1x8x8xf32>
    "tpu.trace_stop"() : () -> ()
    %cst_222 = arith.constant dense<0xFF800000> : vector<1x8xf32>
    %480 = vector.multi_reduction <maximumf>, %479, %cst_222 [2] : vector<1x8x8xf32> to vector<1x8xf32>
    %481 = vector.shape_cast %480 : vector<1x8xf32> to vector<1x8x1xf32>
    %482 = vector.broadcast %481 : vector<1x8x1xf32> to vector<1x8x8xf32>
    %483 = arith.subf %479, %482 : vector<1x8x8xf32>
    %484 = math.exp %483 : vector<1x8x8xf32>
    %cst_223 = arith.constant dense<0.000000e+00> : vector<1x8xf32>
    %485 = vector.multi_reduction <add>, %484, %cst_223 [2] : vector<1x8x8xf32> to vector<1x8xf32>
    %486 = vector.shape_cast %485 : vector<1x8xf32> to vector<1x8x1xf32>
    %487 = tpu.reciprocal %486 {approx = true} : vector<1x8x1xf32> -> vector<1x8x1xf32>
    %488 = arith.mulf %486, %487 : vector<1x8x1xf32>
    %cst_224 = arith.constant 2.000000e+00 : f32
    %489 = vector.broadcast %cst_224 : f32 to vector<1x8x1xf32>
    %490 = arith.subf %489, %488 : vector<1x8x1xf32>
    %491 = arith.mulf %487, %490 : vector<1x8x1xf32>
    %492 = vector.broadcast %491 : vector<1x8x1xf32> to vector<1x8x8xf32>
    %493 = arith.mulf %484, %492 : vector<1x8x8xf32>
    %494 = vector.extract_strided_slice %438 {offsets = [0, 0, 16], sizes = [1, 8, 8], strides = [1, 1, 1]} : vector<1x8x96xf32> to vector<1x8x8xf32>
    "tpu.trace_start"() <{level = 10 : i32, message = "bqk,bkd->bqd"}> : () -> ()
    %cst_225 = arith.constant dense<0.000000e+00> : vector<1x8x8xf32>
    %495 = tpu.matmul %493, %494, %cst_225 {dimension_numbers = #tpu.dot_dimension_numbers<[2], [1], [1], [2], [0, 0, 0, 1, 1, 2], [0], [0]>} : vector<1x8x8xf32>, vector<1x8x8xf32>, vector<1x8x8xf32> -> vector<1x8x8xf32>
    "tpu.trace_stop"() : () -> ()
    %496 = vector.extract_strided_slice %424 {offsets = [0, 0, 24], sizes = [1, 8, 8], strides = [1, 1, 1]} : vector<1x8x96xf32> to vector<1x8x8xf32>
    %497 = vector.extract_strided_slice %431 {offsets = [0, 0, 24], sizes = [1, 8, 8], strides = [1, 1, 1]} : vector<1x8x96xf32> to vector<1x8x8xf32>
    "tpu.trace_start"() <{level = 10 : i32, message = "bqd,bkd->bqk"}> : () -> ()
    %cst_226 = arith.constant dense<0.000000e+00> : vector<1x8x8xf32>
    %498 = tpu.matmul %496, %497, %cst_226 {dimension_numbers = #tpu.dot_dimension_numbers<[2], [2], [1], [1], [0, 0, 0, 1, 1, 1], [0], [0]>} : vector<1x8x8xf32>, vector<1x8x8xf32>, vector<1x8x8xf32> -> vector<1x8x8xf32>
    "tpu.trace_stop"() : () -> ()
    %cst_227 = arith.constant dense<0xFF800000> : vector<1x8xf32>
    %499 = vector.multi_reduction <maximumf>, %498, %cst_227 [2] : vector<1x8x8xf32> to vector<1x8xf32>
    %500 = vector.shape_cast %499 : vector<1x8xf32> to vector<1x8x1xf32>
    %501 = vector.broadcast %500 : vector<1x8x1xf32> to vector<1x8x8xf32>
    %502 = arith.subf %498, %501 : vector<1x8x8xf32>
    %503 = math.exp %502 : vector<1x8x8xf32>
    %cst_228 = arith.constant dense<0.000000e+00> : vector<1x8xf32>
    %504 = vector.multi_reduction <add>, %503, %cst_228 [2] : vector<1x8x8xf32> to vector<1x8xf32>
    %505 = vector.shape_cast %504 : vector<1x8xf32> to vector<1x8x1xf32>
    %506 = tpu.reciprocal %505 {approx = true} : vector<1x8x1xf32> -> vector<1x8x1xf32>
    %507 = arith.mulf %505, %506 : vector<1x8x1xf32>
    %cst_229 = arith.constant 2.000000e+00 : f32
    %508 = vector.broadcast %cst_229 : f32 to vector<1x8x1xf32>
    %509 = arith.subf %508, %507 : vector<1x8x1xf32>
    %510 = arith.mulf %506, %509 : vector<1x8x1xf32>
    %511 = vector.broadcast %510 : vector<1x8x1xf32> to vector<1x8x8xf32>
    %512 = arith.mulf %503, %511 : vector<1x8x8xf32>
    %513 = vector.extract_strided_slice %438 {offsets = [0, 0, 24], sizes = [1, 8, 8], strides = [1, 1, 1]} : vector<1x8x96xf32> to vector<1x8x8xf32>
    "tpu.trace_start"() <{level = 10 : i32, message = "bqk,bkd->bqd"}> : () -> ()
    %cst_230 = arith.constant dense<0.000000e+00> : vector<1x8x8xf32>
    %514 = tpu.matmul %512, %513, %cst_230 {dimension_numbers = #tpu.dot_dimension_numbers<[2], [1], [1], [2], [0, 0, 0, 1, 1, 2], [0], [0]>} : vector<1x8x8xf32>, vector<1x8x8xf32>, vector<1x8x8xf32> -> vector<1x8x8xf32>
    "tpu.trace_stop"() : () -> ()
    %515 = vector.extract_strided_slice %424 {offsets = [0, 0, 32], sizes = [1, 8, 8], strides = [1, 1, 1]} : vector<1x8x96xf32> to vector<1x8x8xf32>
    %516 = vector.extract_strided_slice %431 {offsets = [0, 0, 32], sizes = [1, 8, 8], strides = [1, 1, 1]} : vector<1x8x96xf32> to vector<1x8x8xf32>
    "tpu.trace_start"() <{level = 10 : i32, message = "bqd,bkd->bqk"}> : () -> ()
    %cst_231 = arith.constant dense<0.000000e+00> : vector<1x8x8xf32>
    %517 = tpu.matmul %515, %516, %cst_231 {dimension_numbers = #tpu.dot_dimension_numbers<[2], [2], [1], [1], [0, 0, 0, 1, 1, 1], [0], [0]>} : vector<1x8x8xf32>, vector<1x8x8xf32>, vector<1x8x8xf32> -> vector<1x8x8xf32>
    "tpu.trace_stop"() : () -> ()
    %cst_232 = arith.constant dense<0xFF800000> : vector<1x8xf32>
    %518 = vector.multi_reduction <maximumf>, %517, %cst_232 [2] : vector<1x8x8xf32> to vector<1x8xf32>
    %519 = vector.shape_cast %518 : vector<1x8xf32> to vector<1x8x1xf32>
    %520 = vector.broadcast %519 : vector<1x8x1xf32> to vector<1x8x8xf32>
    %521 = arith.subf %517, %520 : vector<1x8x8xf32>
    %522 = math.exp %521 : vector<1x8x8xf32>
    %cst_233 = arith.constant dense<0.000000e+00> : vector<1x8xf32>
    %523 = vector.multi_reduction <add>, %522, %cst_233 [2] : vector<1x8x8xf32> to vector<1x8xf32>
    %524 = vector.shape_cast %523 : vector<1x8xf32> to vector<1x8x1xf32>
    %525 = tpu.reciprocal %524 {approx = true} : vector<1x8x1xf32> -> vector<1x8x1xf32>
    %526 = arith.mulf %524, %525 : vector<1x8x1xf32>
    %cst_234 = arith.constant 2.000000e+00 : f32
    %527 = vector.broadcast %cst_234 : f32 to vector<1x8x1xf32>
    %528 = arith.subf %527, %526 : vector<1x8x1xf32>
    %529 = arith.mulf %525, %528 : vector<1x8x1xf32>
    %530 = vector.broadcast %529 : vector<1x8x1xf32> to vector<1x8x8xf32>
    %531 = arith.mulf %522, %530 : vector<1x8x8xf32>
    %532 = vector.extract_strided_slice %438 {offsets = [0, 0, 32], sizes = [1, 8, 8], strides = [1, 1, 1]} : vector<1x8x96xf32> to vector<1x8x8xf32>
    "tpu.trace_start"() <{level = 10 : i32, message = "bqk,bkd->bqd"}> : () -> ()
    %cst_235 = arith.constant dense<0.000000e+00> : vector<1x8x8xf32>
    %533 = tpu.matmul %531, %532, %cst_235 {dimension_numbers = #tpu.dot_dimension_numbers<[2], [1], [1], [2], [0, 0, 0, 1, 1, 2], [0], [0]>} : vector<1x8x8xf32>, vector<1x8x8xf32>, vector<1x8x8xf32> -> vector<1x8x8xf32>
    "tpu.trace_stop"() : () -> ()
    %534 = vector.extract_strided_slice %424 {offsets = [0, 0, 40], sizes = [1, 8, 8], strides = [1, 1, 1]} : vector<1x8x96xf32> to vector<1x8x8xf32>
    %535 = vector.extract_strided_slice %431 {offsets = [0, 0, 40], sizes = [1, 8, 8], strides = [1, 1, 1]} : vector<1x8x96xf32> to vector<1x8x8xf32>
    "tpu.trace_start"() <{level = 10 : i32, message = "bqd,bkd->bqk"}> : () -> ()
    %cst_236 = arith.constant dense<0.000000e+00> : vector<1x8x8xf32>
    %536 = tpu.matmul %534, %535, %cst_236 {dimension_numbers = #tpu.dot_dimension_numbers<[2], [2], [1], [1], [0, 0, 0, 1, 1, 1], [0], [0]>} : vector<1x8x8xf32>, vector<1x8x8xf32>, vector<1x8x8xf32> -> vector<1x8x8xf32>
    "tpu.trace_stop"() : () -> ()
    %cst_237 = arith.constant dense<0xFF800000> : vector<1x8xf32>
    %537 = vector.multi_reduction <maximumf>, %536, %cst_237 [2] : vector<1x8x8xf32> to vector<1x8xf32>
    %538 = vector.shape_cast %537 : vector<1x8xf32> to vector<1x8x1xf32>
    %539 = vector.broadcast %538 : vector<1x8x1xf32> to vector<1x8x8xf32>
    %540 = arith.subf %536, %539 : vector<1x8x8xf32>
    %541 = math.exp %540 : vector<1x8x8xf32>
    %cst_238 = arith.constant dense<0.000000e+00> : vector<1x8xf32>
    %542 = vector.multi_reduction <add>, %541, %cst_238 [2] : vector<1x8x8xf32> to vector<1x8xf32>
    %543 = vector.shape_cast %542 : vector<1x8xf32> to vector<1x8x1xf32>
    %544 = tpu.reciprocal %543 {approx = true} : vector<1x8x1xf32> -> vector<1x8x1xf32>
    %545 = arith.mulf %543, %544 : vector<1x8x1xf32>
    %cst_239 = arith.constant 2.000000e+00 : f32
    %546 = vector.broadcast %cst_239 : f32 to vector<1x8x1xf32>
    %547 = arith.subf %546, %545 : vector<1x8x1xf32>
    %548 = arith.mulf %544, %547 : vector<1x8x1xf32>
    %549 = vector.broadcast %548 : vector<1x8x1xf32> to vector<1x8x8xf32>
    %550 = arith.mulf %541, %549 : vector<1x8x8xf32>
    %551 = vector.extract_strided_slice %438 {offsets = [0, 0, 40], sizes = [1, 8, 8], strides = [1, 1, 1]} : vector<1x8x96xf32> to vector<1x8x8xf32>
    "tpu.trace_start"() <{level = 10 : i32, message = "bqk,bkd->bqd"}> : () -> ()
    %cst_240 = arith.constant dense<0.000000e+00> : vector<1x8x8xf32>
    %552 = tpu.matmul %550, %551, %cst_240 {dimension_numbers = #tpu.dot_dimension_numbers<[2], [1], [1], [2], [0, 0, 0, 1, 1, 2], [0], [0]>} : vector<1x8x8xf32>, vector<1x8x8xf32>, vector<1x8x8xf32> -> vector<1x8x8xf32>
    "tpu.trace_stop"() : () -> ()
    %553 = vector.extract_strided_slice %424 {offsets = [0, 0, 48], sizes = [1, 8, 8], strides = [1, 1, 1]} : vector<1x8x96xf32> to vector<1x8x8xf32>
    %554 = vector.extract_strided_slice %431 {offsets = [0, 0, 48], sizes = [1, 8, 8], strides = [1, 1, 1]} : vector<1x8x96xf32> to vector<1x8x8xf32>
    "tpu.trace_start"() <{level = 10 : i32, message = "bqd,bkd->bqk"}> : () -> ()
    %cst_241 = arith.constant dense<0.000000e+00> : vector<1x8x8xf32>
    %555 = tpu.matmul %553, %554, %cst_241 {dimension_numbers = #tpu.dot_dimension_numbers<[2], [2], [1], [1], [0, 0, 0, 1, 1, 1], [0], [0]>} : vector<1x8x8xf32>, vector<1x8x8xf32>, vector<1x8x8xf32> -> vector<1x8x8xf32>
    "tpu.trace_stop"() : () -> ()
    %cst_242 = arith.constant dense<0xFF800000> : vector<1x8xf32>
    %556 = vector.multi_reduction <maximumf>, %555, %cst_242 [2] : vector<1x8x8xf32> to vector<1x8xf32>
    %557 = vector.shape_cast %556 : vector<1x8xf32> to vector<1x8x1xf32>
    %558 = vector.broadcast %557 : vector<1x8x1xf32> to vector<1x8x8xf32>
    %559 = arith.subf %555, %558 : vector<1x8x8xf32>
    %560 = math.exp %559 : vector<1x8x8xf32>
    %cst_243 = arith.constant dense<0.000000e+00> : vector<1x8xf32>
    %561 = vector.multi_reduction <add>, %560, %cst_243 [2] : vector<1x8x8xf32> to vector<1x8xf32>
    %562 = vector.shape_cast %561 : vector<1x8xf32> to vector<1x8x1xf32>
    %563 = tpu.reciprocal %562 {approx = true} : vector<1x8x1xf32> -> vector<1x8x1xf32>
    %564 = arith.mulf %562, %563 : vector<1x8x1xf32>
    %cst_244 = arith.constant 2.000000e+00 : f32
    %565 = vector.broadcast %cst_244 : f32 to vector<1x8x1xf32>
    %566 = arith.subf %565, %564 : vector<1x8x1xf32>
    %567 = arith.mulf %563, %566 : vector<1x8x1xf32>
    %568 = vector.broadcast %567 : vector<1x8x1xf32> to vector<1x8x8xf32>
    %569 = arith.mulf %560, %568 : vector<1x8x8xf32>
    %570 = vector.extract_strided_slice %438 {offsets = [0, 0, 48], sizes = [1, 8, 8], strides = [1, 1, 1]} : vector<1x8x96xf32> to vector<1x8x8xf32>
    "tpu.trace_start"() <{level = 10 : i32, message = "bqk,bkd->bqd"}> : () -> ()
    %cst_245 = arith.constant dense<0.000000e+00> : vector<1x8x8xf32>
    %571 = tpu.matmul %569, %570, %cst_245 {dimension_numbers = #tpu.dot_dimension_numbers<[2], [1], [1], [2], [0, 0, 0, 1, 1, 2], [0], [0]>} : vector<1x8x8xf32>, vector<1x8x8xf32>, vector<1x8x8xf32> -> vector<1x8x8xf32>
    "tpu.trace_stop"() : () -> ()
    %572 = vector.extract_strided_slice %424 {offsets = [0, 0, 56], sizes = [1, 8, 8], strides = [1, 1, 1]} : vector<1x8x96xf32> to vector<1x8x8xf32>
    %573 = vector.extract_strided_slice %431 {offsets = [0, 0, 56], sizes = [1, 8, 8], strides = [1, 1, 1]} : vector<1x8x96xf32> to vector<1x8x8xf32>
    "tpu.trace_start"() <{level = 10 : i32, message = "bqd,bkd->bqk"}> : () -> ()
    %cst_246 = arith.constant dense<0.000000e+00> : vector<1x8x8xf32>
    %574 = tpu.matmul %572, %573, %cst_246 {dimension_numbers = #tpu.dot_dimension_numbers<[2], [2], [1], [1], [0, 0, 0, 1, 1, 1], [0], [0]>} : vector<1x8x8xf32>, vector<1x8x8xf32>, vector<1x8x8xf32> -> vector<1x8x8xf32>
    "tpu.trace_stop"() : () -> ()
    %cst_247 = arith.constant dense<0xFF800000> : vector<1x8xf32>
    %575 = vector.multi_reduction <maximumf>, %574, %cst_247 [2] : vector<1x8x8xf32> to vector<1x8xf32>
    %576 = vector.shape_cast %575 : vector<1x8xf32> to vector<1x8x1xf32>
    %577 = vector.broadcast %576 : vector<1x8x1xf32> to vector<1x8x8xf32>
    %578 = arith.subf %574, %577 : vector<1x8x8xf32>
    %579 = math.exp %578 : vector<1x8x8xf32>
    %cst_248 = arith.constant dense<0.000000e+00> : vector<1x8xf32>
    %580 = vector.multi_reduction <add>, %579, %cst_248 [2] : vector<1x8x8xf32> to vector<1x8xf32>
    %581 = vector.shape_cast %580 : vector<1x8xf32> to vector<1x8x1xf32>
    %582 = tpu.reciprocal %581 {approx = true} : vector<1x8x1xf32> -> vector<1x8x1xf32>
    %583 = arith.mulf %581, %582 : vector<1x8x1xf32>
    %cst_249 = arith.constant 2.000000e+00 : f32
    %584 = vector.broadcast %cst_249 : f32 to vector<1x8x1xf32>
    %585 = arith.subf %584, %583 : vector<1x8x1xf32>
    %586 = arith.mulf %582, %585 : vector<1x8x1xf32>
    %587 = vector.broadcast %586 : vector<1x8x1xf32> to vector<1x8x8xf32>
    %588 = arith.mulf %579, %587 : vector<1x8x8xf32>
    %589 = vector.extract_strided_slice %438 {offsets = [0, 0, 56], sizes = [1, 8, 8], strides = [1, 1, 1]} : vector<1x8x96xf32> to vector<1x8x8xf32>
    "tpu.trace_start"() <{level = 10 : i32, message = "bqk,bkd->bqd"}> : () -> ()
    %cst_250 = arith.constant dense<0.000000e+00> : vector<1x8x8xf32>
    %590 = tpu.matmul %588, %589, %cst_250 {dimension_numbers = #tpu.dot_dimension_numbers<[2], [1], [1], [2], [0, 0, 0, 1, 1, 2], [0], [0]>} : vector<1x8x8xf32>, vector<1x8x8xf32>, vector<1x8x8xf32> -> vector<1x8x8xf32>
    "tpu.trace_stop"() : () -> ()
    %591 = vector.extract_strided_slice %424 {offsets = [0, 0, 64], sizes = [1, 8, 8], strides = [1, 1, 1]} : vector<1x8x96xf32> to vector<1x8x8xf32>
    %592 = vector.extract_strided_slice %431 {offsets = [0, 0, 64], sizes = [1, 8, 8], strides = [1, 1, 1]} : vector<1x8x96xf32> to vector<1x8x8xf32>
    "tpu.trace_start"() <{level = 10 : i32, message = "bqd,bkd->bqk"}> : () -> ()
    %cst_251 = arith.constant dense<0.000000e+00> : vector<1x8x8xf32>
    %593 = tpu.matmul %591, %592, %cst_251 {dimension_numbers = #tpu.dot_dimension_numbers<[2], [2], [1], [1], [0, 0, 0, 1, 1, 1], [0], [0]>} : vector<1x8x8xf32>, vector<1x8x8xf32>, vector<1x8x8xf32> -> vector<1x8x8xf32>
    "tpu.trace_stop"() : () -> ()
    %cst_252 = arith.constant dense<0xFF800000> : vector<1x8xf32>
    %594 = vector.multi_reduction <maximumf>, %593, %cst_252 [2] : vector<1x8x8xf32> to vector<1x8xf32>
    %595 = vector.shape_cast %594 : vector<1x8xf32> to vector<1x8x1xf32>
    %596 = vector.broadcast %595 : vector<1x8x1xf32> to vector<1x8x8xf32>
    %597 = arith.subf %593, %596 : vector<1x8x8xf32>
    %598 = math.exp %597 : vector<1x8x8xf32>
    %cst_253 = arith.constant dense<0.000000e+00> : vector<1x8xf32>
    %599 = vector.multi_reduction <add>, %598, %cst_253 [2] : vector<1x8x8xf32> to vector<1x8xf32>
    %600 = vector.shape_cast %599 : vector<1x8xf32> to vector<1x8x1xf32>
    %601 = tpu.reciprocal %600 {approx = true} : vector<1x8x1xf32> -> vector<1x8x1xf32>
    %602 = arith.mulf %600, %601 : vector<1x8x1xf32>
    %cst_254 = arith.constant 2.000000e+00 : f32
    %603 = vector.broadcast %cst_254 : f32 to vector<1x8x1xf32>
    %604 = arith.subf %603, %602 : vector<1x8x1xf32>
    %605 = arith.mulf %601, %604 : vector<1x8x1xf32>
    %606 = vector.broadcast %605 : vector<1x8x1xf32> to vector<1x8x8xf32>
    %607 = arith.mulf %598, %606 : vector<1x8x8xf32>
    %608 = vector.extract_strided_slice %438 {offsets = [0, 0, 64], sizes = [1, 8, 8], strides = [1, 1, 1]} : vector<1x8x96xf32> to vector<1x8x8xf32>
    "tpu.trace_start"() <{level = 10 : i32, message = "bqk,bkd->bqd"}> : () -> ()
    %cst_255 = arith.constant dense<0.000000e+00> : vector<1x8x8xf32>
    %609 = tpu.matmul %607, %608, %cst_255 {dimension_numbers = #tpu.dot_dimension_numbers<[2], [1], [1], [2], [0, 0, 0, 1, 1, 2], [0], [0]>} : vector<1x8x8xf32>, vector<1x8x8xf32>, vector<1x8x8xf32> -> vector<1x8x8xf32>
    "tpu.trace_stop"() : () -> ()
    %610 = vector.extract_strided_slice %424 {offsets = [0, 0, 72], sizes = [1, 8, 8], strides = [1, 1, 1]} : vector<1x8x96xf32> to vector<1x8x8xf32>
    %611 = vector.extract_strided_slice %431 {offsets = [0, 0, 72], sizes = [1, 8, 8], strides = [1, 1, 1]} : vector<1x8x96xf32> to vector<1x8x8xf32>
    "tpu.trace_start"() <{level = 10 : i32, message = "bqd,bkd->bqk"}> : () -> ()
    %cst_256 = arith.constant dense<0.000000e+00> : vector<1x8x8xf32>
    %612 = tpu.matmul %610, %611, %cst_256 {dimension_numbers = #tpu.dot_dimension_numbers<[2], [2], [1], [1], [0, 0, 0, 1, 1, 1], [0], [0]>} : vector<1x8x8xf32>, vector<1x8x8xf32>, vector<1x8x8xf32> -> vector<1x8x8xf32>
    "tpu.trace_stop"() : () -> ()
    %cst_257 = arith.constant dense<0xFF800000> : vector<1x8xf32>
    %613 = vector.multi_reduction <maximumf>, %612, %cst_257 [2] : vector<1x8x8xf32> to vector<1x8xf32>
    %614 = vector.shape_cast %613 : vector<1x8xf32> to vector<1x8x1xf32>
    %615 = vector.broadcast %614 : vector<1x8x1xf32> to vector<1x8x8xf32>
    %616 = arith.subf %612, %615 : vector<1x8x8xf32>
    %617 = math.exp %616 : vector<1x8x8xf32>
    %cst_258 = arith.constant dense<0.000000e+00> : vector<1x8xf32>
    %618 = vector.multi_reduction <add>, %617, %cst_258 [2] : vector<1x8x8xf32> to vector<1x8xf32>
    %619 = vector.shape_cast %618 : vector<1x8xf32> to vector<1x8x1xf32>
    %620 = tpu.reciprocal %619 {approx = true} : vector<1x8x1xf32> -> vector<1x8x1xf32>
    %621 = arith.mulf %619, %620 : vector<1x8x1xf32>
    %cst_259 = arith.constant 2.000000e+00 : f32
    %622 = vector.broadcast %cst_259 : f32 to vector<1x8x1xf32>
    %623 = arith.subf %622, %621 : vector<1x8x1xf32>
    %624 = arith.mulf %620, %623 : vector<1x8x1xf32>
    %625 = vector.broadcast %624 : vector<1x8x1xf32> to vector<1x8x8xf32>
    %626 = arith.mulf %617, %625 : vector<1x8x8xf32>
    %627 = vector.extract_strided_slice %438 {offsets = [0, 0, 72], sizes = [1, 8, 8], strides = [1, 1, 1]} : vector<1x8x96xf32> to vector<1x8x8xf32>
    "tpu.trace_start"() <{level = 10 : i32, message = "bqk,bkd->bqd"}> : () -> ()
    %cst_260 = arith.constant dense<0.000000e+00> : vector<1x8x8xf32>
    %628 = tpu.matmul %626, %627, %cst_260 {dimension_numbers = #tpu.dot_dimension_numbers<[2], [1], [1], [2], [0, 0, 0, 1, 1, 2], [0], [0]>} : vector<1x8x8xf32>, vector<1x8x8xf32>, vector<1x8x8xf32> -> vector<1x8x8xf32>
    "tpu.trace_stop"() : () -> ()
    %629 = vector.extract_strided_slice %424 {offsets = [0, 0, 80], sizes = [1, 8, 8], strides = [1, 1, 1]} : vector<1x8x96xf32> to vector<1x8x8xf32>
    %630 = vector.extract_strided_slice %431 {offsets = [0, 0, 80], sizes = [1, 8, 8], strides = [1, 1, 1]} : vector<1x8x96xf32> to vector<1x8x8xf32>
    "tpu.trace_start"() <{level = 10 : i32, message = "bqd,bkd->bqk"}> : () -> ()
    %cst_261 = arith.constant dense<0.000000e+00> : vector<1x8x8xf32>
    %631 = tpu.matmul %629, %630, %cst_261 {dimension_numbers = #tpu.dot_dimension_numbers<[2], [2], [1], [1], [0, 0, 0, 1, 1, 1], [0], [0]>} : vector<1x8x8xf32>, vector<1x8x8xf32>, vector<1x8x8xf32> -> vector<1x8x8xf32>
    "tpu.trace_stop"() : () -> ()
    %cst_262 = arith.constant dense<0xFF800000> : vector<1x8xf32>
    %632 = vector.multi_reduction <maximumf>, %631, %cst_262 [2] : vector<1x8x8xf32> to vector<1x8xf32>
    %633 = vector.shape_cast %632 : vector<1x8xf32> to vector<1x8x1xf32>
    %634 = vector.broadcast %633 : vector<1x8x1xf32> to vector<1x8x8xf32>
    %635 = arith.subf %631, %634 : vector<1x8x8xf32>
    %636 = math.exp %635 : vector<1x8x8xf32>
    %cst_263 = arith.constant dense<0.000000e+00> : vector<1x8xf32>
    %637 = vector.multi_reduction <add>, %636, %cst_263 [2] : vector<1x8x8xf32> to vector<1x8xf32>
    %638 = vector.shape_cast %637 : vector<1x8xf32> to vector<1x8x1xf32>
    %639 = tpu.reciprocal %638 {approx = true} : vector<1x8x1xf32> -> vector<1x8x1xf32>
    %640 = arith.mulf %638, %639 : vector<1x8x1xf32>
    %cst_264 = arith.constant 2.000000e+00 : f32
    %641 = vector.broadcast %cst_264 : f32 to vector<1x8x1xf32>
    %642 = arith.subf %641, %640 : vector<1x8x1xf32>
    %643 = arith.mulf %639, %642 : vector<1x8x1xf32>
    %644 = vector.broadcast %643 : vector<1x8x1xf32> to vector<1x8x8xf32>
    %645 = arith.mulf %636, %644 : vector<1x8x8xf32>
    %646 = vector.extract_strided_slice %438 {offsets = [0, 0, 80], sizes = [1, 8, 8], strides = [1, 1, 1]} : vector<1x8x96xf32> to vector<1x8x8xf32>
    "tpu.trace_start"() <{level = 10 : i32, message = "bqk,bkd->bqd"}> : () -> ()
    %cst_265 = arith.constant dense<0.000000e+00> : vector<1x8x8xf32>
    %647 = tpu.matmul %645, %646, %cst_265 {dimension_numbers = #tpu.dot_dimension_numbers<[2], [1], [1], [2], [0, 0, 0, 1, 1, 2], [0], [0]>} : vector<1x8x8xf32>, vector<1x8x8xf32>, vector<1x8x8xf32> -> vector<1x8x8xf32>
    "tpu.trace_stop"() : () -> ()
    %648 = vector.extract_strided_slice %424 {offsets = [0, 0, 88], sizes = [1, 8, 8], strides = [1, 1, 1]} : vector<1x8x96xf32> to vector<1x8x8xf32>
    %649 = vector.extract_strided_slice %431 {offsets = [0, 0, 88], sizes = [1, 8, 8], strides = [1, 1, 1]} : vector<1x8x96xf32> to vector<1x8x8xf32>
    "tpu.trace_start"() <{level = 10 : i32, message = "bqd,bkd->bqk"}> : () -> ()
    %cst_266 = arith.constant dense<0.000000e+00> : vector<1x8x8xf32>
    %650 = tpu.matmul %648, %649, %cst_266 {dimension_numbers = #tpu.dot_dimension_numbers<[2], [2], [1], [1], [0, 0, 0, 1, 1, 1], [0], [0]>} : vector<1x8x8xf32>, vector<1x8x8xf32>, vector<1x8x8xf32> -> vector<1x8x8xf32>
    "tpu.trace_stop"() : () -> ()
    %cst_267 = arith.constant dense<0xFF800000> : vector<1x8xf32>
    %651 = vector.multi_reduction <maximumf>, %650, %cst_267 [2] : vector<1x8x8xf32> to vector<1x8xf32>
    %652 = vector.shape_cast %651 : vector<1x8xf32> to vector<1x8x1xf32>
    %653 = vector.broadcast %652 : vector<1x8x1xf32> to vector<1x8x8xf32>
    %654 = arith.subf %650, %653 : vector<1x8x8xf32>
    %655 = math.exp %654 : vector<1x8x8xf32>
    %cst_268 = arith.constant dense<0.000000e+00> : vector<1x8xf32>
    %656 = vector.multi_reduction <add>, %655, %cst_268 [2] : vector<1x8x8xf32> to vector<1x8xf32>
    %657 = vector.shape_cast %656 : vector<1x8xf32> to vector<1x8x1xf32>
    %658 = tpu.reciprocal %657 {approx = true} : vector<1x8x1xf32> -> vector<1x8x1xf32>
    %659 = arith.mulf %657, %658 : vector<1x8x1xf32>
    %cst_269 = arith.constant 2.000000e+00 : f32
    %660 = vector.broadcast %cst_269 : f32 to vector<1x8x1xf32>
    %661 = arith.subf %660, %659 : vector<1x8x1xf32>
    %662 = arith.mulf %658, %661 : vector<1x8x1xf32>
    %663 = vector.broadcast %662 : vector<1x8x1xf32> to vector<1x8x8xf32>
    %664 = arith.mulf %655, %663 : vector<1x8x8xf32>
    %665 = vector.extract_strided_slice %438 {offsets = [0, 0, 88], sizes = [1, 8, 8], strides = [1, 1, 1]} : vector<1x8x96xf32> to vector<1x8x8xf32>
    "tpu.trace_start"() <{level = 10 : i32, message = "bqk,bkd->bqd"}> : () -> ()
    %cst_270 = arith.constant dense<0.000000e+00> : vector<1x8x8xf32>
    %666 = tpu.matmul %664, %665, %cst_270 {dimension_numbers = #tpu.dot_dimension_numbers<[2], [1], [1], [2], [0, 0, 0, 1, 1, 2], [0], [0]>} : vector<1x8x8xf32>, vector<1x8x8xf32>, vector<1x8x8xf32> -> vector<1x8x8xf32>
    "tpu.trace_stop"() : () -> ()
    %667 = tpu.concatenate %457, %476, %495, %514, %533, %552, %571, %590, %609, %628, %647, %666 in 2 : vector<1x8x8xf32>, vector<1x8x8xf32>, vector<1x8x8xf32>, vector<1x8x8xf32>, vector<1x8x8xf32>, vector<1x8x8xf32>, vector<1x8x8xf32>, vector<1x8x8xf32>, vector<1x8x8xf32>, vector<1x8x8xf32>, vector<1x8x8xf32>, vector<1x8x8xf32> -> vector<1x8x96xf32>
    %668 = vector.shape_cast %667 : vector<1x8x96xf32> to vector<8x96xf32>
    %c0_271 = arith.constant 0 : index
    %c3_272 = arith.constant 3 : index
    %c0_273 = arith.constant 0 : index
    %c0_274 = arith.constant 0 : index
    %669 = vector.load %arg7[%c0_271, %c3_272, %c0_273, %c0_274] : memref<2x4x96x96xf32, #tpu.memory_space<vmem>>, vector<1x1x96x96xf32>
    %670 = vector.shape_cast %669 : vector<1x1x96x96xf32> to vector<96x96xf32>
    %cst_275 = arith.constant dense<0.000000e+00> : vector<8x96xf32>
    %671 = tpu.matmul %668, %670, %cst_275 {dimension_numbers = #tpu.dot_dimension_numbers<[1], [0], [0], [1], [0, 0, 1, 1], [], []>} : vector<8x96xf32>, vector<96x96xf32>, vector<8x96xf32> -> vector<8x96xf32>
    %672 = vector.extract_strided_slice %417 {offsets = [3, 0], sizes = [1, 96], strides = [1, 1]} : vector<4x96xf32> to vector<1x96xf32>
    %673 = vector.broadcast %672 : vector<1x96xf32> to vector<8x96xf32>
    %674 = arith.addf %671, %673 : vector<8x96xf32>
    %675 = arith.addf %415, %674 : vector<8x96xf32>
    %c1_276 = arith.constant 1 : index
    %c0_277 = arith.constant 0 : index
    %c0_278 = arith.constant 0 : index
    %676 = vector.load %arg8[%c1_276, %c0_277, %c0_278] : memref<2x4x96xf32, #tpu.memory_space<vmem>>, vector<1x4x96xf32>
    %677 = vector.shape_cast %676 : vector<1x4x96xf32> to vector<4x96xf32>
    %c1_279 = arith.constant 1 : index
    %c0_280 = arith.constant 0 : index
    %c0_281 = arith.constant 0 : index
    %c0_282 = arith.constant 0 : index
    %678 = vector.load %arg7[%c1_279, %c0_280, %c0_281, %c0_282] : memref<2x4x96x96xf32, #tpu.memory_space<vmem>>, vector<1x1x96x96xf32>
    %679 = vector.shape_cast %678 : vector<1x1x96x96xf32> to vector<96x96xf32>
    %cst_283 = arith.constant dense<0.000000e+00> : vector<8x96xf32>
    %680 = tpu.matmul %675, %679, %cst_283 {dimension_numbers = #tpu.dot_dimension_numbers<[1], [0], [0], [1], [0, 0, 1, 1], [], []>} : vector<8x96xf32>, vector<96x96xf32>, vector<8x96xf32> -> vector<8x96xf32>
    %681 = vector.extract_strided_slice %677 {offsets = [0, 0], sizes = [1, 96], strides = [1, 1]} : vector<4x96xf32> to vector<1x96xf32>
    %682 = vector.broadcast %681 : vector<1x96xf32> to vector<8x96xf32>
    %683 = arith.addf %680, %682 : vector<8x96xf32>
    %684 = vector.shape_cast %683 : vector<8x96xf32> to vector<1x8x96xf32>
    %c1_284 = arith.constant 1 : index
    %c1_285 = arith.constant 1 : index
    %c0_286 = arith.constant 0 : index
    %c0_287 = arith.constant 0 : index
    %685 = vector.load %arg7[%c1_284, %c1_285, %c0_286, %c0_287] : memref<2x4x96x96xf32, #tpu.memory_space<vmem>>, vector<1x1x96x96xf32>
    %686 = vector.shape_cast %685 : vector<1x1x96x96xf32> to vector<96x96xf32>
    %cst_288 = arith.constant dense<0.000000e+00> : vector<8x96xf32>
    %687 = tpu.matmul %675, %686, %cst_288 {dimension_numbers = #tpu.dot_dimension_numbers<[1], [0], [0], [1], [0, 0, 1, 1], [], []>} : vector<8x96xf32>, vector<96x96xf32>, vector<8x96xf32> -> vector<8x96xf32>
    %688 = vector.extract_strided_slice %677 {offsets = [1, 0], sizes = [1, 96], strides = [1, 1]} : vector<4x96xf32> to vector<1x96xf32>
    %689 = vector.broadcast %688 : vector<1x96xf32> to vector<8x96xf32>
    %690 = arith.addf %687, %689 : vector<8x96xf32>
    %691 = vector.shape_cast %690 : vector<8x96xf32> to vector<1x8x96xf32>
    %c1_289 = arith.constant 1 : index
    %c2_290 = arith.constant 2 : index
    %c0_291 = arith.constant 0 : index
    %c0_292 = arith.constant 0 : index
    %692 = vector.load %arg7[%c1_289, %c2_290, %c0_291, %c0_292] : memref<2x4x96x96xf32, #tpu.memory_space<vmem>>, vector<1x1x96x96xf32>
    %693 = vector.shape_cast %692 : vector<1x1x96x96xf32> to vector<96x96xf32>
    %cst_293 = arith.constant dense<0.000000e+00> : vector<8x96xf32>
    %694 = tpu.matmul %675, %693, %cst_293 {dimension_numbers = #tpu.dot_dimension_numbers<[1], [0], [0], [1], [0, 0, 1, 1], [], []>} : vector<8x96xf32>, vector<96x96xf32>, vector<8x96xf32> -> vector<8x96xf32>
    %695 = vector.extract_strided_slice %677 {offsets = [2, 0], sizes = [1, 96], strides = [1, 1]} : vector<4x96xf32> to vector<1x96xf32>
    %696 = vector.broadcast %695 : vector<1x96xf32> to vector<8x96xf32>
    %697 = arith.addf %694, %696 : vector<8x96xf32>
    %698 = vector.shape_cast %697 : vector<8x96xf32> to vector<1x8x96xf32>
    %699 = vector.extract_strided_slice %684 {offsets = [0, 0, 0], sizes = [1, 8, 8], strides = [1, 1, 1]} : vector<1x8x96xf32> to vector<1x8x8xf32>
    %700 = vector.extract_strided_slice %691 {offsets = [0, 0, 0], sizes = [1, 8, 8], strides = [1, 1, 1]} : vector<1x8x96xf32> to vector<1x8x8xf32>
    "tpu.trace_start"() <{level = 10 : i32, message = "bqd,bkd->bqk"}> : () -> ()
    %cst_294 = arith.constant dense<0.000000e+00> : vector<1x8x8xf32>
    %701 = tpu.matmul %699, %700, %cst_294 {dimension_numbers = #tpu.dot_dimension_numbers<[2], [2], [1], [1], [0, 0, 0, 1, 1, 1], [0], [0]>} : vector<1x8x8xf32>, vector<1x8x8xf32>, vector<1x8x8xf32> -> vector<1x8x8xf32>
    "tpu.trace_stop"() : () -> ()
    %cst_295 = arith.constant dense<0xFF800000> : vector<1x8xf32>
    %702 = vector.multi_reduction <maximumf>, %701, %cst_295 [2] : vector<1x8x8xf32> to vector<1x8xf32>
    %703 = vector.shape_cast %702 : vector<1x8xf32> to vector<1x8x1xf32>
    %704 = vector.broadcast %703 : vector<1x8x1xf32> to vector<1x8x8xf32>
    %705 = arith.subf %701, %704 : vector<1x8x8xf32>
    %706 = math.exp %705 : vector<1x8x8xf32>
    %cst_296 = arith.constant dense<0.000000e+00> : vector<1x8xf32>
    %707 = vector.multi_reduction <add>, %706, %cst_296 [2] : vector<1x8x8xf32> to vector<1x8xf32>
    %708 = vector.shape_cast %707 : vector<1x8xf32> to vector<1x8x1xf32>
    %709 = tpu.reciprocal %708 {approx = true} : vector<1x8x1xf32> -> vector<1x8x1xf32>
    %710 = arith.mulf %708, %709 : vector<1x8x1xf32>
    %cst_297 = arith.constant 2.000000e+00 : f32
    %711 = vector.broadcast %cst_297 : f32 to vector<1x8x1xf32>
    %712 = arith.subf %711, %710 : vector<1x8x1xf32>
    %713 = arith.mulf %709, %712 : vector<1x8x1xf32>
    %714 = vector.broadcast %713 : vector<1x8x1xf32> to vector<1x8x8xf32>
    %715 = arith.mulf %706, %714 : vector<1x8x8xf32>
    %716 = vector.extract_strided_slice %698 {offsets = [0, 0, 0], sizes = [1, 8, 8], strides = [1, 1, 1]} : vector<1x8x96xf32> to vector<1x8x8xf32>
    "tpu.trace_start"() <{level = 10 : i32, message = "bqk,bkd->bqd"}> : () -> ()
    %cst_298 = arith.constant dense<0.000000e+00> : vector<1x8x8xf32>
    %717 = tpu.matmul %715, %716, %cst_298 {dimension_numbers = #tpu.dot_dimension_numbers<[2], [1], [1], [2], [0, 0, 0, 1, 1, 2], [0], [0]>} : vector<1x8x8xf32>, vector<1x8x8xf32>, vector<1x8x8xf32> -> vector<1x8x8xf32>
    "tpu.trace_stop"() : () -> ()
    %718 = vector.extract_strided_slice %684 {offsets = [0, 0, 8], sizes = [1, 8, 8], strides = [1, 1, 1]} : vector<1x8x96xf32> to vector<1x8x8xf32>
    %719 = vector.extract_strided_slice %691 {offsets = [0, 0, 8], sizes = [1, 8, 8], strides = [1, 1, 1]} : vector<1x8x96xf32> to vector<1x8x8xf32>
    "tpu.trace_start"() <{level = 10 : i32, message = "bqd,bkd->bqk"}> : () -> ()
    %cst_299 = arith.constant dense<0.000000e+00> : vector<1x8x8xf32>
    %720 = tpu.matmul %718, %719, %cst_299 {dimension_numbers = #tpu.dot_dimension_numbers<[2], [2], [1], [1], [0, 0, 0, 1, 1, 1], [0], [0]>} : vector<1x8x8xf32>, vector<1x8x8xf32>, vector<1x8x8xf32> -> vector<1x8x8xf32>
    "tpu.trace_stop"() : () -> ()
    %cst_300 = arith.constant dense<0xFF800000> : vector<1x8xf32>
    %721 = vector.multi_reduction <maximumf>, %720, %cst_300 [2] : vector<1x8x8xf32> to vector<1x8xf32>
    %722 = vector.shape_cast %721 : vector<1x8xf32> to vector<1x8x1xf32>
    %723 = vector.broadcast %722 : vector<1x8x1xf32> to vector<1x8x8xf32>
    %724 = arith.subf %720, %723 : vector<1x8x8xf32>
    %725 = math.exp %724 : vector<1x8x8xf32>
    %cst_301 = arith.constant dense<0.000000e+00> : vector<1x8xf32>
    %726 = vector.multi_reduction <add>, %725, %cst_301 [2] : vector<1x8x8xf32> to vector<1x8xf32>
    %727 = vector.shape_cast %726 : vector<1x8xf32> to vector<1x8x1xf32>
    %728 = tpu.reciprocal %727 {approx = true} : vector<1x8x1xf32> -> vector<1x8x1xf32>
    %729 = arith.mulf %727, %728 : vector<1x8x1xf32>
    %cst_302 = arith.constant 2.000000e+00 : f32
    %730 = vector.broadcast %cst_302 : f32 to vector<1x8x1xf32>
    %731 = arith.subf %730, %729 : vector<1x8x1xf32>
    %732 = arith.mulf %728, %731 : vector<1x8x1xf32>
    %733 = vector.broadcast %732 : vector<1x8x1xf32> to vector<1x8x8xf32>
    %734 = arith.mulf %725, %733 : vector<1x8x8xf32>
    %735 = vector.extract_strided_slice %698 {offsets = [0, 0, 8], sizes = [1, 8, 8], strides = [1, 1, 1]} : vector<1x8x96xf32> to vector<1x8x8xf32>
    "tpu.trace_start"() <{level = 10 : i32, message = "bqk,bkd->bqd"}> : () -> ()
    %cst_303 = arith.constant dense<0.000000e+00> : vector<1x8x8xf32>
    %736 = tpu.matmul %734, %735, %cst_303 {dimension_numbers = #tpu.dot_dimension_numbers<[2], [1], [1], [2], [0, 0, 0, 1, 1, 2], [0], [0]>} : vector<1x8x8xf32>, vector<1x8x8xf32>, vector<1x8x8xf32> -> vector<1x8x8xf32>
    "tpu.trace_stop"() : () -> ()
    %737 = vector.extract_strided_slice %684 {offsets = [0, 0, 16], sizes = [1, 8, 8], strides = [1, 1, 1]} : vector<1x8x96xf32> to vector<1x8x8xf32>
    %738 = vector.extract_strided_slice %691 {offsets = [0, 0, 16], sizes = [1, 8, 8], strides = [1, 1, 1]} : vector<1x8x96xf32> to vector<1x8x8xf32>
    "tpu.trace_start"() <{level = 10 : i32, message = "bqd,bkd->bqk"}> : () -> ()
    %cst_304 = arith.constant dense<0.000000e+00> : vector<1x8x8xf32>
    %739 = tpu.matmul %737, %738, %cst_304 {dimension_numbers = #tpu.dot_dimension_numbers<[2], [2], [1], [1], [0, 0, 0, 1, 1, 1], [0], [0]>} : vector<1x8x8xf32>, vector<1x8x8xf32>, vector<1x8x8xf32> -> vector<1x8x8xf32>
    "tpu.trace_stop"() : () -> ()
    %cst_305 = arith.constant dense<0xFF800000> : vector<1x8xf32>
    %740 = vector.multi_reduction <maximumf>, %739, %cst_305 [2] : vector<1x8x8xf32> to vector<1x8xf32>
    %741 = vector.shape_cast %740 : vector<1x8xf32> to vector<1x8x1xf32>
    %742 = vector.broadcast %741 : vector<1x8x1xf32> to vector<1x8x8xf32>
    %743 = arith.subf %739, %742 : vector<1x8x8xf32>
    %744 = math.exp %743 : vector<1x8x8xf32>
    %cst_306 = arith.constant dense<0.000000e+00> : vector<1x8xf32>
    %745 = vector.multi_reduction <add>, %744, %cst_306 [2] : vector<1x8x8xf32> to vector<1x8xf32>
    %746 = vector.shape_cast %745 : vector<1x8xf32> to vector<1x8x1xf32>
    %747 = tpu.reciprocal %746 {approx = true} : vector<1x8x1xf32> -> vector<1x8x1xf32>
    %748 = arith.mulf %746, %747 : vector<1x8x1xf32>
    %cst_307 = arith.constant 2.000000e+00 : f32
    %749 = vector.broadcast %cst_307 : f32 to vector<1x8x1xf32>
    %750 = arith.subf %749, %748 : vector<1x8x1xf32>
    %751 = arith.mulf %747, %750 : vector<1x8x1xf32>
    %752 = vector.broadcast %751 : vector<1x8x1xf32> to vector<1x8x8xf32>
    %753 = arith.mulf %744, %752 : vector<1x8x8xf32>
    %754 = vector.extract_strided_slice %698 {offsets = [0, 0, 16], sizes = [1, 8, 8], strides = [1, 1, 1]} : vector<1x8x96xf32> to vector<1x8x8xf32>
    "tpu.trace_start"() <{level = 10 : i32, message = "bqk,bkd->bqd"}> : () -> ()
    %cst_308 = arith.constant dense<0.000000e+00> : vector<1x8x8xf32>
    %755 = tpu.matmul %753, %754, %cst_308 {dimension_numbers = #tpu.dot_dimension_numbers<[2], [1], [1], [2], [0, 0, 0, 1, 1, 2], [0], [0]>} : vector<1x8x8xf32>, vector<1x8x8xf32>, vector<1x8x8xf32> -> vector<1x8x8xf32>
    "tpu.trace_stop"() : () -> ()
    %756 = vector.extract_strided_slice %684 {offsets = [0, 0, 24], sizes = [1, 8, 8], strides = [1, 1, 1]} : vector<1x8x96xf32> to vector<1x8x8xf32>
    %757 = vector.extract_strided_slice %691 {offsets = [0, 0, 24], sizes = [1, 8, 8], strides = [1, 1, 1]} : vector<1x8x96xf32> to vector<1x8x8xf32>
    "tpu.trace_start"() <{level = 10 : i32, message = "bqd,bkd->bqk"}> : () -> ()
    %cst_309 = arith.constant dense<0.000000e+00> : vector<1x8x8xf32>
    %758 = tpu.matmul %756, %757, %cst_309 {dimension_numbers = #tpu.dot_dimension_numbers<[2], [2], [1], [1], [0, 0, 0, 1, 1, 1], [0], [0]>} : vector<1x8x8xf32>, vector<1x8x8xf32>, vector<1x8x8xf32> -> vector<1x8x8xf32>
    "tpu.trace_stop"() : () -> ()
    %cst_310 = arith.constant dense<0xFF800000> : vector<1x8xf32>
    %759 = vector.multi_reduction <maximumf>, %758, %cst_310 [2] : vector<1x8x8xf32> to vector<1x8xf32>
    %760 = vector.shape_cast %759 : vector<1x8xf32> to vector<1x8x1xf32>
    %761 = vector.broadcast %760 : vector<1x8x1xf32> to vector<1x8x8xf32>
    %762 = arith.subf %758, %761 : vector<1x8x8xf32>
    %763 = math.exp %762 : vector<1x8x8xf32>
    %cst_311 = arith.constant dense<0.000000e+00> : vector<1x8xf32>
    %764 = vector.multi_reduction <add>, %763, %cst_311 [2] : vector<1x8x8xf32> to vector<1x8xf32>
    %765 = vector.shape_cast %764 : vector<1x8xf32> to vector<1x8x1xf32>
    %766 = tpu.reciprocal %765 {approx = true} : vector<1x8x1xf32> -> vector<1x8x1xf32>
    %767 = arith.mulf %765, %766 : vector<1x8x1xf32>
    %cst_312 = arith.constant 2.000000e+00 : f32
    %768 = vector.broadcast %cst_312 : f32 to vector<1x8x1xf32>
    %769 = arith.subf %768, %767 : vector<1x8x1xf32>
    %770 = arith.mulf %766, %769 : vector<1x8x1xf32>
    %771 = vector.broadcast %770 : vector<1x8x1xf32> to vector<1x8x8xf32>
    %772 = arith.mulf %763, %771 : vector<1x8x8xf32>
    %773 = vector.extract_strided_slice %698 {offsets = [0, 0, 24], sizes = [1, 8, 8], strides = [1, 1, 1]} : vector<1x8x96xf32> to vector<1x8x8xf32>
    "tpu.trace_start"() <{level = 10 : i32, message = "bqk,bkd->bqd"}> : () -> ()
    %cst_313 = arith.constant dense<0.000000e+00> : vector<1x8x8xf32>
    %774 = tpu.matmul %772, %773, %cst_313 {dimension_numbers = #tpu.dot_dimension_numbers<[2], [1], [1], [2], [0, 0, 0, 1, 1, 2], [0], [0]>} : vector<1x8x8xf32>, vector<1x8x8xf32>, vector<1x8x8xf32> -> vector<1x8x8xf32>
    "tpu.trace_stop"() : () -> ()
    %775 = vector.extract_strided_slice %684 {offsets = [0, 0, 32], sizes = [1, 8, 8], strides = [1, 1, 1]} : vector<1x8x96xf32> to vector<1x8x8xf32>
    %776 = vector.extract_strided_slice %691 {offsets = [0, 0, 32], sizes = [1, 8, 8], strides = [1, 1, 1]} : vector<1x8x96xf32> to vector<1x8x8xf32>
    "tpu.trace_start"() <{level = 10 : i32, message = "bqd,bkd->bqk"}> : () -> ()
    %cst_314 = arith.constant dense<0.000000e+00> : vector<1x8x8xf32>
    %777 = tpu.matmul %775, %776, %cst_314 {dimension_numbers = #tpu.dot_dimension_numbers<[2], [2], [1], [1], [0, 0, 0, 1, 1, 1], [0], [0]>} : vector<1x8x8xf32>, vector<1x8x8xf32>, vector<1x8x8xf32> -> vector<1x8x8xf32>
    "tpu.trace_stop"() : () -> ()
    %cst_315 = arith.constant dense<0xFF800000> : vector<1x8xf32>
    %778 = vector.multi_reduction <maximumf>, %777, %cst_315 [2] : vector<1x8x8xf32> to vector<1x8xf32>
    %779 = vector.shape_cast %778 : vector<1x8xf32> to vector<1x8x1xf32>
    %780 = vector.broadcast %779 : vector<1x8x1xf32> to vector<1x8x8xf32>
    %781 = arith.subf %777, %780 : vector<1x8x8xf32>
    %782 = math.exp %781 : vector<1x8x8xf32>
    %cst_316 = arith.constant dense<0.000000e+00> : vector<1x8xf32>
    %783 = vector.multi_reduction <add>, %782, %cst_316 [2] : vector<1x8x8xf32> to vector<1x8xf32>
    %784 = vector.shape_cast %783 : vector<1x8xf32> to vector<1x8x1xf32>
    %785 = tpu.reciprocal %784 {approx = true} : vector<1x8x1xf32> -> vector<1x8x1xf32>
    %786 = arith.mulf %784, %785 : vector<1x8x1xf32>
    %cst_317 = arith.constant 2.000000e+00 : f32
    %787 = vector.broadcast %cst_317 : f32 to vector<1x8x1xf32>
    %788 = arith.subf %787, %786 : vector<1x8x1xf32>
    %789 = arith.mulf %785, %788 : vector<1x8x1xf32>
    %790 = vector.broadcast %789 : vector<1x8x1xf32> to vector<1x8x8xf32>
    %791 = arith.mulf %782, %790 : vector<1x8x8xf32>
    %792 = vector.extract_strided_slice %698 {offsets = [0, 0, 32], sizes = [1, 8, 8], strides = [1, 1, 1]} : vector<1x8x96xf32> to vector<1x8x8xf32>
    "tpu.trace_start"() <{level = 10 : i32, message = "bqk,bkd->bqd"}> : () -> ()
    %cst_318 = arith.constant dense<0.000000e+00> : vector<1x8x8xf32>
    %793 = tpu.matmul %791, %792, %cst_318 {dimension_numbers = #tpu.dot_dimension_numbers<[2], [1], [1], [2], [0, 0, 0, 1, 1, 2], [0], [0]>} : vector<1x8x8xf32>, vector<1x8x8xf32>, vector<1x8x8xf32> -> vector<1x8x8xf32>
    "tpu.trace_stop"() : () -> ()
    %794 = vector.extract_strided_slice %684 {offsets = [0, 0, 40], sizes = [1, 8, 8], strides = [1, 1, 1]} : vector<1x8x96xf32> to vector<1x8x8xf32>
    %795 = vector.extract_strided_slice %691 {offsets = [0, 0, 40], sizes = [1, 8, 8], strides = [1, 1, 1]} : vector<1x8x96xf32> to vector<1x8x8xf32>
    "tpu.trace_start"() <{level = 10 : i32, message = "bqd,bkd->bqk"}> : () -> ()
    %cst_319 = arith.constant dense<0.000000e+00> : vector<1x8x8xf32>
    %796 = tpu.matmul %794, %795, %cst_319 {dimension_numbers = #tpu.dot_dimension_numbers<[2], [2], [1], [1], [0, 0, 0, 1, 1, 1], [0], [0]>} : vector<1x8x8xf32>, vector<1x8x8xf32>, vector<1x8x8xf32> -> vector<1x8x8xf32>
    "tpu.trace_stop"() : () -> ()
    %cst_320 = arith.constant dense<0xFF800000> : vector<1x8xf32>
    %797 = vector.multi_reduction <maximumf>, %796, %cst_320 [2] : vector<1x8x8xf32> to vector<1x8xf32>
    %798 = vector.shape_cast %797 : vector<1x8xf32> to vector<1x8x1xf32>
    %799 = vector.broadcast %798 : vector<1x8x1xf32> to vector<1x8x8xf32>
    %800 = arith.subf %796, %799 : vector<1x8x8xf32>
    %801 = math.exp %800 : vector<1x8x8xf32>
    %cst_321 = arith.constant dense<0.000000e+00> : vector<1x8xf32>
    %802 = vector.multi_reduction <add>, %801, %cst_321 [2] : vector<1x8x8xf32> to vector<1x8xf32>
    %803 = vector.shape_cast %802 : vector<1x8xf32> to vector<1x8x1xf32>
    %804 = tpu.reciprocal %803 {approx = true} : vector<1x8x1xf32> -> vector<1x8x1xf32>
    %805 = arith.mulf %803, %804 : vector<1x8x1xf32>
    %cst_322 = arith.constant 2.000000e+00 : f32
    %806 = vector.broadcast %cst_322 : f32 to vector<1x8x1xf32>
    %807 = arith.subf %806, %805 : vector<1x8x1xf32>
    %808 = arith.mulf %804, %807 : vector<1x8x1xf32>
    %809 = vector.broadcast %808 : vector<1x8x1xf32> to vector<1x8x8xf32>
    %810 = arith.mulf %801, %809 : vector<1x8x8xf32>
    %811 = vector.extract_strided_slice %698 {offsets = [0, 0, 40], sizes = [1, 8, 8], strides = [1, 1, 1]} : vector<1x8x96xf32> to vector<1x8x8xf32>
    "tpu.trace_start"() <{level = 10 : i32, message = "bqk,bkd->bqd"}> : () -> ()
    %cst_323 = arith.constant dense<0.000000e+00> : vector<1x8x8xf32>
    %812 = tpu.matmul %810, %811, %cst_323 {dimension_numbers = #tpu.dot_dimension_numbers<[2], [1], [1], [2], [0, 0, 0, 1, 1, 2], [0], [0]>} : vector<1x8x8xf32>, vector<1x8x8xf32>, vector<1x8x8xf32> -> vector<1x8x8xf32>
    "tpu.trace_stop"() : () -> ()
    %813 = vector.extract_strided_slice %684 {offsets = [0, 0, 48], sizes = [1, 8, 8], strides = [1, 1, 1]} : vector<1x8x96xf32> to vector<1x8x8xf32>
    %814 = vector.extract_strided_slice %691 {offsets = [0, 0, 48], sizes = [1, 8, 8], strides = [1, 1, 1]} : vector<1x8x96xf32> to vector<1x8x8xf32>
    "tpu.trace_start"() <{level = 10 : i32, message = "bqd,bkd->bqk"}> : () -> ()
    %cst_324 = arith.constant dense<0.000000e+00> : vector<1x8x8xf32>
    %815 = tpu.matmul %813, %814, %cst_324 {dimension_numbers = #tpu.dot_dimension_numbers<[2], [2], [1], [1], [0, 0, 0, 1, 1, 1], [0], [0]>} : vector<1x8x8xf32>, vector<1x8x8xf32>, vector<1x8x8xf32> -> vector<1x8x8xf32>
    "tpu.trace_stop"() : () -> ()
    %cst_325 = arith.constant dense<0xFF800000> : vector<1x8xf32>
    %816 = vector.multi_reduction <maximumf>, %815, %cst_325 [2] : vector<1x8x8xf32> to vector<1x8xf32>
    %817 = vector.shape_cast %816 : vector<1x8xf32> to vector<1x8x1xf32>
    %818 = vector.broadcast %817 : vector<1x8x1xf32> to vector<1x8x8xf32>
    %819 = arith.subf %815, %818 : vector<1x8x8xf32>
    %820 = math.exp %819 : vector<1x8x8xf32>
    %cst_326 = arith.constant dense<0.000000e+00> : vector<1x8xf32>
    %821 = vector.multi_reduction <add>, %820, %cst_326 [2] : vector<1x8x8xf32> to vector<1x8xf32>
    %822 = vector.shape_cast %821 : vector<1x8xf32> to vector<1x8x1xf32>
    %823 = tpu.reciprocal %822 {approx = true} : vector<1x8x1xf32> -> vector<1x8x1xf32>
    %824 = arith.mulf %822, %823 : vector<1x8x1xf32>
    %cst_327 = arith.constant 2.000000e+00 : f32
    %825 = vector.broadcast %cst_327 : f32 to vector<1x8x1xf32>
    %826 = arith.subf %825, %824 : vector<1x8x1xf32>
    %827 = arith.mulf %823, %826 : vector<1x8x1xf32>
    %828 = vector.broadcast %827 : vector<1x8x1xf32> to vector<1x8x8xf32>
    %829 = arith.mulf %820, %828 : vector<1x8x8xf32>
    %830 = vector.extract_strided_slice %698 {offsets = [0, 0, 48], sizes = [1, 8, 8], strides = [1, 1, 1]} : vector<1x8x96xf32> to vector<1x8x8xf32>
    "tpu.trace_start"() <{level = 10 : i32, message = "bqk,bkd->bqd"}> : () -> ()
    %cst_328 = arith.constant dense<0.000000e+00> : vector<1x8x8xf32>
    %831 = tpu.matmul %829, %830, %cst_328 {dimension_numbers = #tpu.dot_dimension_numbers<[2], [1], [1], [2], [0, 0, 0, 1, 1, 2], [0], [0]>} : vector<1x8x8xf32>, vector<1x8x8xf32>, vector<1x8x8xf32> -> vector<1x8x8xf32>
    "tpu.trace_stop"() : () -> ()
    %832 = vector.extract_strided_slice %684 {offsets = [0, 0, 56], sizes = [1, 8, 8], strides = [1, 1, 1]} : vector<1x8x96xf32> to vector<1x8x8xf32>
    %833 = vector.extract_strided_slice %691 {offsets = [0, 0, 56], sizes = [1, 8, 8], strides = [1, 1, 1]} : vector<1x8x96xf32> to vector<1x8x8xf32>
    "tpu.trace_start"() <{level = 10 : i32, message = "bqd,bkd->bqk"}> : () -> ()
    %cst_329 = arith.constant dense<0.000000e+00> : vector<1x8x8xf32>
    %834 = tpu.matmul %832, %833, %cst_329 {dimension_numbers = #tpu.dot_dimension_numbers<[2], [2], [1], [1], [0, 0, 0, 1, 1, 1], [0], [0]>} : vector<1x8x8xf32>, vector<1x8x8xf32>, vector<1x8x8xf32> -> vector<1x8x8xf32>
    "tpu.trace_stop"() : () -> ()
    %cst_330 = arith.constant dense<0xFF800000> : vector<1x8xf32>
    %835 = vector.multi_reduction <maximumf>, %834, %cst_330 [2] : vector<1x8x8xf32> to vector<1x8xf32>
    %836 = vector.shape_cast %835 : vector<1x8xf32> to vector<1x8x1xf32>
    %837 = vector.broadcast %836 : vector<1x8x1xf32> to vector<1x8x8xf32>
    %838 = arith.subf %834, %837 : vector<1x8x8xf32>
    %839 = math.exp %838 : vector<1x8x8xf32>
    %cst_331 = arith.constant dense<0.000000e+00> : vector<1x8xf32>
    %840 = vector.multi_reduction <add>, %839, %cst_331 [2] : vector<1x8x8xf32> to vector<1x8xf32>
    %841 = vector.shape_cast %840 : vector<1x8xf32> to vector<1x8x1xf32>
    %842 = tpu.reciprocal %841 {approx = true} : vector<1x8x1xf32> -> vector<1x8x1xf32>
    %843 = arith.mulf %841, %842 : vector<1x8x1xf32>
    %cst_332 = arith.constant 2.000000e+00 : f32
    %844 = vector.broadcast %cst_332 : f32 to vector<1x8x1xf32>
    %845 = arith.subf %844, %843 : vector<1x8x1xf32>
    %846 = arith.mulf %842, %845 : vector<1x8x1xf32>
    %847 = vector.broadcast %846 : vector<1x8x1xf32> to vector<1x8x8xf32>
    %848 = arith.mulf %839, %847 : vector<1x8x8xf32>
    %849 = vector.extract_strided_slice %698 {offsets = [0, 0, 56], sizes = [1, 8, 8], strides = [1, 1, 1]} : vector<1x8x96xf32> to vector<1x8x8xf32>
    "tpu.trace_start"() <{level = 10 : i32, message = "bqk,bkd->bqd"}> : () -> ()
    %cst_333 = arith.constant dense<0.000000e+00> : vector<1x8x8xf32>
    %850 = tpu.matmul %848, %849, %cst_333 {dimension_numbers = #tpu.dot_dimension_numbers<[2], [1], [1], [2], [0, 0, 0, 1, 1, 2], [0], [0]>} : vector<1x8x8xf32>, vector<1x8x8xf32>, vector<1x8x8xf32> -> vector<1x8x8xf32>
    "tpu.trace_stop"() : () -> ()
    %851 = vector.extract_strided_slice %684 {offsets = [0, 0, 64], sizes = [1, 8, 8], strides = [1, 1, 1]} : vector<1x8x96xf32> to vector<1x8x8xf32>
    %852 = vector.extract_strided_slice %691 {offsets = [0, 0, 64], sizes = [1, 8, 8], strides = [1, 1, 1]} : vector<1x8x96xf32> to vector<1x8x8xf32>
    "tpu.trace_start"() <{level = 10 : i32, message = "bqd,bkd->bqk"}> : () -> ()
    %cst_334 = arith.constant dense<0.000000e+00> : vector<1x8x8xf32>
    %853 = tpu.matmul %851, %852, %cst_334 {dimension_numbers = #tpu.dot_dimension_numbers<[2], [2], [1], [1], [0, 0, 0, 1, 1, 1], [0], [0]>} : vector<1x8x8xf32>, vector<1x8x8xf32>, vector<1x8x8xf32> -> vector<1x8x8xf32>
    "tpu.trace_stop"() : () -> ()
    %cst_335 = arith.constant dense<0xFF800000> : vector<1x8xf32>
    %854 = vector.multi_reduction <maximumf>, %853, %cst_335 [2] : vector<1x8x8xf32> to vector<1x8xf32>
    %855 = vector.shape_cast %854 : vector<1x8xf32> to vector<1x8x1xf32>
    %856 = vector.broadcast %855 : vector<1x8x1xf32> to vector<1x8x8xf32>
    %857 = arith.subf %853, %856 : vector<1x8x8xf32>
    %858 = math.exp %857 : vector<1x8x8xf32>
    %cst_336 = arith.constant dense<0.000000e+00> : vector<1x8xf32>
    %859 = vector.multi_reduction <add>, %858, %cst_336 [2] : vector<1x8x8xf32> to vector<1x8xf32>
    %860 = vector.shape_cast %859 : vector<1x8xf32> to vector<1x8x1xf32>
    %861 = tpu.reciprocal %860 {approx = true} : vector<1x8x1xf32> -> vector<1x8x1xf32>
    %862 = arith.mulf %860, %861 : vector<1x8x1xf32>
    %cst_337 = arith.constant 2.000000e+00 : f32
    %863 = vector.broadcast %cst_337 : f32 to vector<1x8x1xf32>
    %864 = arith.subf %863, %862 : vector<1x8x1xf32>
    %865 = arith.mulf %861, %864 : vector<1x8x1xf32>
    %866 = vector.broadcast %865 : vector<1x8x1xf32> to vector<1x8x8xf32>
    %867 = arith.mulf %858, %866 : vector<1x8x8xf32>
    %868 = vector.extract_strided_slice %698 {offsets = [0, 0, 64], sizes = [1, 8, 8], strides = [1, 1, 1]} : vector<1x8x96xf32> to vector<1x8x8xf32>
    "tpu.trace_start"() <{level = 10 : i32, message = "bqk,bkd->bqd"}> : () -> ()
    %cst_338 = arith.constant dense<0.000000e+00> : vector<1x8x8xf32>
    %869 = tpu.matmul %867, %868, %cst_338 {dimension_numbers = #tpu.dot_dimension_numbers<[2], [1], [1], [2], [0, 0, 0, 1, 1, 2], [0], [0]>} : vector<1x8x8xf32>, vector<1x8x8xf32>, vector<1x8x8xf32> -> vector<1x8x8xf32>
    "tpu.trace_stop"() : () -> ()
    %870 = vector.extract_strided_slice %684 {offsets = [0, 0, 72], sizes = [1, 8, 8], strides = [1, 1, 1]} : vector<1x8x96xf32> to vector<1x8x8xf32>
    %871 = vector.extract_strided_slice %691 {offsets = [0, 0, 72], sizes = [1, 8, 8], strides = [1, 1, 1]} : vector<1x8x96xf32> to vector<1x8x8xf32>
    "tpu.trace_start"() <{level = 10 : i32, message = "bqd,bkd->bqk"}> : () -> ()
    %cst_339 = arith.constant dense<0.000000e+00> : vector<1x8x8xf32>
    %872 = tpu.matmul %870, %871, %cst_339 {dimension_numbers = #tpu.dot_dimension_numbers<[2], [2], [1], [1], [0, 0, 0, 1, 1, 1], [0], [0]>} : vector<1x8x8xf32>, vector<1x8x8xf32>, vector<1x8x8xf32> -> vector<1x8x8xf32>
    "tpu.trace_stop"() : () -> ()
    %cst_340 = arith.constant dense<0xFF800000> : vector<1x8xf32>
    %873 = vector.multi_reduction <maximumf>, %872, %cst_340 [2] : vector<1x8x8xf32> to vector<1x8xf32>
    %874 = vector.shape_cast %873 : vector<1x8xf32> to vector<1x8x1xf32>
    %875 = vector.broadcast %874 : vector<1x8x1xf32> to vector<1x8x8xf32>
    %876 = arith.subf %872, %875 : vector<1x8x8xf32>
    %877 = math.exp %876 : vector<1x8x8xf32>
    %cst_341 = arith.constant dense<0.000000e+00> : vector<1x8xf32>
    %878 = vector.multi_reduction <add>, %877, %cst_341 [2] : vector<1x8x8xf32> to vector<1x8xf32>
    %879 = vector.shape_cast %878 : vector<1x8xf32> to vector<1x8x1xf32>
    %880 = tpu.reciprocal %879 {approx = true} : vector<1x8x1xf32> -> vector<1x8x1xf32>
    %881 = arith.mulf %879, %880 : vector<1x8x1xf32>
    %cst_342 = arith.constant 2.000000e+00 : f32
    %882 = vector.broadcast %cst_342 : f32 to vector<1x8x1xf32>
    %883 = arith.subf %882, %881 : vector<1x8x1xf32>
    %884 = arith.mulf %880, %883 : vector<1x8x1xf32>
    %885 = vector.broadcast %884 : vector<1x8x1xf32> to vector<1x8x8xf32>
    %886 = arith.mulf %877, %885 : vector<1x8x8xf32>
    %887 = vector.extract_strided_slice %698 {offsets = [0, 0, 72], sizes = [1, 8, 8], strides = [1, 1, 1]} : vector<1x8x96xf32> to vector<1x8x8xf32>
    "tpu.trace_start"() <{level = 10 : i32, message = "bqk,bkd->bqd"}> : () -> ()
    %cst_343 = arith.constant dense<0.000000e+00> : vector<1x8x8xf32>
    %888 = tpu.matmul %886, %887, %cst_343 {dimension_numbers = #tpu.dot_dimension_numbers<[2], [1], [1], [2], [0, 0, 0, 1, 1, 2], [0], [0]>} : vector<1x8x8xf32>, vector<1x8x8xf32>, vector<1x8x8xf32> -> vector<1x8x8xf32>
    "tpu.trace_stop"() : () -> ()
    %889 = vector.extract_strided_slice %684 {offsets = [0, 0, 80], sizes = [1, 8, 8], strides = [1, 1, 1]} : vector<1x8x96xf32> to vector<1x8x8xf32>
    %890 = vector.extract_strided_slice %691 {offsets = [0, 0, 80], sizes = [1, 8, 8], strides = [1, 1, 1]} : vector<1x8x96xf32> to vector<1x8x8xf32>
    "tpu.trace_start"() <{level = 10 : i32, message = "bqd,bkd->bqk"}> : () -> ()
    %cst_344 = arith.constant dense<0.000000e+00> : vector<1x8x8xf32>
    %891 = tpu.matmul %889, %890, %cst_344 {dimension_numbers = #tpu.dot_dimension_numbers<[2], [2], [1], [1], [0, 0, 0, 1, 1, 1], [0], [0]>} : vector<1x8x8xf32>, vector<1x8x8xf32>, vector<1x8x8xf32> -> vector<1x8x8xf32>
    "tpu.trace_stop"() : () -> ()
    %cst_345 = arith.constant dense<0xFF800000> : vector<1x8xf32>
    %892 = vector.multi_reduction <maximumf>, %891, %cst_345 [2] : vector<1x8x8xf32> to vector<1x8xf32>
    %893 = vector.shape_cast %892 : vector<1x8xf32> to vector<1x8x1xf32>
    %894 = vector.broadcast %893 : vector<1x8x1xf32> to vector<1x8x8xf32>
    %895 = arith.subf %891, %894 : vector<1x8x8xf32>
    %896 = math.exp %895 : vector<1x8x8xf32>
    %cst_346 = arith.constant dense<0.000000e+00> : vector<1x8xf32>
    %897 = vector.multi_reduction <add>, %896, %cst_346 [2] : vector<1x8x8xf32> to vector<1x8xf32>
    %898 = vector.shape_cast %897 : vector<1x8xf32> to vector<1x8x1xf32>
    %899 = tpu.reciprocal %898 {approx = true} : vector<1x8x1xf32> -> vector<1x8x1xf32>
    %900 = arith.mulf %898, %899 : vector<1x8x1xf32>
    %cst_347 = arith.constant 2.000000e+00 : f32
    %901 = vector.broadcast %cst_347 : f32 to vector<1x8x1xf32>
    %902 = arith.subf %901, %900 : vector<1x8x1xf32>
    %903 = arith.mulf %899, %902 : vector<1x8x1xf32>
    %904 = vector.broadcast %903 : vector<1x8x1xf32> to vector<1x8x8xf32>
    %905 = arith.mulf %896, %904 : vector<1x8x8xf32>
    %906 = vector.extract_strided_slice %698 {offsets = [0, 0, 80], sizes = [1, 8, 8], strides = [1, 1, 1]} : vector<1x8x96xf32> to vector<1x8x8xf32>
    "tpu.trace_start"() <{level = 10 : i32, message = "bqk,bkd->bqd"}> : () -> ()
    %cst_348 = arith.constant dense<0.000000e+00> : vector<1x8x8xf32>
    %907 = tpu.matmul %905, %906, %cst_348 {dimension_numbers = #tpu.dot_dimension_numbers<[2], [1], [1], [2], [0, 0, 0, 1, 1, 2], [0], [0]>} : vector<1x8x8xf32>, vector<1x8x8xf32>, vector<1x8x8xf32> -> vector<1x8x8xf32>
    "tpu.trace_stop"() : () -> ()
    %908 = vector.extract_strided_slice %684 {offsets = [0, 0, 88], sizes = [1, 8, 8], strides = [1, 1, 1]} : vector<1x8x96xf32> to vector<1x8x8xf32>
    %909 = vector.extract_strided_slice %691 {offsets = [0, 0, 88], sizes = [1, 8, 8], strides = [1, 1, 1]} : vector<1x8x96xf32> to vector<1x8x8xf32>
    "tpu.trace_start"() <{level = 10 : i32, message = "bqd,bkd->bqk"}> : () -> ()
    %cst_349 = arith.constant dense<0.000000e+00> : vector<1x8x8xf32>
    %910 = tpu.matmul %908, %909, %cst_349 {dimension_numbers = #tpu.dot_dimension_numbers<[2], [2], [1], [1], [0, 0, 0, 1, 1, 1], [0], [0]>} : vector<1x8x8xf32>, vector<1x8x8xf32>, vector<1x8x8xf32> -> vector<1x8x8xf32>
    "tpu.trace_stop"() : () -> ()
    %cst_350 = arith.constant dense<0xFF800000> : vector<1x8xf32>
    %911 = vector.multi_reduction <maximumf>, %910, %cst_350 [2] : vector<1x8x8xf32> to vector<1x8xf32>
    %912 = vector.shape_cast %911 : vector<1x8xf32> to vector<1x8x1xf32>
    %913 = vector.broadcast %912 : vector<1x8x1xf32> to vector<1x8x8xf32>
    %914 = arith.subf %910, %913 : vector<1x8x8xf32>
    %915 = math.exp %914 : vector<1x8x8xf32>
    %cst_351 = arith.constant dense<0.000000e+00> : vector<1x8xf32>
    %916 = vector.multi_reduction <add>, %915, %cst_351 [2] : vector<1x8x8xf32> to vector<1x8xf32>
    %917 = vector.shape_cast %916 : vector<1x8xf32> to vector<1x8x1xf32>
    %918 = tpu.reciprocal %917 {approx = true} : vector<1x8x1xf32> -> vector<1x8x1xf32>
    %919 = arith.mulf %917, %918 : vector<1x8x1xf32>
    %cst_352 = arith.constant 2.000000e+00 : f32
    %920 = vector.broadcast %cst_352 : f32 to vector<1x8x1xf32>
    %921 = arith.subf %920, %919 : vector<1x8x1xf32>
    %922 = arith.mulf %918, %921 : vector<1x8x1xf32>
    %923 = vector.broadcast %922 : vector<1x8x1xf32> to vector<1x8x8xf32>
    %924 = arith.mulf %915, %923 : vector<1x8x8xf32>
    %925 = vector.extract_strided_slice %698 {offsets = [0, 0, 88], sizes = [1, 8, 8], strides = [1, 1, 1]} : vector<1x8x96xf32> to vector<1x8x8xf32>
    "tpu.trace_start"() <{level = 10 : i32, message = "bqk,bkd->bqd"}> : () -> ()
    %cst_353 = arith.constant dense<0.000000e+00> : vector<1x8x8xf32>
    %926 = tpu.matmul %924, %925, %cst_353 {dimension_numbers = #tpu.dot_dimension_numbers<[2], [1], [1], [2], [0, 0, 0, 1, 1, 2], [0], [0]>} : vector<1x8x8xf32>, vector<1x8x8xf32>, vector<1x8x8xf32> -> vector<1x8x8xf32>
    "tpu.trace_stop"() : () -> ()
    %927 = tpu.concatenate %717, %736, %755, %774, %793, %812, %831, %850, %869, %888, %907, %926 in 2 : vector<1x8x8xf32>, vector<1x8x8xf32>, vector<1x8x8xf32>, vector<1x8x8xf32>, vector<1x8x8xf32>, vector<1x8x8xf32>, vector<1x8x8xf32>, vector<1x8x8xf32>, vector<1x8x8xf32>, vector<1x8x8xf32>, vector<1x8x8xf32>, vector<1x8x8xf32> -> vector<1x8x96xf32>
    %928 = vector.shape_cast %927 : vector<1x8x96xf32> to vector<8x96xf32>
    %c1_354 = arith.constant 1 : index
    %c3_355 = arith.constant 3 : index
    %c0_356 = arith.constant 0 : index
    %c0_357 = arith.constant 0 : index
    %929 = vector.load %arg7[%c1_354, %c3_355, %c0_356, %c0_357] : memref<2x4x96x96xf32, #tpu.memory_space<vmem>>, vector<1x1x96x96xf32>
    %930 = vector.shape_cast %929 : vector<1x1x96x96xf32> to vector<96x96xf32>
    %cst_358 = arith.constant dense<0.000000e+00> : vector<8x96xf32>
    %931 = tpu.matmul %928, %930, %cst_358 {dimension_numbers = #tpu.dot_dimension_numbers<[1], [0], [0], [1], [0, 0, 1, 1], [], []>} : vector<8x96xf32>, vector<96x96xf32>, vector<8x96xf32> -> vector<8x96xf32>
    %932 = vector.extract_strided_slice %677 {offsets = [3, 0], sizes = [1, 96], strides = [1, 1]} : vector<4x96xf32> to vector<1x96xf32>
    %933 = vector.broadcast %932 : vector<1x96xf32> to vector<8x96xf32>
    %934 = arith.addf %931, %933 : vector<8x96xf32>
    %935 = arith.addf %675, %934 : vector<8x96xf32>
    %936 = vector.shape_cast %935 : vector<8x96xf32> to vector<1x8x96xf32>
    %c0_359 = arith.constant 0 : index
    %c0_360 = arith.constant 0 : index
    %c0_361 = arith.constant 0 : index
    %937 = vector.load %arg9[%c0_359, %c0_360, %c0_361] : memref<1x8x96xf32, #tpu.memory_space<vmem>>, vector<1x8x96xf32>
    tpu.vector_store %arg9[%c0_359, %c0_360, %c0_361], %936 {strides = array<i32>} : memref<1x8x96xf32, #tpu.memory_space<vmem>>, vector<1x8x96xf32>,
    return
  }
  func.func @transform_0(%arg0: i32) -> (i32, i32, i32) {
    %c0_i32 = arith.constant 0 : i32
    %c0_i32_0 = arith.constant 0 : i32
    %c0_i32_1 = arith.constant 0 : i32
    return %arg0, %c0_i32, %c0_i32_0 : i32, i32, i32
  }
  func.func @transform_1(%arg0: i32) -> (i32, i32, i32) {
    %c0_i32 = arith.constant 0 : i32
    %c0_i32_0 = arith.constant 0 : i32
    %c0_i32_1 = arith.constant 0 : i32
    return %arg0, %c0_i32, %c0_i32_0 : i32, i32, i32
  }
  func.func @transform_2(%arg0: i32) -> (i32, i32, i32, i32) {
    %c0_i32 = arith.constant 0 : i32
    %c0_i32_0 = arith.constant 0 : i32
    %c0_i32_1 = arith.constant 0 : i32
    %c0_i32_2 = arith.constant 0 : i32
    %c0_i32_3 = arith.constant 0 : i32
    return %c0_i32, %c0_i32_0, %c0_i32_1, %c0_i32_2 : i32, i32, i32, i32
  }
  func.func @transform_3(%arg0: i32) -> (i32, i32, i32) {
    %c0_i32 = arith.constant 0 : i32
    %c0_i32_0 = arith.constant 0 : i32
    %c0_i32_1 = arith.constant 0 : i32
    %c0_i32_2 = arith.constant 0 : i32
    return %c0_i32, %c0_i32_0, %c0_i32_1 : i32, i32, i32
  }
  func.func @transform_4(%arg0: i32) -> (i32, i32, i32, i32) {
    %c0_i32 = arith.constant 0 : i32
    %c0_i32_0 = arith.constant 0 : i32
    %c0_i32_1 = arith.constant 0 : i32
    %c0_i32_2 = arith.constant 0 : i32
    %c0_i32_3 = arith.constant 0 : i32
    return %c0_i32, %c0_i32_0, %c0_i32_1, %c0_i32_2 : i32, i32, i32, i32
  }
  func.func @transform_5(%arg0: i32) -> (i32, i32, i32) {
    %c0_i32 = arith.constant 0 : i32
    %c0_i32_0 = arith.constant 0 : i32
    %c0_i32_1 = arith.constant 0 : i32
    %c0_i32_2 = arith.constant 0 : i32
    return %c0_i32, %c0_i32_0, %c0_i32_1 : i32, i32, i32
  }
  func.func @transform_6(%arg0: i32) -> (i32, i32, i32, i32) {
    %c0_i32 = arith.constant 0 : i32
    %c0_i32_0 = arith.constant 0 : i32
    %c0_i32_1 = arith.constant 0 : i32
    %c0_i32_2 = arith.constant 0 : i32
    %c0_i32_3 = arith.constant 0 : i32
    return %c0_i32, %c0_i32_0, %c0_i32_1, %c0_i32_2 : i32, i32, i32, i32
  }
  func.func @transform_7(%arg0: i32) -> (i32, i32, i32) {
    %c0_i32 = arith.constant 0 : i32
    %c0_i32_0 = arith.constant 0 : i32
    %c0_i32_1 = arith.constant 0 : i32
    %c0_i32_2 = arith.constant 0 : i32
    return %c0_i32, %c0_i32_0, %c0_i32_1 : i32, i32, i32
  }
  func.func @transform_8(%arg0: i32) -> (i32, i32, i32) {
    %c0_i32 = arith.constant 0 : i32
    %c0_i32_0 = arith.constant 0 : i32
    %c0_i32_1 = arith.constant 0 : i32
    return %arg0, %c0_i32, %c0_i32_0 : i32, i32, i32
  }
}

</mosaic_0001>

<llo_original>
// kernel: ian_forward.1
$region0: #{ian_forward.1}
  #allocation0 [shape = 'u32[]', space=smem, size = 0x4, offset = 0x4, fixed_abs, tag = 'smem constant byte address 0x4 - core index']
  #allocation1 [shape = 'u32[144,128]{1,0:T(1,128)}', space=vmem, size = 0x12000, scoped, tag = 'internal scratch']
  %s0 = inlined_call_operand.vmem [shape: f32[2,8,32], index: 0, kind: input, shape index: {}]
  %s1 = inlined_call_operand.vmem [shape: f32[2,8,96], index: 1, kind: input, shape index: {}]
  %s2 = inlined_call_operand.hbm [shape: f32[4,4,32,32], index: 2, kind: input, shape index: {}]
  %s3 = inlined_call_operand.vmem [shape: f32[4,6,32], index: 3, kind: input, shape index: {}]
  %s4 = inlined_call_operand.hbm [shape: f32[4,2,96,96], index: 4, kind: input, shape index: {}]
  %s5 = inlined_call_operand.vmem [shape: f32[4,4,96], index: 5, kind: input, shape index: {}]
  %s6 = inlined_call_operand.hbm [shape: f32[2,4,96,96], index: 6, kind: input, shape index: {}]
  %s7 = inlined_call_operand.vmem [shape: f32[2,4,96], index: 7, kind: input, shape index: {}]
  %s8 = inlined_call_operand.hbm [shape: f32[2,8,96], index: 8, kind: output, shape index: {}]
  %s9 = sld [smem:[#allocation0]]
  $region77: #{ian_forward.1} parent=0
    _
  %s11 = ssub.s32 1, %s9
  %s12 = scalar_select 0, %s11, %s9
  $region1: #{ian_forward.1} parent=0
    #allocation2 [shape = 'u8[262144]{0}', space=vmem, size = 0x40000, scoped, tag = 'input window, operand 2, single buffered']
    #allocation3 [shape = 's32[2]{0}', space=sflag, size = 0x8, scoped, tag = 'scoped memory for ian_forward.1']
    #allocation4 [shape = 's32[2]{0}', space=sflag, size = 0x8, scoped, tag = 'scoped memory for ian_forward.1']
    #allocation5 [shape = 'u8[393216]{0}', space=vmem, size = 0x60000, scoped, tag = 'input window, operand 4, single buffered']
    #allocation6 [shape = 's32[1]{0}', space=sflag, size = 0x4, scoped, tag = 'scoped memory for ian_forward.1']
    #allocation7 [shape = 'u8[393216]{0}', space=vmem, size = 0x60000, scoped, tag = 'input window, operand 6, single buffered']
    #allocation8 [shape = 'u8[8192]{0}', space=vmem, size = 0x2000, scoped, tag = 'output window, operand 0']
    %13 = vsyncpa [#allocation3], 0
    %14 = vsyncpa [#allocation6], 0
    %15 = vsyncpa [#allocation4], 0
    %s16 = scalar_lea.sflag [#allocation4], 1
    %17 = vsyncpa %s16, 0
    loop: start=0, step=1, limit=4
    $region2: #{ian_forward.1} parent=1 // loop_pre_header
      _
    $region3: #{ian_forward.1} parent=1 // loop_header
      %s19 = sphi 0, %s23
      %p20 = scmp.ge.s32.totalorder %s19, 4
      %s29 = sphi 0, %s31
      %s32 = sphi 0, %s29
      %s33 = sphi 0, %s32
      %s49 = sphi 0, %s33
      %s55 = sphi 0, %s57
      %s58 = sphi 0, %s55
      %s59 = sphi 0, %s58
      %s75 = sphi 0, %s59
      %s79 = sphi 0, %s79
      %s81 = sphi 0, %s79
      %s82 = sphi 0, %s81
      %s96 = sphi 0, %s82
      %s100 = sphi 0, %s100
      %s102 = sphi 0, %s100
      %s103 = sphi 0, %s102
      %s117 = sphi 0, %s103
      %s121 = sphi 0, %s121
      %s123 = sphi 0, %s121
      %s124 = sphi 0, %s123
      %s138 = sphi 0, %s124
      %s142 = sphi 0, %s142
      %s144 = sphi 0, %s142
      %s145 = sphi 0, %s144
      %s159 = sphi 0, %s145
      %s163 = sphi 0, %s163
      %s165 = sphi 0, %s163
      %s166 = sphi 0, %s165
      %s180 = sphi 0, %s166
      %s184 = sphi 0, %s184
      %s186 = sphi 0, %s184
      %s187 = sphi 0, %s186
      %s201 = sphi 0, %s187
      %s207 = sphi 0, %s209
      %s210 = sphi 0, %s207
      %s211 = sphi 0, %s210
      %s227 = sphi 0, %s211
    $region4: #{ian_forward.1} parent=1 // loop_header_branch
      %22 = sbr.rel (%p20) target = $region8
    $region5: #{ian_forward.1} parent=1 // loop_body
      %s24 = ssub.s32 %s19, 1
      %s25 = ssub.s32 %s19, 2
      %s26 = sadd.s32 %s19, 1
      %s27 = ssub.s32 %s19, %s26
      %p28 = scmp.eq.s32.totalorder %s27, 0
      %s30 = sadd.s32 %s29, 1
      %s31 = scalar_select %p28, %s29, %s30
      %p34 = pneg %p28
      %p35 = scmp.eq.s32.totalorder %s19, 1
      %p36 = por %p34, %p35
      %p37 = scmp.ne.s32.totalorder %s29, %s32
      %p38 = scmp.eq.s32.totalorder %s19, 0
      %p39 = por %p37, %p38
      %p40 = scmp.ne.s32.totalorder %s29, %s32
      %p41 = scmp.eq.s32.totalorder %s24, 1
      %p42 = por %p40, %p41
      %p43 = scmp.ne.s32.totalorder %s32, %s33
      %p44 = scmp.eq.s32.totalorder %s24, 0
      %p45 = por %p43, %p44
      %p46 = scmp.ne.s32.totalorder %s32, %s33
      %p47 = scmp.eq.s32.totalorder %s25, 1
      %p48 = por %p46, %p47
      %p50 = scmp.ne.s32.totalorder %s33, %s49
      %p51 = scmp.eq.s32.totalorder %s25, 0
      %p52 = por %p50, %p51
      %s53 = ssub.s32 %s19, %s26
      %p54 = scmp.eq.s32.totalorder %s53, 0
      %s56 = sadd.s32 %s55, 1
      %s57 = scalar_select %p54, %s55, %s56
      %p60 = pneg %p54
      %p61 = scmp.eq.s32.totalorder %s19, 1
      %p62 = por %p60, %p61
      %p63 = scmp.ne.s32.totalorder %s55, %s58
      %p64 = scmp.eq.s32.totalorder %s19, 0
      %p65 = por %p63, %p64
      %p66 = scmp.ne.s32.totalorder %s55, %s58
      %p67 = scmp.eq.s32.totalorder %s24, 1
      %p68 = por %p66, %p67
      %p69 = scmp.ne.s32.totalorder %s58, %s59
      %p70 = scmp.eq.s32.totalorder %s24, 0
      %p71 = por %p69, %p70
      %p72 = scmp.ne.s32.totalorder %s58, %s59
      %p73 = scmp.eq.s32.totalorder %s25, 1
      %p74 = por %p72, %p73
      %p76 = scmp.ne.s32.totalorder %s59, %s75
      %p77 = scmp.eq.s32.totalorder %s25, 0
      %p78 = por %p76, %p77
      %s80 = sadd.s32 %s79, 1
      %p83 = scmp.eq.s32.totalorder %s19, 1
      %p84 = scmp.ne.s32.totalorder %s79, %s81
      %p85 = scmp.eq.s32.totalorder %s19, 0
      %p86 = por %p84, %p85
      %p87 = scmp.ne.s32.totalorder %s79, %s81
      %p88 = scmp.eq.s32.totalorder %s24, 1
      %p89 = por %p87, %p88
      %p90 = scmp.ne.s32.totalorder %s81, %s82
      %p91 = scmp.eq.s32.totalorder %s24, 0
      %p92 = por %p90, %p91
      %p93 = scmp.ne.s32.totalorder %s81, %s82
      %p94 = scmp.eq.s32.totalorder %s25, 1
      %p95 = por %p93, %p94
      %p97 = scmp.ne.s32.totalorder %s82, %s96
      %p98 = scmp.eq.s32.totalorder %s25, 0
      %p99 = por %p97, %p98
      %s101 = sadd.s32 %s100, 1
      %p104 = scmp.eq.s32.totalorder %s19, 1
      %p105 = scmp.ne.s32.totalorder %s100, %s102
      %p106 = scmp.eq.s32.totalorder %s19, 0
      %p107 = por %p105, %p106
      %p108 = scmp.ne.s32.totalorder %s100, %s102
      %p109 = scmp.eq.s32.totalorder %s24, 1
      %p110 = por %p108, %p109
      %p111 = scmp.ne.s32.totalorder %s102, %s103
      %p112 = scmp.eq.s32.totalorder %s24, 0
      %p113 = por %p111, %p112
      %p114 = scmp.ne.s32.totalorder %s102, %s103
      %p115 = scmp.eq.s32.totalorder %s25, 1
      %p116 = por %p114, %p115
      %p118 = scmp.ne.s32.totalorder %s103, %s117
      %p119 = scmp.eq.s32.totalorder %s25, 0
      %p120 = por %p118, %p119
      %s122 = sadd.s32 %s121, 1
      %p125 = scmp.eq.s32.totalorder %s19, 1
      %p126 = scmp.ne.s32.totalorder %s121, %s123
      %p127 = scmp.eq.s32.totalorder %s19, 0
      %p128 = por %p126, %p127
      %p129 = scmp.ne.s32.totalorder %s121, %s123
      %p130 = scmp.eq.s32.totalorder %s24, 1
      %p131 = por %p129, %p130
      %p132 = scmp.ne.s32.totalorder %s123, %s124
      %p133 = scmp.eq.s32.totalorder %s24, 0
      %p134 = por %p132, %p133
      %p135 = scmp.ne.s32.totalorder %s123, %s124
      %p136 = scmp.eq.s32.totalorder %s25, 1
      %p137 = por %p135, %p136
      %p139 = scmp.ne.s32.totalorder %s124, %s138
      %p140 = scmp.eq.s32.totalorder %s25, 0
      %p141 = por %p139, %p140
      %s143 = sadd.s32 %s142, 1
      %p146 = scmp.eq.s32.totalorder %s19, 1
      %p147 = scmp.ne.s32.totalorder %s142, %s144
      %p148 = scmp.eq.s32.totalorder %s19, 0
      %p149 = por %p147, %p148
      %p150 = scmp.ne.s32.totalorder %s142, %s144
      %p151 = scmp.eq.s32.totalorder %s24, 1
      %p152 = por %p150, %p151
      %p153 = scmp.ne.s32.totalorder %s144, %s145
      %p154 = scmp.eq.s32.totalorder %s24, 0
      %p155 = por %p153, %p154
      %p156 = scmp.ne.s32.totalorder %s144, %s145
      %p157 = scmp.eq.s32.totalorder %s25, 1
      %p158 = por %p156, %p157
      %p160 = scmp.ne.s32.totalorder %s145, %s159
      %p161 = scmp.eq.s32.totalorder %s25, 0
      %p162 = por %p160, %p161
      %s164 = sadd.s32 %s163, 1
      %p167 = scmp.eq.s32.totalorder %s19, 1
      %p168 = scmp.ne.s32.totalorder %s163, %s165
      %p169 = scmp.eq.s32.totalorder %s19, 0
      %p170 = por %p168, %p169
      %p171 = scmp.ne.s32.totalorder %s163, %s165
      %p172 = scmp.eq.s32.totalorder %s24, 1
      %p173 = por %p171, %p172
      %p174 = scmp.ne.s32.totalorder %s165, %s166
      %p175 = scmp.eq.s32.totalorder %s24, 0
      %p176 = por %p174, %p175
      %p177 = scmp.ne.s32.totalorder %s165, %s166
      %p178 = scmp.eq.s32.totalorder %s25, 1
      %p179 = por %p177, %p178
      %p181 = scmp.ne.s32.totalorder %s166, %s180
      %p182 = scmp.eq.s32.totalorder %s25, 0
      %p183 = por %p181, %p182
      %s185 = sadd.s32 %s184, 1
      %p188 = scmp.eq.s32.totalorder %s19, 1
      %p189 = scmp.ne.s32.totalorder %s184, %s186
      %p190 = scmp.eq.s32.totalorder %s19, 0
      %p191 = por %p189, %p190
      %p192 = scmp.ne.s32.totalorder %s184, %s186
      %p193 = scmp.eq.s32.totalorder %s24, 1
      %p194 = por %p192, %p193
      %p195 = scmp.ne.s32.totalorder %s186, %s187
      %p196 = scmp.eq.s32.totalorder %s24, 0
      %p197 = por %p195, %p196
      %p198 = scmp.ne.s32.totalorder %s186, %s187
      %p199 = scmp.eq.s32.totalorder %s25, 1
      %p200 = por %p198, %p199
      %p202 = scmp.ne.s32.totalorder %s187, %s201
      %p203 = scmp.eq.s32.totalorder %s25, 0
      %p204 = por %p202, %p203
      %s205 = ssub.s32 %s19, %s26
      %p206 = scmp.eq.s32.totalorder %s205, 0
      %s208 = sadd.s32 %s207, 1
      %s209 = scalar_select %p206, %s207, %s208
      %p212 = pneg %p206
      %p213 = scmp.eq.s32.totalorder %s19, 1
      %p214 = por %p212, %p213
      %p215 = scmp.ne.s32.totalorder %s207, %s210
      %p216 = scmp.eq.s32.totalorder %s19, 0
      %p217 = por %p215, %p216
      %p218 = scmp.ne.s32.totalorder %s207, %s210
      %p219 = scmp.eq.s32.totalorder %s24, 1
      %p220 = por %p218, %p219
      %p221 = scmp.ne.s32.totalorder %s210, %s211
      %p222 = scmp.eq.s32.totalorder %s24, 0
      %p223 = por %p221, %p222
      %p224 = scmp.ne.s32.totalorder %s210, %s211
      %p225 = scmp.eq.s32.totalorder %s25, 1
      %p226 = por %p224, %p225
      %p228 = scmp.ne.s32.totalorder %s211, %s227
      %p229 = scmp.eq.s32.totalorder %s25, 0
      %p230 = por %p228, %p229
      %p231 = scmp.le.s32.totalorder 1, %s19
      %p232 = scmp.lt.s32.totalorder %s19, 3
      %p233 = pnand %p231, %p232
      %p234 = pneg %p233
      // Predicated region
      $region9: #{ian_forward.1} parent=5 // pred_check
        _
      $region10: #{ian_forward.1} parent=5 // pred_check_branch
        %236 = sbr.rel (%p233) target = $region12
      $region11: #{ian_forward.1} parent=5 // pred_region
        %s237 = ssub.s32 %s19, 1
        // Predicated region
        $region13: #{ian_forward.1} parent=11 // pred_check
          %p238 = pneg %p92
        $region14: #{ian_forward.1} parent=11 // pred_check_branch
          %240 = sbr.rel (%p238) target = $region16
        $region15: #{ian_forward.1} parent=11 // pred_region
          %s242 = ssub.s32 8192, 8192
          %243 = vsyncadd [#allocation3], %s242
          %s244 = sshll.u32 [#allocation2], 4
          %s245 = int_to_ptr.vmem [resolvable:$true] %s244
          %250 = dma.hbm_to_vmem [thread:$0]  %s2, 8192, %s245, [#allocation3], 128, 128, 8
        $region16: #{ian_forward.1} parent=11 // pred_fallthru
          _
        // Predicated region
        $region17: #{ian_forward.1} parent=11 // pred_check
          %p251 = pneg %p113
        $region18: #{ian_forward.1} parent=11 // pred_check_branch
          %253 = sbr.rel (%p251) target = $region20
        $region19: #{ian_forward.1} parent=11 // pred_region
          _
        $region20: #{ian_forward.1} parent=11 // pred_fallthru
          _
        // Predicated region
        $region21: #{ian_forward.1} parent=11 // pred_check
          %p254 = pneg %p134
        $region22: #{ian_forward.1} parent=11 // pred_check_branch
          %256 = sbr.rel (%p254) target = $region24
        $region23: #{ian_forward.1} parent=11 // pred_region
          %s258 = ssub.s32 12288, 12288
          %259 = vsyncadd [#allocation6], %s258
          %s260 = sshll.u32 [#allocation5], 4
          %s261 = int_to_ptr.vmem [resolvable:$true] %s260
          %266 = dma.hbm_to_vmem [thread:$0]  %s4, 12288, %s261, [#allocation6], 128, 128, 8
        $region24: #{ian_forward.1} parent=11 // pred_fallthru
          _
        // Predicated region
        $region25: #{ian_forward.1} parent=11 // pred_check
          %p267 = pneg %p155
        $region26: #{ian_forward.1} parent=11 // pred_check_branch
          %269 = sbr.rel (%p267) target = $region28
        $region27: #{ian_forward.1} parent=11 // pred_region
          _
        $region28: #{ian_forward.1} parent=11 // pred_fallthru
          _
        // Predicated region
        $region29: #{ian_forward.1} parent=11 // pred_check
          %p270 = pneg %p176
        $region30: #{ian_forward.1} parent=11 // pred_check_branch
          %272 = sbr.rel (%p270) target = $region32
        $region31: #{ian_forward.1} parent=11 // pred_region
          %s274 = ssub.s32 12288, 12288
          %275 = vsyncadd [#allocation6], %s274
          %s276 = sshll.u32 [#allocation7], 4
          %s277 = int_to_ptr.vmem [resolvable:$true] %s276
          %282 = dma.hbm_to_vmem [thread:$0]  %s6, 12288, %s277, [#allocation6], 128, 128, 8
        $region32: #{ian_forward.1} parent=11 // pred_fallthru
          _
        // Predicated region
        $region33: #{ian_forward.1} parent=11 // pred_check
          %p283 = pneg %p197
        $region34: #{ian_forward.1} parent=11 // pred_check_branch
          %285 = sbr.rel (%p283) target = $region36
        $region35: #{ian_forward.1} parent=11 // pred_region
          _
        $region36: #{ian_forward.1} parent=11 // pred_fallthru
          _
      $region12: #{ian_forward.1} parent=5 // pred_fallthru
        _
      %p286 = scmp.lt.s32.totalorder %s19, 2
      // Predicated region
      $region37: #{ian_forward.1} parent=5 // pred_check
        %p287 = pneg %p286
      $region38: #{ian_forward.1} parent=5 // pred_check_branch
        %289 = sbr.rel (%p287) target = $region40
      $region39: #{ian_forward.1} parent=5 // pred_region
        // Predicated region
        $region41: #{ian_forward.1} parent=39 // pred_check
          %p290 = pneg %p39
        $region42: #{ian_forward.1} parent=39 // pred_check_branch
          %292 = sbr.rel (%p290) target = $region44
        $region43: #{ian_forward.1} parent=39 // pred_region
          %p293 = scmp.lt.s32.totalorder %s19, 1
          %s294 = scalar_select %p293, %s19, 1
          %s295 = smul.addr %s294, 8
          %s296 = scalar_lea.vmem %s0, %s295
        $region44: #{ian_forward.1} parent=39 // pred_fallthru
          _
        // Predicated region
        $region45: #{ian_forward.1} parent=39 // pred_check
          %p297 = pneg %p65
        $region46: #{ian_forward.1} parent=39 // pred_check_branch
          %299 = sbr.rel (%p297) target = $region48
        $region47: #{ian_forward.1} parent=39 // pred_region
          %p300 = scmp.lt.s32.totalorder %s19, 1
          %s301 = scalar_select %p300, %s19, 1
          %s302 = smul.addr %s301, 8
          %s303 = scalar_lea.vmem %s1, %s302
        $region48: #{ian_forward.1} parent=39 // pred_fallthru
          _
      $region40: #{ian_forward.1} parent=5 // pred_fallthru
        _
      %p304 = scmp.le.s32.totalorder 1, %s19
      %p305 = scmp.lt.s32.totalorder %s19, 3
      %p306 = pnand %p304, %p305
      %p307 = pneg %p306
      // Predicated region
      $region49: #{ian_forward.1} parent=5 // pred_check
        _
      $region50: #{ian_forward.1} parent=5 // pred_check_branch
        %309 = sbr.rel (%p306) target = $region52
      $region51: #{ian_forward.1} parent=5 // pred_region
        %s310 = ssub.s32 %s19, 1
        // Predicated region
        $region53: #{ian_forward.1} parent=51 // pred_check
          %p311 = pneg %p92
        $region54: #{ian_forward.1} parent=51 // pred_check_branch
          %313 = sbr.rel (%p311) target = $region56
        $region55: #{ian_forward.1} parent=51 // pred_region
          %314 = dma.done [#allocation3], 8192
        $region56: #{ian_forward.1} parent=51 // pred_fallthru
          _
        // Predicated region
        $region57: #{ian_forward.1} parent=51 // pred_check
          %p315 = pneg %p134
        $region58: #{ian_forward.1} parent=51 // pred_check_branch
          %317 = sbr.rel (%p315) target = $region60
        $region59: #{ian_forward.1} parent=51 // pred_region
          %318 = dma.done [#allocation6], 12288
        $region60: #{ian_forward.1} parent=51 // pred_fallthru
          _
        // Predicated region
        $region61: #{ian_forward.1} parent=51 // pred_check
          %p319 = pneg %p176
        $region62: #{ian_forward.1} parent=51 // pred_check_branch
          %321 = sbr.rel (%p319) target = $region64
        $region63: #{ian_forward.1} parent=51 // pred_region
          %322 = dma.done [#allocation6], 12288
        $region64: #{ian_forward.1} parent=51 // pred_fallthru
          _
        %p323 = scmp.lt.s32.totalorder %s24, 1
        %s324 = scalar_select %p323, %s24, 1
        %s325 = smul.addr %s324, 8
        %s326 = scalar_lea.vmem %s0, %s325
        %p327 = pneg %p45
        %p328 = pneg %p42
        %p329 = scmp.lt.s32.totalorder %s24, 1
        %s330 = scalar_select %p329, %s24, 1
        %s331 = smul.addr %s330, 8
        %s332 = scalar_lea.vmem %s1, %s331
        %p333 = pneg %p71
        %p334 = pneg %p68
        %p335 = pneg %p92
        %p336 = pneg %p89
        %p337 = pneg %p113
        %p338 = pneg %p110
        %p339 = pneg %p134
        %p340 = pneg %p131
        %p341 = pneg %p155
        %p342 = pneg %p152
        %p343 = pneg %p176
        %p344 = pneg %p173
        %p345 = pneg %p197
        %p346 = pneg %p194
        %p347 = pneg %p223
        %p348 = pneg %p220
        %s349 = sand.u32 %s210, 1
        %s350 = scalar_lea.sflag [#allocation4], %s349
        %s351 = sand.u32 %s210, 1
        %s352 = smul.addr %s351, 8
        %s353 = scalar_lea.vmem [#allocation8], %s352
        %p354 = scmp.lt.s32.totalorder %s24, 1
        %s355 = scalar_select %p354, %s24, 1
        %s356 = smul.addr %s355, 8
        %s357 = scalar_lea.vmem %s0, %s356
        %p358 = scmp.lt.s32.totalorder %s24, 1
        %s359 = scalar_select %p358, %s24, 1
        %s360 = smul.addr %s359, 8
        %s361 = scalar_lea.vmem %s1, %s360
        %v362 = vld [vmem:[%s357] sm:$0xff]
        %v363 = vld [vmem:[%s361] sm:$0xff]
        %v364 = vld [vmem:[%s3] sm:$0x3f]
        %v365 = vld [vmem:[#allocation2] sm:$0xff]
        %v366 = vld [vmem:[#allocation2 + $0x8] sm:$0xff]
        %v367 = vld [vmem:[#allocation2 + $0x10] sm:$0xff]
        %v368 = vld [vmem:[#allocation2 + $0x18] sm:$0xff]
        %v369 = vlaneseq
        %v370 = vshrl.u32 %v369, 7
        %v371 = vsub.s32 0, %v370
        %v372 = vrot.slane %v364, %v371
        %vm373 = vcmask 261120
        %v375 = vsel %vm373, %v362, 0
        %377 = vmatprep.subr.mxu0 0.0
        %378 = vmatpush1.msra.mxu0 %v365
        %379 = vmatprep.subr.mxu0 0.0
        %380 = vmatpush1.msra.mxu0 %v366
        %381 = vmatprep.subr.mxu0 0.0
        %382 = vmatpush1.msra.mxu0 %v367
        %383 = vmatprep.subr.mxu0 0.0
        %384 = vmatpush1.msra.mxu0 %v368
        %385 = vmatprep.subr.mxu0 0.0
        %386 = vmatpush1.msra.mxu0 0.0
        %387 = vmatprep.subr.mxu0 0.0
        %388 = vmatpush1.msra.mxu0 0.0
        %389 = vmatprep.subr.mxu0 0.0
        %390 = vmatpush1.msra.mxu0 0.0
        %391 = vmatprep.subr.mxu0 0.0
        %392 = vmatpush1.msra.mxu0 0.0
        %393 = vmatprep.subr.mxu0 0.0
        %394 = vmatpush1.msra.mxu0 0.0
        %395 = vmatprep.subr.mxu0 0.0
        %396 = vmatpush1.msra.mxu0 0.0
        %397 = vmatprep.subr.mxu0 0.0
        %398 = vmatpush1.msra.mxu0 0.0
        %399 = vmatprep.subr.mxu0 0.0
        %400 = vmatpush1.msra.mxu0 0.0
        %401 = vmatprep.subr.mxu0 0.0
        %402 = vmatpush1.msra.mxu0 0.0
        %403 = vmatprep.subr.mxu0 0.0
        %404 = vmatpush1.msra.mxu0 0.0
        %405 = vmatprep.subr.mxu0 0.0
        %406 = vmatpush1.msra.mxu0 0.0
        %407 = vmatprep.subr.mxu0 0.0
        %408 = vmatpush1.msra.mxu0 0.0
        %409 = vmatprep.subr.mxu0 0.0
        %410 = vmatpush1.msra.mxu0 0.0
        %411 = vmatprep.subr.mxu0 0.0
        %412 = vmatpush1.msra.mxu0 0.0
        %413 = vmatprep.subr.mxu0 0.0
        %414 = vmatpush1.msra.mxu0 0.0
        %415 = vmatprep.subr.mxu0 0.0
        %416 = vmatpush1.msra.mxu0 0.0
        %417 = vmatprep.subr.mxu0 0.0
        %418 = vmatpush1.msra.mxu0 0.0
        %419 = vmatprep.subr.mxu0 0.0
        %420 = vmatpush1.msra.mxu0 0.0
        %421 = vmatprep.subr.mxu0 0.0
        %422 = vmatpush1.msra.mxu0 0.0
        %423 = vmatprep.subr.mxu0 0.0
        %424 = vmatpush1.msra.mxu0 0.0
        %425 = vmatprep.subr.mxu0 0.0
        %426 = vmatpush1.msra.mxu0 0.0
        %427 = vmatprep.subr.mxu0 0.0
        %428 = vmatpush1.msra.mxu0 0.0
        %429 = vmatprep.subr.mxu0 0.0
        %430 = vmatpush1.msra.mxu0 0.0
        %431 = vmatprep.subr.mxu0 0.0
        %432 = vmatpush1.msra.mxu0 0.0
        %433 = vmatprep.subr.mxu0 0.0
        %434 = vmatpush1.msra.mxu0 0.0
        %435 = vmatprep.subr.mxu0 0.0
        %436 = vmatpush1.msra.mxu0 0.0
        %437 = vmatprep.subr.mxu0 0.0
        %438 = vmatpush1.msra.mxu0 0.0
        %439 = vmatprep.subr.mxu0 0.0
        %440 = vmatpush1.msra.mxu0 0.0
        %441 = vmatprep.mubr.f32.mxu0 0.0
        %442 = vmatmul.mubr.f32.gmra.mrb[0].mxu0 %v375
        %v443 = vpop.f32.mrb[0].mxu0
        %v444 = vadd.f32 %v372, %v443
        %v445 = vpop.f32.mrb[0].mxu0
        %446 = vdwg.mxu0
        %s447 = scalar_lea.vmem [#allocation2], 32
        %v448 = vld [vmem:[%s447] sm:$0xff]
        %v449 = vld [vmem:[%s447 + $0x8] sm:$0xff]
        %v450 = vld [vmem:[%s447 + $0x10] sm:$0xff]
        %v451 = vld [vmem:[%s447 + $0x18] sm:$0xff]
        %v452 = vlaneseq
        %v453 = vshrl.u32 %v452, 7
        %v454 = vsub.s32 1, %v453
        %v455 = vrot.slane %v364, %v454
        %456 = vmatprep.subr.mxu0 0.0
        %457 = vmatpush1.msra.mxu0 %v448
        %458 = vmatprep.subr.mxu0 0.0
        %459 = vmatpush1.msra.mxu0 %v449
        %460 = vmatprep.subr.mxu0 0.0
        %461 = vmatpush1.msra.mxu0 %v450
        %462 = vmatprep.subr.mxu0 0.0
        %463 = vmatpush1.msra.mxu0 %v451
        %464 = vmatprep.subr.mxu0 0.0
        %465 = vmatpush1.msra.mxu0 0.0
        %466 = vmatprep.subr.mxu0 0.0
        %467 = vmatpush1.msra.mxu0 0.0
        %468 = vmatprep.subr.mxu0 0.0
        %469 = vmatpush1.msra.mxu0 0.0
        %470 = vmatprep.subr.mxu0 0.0
        %471 = vmatpush1.msra.mxu0 0.0
        %472 = vmatprep.subr.mxu0 0.0
        %473 = vmatpush1.msra.mxu0 0.0
        %474 = vmatprep.subr.mxu0 0.0
        %475 = vmatpush1.msra.mxu0 0.0
        %476 = vmatprep.subr.mxu0 0.0
        %477 = vmatpush1.msra.mxu0 0.0
        %478 = vmatprep.subr.mxu0 0.0
        %479 = vmatpush1.msra.mxu0 0.0
        %480 = vmatprep.subr.mxu0 0.0
        %481 = vmatpush1.msra.mxu0 0.0
        %482 = vmatprep.subr.mxu0 0.0
        %483 = vmatpush1.msra.mxu0 0.0
        %484 = vmatprep.subr.mxu0 0.0
        %485 = vmatpush1.msra.mxu0 0.0
        %486 = vmatprep.subr.mxu0 0.0
        %487 = vmatpush1.msra.mxu0 0.0
        %488 = vmatprep.subr.mxu0 0.0
        %489 = vmatpush1.msra.mxu0 0.0
        %490 = vmatprep.subr.mxu0 0.0
        %491 = vmatpush1.msra.mxu0 0.0
        %492 = vmatprep.subr.mxu0 0.0
        %493 = vmatpush1.msra.mxu0 0.0
        %494 = vmatprep.subr.mxu0 0.0
        %495 = vmatpush1.msra.mxu0 0.0
        %496 = vmatprep.subr.mxu0 0.0
        %497 = vmatpush1.msra.mxu0 0.0
        %498 = vmatprep.subr.mxu0 0.0
        %499 = vmatpush1.msra.mxu0 0.0
        %500 = vmatprep.subr.mxu0 0.0
        %501 = vmatpush1.msra.mxu0 0.0
        %502 = vmatprep.subr.mxu0 0.0
        %503 = vmatpush1.msra.mxu0 0.0
        %504 = vmatprep.subr.mxu0 0.0
        %505 = vmatpush1.msra.mxu0 0.0
        %506 = vmatprep.subr.mxu0 0.0
        %507 = vmatpush1.msra.mxu0 0.0
        %508 = vmatprep.subr.mxu0 0.0
        %509 = vmatpush1.msra.mxu0 0.0
        %510 = vmatprep.subr.mxu0 0.0
        %511 = vmatpush1.msra.mxu0 0.0
        %512 = vmatprep.subr.mxu0 0.0
        %513 = vmatpush1.msra.mxu0 0.0
        %514 = vmatprep.subr.mxu0 0.0
        %515 = vmatpush1.msra.mxu0 0.0
        %516 = vmatprep.subr.mxu0 0.0
        %517 = vmatpush1.msra.mxu0 0.0
        %518 = vmatprep.subr.mxu0 0.0
        %519 = vmatpush1.msra.mxu0 0.0
        %520 = vmatprep.mubr.f32.mxu0 0.0
        %521 = vmatmul.mubr.f32.gmra.mrb[0].mxu0 %v375
        %v522 = vpop.f32.mrb[0].mxu0
        %v523 = vadd.f32 %v455, %v522
        %v524 = vpop.f32.mrb[0].mxu0
        %525 = vdwg.mxu0
        %v527 = vsel %vm373, %v444, 0
        %v530 = vsel %vm373, %v523, 0
        %532 = vmatprep.subr.mxu0 0.0
        %533 = vmatpush1.xpose.msra.mxu0 %v530
        %534 = vmatprep.subr.mxu0 0.0
        %535 = vmatpush1.xpose.msra.mxu0 0.0
        %536 = vmatprep.subr.mxu0 0.0
        %537 = vmatpush1.xpose.msra.mxu0 0.0
        %538 = vmatprep.subr.mxu0 0.0
        %539 = vmatpush1.xpose.msra.mxu0 0.0
        %540 = vmatprep.subr.mxu0 0.0
        %541 = vmatpush1.xpose.msra.mxu0 0.0
        %542 = vmatprep.subr.mxu0 0.0
        %543 = vmatpush1.xpose.msra.mxu0 0.0
        %544 = vmatprep.subr.mxu0 0.0
        %545 = vmatpush1.xpose.msra.mxu0 0.0
        %546 = vmatprep.subr.mxu0 0.0
        %547 = vmatpush1.xpose.msra.mxu0 0.0
        %548 = vmatprep.subr.mxu0 0.0
        %549 = vmatpush1.xpose.msra.mxu0 0.0
        %550 = vmatprep.subr.mxu0 0.0
        %551 = vmatpush1.xpose.msra.mxu0 0.0
        %552 = vmatprep.subr.mxu0 0.0
        %553 = vmatpush1.xpose.msra.mxu0 0.0
        %554 = vmatprep.subr.mxu0 0.0
        %555 = vmatpush1.xpose.msra.mxu0 0.0
        %556 = vmatprep.subr.mxu0 0.0
        %557 = vmatpush1.xpose.msra.mxu0 0.0
        %558 = vmatprep.subr.mxu0 0.0
        %559 = vmatpush1.xpose.msra.mxu0 0.0
        %560 = vmatprep.subr.mxu0 0.0
        %561 = vmatpush1.xpose.msra.mxu0 0.0
        %562 = vmatprep.subr.mxu0 0.0
        %563 = vmatpush1.xpose.msra.mxu0 0.0
        %564 = vmatprep.subr.mxu0 0.0
        %565 = vmatpush1.xpose.msra.mxu0 0.0
        %566 = vmatprep.subr.mxu0 0.0
        %567 = vmatpush1.xpose.msra.mxu0 0.0
        %568 = vmatprep.subr.mxu0 0.0
        %569 = vmatpush1.xpose.msra.mxu0 0.0
        %570 = vmatprep.subr.mxu0 0.0
        %571 = vmatpush1.xpose.msra.mxu0 0.0
        %572 = vmatprep.subr.mxu0 0.0
        %573 = vmatpush1.xpose.msra.mxu0 0.0
        %574 = vmatprep.subr.mxu0 0.0
        %575 = vmatpush1.xpose.msra.mxu0 0.0
        %576 = vmatprep.subr.mxu0 0.0
        %577 = vmatpush1.xpose.msra.mxu0 0.0
        %578 = vmatprep.subr.mxu0 0.0
        %579 = vmatpush1.xpose.msra.mxu0 0.0
        %580 = vmatprep.subr.mxu0 0.0
        %581 = vmatpush1.xpose.msra.mxu0 0.0
        %582 = vmatprep.subr.mxu0 0.0
        %583 = vmatpush1.xpose.msra.mxu0 0.0
        %584 = vmatprep.subr.mxu0 0.0
        %585 = vmatpush1.xpose.msra.mxu0 0.0
        %586 = vmatprep.subr.mxu0 0.0
        %587 = vmatpush1.xpose.msra.mxu0 0.0
        %588 = vmatprep.subr.mxu0 0.0
        %589 = vmatpush1.xpose.msra.mxu0 0.0
        %590 = vmatprep.subr.mxu0 0.0
        %591 = vmatpush1.xpose.msra.mxu0 0.0
        %592 = vmatprep.subr.mxu0 0.0
        %593 = vmatpush1.xpose.msra.mxu0 0.0
        %594 = vmatprep.subr.mxu0 0.0
        %595 = vmatpush1.xpose.msra.mxu0 0.0
        %596 = vmatprep.mubr.f32.mxu0 0.0
        %597 = vmatmul.mubr.f32.gmra.mrb[0].mxu0 %v527
        %v598 = vpop.f32.mrb[0].mxu0
        %v599 = vadd.f32 0.0, %v598
        %v600 = vpop.f32.mrb[0].mxu0
        %601 = vdwg.mxu0
        %vm602 = vcmask 64512
        %v603 = vsel %vm602, %v599, -inf
        %604 = vmax.xlane.f32.xlu0 %v603
        %v605 = vpop.xlane.xlu0 %604
        %v606 = vsub.f32 %v599, %v605
        %v607 = vmul.f32 %v606, 1.442695
        %v608 = vpow.pop %v607
        %v609 = vsel %vm602, %v608, 0.0
        %610 = vadd.xlane.f32.xlu0 %v609
        %v611 = vpop.xlane.xlu0 %610
        %v612 = vrcp.pop %v611
        %v613 = vmul.f32 %v611, %v612
        %v614 = vsub.f32 2.0, %v613
        %v615 = vmul.f32 %v612, %v614
        %v616 = vmul.f32 %v608, %v615
        %s617 = scalar_lea.vmem [#allocation2], 64
        %v618 = vld [vmem:[%s617] sm:$0xff]
        %v619 = vld [vmem:[%s617 + $0x8] sm:$0xff]
        %v620 = vld [vmem:[%s617 + $0x10] sm:$0xff]
        %v621 = vld [vmem:[%s617 + $0x18] sm:$0xff]
        %v622 = vlaneseq
        %v623 = vshrl.u32 %v622, 7
        %v624 = vsub.s32 2, %v623
        %v625 = vrot.slane %v364, %v624
        %626 = vmatprep.subr.mxu0 0.0
        %627 = vmatpush1.msra.mxu0 %v618
        %628 = vmatprep.subr.mxu0 0.0
        %629 = vmatpush1.msra.mxu0 %v619
        %630 = vmatprep.subr.mxu0 0.0
        %631 = vmatpush1.msra.mxu0 %v620
        %632 = vmatprep.subr.mxu0 0.0
        %633 = vmatpush1.msra.mxu0 %v621
        %634 = vmatprep.subr.mxu0 0.0
        %635 = vmatpush1.msra.mxu0 0.0
        %636 = vmatprep.subr.mxu0 0.0
        %637 = vmatpush1.msra.mxu0 0.0
        %638 = vmatprep.subr.mxu0 0.0
        %639 = vmatpush1.msra.mxu0 0.0
        %640 = vmatprep.subr.mxu0 0.0
        %641 = vmatpush1.msra.mxu0 0.0
        %642 = vmatprep.subr.mxu0 0.0
        %643 = vmatpush1.msra.mxu0 0.0
        %644 = vmatprep.subr.mxu0 0.0
        %645 = vmatpush1.msra.mxu0 0.0
        %646 = vmatprep.subr.mxu0 0.0
        %647 = vmatpush1.msra.mxu0 0.0
        %648 = vmatprep.subr.mxu0 0.0
        %649 = vmatpush1.msra.mxu0 0.0
        %650 = vmatprep.subr.mxu0 0.0
        %651 = vmatpush1.msra.mxu0 0.0
        %652 = vmatprep.subr.mxu0 0.0
        %653 = vmatpush1.msra.mxu0 0.0
        %654 = vmatprep.subr.mxu0 0.0
        %655 = vmatpush1.msra.mxu0 0.0
        %656 = vmatprep.subr.mxu0 0.0
        %657 = vmatpush1.msra.mxu0 0.0
        %658 = vmatprep.subr.mxu0 0.0
        %659 = vmatpush1.msra.mxu0 0.0
        %660 = vmatprep.subr.mxu0 0.0
        %661 = vmatpush1.msra.mxu0 0.0
        %662 = vmatprep.subr.mxu0 0.0
        %663 = vmatpush1.msra.mxu0 0.0
        %664 = vmatprep.subr.mxu0 0.0
        %665 = vmatpush1.msra.mxu0 0.0
        %666 = vmatprep.subr.mxu0 0.0
        %667 = vmatpush1.msra.mxu0 0.0
        %668 = vmatprep.subr.mxu0 0.0
        %669 = vmatpush1.msra.mxu0 0.0
        %670 = vmatprep.subr.mxu0 0.0
        %671 = vmatpush1.msra.mxu0 0.0
        %672 = vmatprep.subr.mxu0 0.0
        %673 = vmatpush1.msra.mxu0 0.0
        %674 = vmatprep.subr.mxu0 0.0
        %675 = vmatpush1.msra.mxu0 0.0
        %676 = vmatprep.subr.mxu0 0.0
        %677 = vmatpush1.msra.mxu0 0.0
        %678 = vmatprep.subr.mxu0 0.0
        %679 = vmatpush1.msra.mxu0 0.0
        %680 = vmatprep.subr.mxu0 0.0
        %681 = vmatpush1.msra.mxu0 0.0
        %682 = vmatprep.subr.mxu0 0.0
        %683 = vmatpush1.msra.mxu0 0.0
        %684 = vmatprep.subr.mxu0 0.0
        %685 = vmatpush1.msra.mxu0 0.0
        %686 = vmatprep.subr.mxu0 0.0
        %687 = vmatpush1.msra.mxu0 0.0
        %688 = vmatprep.subr.mxu0 0.0
        %689 = vmatpush1.msra.mxu0 0.0
        %690 = vmatprep.mubr.f32.mxu0 0.0
        %691 = vmatmul.mubr.f32.gmra.mrb[0].mxu0 %v375
        %v692 = vpop.f32.mrb[0].mxu0
        %v693 = vadd.f32 %v625, %v692
        %v694 = vpop.f32.mrb[0].mxu0
        %695 = vdwg.mxu0
        %v697 = vsel %vm602, %v616, 0
        %699 = vmatprep.subr.mxu0 0.0
        %700 = vmatpush1.msra.mxu0 %v693
        %701 = vmatprep.subr.mxu0 0.0
        %702 = vmatpush1.msra.mxu0 0.0
        %703 = vmatprep.subr.mxu0 0.0
        %704 = vmatpush1.msra.mxu0 0.0
        %705 = vmatprep.subr.mxu0 0.0
        %706 = vmatpush1.msra.mxu0 0.0
        %707 = vmatprep.subr.mxu0 0.0
        %708 = vmatpush1.msra.mxu0 0.0
        %709 = vmatprep.subr.mxu0 0.0
        %710 = vmatpush1.msra.mxu0 0.0
        %711 = vmatprep.subr.mxu0 0.0
        %712 = vmatpush1.msra.mxu0 0.0
        %713 = vmatprep.subr.mxu0 0.0
        %714 = vmatpush1.msra.mxu0 0.0
        %715 = vmatprep.subr.mxu0 0.0
        %716 = vmatpush1.msra.mxu0 0.0
        %717 = vmatprep.subr.mxu0 0.0
        %718 = vmatpush1.msra.mxu0 0.0
        %719 = vmatprep.subr.mxu0 0.0
        %720 = vmatpush1.msra.mxu0 0.0
        %721 = vmatprep.subr.mxu0 0.0
        %722 = vmatpush1.msra.mxu0 0.0
        %723 = vmatprep.subr.mxu0 0.0
        %724 = vmatpush1.msra.mxu0 0.0
        %725 = vmatprep.subr.mxu0 0.0
        %726 = vmatpush1.msra.mxu0 0.0
        %727 = vmatprep.subr.mxu0 0.0
        %728 = vmatpush1.msra.mxu0 0.0
        %729 = vmatprep.subr.mxu0 0.0
        %730 = vmatpush1.msra.mxu0 0.0
        %731 = vmatprep.subr.mxu0 0.0
        %732 = vmatpush1.msra.mxu0 0.0
        %733 = vmatprep.subr.mxu0 0.0
        %734 = vmatpush1.msra.mxu0 0.0
        %735 = vmatprep.subr.mxu0 0.0
        %736 = vmatpush1.msra.mxu0 0.0
        %737 = vmatprep.subr.mxu0 0.0
        %738 = vmatpush1.msra.mxu0 0.0
        %739 = vmatprep.subr.mxu0 0.0
        %740 = vmatpush1.msra.mxu0 0.0
        %741 = vmatprep.subr.mxu0 0.0
        %742 = vmatpush1.msra.mxu0 0.0
        %743 = vmatprep.subr.mxu0 0.0
        %744 = vmatpush1.msra.mxu0 0.0
        %745 = vmatprep.subr.mxu0 0.0
        %746 = vmatpush1.msra.mxu0 0.0
        %747 = vmatprep.subr.mxu0 0.0
        %748 = vmatpush1.msra.mxu0 0.0
        %749 = vmatprep.subr.mxu0 0.0
        %750 = vmatpush1.msra.mxu0 0.0
        %751 = vmatprep.subr.mxu0 0.0
        %752 = vmatpush1.msra.mxu0 0.0
        %753 = vmatprep.subr.mxu0 0.0
        %754 = vmatpush1.msra.mxu0 0.0
        %755 = vmatprep.subr.mxu0 0.0
        %756 = vmatpush1.msra.mxu0 0.0
        %757 = vmatprep.subr.mxu0 0.0
        %758 = vmatpush1.msra.mxu0 0.0
        %759 = vmatprep.subr.mxu0 0.0
        %760 = vmatpush1.msra.mxu0 0.0
        %761 = vmatprep.subr.mxu0 0.0
        %762 = vmatpush1.msra.mxu0 0.0
        %763 = vmatprep.mubr.f32.mxu0 0.0
        %764 = vmatmul.mubr.f32.gmra.mrb[0].mxu0 %v697
        %v765 = vpop.f32.mrb[0].mxu0
        %v766 = vadd.f32 0.0, %v765
        %v767 = vpop.f32.mrb[0].mxu0
        %768 = vdwg.mxu0
        %s769 = scalar_lea.vmem [#allocation2], 96
        %v770 = vld [vmem:[%s769] sm:$0xff]
        %v771 = vld [vmem:[%s769 + $0x8] sm:$0xff]
        %v772 = vld [vmem:[%s769 + $0x10] sm:$0xff]
        %v773 = vld [vmem:[%s769 + $0x18] sm:$0xff]
        %v774 = vlaneseq
        %v775 = vshrl.u32 %v774, 7
        %v776 = vsub.s32 3, %v775
        %v777 = vrot.slane %v364, %v776
        %v779 = vsel %vm373, %v766, 0
        %781 = vmatprep.subr.mxu0 0.0
        %782 = vmatpush1.msra.mxu0 %v770
        %783 = vmatprep.subr.mxu0 0.0
        %784 = vmatpush1.msra.mxu0 %v771
        %785 = vmatprep.subr.mxu0 0.0
        %786 = vmatpush1.msra.mxu0 %v772
        %787 = vmatprep.subr.mxu0 0.0
        %788 = vmatpush1.msra.mxu0 %v773
        %789 = vmatprep.subr.mxu0 0.0
        %790 = vmatpush1.msra.mxu0 0.0
        %791 = vmatprep.subr.mxu0 0.0
        %792 = vmatpush1.msra.mxu0 0.0
        %793 = vmatprep.subr.mxu0 0.0
        %794 = vmatpush1.msra.mxu0 0.0
        %795 = vmatprep.subr.mxu0 0.0
        %796 = vmatpush1.msra.mxu0 0.0
        %797 = vmatprep.subr.mxu0 0.0
        %798 = vmatpush1.msra.mxu0 0.0
        %799 = vmatprep.subr.mxu0 0.0
        %800 = vmatpush1.msra.mxu0 0.0
        %801 = vmatprep.subr.mxu0 0.0
        %802 = vmatpush1.msra.mxu0 0.0
        %803 = vmatprep.subr.mxu0 0.0
        %804 = vmatpush1.msra.mxu0 0.0
        %805 = vmatprep.subr.mxu0 0.0
        %806 = vmatpush1.msra.mxu0 0.0
        %807 = vmatprep.subr.mxu0 0.0
        %808 = vmatpush1.msra.mxu0 0.0
        %809 = vmatprep.subr.mxu0 0.0
        %810 = vmatpush1.msra.mxu0 0.0
        %811 = vmatprep.subr.mxu0 0.0
        %812 = vmatpush1.msra.mxu0 0.0
        %813 = vmatprep.subr.mxu0 0.0
        %814 = vmatpush1.msra.mxu0 0.0
        %815 = vmatprep.subr.mxu0 0.0
        %816 = vmatpush1.msra.mxu0 0.0
        %817 = vmatprep.subr.mxu0 0.0
        %818 = vmatpush1.msra.mxu0 0.0
        %819 = vmatprep.subr.mxu0 0.0
        %820 = vmatpush1.msra.mxu0 0.0
        %821 = vmatprep.subr.mxu0 0.0
        %822 = vmatpush1.msra.mxu0 0.0
        %823 = vmatprep.subr.mxu0 0.0
        %824 = vmatpush1.msra.mxu0 0.0
        %825 = vmatprep.subr.mxu0 0.0
        %826 = vmatpush1.msra.mxu0 0.0
        %827 = vmatprep.subr.mxu0 0.0
        %828 = vmatpush1.msra.mxu0 0.0
        %829 = vmatprep.subr.mxu0 0.0
        %830 = vmatpush1.msra.mxu0 0.0
        %831 = vmatprep.subr.mxu0 0.0
        %832 = vmatpush1.msra.mxu0 0.0
        %833 = vmatprep.subr.mxu0 0.0
        %834 = vmatpush1.msra.mxu0 0.0
        %835 = vmatprep.subr.mxu0 0.0
        %836 = vmatpush1.msra.mxu0 0.0
        %837 = vmatprep.subr.mxu0 0.0
        %838 = vmatpush1.msra.mxu0 0.0
        %839 = vmatprep.subr.mxu0 0.0
        %840 = vmatpush1.msra.mxu0 0.0
        %841 = vmatprep.subr.mxu0 0.0
        %842 = vmatpush1.msra.mxu0 0.0
        %843 = vmatprep.subr.mxu0 0.0
        %844 = vmatpush1.msra.mxu0 0.0
        %845 = vmatprep.mubr.f32.mxu0 0.0
        %846 = vmatmul.mubr.f32.gmra.mrb[0].mxu0 %v779
        %v847 = vpop.f32.mrb[0].mxu0
        %v848 = vadd.f32 %v777, %v847
        %v849 = vpop.f32.mrb[0].mxu0
        %850 = vdwg.mxu0
        %v851 = vsel %vm373, %v848, 0.0
        %852 = vadd.xlane.f32.xlu0 %v851
        %v853 = vpop.xlane.xlu0 %852
        %v854 = vrcp.pop 32.0
        %v855 = vmul.f32 %v853, %v854
        %v856 = vsub.f32 %v848, %v855
        %v857 = vmul.f32 %v856, %v856
        %v858 = vsel %vm373, %v857, 0.0
        %859 = vadd.xlane.f32.xlu0 %v858
        %v860 = vpop.xlane.xlu0 %859
        %v861 = vmul.f32 %v860, %v854
        %v862 = vadd.f32 %v861, 1e-05
        %v863 = vrsqrt.pop %v862
        %v864 = vmul.f32 %v856, %v863
        %v865 = vlaneseq
        %v866 = vshrl.u32 %v865, 7
        %v867 = vsub.s32 4, %v866
        %v868 = vrot.slane %v364, %v867
        %v869 = vmul.f32 %v864, %v868
        %v870 = vlaneseq
        %v871 = vshrl.u32 %v870, 7
        %v872 = vsub.s32 5, %v871
        %v873 = vrot.slane %v364, %v872
        %v874 = vadd.f32 %v869, %v873
        %v875 = vadd.f32 %v362, %v874
        %v876 = vld [vmem:[%s5] sm:$0xf]
        %v877 = vld [vmem:[#allocation5] sm:$0xff]
        %v878 = vld [vmem:[#allocation5 + $0x8] sm:$0xff]
        %v879 = vld [vmem:[#allocation5 + $0x10] sm:$0xff]
        %v880 = vld [vmem:[#allocation5 + $0x18] sm:$0xff]
        %v881 = vld [vmem:[#allocation5 + $0x20] sm:$0xff]
        %v882 = vld [vmem:[#allocation5 + $0x28] sm:$0xff]
        %v883 = vld [vmem:[#allocation5 + $0x30] sm:$0xff]
        %v884 = vld [vmem:[#allocation5 + $0x38] sm:$0xff]
        %v885 = vld [vmem:[#allocation5 + $0x40] sm:$0xff]
        %v886 = vld [vmem:[#allocation5 + $0x48] sm:$0xff]
        %v887 = vld [vmem:[#allocation5 + $0x50] sm:$0xff]
        %v888 = vld [vmem:[#allocation5 + $0x58] sm:$0xff]
        %v889 = vlaneseq
        %v890 = vshrl.u32 %v889, 7
        %v891 = vsub.s32 0, %v890
        %v892 = vrot.slane %v876, %v891
        %vm893 = vcmask 785408
        %v895 = vsel %vm893, %v363, 0
        %897 = vmatprep.subr.mxu0 0.0
        %898 = vmatpush1.msra.mxu0 %v877
        %899 = vmatprep.subr.mxu0 0.0
        %900 = vmatpush1.msra.mxu0 %v878
        %901 = vmatprep.subr.mxu0 0.0
        %902 = vmatpush1.msra.mxu0 %v879
        %903 = vmatprep.subr.mxu0 0.0
        %904 = vmatpush1.msra.mxu0 %v880
        %905 = vmatprep.subr.mxu0 0.0
        %906 = vmatpush1.msra.mxu0 %v881
        %907 = vmatprep.subr.mxu0 0.0
        %908 = vmatpush1.msra.mxu0 %v882
        %909 = vmatprep.subr.mxu0 0.0
        %910 = vmatpush1.msra.mxu0 %v883
        %911 = vmatprep.subr.mxu0 0.0
        %912 = vmatpush1.msra.mxu0 %v884
        %913 = vmatprep.subr.mxu0 0.0
        %914 = vmatpush1.msra.mxu0 %v885
        %915 = vmatprep.subr.mxu0 0.0
        %916 = vmatpush1.msra.mxu0 %v886
        %917 = vmatprep.subr.mxu0 0.0
        %918 = vmatpush1.msra.mxu0 %v887
        %919 = vmatprep.subr.mxu0 0.0
        %920 = vmatpush1.msra.mxu0 %v888
        %921 = vmatprep.subr.mxu0 0.0
        %922 = vmatpush1.msra.mxu0 0.0
        %923 = vmatprep.subr.mxu0 0.0
        %924 = vmatpush1.msra.mxu0 0.0
        %925 = vmatprep.subr.mxu0 0.0
        %926 = vmatpush1.msra.mxu0 0.0
        %927 = vmatprep.subr.mxu0 0.0
        %928 = vmatpush1.msra.mxu0 0.0
        %929 = vmatprep.subr.mxu0 0.0
        %930 = vmatpush1.msra.mxu0 0.0
        %931 = vmatprep.subr.mxu0 0.0
        %932 = vmatpush1.msra.mxu0 0.0
        %933 = vmatprep.subr.mxu0 0.0
        %934 = vmatpush1.msra.mxu0 0.0
        %935 = vmatprep.subr.mxu0 0.0
        %936 = vmatpush1.msra.mxu0 0.0
        %937 = vmatprep.subr.mxu0 0.0
        %938 = vmatpush1.msra.mxu0 0.0
        %939 = vmatprep.subr.mxu0 0.0
        %940 = vmatpush1.msra.mxu0 0.0
        %941 = vmatprep.subr.mxu0 0.0
        %942 = vmatpush1.msra.mxu0 0.0
        %943 = vmatprep.subr.mxu0 0.0
        %944 = vmatpush1.msra.mxu0 0.0
        %945 = vmatprep.subr.mxu0 0.0
        %946 = vmatpush1.msra.mxu0 0.0
        %947 = vmatprep.subr.mxu0 0.0
        %948 = vmatpush1.msra.mxu0 0.0
        %949 = vmatprep.subr.mxu0 0.0
        %950 = vmatpush1.msra.mxu0 0.0
        %951 = vmatprep.subr.mxu0 0.0
        %952 = vmatpush1.msra.mxu0 0.0
        %953 = vmatprep.subr.mxu0 0.0
        %954 = vmatpush1.msra.mxu0 0.0
        %955 = vmatprep.subr.mxu0 0.0
        %956 = vmatpush1.msra.mxu0 0.0
        %957 = vmatprep.subr.mxu0 0.0
        %958 = vmatpush1.msra.mxu0 0.0
        %959 = vmatprep.subr.mxu0 0.0
        %960 = vmatpush1.msra.mxu0 0.0
        %961 = vmatprep.mubr.f32.mxu0 0.0
        %962 = vmatmul.mubr.f32.gmra.mrb[0].mxu0 %v895
        %v963 = vpop.f32.mrb[0].mxu0
        %v964 = vadd.f32 %v892, %v963
        %v965 = vpop.f32.mrb[0].mxu0
        %966 = vdwg.mxu0
        %967 = vmatprep.subr.mxu0 0.0
        %968 = vmatpush1.msra.mxu0 %v964
        %969 = vmatprep.subr.mxu0 0.0
        %970 = vmatpush1.msra.mxu0 0.0
        %971 = vmatprep.subr.mxu0 0.0
        %972 = vmatpush1.msra.mxu0 0.0
        %973 = vmatprep.subr.mxu0 0.0
        %974 = vmatpush1.msra.mxu0 0.0
        %975 = vmatprep.subr.mxu0 0.0
        %976 = vmatpush1.msra.mxu0 0.0
        %977 = vmatprep.subr.mxu0 0.0
        %978 = vmatpush1.msra.mxu0 0.0
        %979 = vmatprep.subr.mxu0 0.0
        %980 = vmatpush1.msra.mxu0 0.0
        %981 = vmatprep.subr.mxu0 0.0
        %982 = vmatpush1.msra.mxu0 0.0
        %983 = vmatprep.subr.mxu0 0.0
        %984 = vmatpush1.msra.mxu0 0.0
        %985 = vmatprep.subr.mxu0 0.0
        %986 = vmatpush1.msra.mxu0 0.0
        %987 = vmatprep.subr.mxu0 0.0
        %988 = vmatpush1.msra.mxu0 0.0
        %989 = vmatprep.subr.mxu0 0.0
        %990 = vmatpush1.msra.mxu0 0.0
        %991 = vmatprep.subr.mxu0 0.0
        %992 = vmatpush1.msra.mxu0 0.0
        %993 = vmatprep.subr.mxu0 0.0
        %994 = vmatpush1.msra.mxu0 0.0
        %995 = vmatprep.subr.mxu0 0.0
        %996 = vmatpush1.msra.mxu0 0.0
        %997 = vmatprep.subr.mxu0 0.0
        %998 = vmatpush1.msra.mxu0 0.0
        %999 = vmatprep.subr.mxu0 0.0
        %1000 = vmatpush1.msra.mxu0 0.0
        %1001 = vmatprep.subr.mxu0 0.0
        %1002 = vmatpush1.msra.mxu0 0.0
        %1003 = vmatprep.subr.mxu0 0.0
        %1004 = vmatpush1.msra.mxu0 0.0
        %1005 = vmatprep.subr.mxu0 0.0
        %1006 = vmatpush1.msra.mxu0 0.0
        %1007 = vmatprep.subr.mxu0 0.0
        %1008 = vmatpush1.msra.mxu0 0.0
        %1009 = vmatprep.subr.mxu0 0.0
        %1010 = vmatpush1.msra.mxu0 0.0
        %1011 = vmatprep.subr.mxu0 0.0
        %1012 = vmatpush1.msra.mxu0 0.0
        %1013 = vmatprep.subr.mxu0 0.0
        %1014 = vmatpush1.msra.mxu0 0.0
        %1015 = vmatprep.subr.mxu0 0.0
        %1016 = vmatpush1.msra.mxu0 0.0
        %1017 = vmatprep.subr.mxu0 0.0
        %1018 = vmatpush1.msra.mxu0 0.0
        %1019 = vmatprep.subr.mxu0 0.0
        %1020 = vmatpush1.msra.mxu0 0.0
        %1021 = vmatprep.subr.mxu0 0.0
        %1022 = vmatpush1.msra.mxu0 0.0
        %1023 = vmatprep.subr.mxu0 0.0
        %1024 = vmatpush1.msra.mxu0 0.0
        %1025 = vmatprep.subr.mxu0 0.0
        %1026 = vmatpush1.msra.mxu0 0.0
        %1027 = vmatprep.subr.mxu0 0.0
        %1028 = vmatpush1.msra.mxu0 0.0
        %1029 = vmatprep.subr.mxu0 0.0
        %1030 = vmatpush1.msra.mxu0 0.0
        %1031 = vmatprep.mubr.f32.mxu0 0.0
        %1032 = vmatmul.mubr.f32.gmra.mrb[0].mxu0 %v697
        %v1033 = vpop.f32.mrb[0].mxu0
        %v1034 = vadd.f32 0.0, %v1033
        %v1035 = vpop.f32.mrb[0].mxu0
        %1036 = vdwg.mxu0
        %s1037 = scalar_lea.vmem [#allocation5], 96
        %v1038 = vld [vmem:[%s1037] sm:$0xff]
        %v1039 = vld [vmem:[%s1037 + $0x8] sm:$0xff]
        %v1040 = vld [vmem:[%s1037 + $0x10] sm:$0xff]
        %v1041 = vld [vmem:[%s1037 + $0x18] sm:$0xff]
        %v1042 = vld [vmem:[%s1037 + $0x20] sm:$0xff]
        %v1043 = vld [vmem:[%s1037 + $0x28] sm:$0xff]
        %v1044 = vld [vmem:[%s1037 + $0x30] sm:$0xff]
        %v1045 = vld [vmem:[%s1037 + $0x38] sm:$0xff]
        %v1046 = vld [vmem:[%s1037 + $0x40] sm:$0xff]
        %v1047 = vld [vmem:[%s1037 + $0x48] sm:$0xff]
        %v1048 = vld [vmem:[%s1037 + $0x50] sm:$0xff]
        %v1049 = vld [vmem:[%s1037 + $0x58] sm:$0xff]
        %v1050 = vlaneseq
        %v1051 = vshrl.u32 %v1050, 7
        %v1052 = vsub.s32 1, %v1051
        %v1053 = vrot.slane %v876, %v1052
        %v1055 = vsel %vm893, %v1034, 0
        %1057 = vmatprep.subr.mxu0 0.0
        %1058 = vmatpush1.msra.mxu0 %v1038
        %1059 = vmatprep.subr.mxu0 0.0
        %1060 = vmatpush1.msra.mxu0 %v1039
        %1061 = vmatprep.subr.mxu0 0.0
        %1062 = vmatpush1.msra.mxu0 %v1040
        %1063 = vmatprep.subr.mxu0 0.0
        %1064 = vmatpush1.msra.mxu0 %v1041
        %1065 = vmatprep.subr.mxu0 0.0
        %1066 = vmatpush1.msra.mxu0 %v1042
        %1067 = vmatprep.subr.mxu0 0.0
        %1068 = vmatpush1.msra.mxu0 %v1043
        %1069 = vmatprep.subr.mxu0 0.0
        %1070 = vmatpush1.msra.mxu0 %v1044
        %1071 = vmatprep.subr.mxu0 0.0
        %1072 = vmatpush1.msra.mxu0 %v1045
        %1073 = vmatprep.subr.mxu0 0.0
        %1074 = vmatpush1.msra.mxu0 %v1046
        %1075 = vmatprep.subr.mxu0 0.0
        %1076 = vmatpush1.msra.mxu0 %v1047
        %1077 = vmatprep.subr.mxu0 0.0
        %1078 = vmatpush1.msra.mxu0 %v1048
        %1079 = vmatprep.subr.mxu0 0.0
        %1080 = vmatpush1.msra.mxu0 %v1049
        %1081 = vmatprep.subr.mxu0 0.0
        %1082 = vmatpush1.msra.mxu0 0.0
        %1083 = vmatprep.subr.mxu0 0.0
        %1084 = vmatpush1.msra.mxu0 0.0
        %1085 = vmatprep.subr.mxu0 0.0
        %1086 = vmatpush1.msra.mxu0 0.0
        %1087 = vmatprep.subr.mxu0 0.0
        %1088 = vmatpush1.msra.mxu0 0.0
        %1089 = vmatprep.subr.mxu0 0.0
        %1090 = vmatpush1.msra.mxu0 0.0
        %1091 = vmatprep.subr.mxu0 0.0
        %1092 = vmatpush1.msra.mxu0 0.0
        %1093 = vmatprep.subr.mxu0 0.0
        %1094 = vmatpush1.msra.mxu0 0.0
        %1095 = vmatprep.subr.mxu0 0.0
        %1096 = vmatpush1.msra.mxu0 0.0
        %1097 = vmatprep.subr.mxu0 0.0
        %1098 = vmatpush1.msra.mxu0 0.0
        %1099 = vmatprep.subr.mxu0 0.0
        %1100 = vmatpush1.msra.mxu0 0.0
        %1101 = vmatprep.subr.mxu0 0.0
        %1102 = vmatpush1.msra.mxu0 0.0
        %1103 = vmatprep.subr.mxu0 0.0
        %1104 = vmatpush1.msra.mxu0 0.0
        %1105 = vmatprep.subr.mxu0 0.0
        %1106 = vmatpush1.msra.mxu0 0.0
        %1107 = vmatprep.subr.mxu0 0.0
        %1108 = vmatpush1.msra.mxu0 0.0
        %1109 = vmatprep.subr.mxu0 0.0
        %1110 = vmatpush1.msra.mxu0 0.0
        %1111 = vmatprep.subr.mxu0 0.0
        %1112 = vmatpush1.msra.mxu0 0.0
        %1113 = vmatprep.subr.mxu0 0.0
        %1114 = vmatpush1.msra.mxu0 0.0
        %1115 = vmatprep.subr.mxu0 0.0
        %1116 = vmatpush1.msra.mxu0 0.0
        %1117 = vmatprep.subr.mxu0 0.0
        %1118 = vmatpush1.msra.mxu0 0.0
        %1119 = vmatprep.subr.mxu0 0.0
        %1120 = vmatpush1.msra.mxu0 0.0
        %1121 = vmatprep.mubr.f32.mxu0 0.0
        %1122 = vmatmul.mubr.f32.gmra.mrb[0].mxu0 %v1055
        %v1123 = vpop.f32.mrb[0].mxu0
        %v1124 = vadd.f32 %v1053, %v1123
        %v1125 = vpop.f32.mrb[0].mxu0
        %1126 = vdwg.mxu0
        %v1127 = vadd.f32 %v1124, %v363
        %v1128 = vsel %vm893, %v1127, 0.0
        %1129 = vadd.xlane.f32.xlu0 %v1128
        %v1130 = vpop.xlane.xlu0 %1129
        %v1131 = vrcp.pop 96.0
        %v1132 = vmul.f32 %v1130, %v1131
        %v1133 = vsub.f32 %v1127, %v1132
        %v1134 = vmul.f32 %v1133, %v1133
        %v1135 = vsel %vm893, %v1134, 0.0
        %1136 = vadd.xlane.f32.xlu0 %v1135
        %v1137 = vpop.xlane.xlu0 %1136
        %v1138 = vmul.f32 %v1137, %v1131
        %v1139 = vadd.f32 %v1138, 1e-05
        %v1140 = vrsqrt.pop %v1139
        %v1141 = vmul.f32 %v1133, %v1140
        %v1142 = vlaneseq
        %v1143 = vshrl.u32 %v1142, 7
        %v1144 = vsub.s32 2, %v1143
        %v1145 = vrot.slane %v876, %v1144
        %v1146 = vmul.f32 %v1141, %v1145
        %v1147 = vlaneseq
        %v1148 = vshrl.u32 %v1147, 7
        %v1149 = vsub.s32 3, %v1148
        %v1150 = vrot.slane %v876, %v1149
        %v1151 = vadd.f32 %v1146, %v1150
        %s1152 = scalar_lea.vmem %s3, 8
        %v1153 = vld [vmem:[%s1152] sm:$0x3f]
        %s1154 = scalar_lea.vmem [#allocation2], 128
        %v1155 = vld [vmem:[%s1154] sm:$0xff]
        %v1156 = vld [vmem:[%s1154 + $0x8] sm:$0xff]
        %v1157 = vld [vmem:[%s1154 + $0x10] sm:$0xff]
        %v1158 = vld [vmem:[%s1154 + $0x18] sm:$0xff]
        %v1159 = vlaneseq
        %v1160 = vshrl.u32 %v1159, 7
        %v1161 = vsub.s32 0, %v1160
        %v1162 = vrot.slane %v1153, %v1161
        %v1164 = vsel %vm373, %v875, 0
        %1166 = vmatprep.subr.mxu0 0.0
        %1167 = vmatpush1.msra.mxu0 %v1155
        %1168 = vmatprep.subr.mxu0 0.0
        %1169 = vmatpush1.msra.mxu0 %v1156
        %1170 = vmatprep.subr.mxu0 0.0
        %1171 = vmatpush1.msra.mxu0 %v1157
        %1172 = vmatprep.subr.mxu0 0.0
        %1173 = vmatpush1.msra.mxu0 %v1158
        %1174 = vmatprep.subr.mxu0 0.0
        %1175 = vmatpush1.msra.mxu0 0.0
        %1176 = vmatprep.subr.mxu0 0.0
        %1177 = vmatpush1.msra.mxu0 0.0
        %1178 = vmatprep.subr.mxu0 0.0
        %1179 = vmatpush1.msra.mxu0 0.0
        %1180 = vmatprep.subr.mxu0 0.0
        %1181 = vmatpush1.msra.mxu0 0.0
        %1182 = vmatprep.subr.mxu0 0.0
        %1183 = vmatpush1.msra.mxu0 0.0
        %1184 = vmatprep.subr.mxu0 0.0
        %1185 = vmatpush1.msra.mxu0 0.0
        %1186 = vmatprep.subr.mxu0 0.0
        %1187 = vmatpush1.msra.mxu0 0.0
        %1188 = vmatprep.subr.mxu0 0.0
        %1189 = vmatpush1.msra.mxu0 0.0
        %1190 = vmatprep.subr.mxu0 0.0
        %1191 = vmatpush1.msra.mxu0 0.0
        %1192 = vmatprep.subr.mxu0 0.0
        %1193 = vmatpush1.msra.mxu0 0.0
        %1194 = vmatprep.subr.mxu0 0.0
        %1195 = vmatpush1.msra.mxu0 0.0
        %1196 = vmatprep.subr.mxu0 0.0
        %1197 = vmatpush1.msra.mxu0 0.0
        %1198 = vmatprep.subr.mxu0 0.0
        %1199 = vmatpush1.msra.mxu0 0.0
        %1200 = vmatprep.subr.mxu0 0.0
        %1201 = vmatpush1.msra.mxu0 0.0
        %1202 = vmatprep.subr.mxu0 0.0
        %1203 = vmatpush1.msra.mxu0 0.0
        %1204 = vmatprep.subr.mxu0 0.0
        %1205 = vmatpush1.msra.mxu0 0.0
        %1206 = vmatprep.subr.mxu0 0.0
        %1207 = vmatpush1.msra.mxu0 0.0
        %1208 = vmatprep.subr.mxu0 0.0
        %1209 = vmatpush1.msra.mxu0 0.0
        %1210 = vmatprep.subr.mxu0 0.0
        %1211 = vmatpush1.msra.mxu0 0.0
        %1212 = vmatprep.subr.mxu0 0.0
        %1213 = vmatpush1.msra.mxu0 0.0
        %1214 = vmatprep.subr.mxu0 0.0
        %1215 = vmatpush1.msra.mxu0 0.0
        %1216 = vmatprep.subr.mxu0 0.0
        %1217 = vmatpush1.msra.mxu0 0.0
        %1218 = vmatprep.subr.mxu0 0.0
        %1219 = vmatpush1.msra.mxu0 0.0
        %1220 = vmatprep.subr.mxu0 0.0
        %1221 = vmatpush1.msra.mxu0 0.0
        %1222 = vmatprep.subr.mxu0 0.0
        %1223 = vmatpush1.msra.mxu0 0.0
        %1224 = vmatprep.subr.mxu0 0.0
        %1225 = vmatpush1.msra.mxu0 0.0
        %1226 = vmatprep.subr.mxu0 0.0
        %1227 = vmatpush1.msra.mxu0 0.0
        %1228 = vmatprep.subr.mxu0 0.0
        %1229 = vmatpush1.msra.mxu0 0.0
        %1230 = vmatprep.mubr.f32.mxu0 0.0
        %1231 = vmatmul.mubr.f32.gmra.mrb[0].mxu0 %v1164
        %v1232 = vpop.f32.mrb[0].mxu0
        %v1233 = vadd.f32 %v1162, %v1232
        %v1234 = vpop.f32.mrb[0].mxu0
        %1235 = vdwg.mxu0
        %s1236 = scalar_lea.vmem [#allocation2], 160
        %v1237 = vld [vmem:[%s1236] sm:$0xff]
        %v1238 = vld [vmem:[%s1236 + $0x8] sm:$0xff]
        %v1239 = vld [vmem:[%s1236 + $0x10] sm:$0xff]
        %v1240 = vld [vmem:[%s1236 + $0x18] sm:$0xff]
        %v1241 = vlaneseq
        %v1242 = vshrl.u32 %v1241, 7
        %v1243 = vsub.s32 1, %v1242
        %v1244 = vrot.slane %v1153, %v1243
        %1245 = vmatprep.subr.mxu0 0.0
        %1246 = vmatpush1.msra.mxu0 %v1237
        %1247 = vmatprep.subr.mxu0 0.0
        %1248 = vmatpush1.msra.mxu0 %v1238
        %1249 = vmatprep.subr.mxu0 0.0
        %1250 = vmatpush1.msra.mxu0 %v1239
        %1251 = vmatprep.subr.mxu0 0.0
        %1252 = vmatpush1.msra.mxu0 %v1240
        %1253 = vmatprep.subr.mxu0 0.0
        %1254 = vmatpush1.msra.mxu0 0.0
        %1255 = vmatprep.subr.mxu0 0.0
        %1256 = vmatpush1.msra.mxu0 0.0
        %1257 = vmatprep.subr.mxu0 0.0
        %1258 = vmatpush1.msra.mxu0 0.0
        %1259 = vmatprep.subr.mxu0 0.0
        %1260 = vmatpush1.msra.mxu0 0.0
        %1261 = vmatprep.subr.mxu0 0.0
        %1262 = vmatpush1.msra.mxu0 0.0
        %1263 = vmatprep.subr.mxu0 0.0
        %1264 = vmatpush1.msra.mxu0 0.0
        %1265 = vmatprep.subr.mxu0 0.0
        %1266 = vmatpush1.msra.mxu0 0.0
        %1267 = vmatprep.subr.mxu0 0.0
        %1268 = vmatpush1.msra.mxu0 0.0
        %1269 = vmatprep.subr.mxu0 0.0
        %1270 = vmatpush1.msra.mxu0 0.0
        %1271 = vmatprep.subr.mxu0 0.0
        %1272 = vmatpush1.msra.mxu0 0.0
        %1273 = vmatprep.subr.mxu0 0.0
        %1274 = vmatpush1.msra.mxu0 0.0
        %1275 = vmatprep.subr.mxu0 0.0
        %1276 = vmatpush1.msra.mxu0 0.0
        %1277 = vmatprep.subr.mxu0 0.0
        %1278 = vmatpush1.msra.mxu0 0.0
        %1279 = vmatprep.subr.mxu0 0.0
        %1280 = vmatpush1.msra.mxu0 0.0
        %1281 = vmatprep.subr.mxu0 0.0
        %1282 = vmatpush1.msra.mxu0 0.0
        %1283 = vmatprep.subr.mxu0 0.0
        %1284 = vmatpush1.msra.mxu0 0.0
        %1285 = vmatprep.subr.mxu0 0.0
        %1286 = vmatpush1.msra.mxu0 0.0
        %1287 = vmatprep.subr.mxu0 0.0
        %1288 = vmatpush1.msra.mxu0 0.0
        %1289 = vmatprep.subr.mxu0 0.0
        %1290 = vmatpush1.msra.mxu0 0.0
        %1291 = vmatprep.subr.mxu0 0.0
        %1292 = vmatpush1.msra.mxu0 0.0
        %1293 = vmatprep.subr.mxu0 0.0
        %1294 = vmatpush1.msra.mxu0 0.0
        %1295 = vmatprep.subr.mxu0 0.0
        %1296 = vmatpush1.msra.mxu0 0.0
        %1297 = vmatprep.subr.mxu0 0.0
        %1298 = vmatpush1.msra.mxu0 0.0
        %1299 = vmatprep.subr.mxu0 0.0
        %1300 = vmatpush1.msra.mxu0 0.0
        %1301 = vmatprep.subr.mxu0 0.0
        %1302 = vmatpush1.msra.mxu0 0.0
        %1303 = vmatprep.subr.mxu0 0.0
        %1304 = vmatpush1.msra.mxu0 0.0
        %1305 = vmatprep.subr.mxu0 0.0
        %1306 = vmatpush1.msra.mxu0 0.0
        %1307 = vmatprep.subr.mxu0 0.0
        %1308 = vmatpush1.msra.mxu0 0.0
        %1309 = vmatprep.mubr.f32.mxu0 0.0
        %1310 = vmatmul.mubr.f32.gmra.mrb[0].mxu0 %v1164
        %v1311 = vpop.f32.mrb[0].mxu0
        %v1312 = vadd.f32 %v1244, %v1311
        %v1313 = vpop.f32.mrb[0].mxu0
        %1314 = vdwg.mxu0
        %v1316 = vsel %vm373, %v1233, 0
        %v1319 = vsel %vm373, %v1312, 0
        %1321 = vmatprep.subr.mxu0 0.0
        %1322 = vmatpush1.xpose.msra.mxu0 %v1319
        %1323 = vmatprep.subr.mxu0 0.0
        %1324 = vmatpush1.xpose.msra.mxu0 0.0
        %1325 = vmatprep.subr.mxu0 0.0
        %1326 = vmatpush1.xpose.msra.mxu0 0.0
        %1327 = vmatprep.subr.mxu0 0.0
        %1328 = vmatpush1.xpose.msra.mxu0 0.0
        %1329 = vmatprep.subr.mxu0 0.0
        %1330 = vmatpush1.xpose.msra.mxu0 0.0
        %1331 = vmatprep.subr.mxu0 0.0
        %1332 = vmatpush1.xpose.msra.mxu0 0.0
        %1333 = vmatprep.subr.mxu0 0.0
        %1334 = vmatpush1.xpose.msra.mxu0 0.0
        %1335 = vmatprep.subr.mxu0 0.0
        %1336 = vmatpush1.xpose.msra.mxu0 0.0
        %1337 = vmatprep.subr.mxu0 0.0
        %1338 = vmatpush1.xpose.msra.mxu0 0.0
        %1339 = vmatprep.subr.mxu0 0.0
        %1340 = vmatpush1.xpose.msra.mxu0 0.0
        %1341 = vmatprep.subr.mxu0 0.0
        %1342 = vmatpush1.xpose.msra.mxu0 0.0
        %1343 = vmatprep.subr.mxu0 0.0
        %1344 = vmatpush1.xpose.msra.mxu0 0.0
        %1345 = vmatprep.subr.mxu0 0.0
        %1346 = vmatpush1.xpose.msra.mxu0 0.0
        %1347 = vmatprep.subr.mxu0 0.0
        %1348 = vmatpush1.xpose.msra.mxu0 0.0
        %1349 = vmatprep.subr.mxu0 0.0
        %1350 = vmatpush1.xpose.msra.mxu0 0.0
        %1351 = vmatprep.subr.mxu0 0.0
        %1352 = vmatpush1.xpose.msra.mxu0 0.0
        %1353 = vmatprep.subr.mxu0 0.0
        %1354 = vmatpush1.xpose.msra.mxu0 0.0
        %1355 = vmatprep.subr.mxu0 0.0
        %1356 = vmatpush1.xpose.msra.mxu0 0.0
        %1357 = vmatprep.subr.mxu0 0.0
        %1358 = vmatpush1.xpose.msra.mxu0 0.0
        %1359 = vmatprep.subr.mxu0 0.0
        %1360 = vmatpush1.xpose.msra.mxu0 0.0
        %1361 = vmatprep.subr.mxu0 0.0
        %1362 = vmatpush1.xpose.msra.mxu0 0.0
        %1363 = vmatprep.subr.mxu0 0.0
        %1364 = vmatpush1.xpose.msra.mxu0 0.0
        %1365 = vmatprep.subr.mxu0 0.0
        %1366 = vmatpush1.xpose.msra.mxu0 0.0
        %1367 = vmatprep.subr.mxu0 0.0
        %1368 = vmatpush1.xpose.msra.mxu0 0.0
        %1369 = vmatprep.subr.mxu0 0.0
        %1370 = vmatpush1.xpose.msra.mxu0 0.0
        %1371 = vmatprep.subr.mxu0 0.0
        %1372 = vmatpush1.xpose.msra.mxu0 0.0
        %1373 = vmatprep.subr.mxu0 0.0
        %1374 = vmatpush1.xpose.msra.mxu0 0.0
        %1375 = vmatprep.subr.mxu0 0.0
        %1376 = vmatpush1.xpose.msra.mxu0 0.0
        %1377 = vmatprep.subr.mxu0 0.0
        %1378 = vmatpush1.xpose.msra.mxu0 0.0
        %1379 = vmatprep.subr.mxu0 0.0
        %1380 = vmatpush1.xpose.msra.mxu0 0.0
        %1381 = vmatprep.subr.mxu0 0.0
        %1382 = vmatpush1.xpose.msra.mxu0 0.0
        %1383 = vmatprep.subr.mxu0 0.0
        %1384 = vmatpush1.xpose.msra.mxu0 0.0
        %1385 = vmatprep.mubr.f32.mxu0 0.0
        %1386 = vmatmul.mubr.f32.gmra.mrb[0].mxu0 %v1316
        %v1387 = vpop.f32.mrb[0].mxu0
        %v1388 = vadd.f32 0.0, %v1387
        %v1389 = vpop.f32.mrb[0].mxu0
        %1390 = vdwg.mxu0
        %v1391 = vsel %vm602, %v1388, -inf
        %1392 = vmax.xlane.f32.xlu0 %v1391
        %v1393 = vpop.xlane.xlu0 %1392
        %v1394 = vsub.f32 %v1388, %v1393
        %v1395 = vmul.f32 %v1394, 1.442695
        %v1396 = vpow.pop %v1395
        %v1397 = vsel %vm602, %v1396, 0.0
        %1398 = vadd.xlane.f32.xlu0 %v1397
        %v1399 = vpop.xlane.xlu0 %1398
        %v1400 = vrcp.pop %v1399
        %v1401 = vmul.f32 %v1399, %v1400
        %v1402 = vsub.f32 2.0, %v1401
        %v1403 = vmul.f32 %v1400, %v1402
        %v1404 = vmul.f32 %v1396, %v1403
        %s1405 = scalar_lea.vmem [#allocation2], 192
        %v1406 = vld [vmem:[%s1405] sm:$0xff]
        %v1407 = vld [vmem:[%s1405 + $0x8] sm:$0xff]
        %v1408 = vld [vmem:[%s1405 + $0x10] sm:$0xff]
        %v1409 = vld [vmem:[%s1405 + $0x18] sm:$0xff]
        %v1410 = vlaneseq
        %v1411 = vshrl.u32 %v1410, 7
        %v1412 = vsub.s32 2, %v1411
        %v1413 = vrot.slane %v1153, %v1412
        %1414 = vmatprep.subr.mxu0 0.0
        %1415 = vmatpush1.msra.mxu0 %v1406
        %1416 = vmatprep.subr.mxu0 0.0
        %1417 = vmatpush1.msra.mxu0 %v1407
        %1418 = vmatprep.subr.mxu0 0.0
        %1419 = vmatpush1.msra.mxu0 %v1408
        %1420 = vmatprep.subr.mxu0 0.0
        %1421 = vmatpush1.msra.mxu0 %v1409
        %1422 = vmatprep.subr.mxu0 0.0
        %1423 = vmatpush1.msra.mxu0 0.0
        %1424 = vmatprep.subr.mxu0 0.0
        %1425 = vmatpush1.msra.mxu0 0.0
        %1426 = vmatprep.subr.mxu0 0.0
        %1427 = vmatpush1.msra.mxu0 0.0
        %1428 = vmatprep.subr.mxu0 0.0
        %1429 = vmatpush1.msra.mxu0 0.0
        %1430 = vmatprep.subr.mxu0 0.0
        %1431 = vmatpush1.msra.mxu0 0.0
        %1432 = vmatprep.subr.mxu0 0.0
        %1433 = vmatpush1.msra.mxu0 0.0
        %1434 = vmatprep.subr.mxu0 0.0
        %1435 = vmatpush1.msra.mxu0 0.0
        %1436 = vmatprep.subr.mxu0 0.0
        %1437 = vmatpush1.msra.mxu0 0.0
        %1438 = vmatprep.subr.mxu0 0.0
        %1439 = vmatpush1.msra.mxu0 0.0
        %1440 = vmatprep.subr.mxu0 0.0
        %1441 = vmatpush1.msra.mxu0 0.0
        %1442 = vmatprep.subr.mxu0 0.0
        %1443 = vmatpush1.msra.mxu0 0.0
        %1444 = vmatprep.subr.mxu0 0.0
        %1445 = vmatpush1.msra.mxu0 0.0
        %1446 = vmatprep.subr.mxu0 0.0
        %1447 = vmatpush1.msra.mxu0 0.0
        %1448 = vmatprep.subr.mxu0 0.0
        %1449 = vmatpush1.msra.mxu0 0.0
        %1450 = vmatprep.subr.mxu0 0.0
        %1451 = vmatpush1.msra.mxu0 0.0
        %1452 = vmatprep.subr.mxu0 0.0
        %1453 = vmatpush1.msra.mxu0 0.0
        %1454 = vmatprep.subr.mxu0 0.0
        %1455 = vmatpush1.msra.mxu0 0.0
        %1456 = vmatprep.subr.mxu0 0.0
        %1457 = vmatpush1.msra.mxu0 0.0
        %1458 = vmatprep.subr.mxu0 0.0
        %1459 = vmatpush1.msra.mxu0 0.0
        %1460 = vmatprep.subr.mxu0 0.0
        %1461 = vmatpush1.msra.mxu0 0.0
        %1462 = vmatprep.subr.mxu0 0.0
        %1463 = vmatpush1.msra.mxu0 0.0
        %1464 = vmatprep.subr.mxu0 0.0
        %1465 = vmatpush1.msra.mxu0 0.0
        %1466 = vmatprep.subr.mxu0 0.0
        %1467 = vmatpush1.msra.mxu0 0.0
        %1468 = vmatprep.subr.mxu0 0.0
        %1469 = vmatpush1.msra.mxu0 0.0
        %1470 = vmatprep.subr.mxu0 0.0
        %1471 = vmatpush1.msra.mxu0 0.0
        %1472 = vmatprep.subr.mxu0 0.0
        %1473 = vmatpush1.msra.mxu0 0.0
        %1474 = vmatprep.subr.mxu0 0.0
        %1475 = vmatpush1.msra.mxu0 0.0
        %1476 = vmatprep.subr.mxu0 0.0
        %1477 = vmatpush1.msra.mxu0 0.0
        %1478 = vmatprep.mubr.f32.mxu0 0.0
        %1479 = vmatmul.mubr.f32.gmra.mrb[0].mxu0 %v1164
        %v1480 = vpop.f32.mrb[0].mxu0
        %v1481 = vadd.f32 %v1413, %v1480
        %v1482 = vpop.f32.mrb[0].mxu0
        %1483 = vdwg.mxu0
        %v1485 = vsel %vm602, %v1404, 0
        %1487 = vmatprep.subr.mxu0 0.0
        %1488 = vmatpush1.msra.mxu0 %v1481
        %1489 = vmatprep.subr.mxu0 0.0
        %1490 = vmatpush1.msra.mxu0 0.0
        %1491 = vmatprep.subr.mxu0 0.0
        %1492 = vmatpush1.msra.mxu0 0.0
        %1493 = vmatprep.subr.mxu0 0.0
        %1494 = vmatpush1.msra.mxu0 0.0
        %1495 = vmatprep.subr.mxu0 0.0
        %1496 = vmatpush1.msra.mxu0 0.0
        %1497 = vmatprep.subr.mxu0 0.0
        %1498 = vmatpush1.msra.mxu0 0.0
        %1499 = vmatprep.subr.mxu0 0.0
        %1500 = vmatpush1.msra.mxu0 0.0
        %1501 = vmatprep.subr.mxu0 0.0
        %1502 = vmatpush1.msra.mxu0 0.0
        %1503 = vmatprep.subr.mxu0 0.0
        %1504 = vmatpush1.msra.mxu0 0.0
        %1505 = vmatprep.subr.mxu0 0.0
        %1506 = vmatpush1.msra.mxu0 0.0
        %1507 = vmatprep.subr.mxu0 0.0
        %1508 = vmatpush1.msra.mxu0 0.0
        %1509 = vmatprep.subr.mxu0 0.0
        %1510 = vmatpush1.msra.mxu0 0.0
        %1511 = vmatprep.subr.mxu0 0.0
        %1512 = vmatpush1.msra.mxu0 0.0
        %1513 = vmatprep.subr.mxu0 0.0
        %1514 = vmatpush1.msra.mxu0 0.0
        %1515 = vmatprep.subr.mxu0 0.0
        %1516 = vmatpush1.msra.mxu0 0.0
        %1517 = vmatprep.subr.mxu0 0.0
        %1518 = vmatpush1.msra.mxu0 0.0
        %1519 = vmatprep.subr.mxu0 0.0
        %1520 = vmatpush1.msra.mxu0 0.0
        %1521 = vmatprep.subr.mxu0 0.0
        %1522 = vmatpush1.msra.mxu0 0.0
        %1523 = vmatprep.subr.mxu0 0.0
        %1524 = vmatpush1.msra.mxu0 0.0
        %1525 = vmatprep.subr.mxu0 0.0
        %1526 = vmatpush1.msra.mxu0 0.0
        %1527 = vmatprep.subr.mxu0 0.0
        %1528 = vmatpush1.msra.mxu0 0.0
        %1529 = vmatprep.subr.mxu0 0.0
        %1530 = vmatpush1.msra.mxu0 0.0
        %1531 = vmatprep.subr.mxu0 0.0
        %1532 = vmatpush1.msra.mxu0 0.0
        %1533 = vmatprep.subr.mxu0 0.0
        %1534 = vmatpush1.msra.mxu0 0.0
        %1535 = vmatprep.subr.mxu0 0.0
        %1536 = vmatpush1.msra.mxu0 0.0
        %1537 = vmatprep.subr.mxu0 0.0
        %1538 = vmatpush1.msra.mxu0 0.0
        %1539 = vmatprep.subr.mxu0 0.0
        %1540 = vmatpush1.msra.mxu0 0.0
        %1541 = vmatprep.subr.mxu0 0.0
        %1542 = vmatpush1.msra.mxu0 0.0
        %1543 = vmatprep.subr.mxu0 0.0
        %1544 = vmatpush1.msra.mxu0 0.0
        %1545 = vmatprep.subr.mxu0 0.0
        %1546 = vmatpush1.msra.mxu0 0.0
        %1547 = vmatprep.subr.mxu0 0.0
        %1548 = vmatpush1.msra.mxu0 0.0
        %1549 = vmatprep.subr.mxu0 0.0
        %1550 = vmatpush1.msra.mxu0 0.0
        %1551 = vmatprep.mubr.f32.mxu0 0.0
        %1552 = vmatmul.mubr.f32.gmra.mrb[0].mxu0 %v1485
        %v1553 = vpop.f32.mrb[0].mxu0
        %v1554 = vadd.f32 0.0, %v1553
        %v1555 = vpop.f32.mrb[0].mxu0
        %1556 = vdwg.mxu0
        %s1557 = scalar_lea.vmem [#allocation2], 224
        %v1558 = vld [vmem:[%s1557] sm:$0xff]
        %v1559 = vld [vmem:[%s1557 + $0x8] sm:$0xff]
        %v1560 = vld [vmem:[%s1557 + $0x10] sm:$0xff]
        %v1561 = vld [vmem:[%s1557 + $0x18] sm:$0xff]
        %v1562 = vlaneseq
        %v1563 = vshrl.u32 %v1562, 7
        %v1564 = vsub.s32 3, %v1563
        %v1565 = vrot.slane %v1153, %v1564
        %v1567 = vsel %vm373, %v1554, 0
        %1569 = vmatprep.subr.mxu0 0.0
        %1570 = vmatpush1.msra.mxu0 %v1558
        %1571 = vmatprep.subr.mxu0 0.0
        %1572 = vmatpush1.msra.mxu0 %v1559
        %1573 = vmatprep.subr.mxu0 0.0
        %1574 = vmatpush1.msra.mxu0 %v1560
        %1575 = vmatprep.subr.mxu0 0.0
        %1576 = vmatpush1.msra.mxu0 %v1561
        %1577 = vmatprep.subr.mxu0 0.0
        %1578 = vmatpush1.msra.mxu0 0.0
        %1579 = vmatprep.subr.mxu0 0.0
        %1580 = vmatpush1.msra.mxu0 0.0
        %1581 = vmatprep.subr.mxu0 0.0
        %1582 = vmatpush1.msra.mxu0 0.0
        %1583 = vmatprep.subr.mxu0 0.0
        %1584 = vmatpush1.msra.mxu0 0.0
        %1585 = vmatprep.subr.mxu0 0.0
        %1586 = vmatpush1.msra.mxu0 0.0
        %1587 = vmatprep.subr.mxu0 0.0
        %1588 = vmatpush1.msra.mxu0 0.0
        %1589 = vmatprep.subr.mxu0 0.0
        %1590 = vmatpush1.msra.mxu0 0.0
        %1591 = vmatprep.subr.mxu0 0.0
        %1592 = vmatpush1.msra.mxu0 0.0
        %1593 = vmatprep.subr.mxu0 0.0
        %1594 = vmatpush1.msra.mxu0 0.0
        %1595 = vmatprep.subr.mxu0 0.0
        %1596 = vmatpush1.msra.mxu0 0.0
        %1597 = vmatprep.subr.mxu0 0.0
        %1598 = vmatpush1.msra.mxu0 0.0
        %1599 = vmatprep.subr.mxu0 0.0
        %1600 = vmatpush1.msra.mxu0 0.0
        %1601 = vmatprep.subr.mxu0 0.0
        %1602 = vmatpush1.msra.mxu0 0.0
        %1603 = vmatprep.subr.mxu0 0.0
        %1604 = vmatpush1.msra.mxu0 0.0
        %1605 = vmatprep.subr.mxu0 0.0
        %1606 = vmatpush1.msra.mxu0 0.0
        %1607 = vmatprep.subr.mxu0 0.0
        %1608 = vmatpush1.msra.mxu0 0.0
        %1609 = vmatprep.subr.mxu0 0.0
        %1610 = vmatpush1.msra.mxu0 0.0
        %1611 = vmatprep.subr.mxu0 0.0
        %1612 = vmatpush1.msra.mxu0 0.0
        %1613 = vmatprep.subr.mxu0 0.0
        %1614 = vmatpush1.msra.mxu0 0.0
        %1615 = vmatprep.subr.mxu0 0.0
        %1616 = vmatpush1.msra.mxu0 0.0
        %1617 = vmatprep.subr.mxu0 0.0
        %1618 = vmatpush1.msra.mxu0 0.0
        %1619 = vmatprep.subr.mxu0 0.0
        %1620 = vmatpush1.msra.mxu0 0.0
        %1621 = vmatprep.subr.mxu0 0.0
        %1622 = vmatpush1.msra.mxu0 0.0
        %1623 = vmatprep.subr.mxu0 0.0
        %1624 = vmatpush1.msra.mxu0 0.0
        %1625 = vmatprep.subr.mxu0 0.0
        %1626 = vmatpush1.msra.mxu0 0.0
        %1627 = vmatprep.subr.mxu0 0.0
        %1628 = vmatpush1.msra.mxu0 0.0
        %1629 = vmatprep.subr.mxu0 0.0
        %1630 = vmatpush1.msra.mxu0 0.0
        %1631 = vmatprep.subr.mxu0 0.0
        %1632 = vmatpush1.msra.mxu0 0.0
        %1633 = vmatprep.mubr.f32.mxu0 0.0
        %1634 = vmatmul.mubr.f32.gmra.mrb[0].mxu0 %v1567
        %v1635 = vpop.f32.mrb[0].mxu0
        %v1636 = vadd.f32 %v1565, %v1635
        %v1637 = vpop.f32.mrb[0].mxu0
        %1638 = vdwg.mxu0
        %v1639 = vsel %vm373, %v1636, 0.0
        %1640 = vadd.xlane.f32.xlu0 %v1639
        %v1641 = vpop.xlane.xlu0 %1640
        %v1642 = vmul.f32 %v1641, %v854
        %v1643 = vsub.f32 %v1636, %v1642
        %v1644 = vmul.f32 %v1643, %v1643
        %v1645 = vsel %vm373, %v1644, 0.0
        %1646 = vadd.xlane.f32.xlu0 %v1645
        %v1647 = vpop.xlane.xlu0 %1646
        %v1648 = vmul.f32 %v1647, %v854
        %v1649 = vadd.f32 %v1648, 1e-05
        %v1650 = vrsqrt.pop %v1649
        %v1651 = vmul.f32 %v1643, %v1650
        %v1652 = vlaneseq
        %v1653 = vshrl.u32 %v1652, 7
        %v1654 = vsub.s32 4, %v1653
        %v1655 = vrot.slane %v1153, %v1654
        %v1656 = vmul.f32 %v1651, %v1655
        %v1657 = vlaneseq
        %v1658 = vshrl.u32 %v1657, 7
        %v1659 = vsub.s32 5, %v1658
        %v1660 = vrot.slane %v1153, %v1659
        %v1661 = vadd.f32 %v1656, %v1660
        %v1662 = vadd.f32 %v875, %v1661
        %s1663 = scalar_lea.vmem %s5, 4
        %v1664 = vld [vmem:[%s1663] sm:$0xf]
        %s1665 = scalar_lea.vmem [#allocation5], 192
        %v1666 = vld [vmem:[%s1665] sm:$0xff]
        %v1667 = vld [vmem:[%s1665 + $0x8] sm:$0xff]
        %v1668 = vld [vmem:[%s1665 + $0x10] sm:$0xff]
        %v1669 = vld [vmem:[%s1665 + $0x18] sm:$0xff]
        %v1670 = vld [vmem:[%s1665 + $0x20] sm:$0xff]
        %v1671 = vld [vmem:[%s1665 + $0x28] sm:$0xff]
        %v1672 = vld [vmem:[%s1665 + $0x30] sm:$0xff]
        %v1673 = vld [vmem:[%s1665 + $0x38] sm:$0xff]
        %v1674 = vld [vmem:[%s1665 + $0x40] sm:$0xff]
        %v1675 = vld [vmem:[%s1665 + $0x48] sm:$0xff]
        %v1676 = vld [vmem:[%s1665 + $0x50] sm:$0xff]
        %v1677 = vld [vmem:[%s1665 + $0x58] sm:$0xff]
        %v1678 = vlaneseq
        %v1679 = vshrl.u32 %v1678, 7
        %v1680 = vsub.s32 0, %v1679
        %v1681 = vrot.slane %v1664, %v1680
        %v1683 = vsel %vm893, %v1151, 0
        %1685 = vmatprep.subr.mxu0 0.0
        %1686 = vmatpush1.msra.mxu0 %v1666
        %1687 = vmatprep.subr.mxu0 0.0
        %1688 = vmatpush1.msra.mxu0 %v1667
        %1689 = vmatprep.subr.mxu0 0.0
        %1690 = vmatpush1.msra.mxu0 %v1668
        %1691 = vmatprep.subr.mxu0 0.0
        %1692 = vmatpush1.msra.mxu0 %v1669
        %1693 = vmatprep.subr.mxu0 0.0
        %1694 = vmatpush1.msra.mxu0 %v1670
        %1695 = vmatprep.subr.mxu0 0.0
        %1696 = vmatpush1.msra.mxu0 %v1671
        %1697 = vmatprep.subr.mxu0 0.0
        %1698 = vmatpush1.msra.mxu0 %v1672
        %1699 = vmatprep.subr.mxu0 0.0
        %1700 = vmatpush1.msra.mxu0 %v1673
        %1701 = vmatprep.subr.mxu0 0.0
        %1702 = vmatpush1.msra.mxu0 %v1674
        %1703 = vmatprep.subr.mxu0 0.0
        %1704 = vmatpush1.msra.mxu0 %v1675
        %1705 = vmatprep.subr.mxu0 0.0
        %1706 = vmatpush1.msra.mxu0 %v1676
        %1707 = vmatprep.subr.mxu0 0.0
        %1708 = vmatpush1.msra.mxu0 %v1677
        %1709 = vmatprep.subr.mxu0 0.0
        %1710 = vmatpush1.msra.mxu0 0.0
        %1711 = vmatprep.subr.mxu0 0.0
        %1712 = vmatpush1.msra.mxu0 0.0
        %1713 = vmatprep.subr.mxu0 0.0
        %1714 = vmatpush1.msra.mxu0 0.0
        %1715 = vmatprep.subr.mxu0 0.0
        %1716 = vmatpush1.msra.mxu0 0.0
        %1717 = vmatprep.subr.mxu0 0.0
        %1718 = vmatpush1.msra.mxu0 0.0
        %1719 = vmatprep.subr.mxu0 0.0
        %1720 = vmatpush1.msra.mxu0 0.0
        %1721 = vmatprep.subr.mxu0 0.0
        %1722 = vmatpush1.msra.mxu0 0.0
        %1723 = vmatprep.subr.mxu0 0.0
        %1724 = vmatpush1.msra.mxu0 0.0
        %1725 = vmatprep.subr.mxu0 0.0
        %1726 = vmatpush1.msra.mxu0 0.0
        %1727 = vmatprep.subr.mxu0 0.0
        %1728 = vmatpush1.msra.mxu0 0.0
        %1729 = vmatprep.subr.mxu0 0.0
        %1730 = vmatpush1.msra.mxu0 0.0
        %1731 = vmatprep.subr.mxu0 0.0
        %1732 = vmatpush1.msra.mxu0 0.0
        %1733 = vmatprep.subr.mxu0 0.0
        %1734 = vmatpush1.msra.mxu0 0.0
        %1735 = vmatprep.subr.mxu0 0.0
        %1736 = vmatpush1.msra.mxu0 0.0
        %1737 = vmatprep.subr.mxu0 0.0
        %1738 = vmatpush1.msra.mxu0 0.0
        %1739 = vmatprep.subr.mxu0 0.0
        %1740 = vmatpush1.msra.mxu0 0.0
        %1741 = vmatprep.subr.mxu0 0.0
        %1742 = vmatpush1.msra.mxu0 0.0
        %1743 = vmatprep.subr.mxu0 0.0
        %1744 = vmatpush1.msra.mxu0 0.0
        %1745 = vmatprep.subr.mxu0 0.0
        %1746 = vmatpush1.msra.mxu0 0.0
        %1747 = vmatprep.subr.mxu0 0.0
        %1748 = vmatpush1.msra.mxu0 0.0
        %1749 = vmatprep.mubr.f32.mxu0 0.0
        %1750 = vmatmul.mubr.f32.gmra.mrb[0].mxu0 %v1683
        %v1751 = vpop.f32.mrb[0].mxu0
        %v1752 = vadd.f32 %v1681, %v1751
        %v1753 = vpop.f32.mrb[0].mxu0
        %1754 = vdwg.mxu0
        %1755 = vmatprep.subr.mxu0 0.0
        %1756 = vmatpush1.msra.mxu0 %v1752
        %1757 = vmatprep.subr.mxu0 0.0
        %1758 = vmatpush1.msra.mxu0 0.0
        %1759 = vmatprep.subr.mxu0 0.0
        %1760 = vmatpush1.msra.mxu0 0.0
        %1761 = vmatprep.subr.mxu0 0.0
        %1762 = vmatpush1.msra.mxu0 0.0
        %1763 = vmatprep.subr.mxu0 0.0
        %1764 = vmatpush1.msra.mxu0 0.0
        %1765 = vmatprep.subr.mxu0 0.0
        %1766 = vmatpush1.msra.mxu0 0.0
        %1767 = vmatprep.subr.mxu0 0.0
        %1768 = vmatpush1.msra.mxu0 0.0
        %1769 = vmatprep.subr.mxu0 0.0
        %1770 = vmatpush1.msra.mxu0 0.0
        %1771 = vmatprep.subr.mxu0 0.0
        %1772 = vmatpush1.msra.mxu0 0.0
        %1773 = vmatprep.subr.mxu0 0.0
        %1774 = vmatpush1.msra.mxu0 0.0
        %1775 = vmatprep.subr.mxu0 0.0
        %1776 = vmatpush1.msra.mxu0 0.0
        %1777 = vmatprep.subr.mxu0 0.0
        %1778 = vmatpush1.msra.mxu0 0.0
        %1779 = vmatprep.subr.mxu0 0.0
        %1780 = vmatpush1.msra.mxu0 0.0
        %1781 = vmatprep.subr.mxu0 0.0
        %1782 = vmatpush1.msra.mxu0 0.0
        %1783 = vmatprep.subr.mxu0 0.0
        %1784 = vmatpush1.msra.mxu0 0.0
        %1785 = vmatprep.subr.mxu0 0.0
        %1786 = vmatpush1.msra.mxu0 0.0
        %1787 = vmatprep.subr.mxu0 0.0
        %1788 = vmatpush1.msra.mxu0 0.0
        %1789 = vmatprep.subr.mxu0 0.0
        %1790 = vmatpush1.msra.mxu0 0.0
        %1791 = vmatprep.subr.mxu0 0.0
        %1792 = vmatpush1.msra.mxu0 0.0
        %1793 = vmatprep.subr.mxu0 0.0
        %1794 = vmatpush1.msra.mxu0 0.0
        %1795 = vmatprep.subr.mxu0 0.0
        %1796 = vmatpush1.msra.mxu0 0.0
        %1797 = vmatprep.subr.mxu0 0.0
        %1798 = vmatpush1.msra.mxu0 0.0
        %1799 = vmatprep.subr.mxu0 0.0
        %1800 = vmatpush1.msra.mxu0 0.0
        %1801 = vmatprep.subr.mxu0 0.0
        %1802 = vmatpush1.msra.mxu0 0.0
        %1803 = vmatprep.subr.mxu0 0.0
        %1804 = vmatpush1.msra.mxu0 0.0
        %1805 = vmatprep.subr.mxu0 0.0
        %1806 = vmatpush1.msra.mxu0 0.0
        %1807 = vmatprep.subr.mxu0 0.0
        %1808 = vmatpush1.msra.mxu0 0.0
        %1809 = vmatprep.subr.mxu0 0.0
        %1810 = vmatpush1.msra.mxu0 0.0
        %1811 = vmatprep.subr.mxu0 0.0
        %1812 = vmatpush1.msra.mxu0 0.0
        %1813 = vmatprep.subr.mxu0 0.0
        %1814 = vmatpush1.msra.mxu0 0.0
        %1815 = vmatprep.subr.mxu0 0.0
        %1816 = vmatpush1.msra.mxu0 0.0
        %1817 = vmatprep.subr.mxu0 0.0
        %1818 = vmatpush1.msra.mxu0 0.0
        %1819 = vmatprep.mubr.f32.mxu0 0.0
        %1820 = vmatmul.mubr.f32.gmra.mrb[0].mxu0 %v1485
        %v1821 = vpop.f32.mrb[0].mxu0
        %v1822 = vadd.f32 0.0, %v1821
        %v1823 = vpop.f32.mrb[0].mxu0
        %1824 = vdwg.mxu0
        %s1825 = scalar_lea.vmem [#allocation5], 288
        %v1826 = vld [vmem:[%s1825] sm:$0xff]
        %v1827 = vld [vmem:[%s1825 + $0x8] sm:$0xff]
        %v1828 = vld [vmem:[%s1825 + $0x10] sm:$0xff]
        %v1829 = vld [vmem:[%s1825 + $0x18] sm:$0xff]
        %v1830 = vld [vmem:[%s1825 + $0x20] sm:$0xff]
        %v1831 = vld [vmem:[%s1825 + $0x28] sm:$0xff]
        %v1832 = vld [vmem:[%s1825 + $0x30] sm:$0xff]
        %v1833 = vld [vmem:[%s1825 + $0x38] sm:$0xff]
        %v1834 = vld [vmem:[%s1825 + $0x40] sm:$0xff]
        %v1835 = vld [vmem:[%s1825 + $0x48] sm:$0xff]
        %v1836 = vld [vmem:[%s1825 + $0x50] sm:$0xff]
        %v1837 = vld [vmem:[%s1825 + $0x58] sm:$0xff]
        %v1838 = vlaneseq
        %v1839 = vshrl.u32 %v1838, 7
        %v1840 = vsub.s32 1, %v1839
        %v1841 = vrot.slane %v1664, %v1840
        %v1843 = vsel %vm893, %v1822, 0
        %1845 = vmatprep.subr.mxu0 0.0
        %1846 = vmatpush1.msra.mxu0 %v1826
        %1847 = vmatprep.subr.mxu0 0.0
        %1848 = vmatpush1.msra.mxu0 %v1827
        %1849 = vmatprep.subr.mxu0 0.0
        %1850 = vmatpush1.msra.mxu0 %v1828
        %1851 = vmatprep.subr.mxu0 0.0
        %1852 = vmatpush1.msra.mxu0 %v1829
        %1853 = vmatprep.subr.mxu0 0.0
        %1854 = vmatpush1.msra.mxu0 %v1830
        %1855 = vmatprep.subr.mxu0 0.0
        %1856 = vmatpush1.msra.mxu0 %v1831
        %1857 = vmatprep.subr.mxu0 0.0
        %1858 = vmatpush1.msra.mxu0 %v1832
        %1859 = vmatprep.subr.mxu0 0.0
        %1860 = vmatpush1.msra.mxu0 %v1833
        %1861 = vmatprep.subr.mxu0 0.0
        %1862 = vmatpush1.msra.mxu0 %v1834
        %1863 = vmatprep.subr.mxu0 0.0
        %1864 = vmatpush1.msra.mxu0 %v1835
        %1865 = vmatprep.subr.mxu0 0.0
        %1866 = vmatpush1.msra.mxu0 %v1836
        %1867 = vmatprep.subr.mxu0 0.0
        %1868 = vmatpush1.msra.mxu0 %v1837
        %1869 = vmatprep.subr.mxu0 0.0
        %1870 = vmatpush1.msra.mxu0 0.0
        %1871 = vmatprep.subr.mxu0 0.0
        %1872 = vmatpush1.msra.mxu0 0.0
        %1873 = vmatprep.subr.mxu0 0.0
        %1874 = vmatpush1.msra.mxu0 0.0
        %1875 = vmatprep.subr.mxu0 0.0
        %1876 = vmatpush1.msra.mxu0 0.0
        %1877 = vmatprep.subr.mxu0 0.0
        %1878 = vmatpush1.msra.mxu0 0.0
        %1879 = vmatprep.subr.mxu0 0.0
        %1880 = vmatpush1.msra.mxu0 0.0
        %1881 = vmatprep.subr.mxu0 0.0
        %1882 = vmatpush1.msra.mxu0 0.0
        %1883 = vmatprep.subr.mxu0 0.0
        %1884 = vmatpush1.msra.mxu0 0.0
        %1885 = vmatprep.subr.mxu0 0.0
        %1886 = vmatpush1.msra.mxu0 0.0
        %1887 = vmatprep.subr.mxu0 0.0
        %1888 = vmatpush1.msra.mxu0 0.0
        %1889 = vmatprep.subr.mxu0 0.0
        %1890 = vmatpush1.msra.mxu0 0.0
        %1891 = vmatprep.subr.mxu0 0.0
        %1892 = vmatpush1.msra.mxu0 0.0
        %1893 = vmatprep.subr.mxu0 0.0
        %1894 = vmatpush1.msra.mxu0 0.0
        %1895 = vmatprep.subr.mxu0 0.0
        %1896 = vmatpush1.msra.mxu0 0.0
        %1897 = vmatprep.subr.mxu0 0.0
        %1898 = vmatpush1.msra.mxu0 0.0
        %1899 = vmatprep.subr.mxu0 0.0
        %1900 = vmatpush1.msra.mxu0 0.0
        %1901 = vmatprep.subr.mxu0 0.0
        %1902 = vmatpush1.msra.mxu0 0.0
        %1903 = vmatprep.subr.mxu0 0.0
        %1904 = vmatpush1.msra.mxu0 0.0
        %1905 = vmatprep.subr.mxu0 0.0
        %1906 = vmatpush1.msra.mxu0 0.0
        %1907 = vmatprep.subr.mxu0 0.0
        %1908 = vmatpush1.msra.mxu0 0.0
        %1909 = vmatprep.mubr.f32.mxu0 0.0
        %1910 = vmatmul.mubr.f32.gmra.mrb[0].mxu0 %v1843
        %v1911 = vpop.f32.mrb[0].mxu0
        %v1912 = vadd.f32 %v1841, %v1911
        %v1913 = vpop.f32.mrb[0].mxu0
        %1914 = vdwg.mxu0
        %v1915 = vadd.f32 %v1912, %v1151
        %v1916 = vsel %vm893, %v1915, 0.0
        %1917 = vadd.xlane.f32.xlu0 %v1916
        %v1918 = vpop.xlane.xlu0 %1917
        %v1919 = vmul.f32 %v1918, %v1131
        %v1920 = vsub.f32 %v1915, %v1919
        %v1921 = vmul.f32 %v1920, %v1920
        %v1922 = vsel %vm893, %v1921, 0.0
        %1923 = vadd.xlane.f32.xlu0 %v1922
        %v1924 = vpop.xlane.xlu0 %1923
        %v1925 = vmul.f32 %v1924, %v1131
        %v1926 = vadd.f32 %v1925, 1e-05
        %v1927 = vrsqrt.pop %v1926
        %v1928 = vmul.f32 %v1920, %v1927
        %v1929 = vlaneseq
        %v1930 = vshrl.u32 %v1929, 7
        %v1931 = vsub.s32 2, %v1930
        %v1932 = vrot.slane %v1664, %v1931
        %v1933 = vmul.f32 %v1928, %v1932
        %v1934 = vlaneseq
        %v1935 = vshrl.u32 %v1934, 7
        %v1936 = vsub.s32 3, %v1935
        %v1937 = vrot.slane %v1664, %v1936
        %v1938 = vadd.f32 %v1933, %v1937
        %s1939 = scalar_lea.vmem %s3, 16
        %v1940 = vld [vmem:[%s1939] sm:$0x3f]
        %s1941 = scalar_lea.vmem [#allocation2], 256
        %v1942 = vld [vmem:[%s1941] sm:$0xff]
        %v1943 = vld [vmem:[%s1941 + $0x8] sm:$0xff]
        %v1944 = vld [vmem:[%s1941 + $0x10] sm:$0xff]
        %v1945 = vld [vmem:[%s1941 + $0x18] sm:$0xff]
        %v1946 = vlaneseq
        %v1947 = vshrl.u32 %v1946, 7
        %v1948 = vsub.s32 0, %v1947
        %v1949 = vrot.slane %v1940, %v1948
        %v1951 = vsel %vm373, %v1662, 0
        %1953 = vmatprep.subr.mxu0 0.0
        %1954 = vmatpush1.msra.mxu0 %v1942
        %1955 = vmatprep.subr.mxu0 0.0
        %1956 = vmatpush1.msra.mxu0 %v1943
        %1957 = vmatprep.subr.mxu0 0.0
        %1958 = vmatpush1.msra.mxu0 %v1944
        %1959 = vmatprep.subr.mxu0 0.0
        %1960 = vmatpush1.msra.mxu0 %v1945
        %1961 = vmatprep.subr.mxu0 0.0
        %1962 = vmatpush1.msra.mxu0 0.0
        %1963 = vmatprep.subr.mxu0 0.0
        %1964 = vmatpush1.msra.mxu0 0.0
        %1965 = vmatprep.subr.mxu0 0.0
        %1966 = vmatpush1.msra.mxu0 0.0
        %1967 = vmatprep.subr.mxu0 0.0
        %1968 = vmatpush1.msra.mxu0 0.0
        %1969 = vmatprep.subr.mxu0 0.0
        %1970 = vmatpush1.msra.mxu0 0.0
        %1971 = vmatprep.subr.mxu0 0.0
        %1972 = vmatpush1.msra.mxu0 0.0
        %1973 = vmatprep.subr.mxu0 0.0
        %1974 = vmatpush1.msra.mxu0 0.0
        %1975 = vmatprep.subr.mxu0 0.0
        %1976 = vmatpush1.msra.mxu0 0.0
        %1977 = vmatprep.subr.mxu0 0.0
        %1978 = vmatpush1.msra.mxu0 0.0
        %1979 = vmatprep.subr.mxu0 0.0
        %1980 = vmatpush1.msra.mxu0 0.0
        %1981 = vmatprep.subr.mxu0 0.0
        %1982 = vmatpush1.msra.mxu0 0.0
        %1983 = vmatprep.subr.mxu0 0.0
        %1984 = vmatpush1.msra.mxu0 0.0
        %1985 = vmatprep.subr.mxu0 0.0
        %1986 = vmatpush1.msra.mxu0 0.0
        %1987 = vmatprep.subr.mxu0 0.0
        %1988 = vmatpush1.msra.mxu0 0.0
        %1989 = vmatprep.subr.mxu0 0.0
        %1990 = vmatpush1.msra.mxu0 0.0
        %1991 = vmatprep.subr.mxu0 0.0
        %1992 = vmatpush1.msra.mxu0 0.0
        %1993 = vmatprep.subr.mxu0 0.0
        %1994 = vmatpush1.msra.mxu0 0.0
        %1995 = vmatprep.subr.mxu0 0.0
        %1996 = vmatpush1.msra.mxu0 0.0
        %1997 = vmatprep.subr.mxu0 0.0
        %1998 = vmatpush1.msra.mxu0 0.0
        %1999 = vmatprep.subr.mxu0 0.0
        %2000 = vmatpush1.msra.mxu0 0.0
        %2001 = vmatprep.subr.mxu0 0.0
        %2002 = vmatpush1.msra.mxu0 0.0
        %2003 = vmatprep.subr.mxu0 0.0
        %2004 = vmatpush1.msra.mxu0 0.0
        %2005 = vmatprep.subr.mxu0 0.0
        %2006 = vmatpush1.msra.mxu0 0.0
        %2007 = vmatprep.subr.mxu0 0.0
        %2008 = vmatpush1.msra.mxu0 0.0
        %2009 = vmatprep.subr.mxu0 0.0
        %2010 = vmatpush1.msra.mxu0 0.0
        %2011 = vmatprep.subr.mxu0 0.0
        %2012 = vmatpush1.msra.mxu0 0.0
        %2013 = vmatprep.subr.mxu0 0.0
        %2014 = vmatpush1.msra.mxu0 0.0
        %2015 = vmatprep.subr.mxu0 0.0
        %2016 = vmatpush1.msra.mxu0 0.0
        %2017 = vmatprep.mubr.f32.mxu0 0.0
        %2018 = vmatmul.mubr.f32.gmra.mrb[0].mxu0 %v1951
        %v2019 = vpop.f32.mrb[0].mxu0
        %v2020 = vadd.f32 %v1949, %v2019
        %v2021 = vpop.f32.mrb[0].mxu0
        %2022 = vdwg.mxu0
        %s2023 = scalar_lea.vmem [#allocation2], 288
        %v2024 = vld [vmem:[%s2023] sm:$0xff]
        %v2025 = vld [vmem:[%s2023 + $0x8] sm:$0xff]
        %v2026 = vld [vmem:[%s2023 + $0x10] sm:$0xff]
        %v2027 = vld [vmem:[%s2023 + $0x18] sm:$0xff]
        %v2028 = vlaneseq
        %v2029 = vshrl.u32 %v2028, 7
        %v2030 = vsub.s32 1, %v2029
        %v2031 = vrot.slane %v1940, %v2030
        %2032 = vmatprep.subr.mxu0 0.0
        %2033 = vmatpush1.msra.mxu0 %v2024
        %2034 = vmatprep.subr.mxu0 0.0
        %2035 = vmatpush1.msra.mxu0 %v2025
        %2036 = vmatprep.subr.mxu0 0.0
        %2037 = vmatpush1.msra.mxu0 %v2026
        %2038 = vmatprep.subr.mxu0 0.0
        %2039 = vmatpush1.msra.mxu0 %v2027
        %2040 = vmatprep.subr.mxu0 0.0
        %2041 = vmatpush1.msra.mxu0 0.0
        %2042 = vmatprep.subr.mxu0 0.0
        %2043 = vmatpush1.msra.mxu0 0.0
        %2044 = vmatprep.subr.mxu0 0.0
        %2045 = vmatpush1.msra.mxu0 0.0
        %2046 = vmatprep.subr.mxu0 0.0
        %2047 = vmatpush1.msra.mxu0 0.0
        %2048 = vmatprep.subr.mxu0 0.0
        %2049 = vmatpush1.msra.mxu0 0.0
        %2050 = vmatprep.subr.mxu0 0.0
        %2051 = vmatpush1.msra.mxu0 0.0
        %2052 = vmatprep.subr.mxu0 0.0
        %2053 = vmatpush1.msra.mxu0 0.0
        %2054 = vmatprep.subr.mxu0 0.0
        %2055 = vmatpush1.msra.mxu0 0.0
        %2056 = vmatprep.subr.mxu0 0.0
        %2057 = vmatpush1.msra.mxu0 0.0
        %2058 = vmatprep.subr.mxu0 0.0
        %2059 = vmatpush1.msra.mxu0 0.0
        %2060 = vmatprep.subr.mxu0 0.0
        %2061 = vmatpush1.msra.mxu0 0.0
        %2062 = vmatprep.subr.mxu0 0.0
        %2063 = vmatpush1.msra.mxu0 0.0
        %2064 = vmatprep.subr.mxu0 0.0
        %2065 = vmatpush1.msra.mxu0 0.0
        %2066 = vmatprep.subr.mxu0 0.0
        %2067 = vmatpush1.msra.mxu0 0.0
        %2068 = vmatprep.subr.mxu0 0.0
        %2069 = vmatpush1.msra.mxu0 0.0
        %2070 = vmatprep.subr.mxu0 0.0
        %2071 = vmatpush1.msra.mxu0 0.0
        %2072 = vmatprep.subr.mxu0 0.0
        %2073 = vmatpush1.msra.mxu0 0.0
        %2074 = vmatprep.subr.mxu0 0.0
        %2075 = vmatpush1.msra.mxu0 0.0
        %2076 = vmatprep.subr.mxu0 0.0
        %2077 = vmatpush1.msra.mxu0 0.0
        %2078 = vmatprep.subr.mxu0 0.0
        %2079 = vmatpush1.msra.mxu0 0.0
        %2080 = vmatprep.subr.mxu0 0.0
        %2081 = vmatpush1.msra.mxu0 0.0
        %2082 = vmatprep.subr.mxu0 0.0
        %2083 = vmatpush1.msra.mxu0 0.0
        %2084 = vmatprep.subr.mxu0 0.0
        %2085 = vmatpush1.msra.mxu0 0.0
        %2086 = vmatprep.subr.mxu0 0.0
        %2087 = vmatpush1.msra.mxu0 0.0
        %2088 = vmatprep.subr.mxu0 0.0
        %2089 = vmatpush1.msra.mxu0 0.0
        %2090 = vmatprep.subr.mxu0 0.0
        %2091 = vmatpush1.msra.mxu0 0.0
        %2092 = vmatprep.subr.mxu0 0.0
        %2093 = vmatpush1.msra.mxu0 0.0
        %2094 = vmatprep.subr.mxu0 0.0
        %2095 = vmatpush1.msra.mxu0 0.0
        %2096 = vmatprep.mubr.f32.mxu0 0.0
        %2097 = vmatmul.mubr.f32.gmra.mrb[0].mxu0 %v1951
        %v2098 = vpop.f32.mrb[0].mxu0
        %v2099 = vadd.f32 %v2031, %v2098
        %v2100 = vpop.f32.mrb[0].mxu0
        %2101 = vdwg.mxu0
        %v2103 = vsel %vm373, %v2020, 0
        %v2106 = vsel %vm373, %v2099, 0
        %2108 = vmatprep.subr.mxu0 0.0
        %2109 = vmatpush1.xpose.msra.mxu0 %v2106
        %2110 = vmatprep.subr.mxu0 0.0
        %2111 = vmatpush1.xpose.msra.mxu0 0.0
        %2112 = vmatprep.subr.mxu0 0.0
        %2113 = vmatpush1.xpose.msra.mxu0 0.0
        %2114 = vmatprep.subr.mxu0 0.0
        %2115 = vmatpush1.xpose.msra.mxu0 0.0
        %2116 = vmatprep.subr.mxu0 0.0
        %2117 = vmatpush1.xpose.msra.mxu0 0.0
        %2118 = vmatprep.subr.mxu0 0.0
        %2119 = vmatpush1.xpose.msra.mxu0 0.0
        %2120 = vmatprep.subr.mxu0 0.0
        %2121 = vmatpush1.xpose.msra.mxu0 0.0
        %2122 = vmatprep.subr.mxu0 0.0
        %2123 = vmatpush1.xpose.msra.mxu0 0.0
        %2124 = vmatprep.subr.mxu0 0.0
        %2125 = vmatpush1.xpose.msra.mxu0 0.0
        %2126 = vmatprep.subr.mxu0 0.0
        %2127 = vmatpush1.xpose.msra.mxu0 0.0
        %2128 = vmatprep.subr.mxu0 0.0
        %2129 = vmatpush1.xpose.msra.mxu0 0.0
        %2130 = vmatprep.subr.mxu0 0.0
        %2131 = vmatpush1.xpose.msra.mxu0 0.0
        %2132 = vmatprep.subr.mxu0 0.0
        %2133 = vmatpush1.xpose.msra.mxu0 0.0
        %2134 = vmatprep.subr.mxu0 0.0
        %2135 = vmatpush1.xpose.msra.mxu0 0.0
        %2136 = vmatprep.subr.mxu0 0.0
        %2137 = vmatpush1.xpose.msra.mxu0 0.0
        %2138 = vmatprep.subr.mxu0 0.0
        %2139 = vmatpush1.xpose.msra.mxu0 0.0
        %2140 = vmatprep.subr.mxu0 0.0
        %2141 = vmatpush1.xpose.msra.mxu0 0.0
        %2142 = vmatprep.subr.mxu0 0.0
        %2143 = vmatpush1.xpose.msra.mxu0 0.0
        %2144 = vmatprep.subr.mxu0 0.0
        %2145 = vmatpush1.xpose.msra.mxu0 0.0
        %2146 = vmatprep.subr.mxu0 0.0
        %2147 = vmatpush1.xpose.msra.mxu0 0.0
        %2148 = vmatprep.subr.mxu0 0.0
        %2149 = vmatpush1.xpose.msra.mxu0 0.0
        %2150 = vmatprep.subr.mxu0 0.0
        %2151 = vmatpush1.xpose.msra.mxu0 0.0
        %2152 = vmatprep.subr.mxu0 0.0
        %2153 = vmatpush1.xpose.msra.mxu0 0.0
        %2154 = vmatprep.subr.mxu0 0.0
        %2155 = vmatpush1.xpose.msra.mxu0 0.0
        %2156 = vmatprep.subr.mxu0 0.0
        %2157 = vmatpush1.xpose.msra.mxu0 0.0
        %2158 = vmatprep.subr.mxu0 0.0
        %2159 = vmatpush1.xpose.msra.mxu0 0.0
        %2160 = vmatprep.subr.mxu0 0.0
        %2161 = vmatpush1.xpose.msra.mxu0 0.0
        %2162 = vmatprep.subr.mxu0 0.0
        %2163 = vmatpush1.xpose.msra.mxu0 0.0
        %2164 = vmatprep.subr.mxu0 0.0
        %2165 = vmatpush1.xpose.msra.mxu0 0.0
        %2166 = vmatprep.subr.mxu0 0.0
        %2167 = vmatpush1.xpose.msra.mxu0 0.0
        %2168 = vmatprep.subr.mxu0 0.0
        %2169 = vmatpush1.xpose.msra.mxu0 0.0
        %2170 = vmatprep.subr.mxu0 0.0
        %2171 = vmatpush1.xpose.msra.mxu0 0.0
        %2172 = vmatprep.mubr.f32.mxu0 0.0
        %2173 = vmatmul.mubr.f32.gmra.mrb[0].mxu0 %v2103
        %v2174 = vpop.f32.mrb[0].mxu0
        %v2175 = vadd.f32 0.0, %v2174
        %v2176 = vpop.f32.mrb[0].mxu0
        %2177 = vdwg.mxu0
        %v2178 = vsel %vm602, %v2175, -inf
        %2179 = vmax.xlane.f32.xlu0 %v2178
        %v2180 = vpop.xlane.xlu0 %2179
        %v2181 = vsub.f32 %v2175, %v2180
        %v2182 = vmul.f32 %v2181, 1.442695
        %v2183 = vpow.pop %v2182
        %v2184 = vsel %vm602, %v2183, 0.0
        %2185 = vadd.xlane.f32.xlu0 %v2184
        %v2186 = vpop.xlane.xlu0 %2185
        %v2187 = vrcp.pop %v2186
        %v2188 = vmul.f32 %v2186, %v2187
        %v2189 = vsub.f32 2.0, %v2188
        %v2190 = vmul.f32 %v2187, %v2189
        %v2191 = vmul.f32 %v2183, %v2190
        %s2192 = scalar_lea.vmem [#allocation2], 320
        %v2193 = vld [vmem:[%s2192] sm:$0xff]
        %v2194 = vld [vmem:[%s2192 + $0x8] sm:$0xff]
        %v2195 = vld [vmem:[%s2192 + $0x10] sm:$0xff]
        %v2196 = vld [vmem:[%s2192 + $0x18] sm:$0xff]
        %v2197 = vlaneseq
        %v2198 = vshrl.u32 %v2197, 7
        %v2199 = vsub.s32 2, %v2198
        %v2200 = vrot.slane %v1940, %v2199
        %2201 = vmatprep.subr.mxu0 0.0
        %2202 = vmatpush1.msra.mxu0 %v2193
        %2203 = vmatprep.subr.mxu0 0.0
        %2204 = vmatpush1.msra.mxu0 %v2194
        %2205 = vmatprep.subr.mxu0 0.0
        %2206 = vmatpush1.msra.mxu0 %v2195
        %2207 = vmatprep.subr.mxu0 0.0
        %2208 = vmatpush1.msra.mxu0 %v2196
        %2209 = vmatprep.subr.mxu0 0.0
        %2210 = vmatpush1.msra.mxu0 0.0
        %2211 = vmatprep.subr.mxu0 0.0
        %2212 = vmatpush1.msra.mxu0 0.0
        %2213 = vmatprep.subr.mxu0 0.0
        %2214 = vmatpush1.msra.mxu0 0.0
        %2215 = vmatprep.subr.mxu0 0.0
        %2216 = vmatpush1.msra.mxu0 0.0
        %2217 = vmatprep.subr.mxu0 0.0
        %2218 = vmatpush1.msra.mxu0 0.0
        %2219 = vmatprep.subr.mxu0 0.0
        %2220 = vmatpush1.msra.mxu0 0.0
        %2221 = vmatprep.subr.mxu0 0.0
        %2222 = vmatpush1.msra.mxu0 0.0
        %2223 = vmatprep.subr.mxu0 0.0
        %2224 = vmatpush1.msra.mxu0 0.0
        %2225 = vmatprep.subr.mxu0 0.0
        %2226 = vmatpush1.msra.mxu0 0.0
        %2227 = vmatprep.subr.mxu0 0.0
        %2228 = vmatpush1.msra.mxu0 0.0
        %2229 = vmatprep.subr.mxu0 0.0
        %2230 = vmatpush1.msra.mxu0 0.0
        %2231 = vmatprep.subr.mxu0 0.0
        %2232 = vmatpush1.msra.mxu0 0.0
        %2233 = vmatprep.subr.mxu0 0.0
        %2234 = vmatpush1.msra.mxu0 0.0
        %2235 = vmatprep.subr.mxu0 0.0
        %2236 = vmatpush1.msra.mxu0 0.0
        %2237 = vmatprep.subr.mxu0 0.0
        %2238 = vmatpush1.msra.mxu0 0.0
        %2239 = vmatprep.subr.mxu0 0.0
        %2240 = vmatpush1.msra.mxu0 0.0
        %2241 = vmatprep.subr.mxu0 0.0
        %2242 = vmatpush1.msra.mxu0 0.0
        %2243 = vmatprep.subr.mxu0 0.0
        %2244 = vmatpush1.msra.mxu0 0.0
        %2245 = vmatprep.subr.mxu0 0.0
        %2246 = vmatpush1.msra.mxu0 0.0
        %2247 = vmatprep.subr.mxu0 0.0
        %2248 = vmatpush1.msra.mxu0 0.0
        %2249 = vmatprep.subr.mxu0 0.0
        %2250 = vmatpush1.msra.mxu0 0.0
        %2251 = vmatprep.subr.mxu0 0.0
        %2252 = vmatpush1.msra.mxu0 0.0
        %2253 = vmatprep.subr.mxu0 0.0
        %2254 = vmatpush1.msra.mxu0 0.0
        %2255 = vmatprep.subr.mxu0 0.0
        %2256 = vmatpush1.msra.mxu0 0.0
        %2257 = vmatprep.subr.mxu0 0.0
        %2258 = vmatpush1.msra.mxu0 0.0
        %2259 = vmatprep.subr.mxu0 0.0
        %2260 = vmatpush1.msra.mxu0 0.0
        %2261 = vmatprep.subr.mxu0 0.0
        %2262 = vmatpush1.msra.mxu0 0.0
        %2263 = vmatprep.subr.mxu0 0.0
        %2264 = vmatpush1.msra.mxu0 0.0
        %2265 = vmatprep.mubr.f32.mxu0 0.0
        %2266 = vmatmul.mubr.f32.gmra.mrb[0].mxu0 %v1951
        %v2267 = vpop.f32.mrb[0].mxu0
        %v2268 = vadd.f32 %v2200, %v2267
        %v2269 = vpop.f32.mrb[0].mxu0
        %2270 = vdwg.mxu0
        %v2272 = vsel %vm602, %v2191, 0
        %2274 = vmatprep.subr.mxu0 0.0
        %2275 = vmatpush1.msra.mxu0 %v2268
        %2276 = vmatprep.subr.mxu0 0.0
        %2277 = vmatpush1.msra.mxu0 0.0
        %2278 = vmatprep.subr.mxu0 0.0
        %2279 = vmatpush1.msra.mxu0 0.0
        %2280 = vmatprep.subr.mxu0 0.0
        %2281 = vmatpush1.msra.mxu0 0.0
        %2282 = vmatprep.subr.mxu0 0.0
        %2283 = vmatpush1.msra.mxu0 0.0
        %2284 = vmatprep.subr.mxu0 0.0
        %2285 = vmatpush1.msra.mxu0 0.0
        %2286 = vmatprep.subr.mxu0 0.0
        %2287 = vmatpush1.msra.mxu0 0.0
        %2288 = vmatprep.subr.mxu0 0.0
        %2289 = vmatpush1.msra.mxu0 0.0
        %2290 = vmatprep.subr.mxu0 0.0
        %2291 = vmatpush1.msra.mxu0 0.0
        %2292 = vmatprep.subr.mxu0 0.0
        %2293 = vmatpush1.msra.mxu0 0.0
        %2294 = vmatprep.subr.mxu0 0.0
        %2295 = vmatpush1.msra.mxu0 0.0
        %2296 = vmatprep.subr.mxu0 0.0
        %2297 = vmatpush1.msra.mxu0 0.0
        %2298 = vmatprep.subr.mxu0 0.0
        %2299 = vmatpush1.msra.mxu0 0.0
        %2300 = vmatprep.subr.mxu0 0.0
        %2301 = vmatpush1.msra.mxu0 0.0
        %2302 = vmatprep.subr.mxu0 0.0
        %2303 = vmatpush1.msra.mxu0 0.0
        %2304 = vmatprep.subr.mxu0 0.0
        %2305 = vmatpush1.msra.mxu0 0.0
        %2306 = vmatprep.subr.mxu0 0.0
        %2307 = vmatpush1.msra.mxu0 0.0
        %2308 = vmatprep.subr.mxu0 0.0
        %2309 = vmatpush1.msra.mxu0 0.0
        %2310 = vmatprep.subr.mxu0 0.0
        %2311 = vmatpush1.msra.mxu0 0.0
        %2312 = vmatprep.subr.mxu0 0.0
        %2313 = vmatpush1.msra.mxu0 0.0
        %2314 = vmatprep.subr.mxu0 0.0
        %2315 = vmatpush1.msra.mxu0 0.0
        %2316 = vmatprep.subr.mxu0 0.0
        %2317 = vmatpush1.msra.mxu0 0.0
        %2318 = vmatprep.subr.mxu0 0.0
        %2319 = vmatpush1.msra.mxu0 0.0
        %2320 = vmatprep.subr.mxu0 0.0
        %2321 = vmatpush1.msra.mxu0 0.0
        %2322 = vmatprep.subr.mxu0 0.0
        %2323 = vmatpush1.msra.mxu0 0.0
        %2324 = vmatprep.subr.mxu0 0.0
        %2325 = vmatpush1.msra.mxu0 0.0
        %2326 = vmatprep.subr.mxu0 0.0
        %2327 = vmatpush1.msra.mxu0 0.0
        %2328 = vmatprep.subr.mxu0 0.0
        %2329 = vmatpush1.msra.mxu0 0.0
        %2330 = vmatprep.subr.mxu0 0.0
        %2331 = vmatpush1.msra.mxu0 0.0
        %2332 = vmatprep.subr.mxu0 0.0
        %2333 = vmatpush1.msra.mxu0 0.0
        %2334 = vmatprep.subr.mxu0 0.0
        %2335 = vmatpush1.msra.mxu0 0.0
        %2336 = vmatprep.subr.mxu0 0.0
        %2337 = vmatpush1.msra.mxu0 0.0
        %2338 = vmatprep.mubr.f32.mxu0 0.0
        %2339 = vmatmul.mubr.f32.gmra.mrb[0].mxu0 %v2272
        %v2340 = vpop.f32.mrb[0].mxu0
        %v2341 = vadd.f32 0.0, %v2340
        %v2342 = vpop.f32.mrb[0].mxu0
        %2343 = vdwg.mxu0
        %s2344 = scalar_lea.vmem [#allocation2], 352
        %v2345 = vld [vmem:[%s2344] sm:$0xff]
        %v2346 = vld [vmem:[%s2344 + $0x8] sm:$0xff]
        %v2347 = vld [vmem:[%s2344 + $0x10] sm:$0xff]
        %v2348 = vld [vmem:[%s2344 + $0x18] sm:$0xff]
        %v2349 = vlaneseq
        %v2350 = vshrl.u32 %v2349, 7
        %v2351 = vsub.s32 3, %v2350
        %v2352 = vrot.slane %v1940, %v2351
        %v2354 = vsel %vm373, %v2341, 0
        %2356 = vmatprep.subr.mxu0 0.0
        %2357 = vmatpush1.msra.mxu0 %v2345
        %2358 = vmatprep.subr.mxu0 0.0
        %2359 = vmatpush1.msra.mxu0 %v2346
        %2360 = vmatprep.subr.mxu0 0.0
        %2361 = vmatpush1.msra.mxu0 %v2347
        %2362 = vmatprep.subr.mxu0 0.0
        %2363 = vmatpush1.msra.mxu0 %v2348
        %2364 = vmatprep.subr.mxu0 0.0
        %2365 = vmatpush1.msra.mxu0 0.0
        %2366 = vmatprep.subr.mxu0 0.0
        %2367 = vmatpush1.msra.mxu0 0.0
        %2368 = vmatprep.subr.mxu0 0.0
        %2369 = vmatpush1.msra.mxu0 0.0
        %2370 = vmatprep.subr.mxu0 0.0
        %2371 = vmatpush1.msra.mxu0 0.0
        %2372 = vmatprep.subr.mxu0 0.0
        %2373 = vmatpush1.msra.mxu0 0.0
        %2374 = vmatprep.subr.mxu0 0.0
        %2375 = vmatpush1.msra.mxu0 0.0
        %2376 = vmatprep.subr.mxu0 0.0
        %2377 = vmatpush1.msra.mxu0 0.0
        %2378 = vmatprep.subr.mxu0 0.0
        %2379 = vmatpush1.msra.mxu0 0.0
        %2380 = vmatprep.subr.mxu0 0.0
        %2381 = vmatpush1.msra.mxu0 0.0
        %2382 = vmatprep.subr.mxu0 0.0
        %2383 = vmatpush1.msra.mxu0 0.0
        %2384 = vmatprep.subr.mxu0 0.0
        %2385 = vmatpush1.msra.mxu0 0.0
        %2386 = vmatprep.subr.mxu0 0.0
        %2387 = vmatpush1.msra.mxu0 0.0
        %2388 = vmatprep.subr.mxu0 0.0
        %2389 = vmatpush1.msra.mxu0 0.0
        %2390 = vmatprep.subr.mxu0 0.0
        %2391 = vmatpush1.msra.mxu0 0.0
        %2392 = vmatprep.subr.mxu0 0.0
        %2393 = vmatpush1.msra.mxu0 0.0
        %2394 = vmatprep.subr.mxu0 0.0
        %2395 = vmatpush1.msra.mxu0 0.0
        %2396 = vmatprep.subr.mxu0 0.0
        %2397 = vmatpush1.msra.mxu0 0.0
        %2398 = vmatprep.subr.mxu0 0.0
        %2399 = vmatpush1.msra.mxu0 0.0
        %2400 = vmatprep.subr.mxu0 0.0
        %2401 = vmatpush1.msra.mxu0 0.0
        %2402 = vmatprep.subr.mxu0 0.0
        %2403 = vmatpush1.msra.mxu0 0.0
        %2404 = vmatprep.subr.mxu0 0.0
        %2405 = vmatpush1.msra.mxu0 0.0
        %2406 = vmatprep.subr.mxu0 0.0
        %2407 = vmatpush1.msra.mxu0 0.0
        %2408 = vmatprep.subr.mxu0 0.0
        %2409 = vmatpush1.msra.mxu0 0.0
        %2410 = vmatprep.subr.mxu0 0.0
        %2411 = vmatpush1.msra.mxu0 0.0
        %2412 = vmatprep.subr.mxu0 0.0
        %2413 = vmatpush1.msra.mxu0 0.0
        %2414 = vmatprep.subr.mxu0 0.0
        %2415 = vmatpush1.msra.mxu0 0.0
        %2416 = vmatprep.subr.mxu0 0.0
        %2417 = vmatpush1.msra.mxu0 0.0
        %2418 = vmatprep.subr.mxu0 0.0
        %2419 = vmatpush1.msra.mxu0 0.0
        %2420 = vmatprep.mubr.f32.mxu0 0.0
        %2421 = vmatmul.mubr.f32.gmra.mrb[0].mxu0 %v2354
        %v2422 = vpop.f32.mrb[0].mxu0
        %v2423 = vadd.f32 %v2352, %v2422
        %v2424 = vpop.f32.mrb[0].mxu0
        %2425 = vdwg.mxu0
        %v2426 = vsel %vm373, %v2423, 0.0
        %2427 = vadd.xlane.f32.xlu0 %v2426
        %v2428 = vpop.xlane.xlu0 %2427
        %v2429 = vmul.f32 %v2428, %v854
        %v2430 = vsub.f32 %v2423, %v2429
        %v2431 = vmul.f32 %v2430, %v2430
        %v2432 = vsel %vm373, %v2431, 0.0
        %2433 = vadd.xlane.f32.xlu0 %v2432
        %v2434 = vpop.xlane.xlu0 %2433
        %v2435 = vmul.f32 %v2434, %v854
        %v2436 = vadd.f32 %v2435, 1e-05
        %v2437 = vrsqrt.pop %v2436
        %v2438 = vmul.f32 %v2430, %v2437
        %v2439 = vlaneseq
        %v2440 = vshrl.u32 %v2439, 7
        %v2441 = vsub.s32 4, %v2440
        %v2442 = vrot.slane %v1940, %v2441
        %v2443 = vmul.f32 %v2438, %v2442
        %v2444 = vlaneseq
        %v2445 = vshrl.u32 %v2444, 7
        %v2446 = vsub.s32 5, %v2445
        %v2447 = vrot.slane %v1940, %v2446
        %v2448 = vadd.f32 %v2443, %v2447
        %v2449 = vadd.f32 %v1662, %v2448
        %s2450 = scalar_lea.vmem %s5, 8
        %v2451 = vld [vmem:[%s2450] sm:$0xf]
        %s2452 = scalar_lea.vmem [#allocation5], 384
        %v2453 = vld [vmem:[%s2452] sm:$0xff]
        %v2454 = vld [vmem:[%s2452 + $0x8] sm:$0xff]
        %v2455 = vld [vmem:[%s2452 + $0x10] sm:$0xff]
        %v2456 = vld [vmem:[%s2452 + $0x18] sm:$0xff]
        %v2457 = vld [vmem:[%s2452 + $0x20] sm:$0xff]
        %v2458 = vld [vmem:[%s2452 + $0x28] sm:$0xff]
        %v2459 = vld [vmem:[%s2452 + $0x30] sm:$0xff]
        %v2460 = vld [vmem:[%s2452 + $0x38] sm:$0xff]
        %v2461 = vld [vmem:[%s2452 + $0x40] sm:$0xff]
        %v2462 = vld [vmem:[%s2452 + $0x48] sm:$0xff]
        %v2463 = vld [vmem:[%s2452 + $0x50] sm:$0xff]
        %v2464 = vld [vmem:[%s2452 + $0x58] sm:$0xff]
        %v2465 = vlaneseq
        %v2466 = vshrl.u32 %v2465, 7
        %v2467 = vsub.s32 0, %v2466
        %v2468 = vrot.slane %v2451, %v2467
        %v2470 = vsel %vm893, %v1938, 0
        %2472 = vmatprep.subr.mxu0 0.0
        %2473 = vmatpush1.msra.mxu0 %v2453
        %2474 = vmatprep.subr.mxu0 0.0
        %2475 = vmatpush1.msra.mxu0 %v2454
        %2476 = vmatprep.subr.mxu0 0.0
        %2477 = vmatpush1.msra.mxu0 %v2455
        %2478 = vmatprep.subr.mxu0 0.0
        %2479 = vmatpush1.msra.mxu0 %v2456
        %2480 = vmatprep.subr.mxu0 0.0
        %2481 = vmatpush1.msra.mxu0 %v2457
        %2482 = vmatprep.subr.mxu0 0.0
        %2483 = vmatpush1.msra.mxu0 %v2458
        %2484 = vmatprep.subr.mxu0 0.0
        %2485 = vmatpush1.msra.mxu0 %v2459
        %2486 = vmatprep.subr.mxu0 0.0
        %2487 = vmatpush1.msra.mxu0 %v2460
        %2488 = vmatprep.subr.mxu0 0.0
        %2489 = vmatpush1.msra.mxu0 %v2461
        %2490 = vmatprep.subr.mxu0 0.0
        %2491 = vmatpush1.msra.mxu0 %v2462
        %2492 = vmatprep.subr.mxu0 0.0
        %2493 = vmatpush1.msra.mxu0 %v2463
        %2494 = vmatprep.subr.mxu0 0.0
        %2495 = vmatpush1.msra.mxu0 %v2464
        %2496 = vmatprep.subr.mxu0 0.0
        %2497 = vmatpush1.msra.mxu0 0.0
        %2498 = vmatprep.subr.mxu0 0.0
        %2499 = vmatpush1.msra.mxu0 0.0
        %2500 = vmatprep.subr.mxu0 0.0
        %2501 = vmatpush1.msra.mxu0 0.0
        %2502 = vmatprep.subr.mxu0 0.0
        %2503 = vmatpush1.msra.mxu0 0.0
        %2504 = vmatprep.subr.mxu0 0.0
        %2505 = vmatpush1.msra.mxu0 0.0
        %2506 = vmatprep.subr.mxu0 0.0
        %2507 = vmatpush1.msra.mxu0 0.0
        %2508 = vmatprep.subr.mxu0 0.0
        %2509 = vmatpush1.msra.mxu0 0.0
        %2510 = vmatprep.subr.mxu0 0.0
        %2511 = vmatpush1.msra.mxu0 0.0
        %2512 = vmatprep.subr.mxu0 0.0
        %2513 = vmatpush1.msra.mxu0 0.0
        %2514 = vmatprep.subr.mxu0 0.0
        %2515 = vmatpush1.msra.mxu0 0.0
        %2516 = vmatprep.subr.mxu0 0.0
        %2517 = vmatpush1.msra.mxu0 0.0
        %2518 = vmatprep.subr.mxu0 0.0
        %2519 = vmatpush1.msra.mxu0 0.0
        %2520 = vmatprep.subr.mxu0 0.0
        %2521 = vmatpush1.msra.mxu0 0.0
        %2522 = vmatprep.subr.mxu0 0.0
        %2523 = vmatpush1.msra.mxu0 0.0
        %2524 = vmatprep.subr.mxu0 0.0
        %2525 = vmatpush1.msra.mxu0 0.0
        %2526 = vmatprep.subr.mxu0 0.0
        %2527 = vmatpush1.msra.mxu0 0.0
        %2528 = vmatprep.subr.mxu0 0.0
        %2529 = vmatpush1.msra.mxu0 0.0
        %2530 = vmatprep.subr.mxu0 0.0
        %2531 = vmatpush1.msra.mxu0 0.0
        %2532 = vmatprep.subr.mxu0 0.0
        %2533 = vmatpush1.msra.mxu0 0.0
        %2534 = vmatprep.subr.mxu0 0.0
        %2535 = vmatpush1.msra.mxu0 0.0
        %2536 = vmatprep.mubr.f32.mxu0 0.0
        %2537 = vmatmul.mubr.f32.gmra.mrb[0].mxu0 %v2470
        %v2538 = vpop.f32.mrb[0].mxu0
        %v2539 = vadd.f32 %v2468, %v2538
        %v2540 = vpop.f32.mrb[0].mxu0
        %2541 = vdwg.mxu0
        %2542 = vmatprep.subr.mxu0 0.0
        %2543 = vmatpush1.msra.mxu0 %v2539
        %2544 = vmatprep.subr.mxu0 0.0
        %2545 = vmatpush1.msra.mxu0 0.0
        %2546 = vmatprep.subr.mxu0 0.0
        %2547 = vmatpush1.msra.mxu0 0.0
        %2548 = vmatprep.subr.mxu0 0.0
        %2549 = vmatpush1.msra.mxu0 0.0
        %2550 = vmatprep.subr.mxu0 0.0
        %2551 = vmatpush1.msra.mxu0 0.0
        %2552 = vmatprep.subr.mxu0 0.0
        %2553 = vmatpush1.msra.mxu0 0.0
        %2554 = vmatprep.subr.mxu0 0.0
        %2555 = vmatpush1.msra.mxu0 0.0
        %2556 = vmatprep.subr.mxu0 0.0
        %2557 = vmatpush1.msra.mxu0 0.0
        %2558 = vmatprep.subr.mxu0 0.0
        %2559 = vmatpush1.msra.mxu0 0.0
        %2560 = vmatprep.subr.mxu0 0.0
        %2561 = vmatpush1.msra.mxu0 0.0
        %2562 = vmatprep.subr.mxu0 0.0
        %2563 = vmatpush1.msra.mxu0 0.0
        %2564 = vmatprep.subr.mxu0 0.0
        %2565 = vmatpush1.msra.mxu0 0.0
        %2566 = vmatprep.subr.mxu0 0.0
        %2567 = vmatpush1.msra.mxu0 0.0
        %2568 = vmatprep.subr.mxu0 0.0
        %2569 = vmatpush1.msra.mxu0 0.0
        %2570 = vmatprep.subr.mxu0 0.0
        %2571 = vmatpush1.msra.mxu0 0.0
        %2572 = vmatprep.subr.mxu0 0.0
        %2573 = vmatpush1.msra.mxu0 0.0
        %2574 = vmatprep.subr.mxu0 0.0
        %2575 = vmatpush1.msra.mxu0 0.0
        %2576 = vmatprep.subr.mxu0 0.0
        %2577 = vmatpush1.msra.mxu0 0.0
        %2578 = vmatprep.subr.mxu0 0.0
        %2579 = vmatpush1.msra.mxu0 0.0
        %2580 = vmatprep.subr.mxu0 0.0
        %2581 = vmatpush1.msra.mxu0 0.0
        %2582 = vmatprep.subr.mxu0 0.0
        %2583 = vmatpush1.msra.mxu0 0.0
        %2584 = vmatprep.subr.mxu0 0.0
        %2585 = vmatpush1.msra.mxu0 0.0
        %2586 = vmatprep.subr.mxu0 0.0
        %2587 = vmatpush1.msra.mxu0 0.0
        %2588 = vmatprep.subr.mxu0 0.0
        %2589 = vmatpush1.msra.mxu0 0.0
        %2590 = vmatprep.subr.mxu0 0.0
        %2591 = vmatpush1.msra.mxu0 0.0
        %2592 = vmatprep.subr.mxu0 0.0
        %2593 = vmatpush1.msra.mxu0 0.0
        %2594 = vmatprep.subr.mxu0 0.0
        %2595 = vmatpush1.msra.mxu0 0.0
        %2596 = vmatprep.subr.mxu0 0.0
        %2597 = vmatpush1.msra.mxu0 0.0
        %2598 = vmatprep.subr.mxu0 0.0
        %2599 = vmatpush1.msra.mxu0 0.0
        %2600 = vmatprep.subr.mxu0 0.0
        %2601 = vmatpush1.msra.mxu0 0.0
        %2602 = vmatprep.subr.mxu0 0.0
        %2603 = vmatpush1.msra.mxu0 0.0
        %2604 = vmatprep.subr.mxu0 0.0
        %2605 = vmatpush1.msra.mxu0 0.0
        %2606 = vmatprep.mubr.f32.mxu0 0.0
        %2607 = vmatmul.mubr.f32.gmra.mrb[0].mxu0 %v2272
        %v2608 = vpop.f32.mrb[0].mxu0
        %v2609 = vadd.f32 0.0, %v2608
        %v2610 = vpop.f32.mrb[0].mxu0
        %2611 = vdwg.mxu0
        %s2612 = scalar_lea.vmem [#allocation5], 480
        %v2613 = vld [vmem:[%s2612] sm:$0xff]
        %v2614 = vld [vmem:[%s2612 + $0x8] sm:$0xff]
        %v2615 = vld [vmem:[%s2612 + $0x10] sm:$0xff]
        %v2616 = vld [vmem:[%s2612 + $0x18] sm:$0xff]
        %v2617 = vld [vmem:[%s2612 + $0x20] sm:$0xff]
        %v2618 = vld [vmem:[%s2612 + $0x28] sm:$0xff]
        %v2619 = vld [vmem:[%s2612 + $0x30] sm:$0xff]
        %v2620 = vld [vmem:[%s2612 + $0x38] sm:$0xff]
        %v2621 = vld [vmem:[%s2612 + $0x40] sm:$0xff]
        %v2622 = vld [vmem:[%s2612 + $0x48] sm:$0xff]
        %v2623 = vld [vmem:[%s2612 + $0x50] sm:$0xff]
        %v2624 = vld [vmem:[%s2612 + $0x58] sm:$0xff]
        %v2625 = vlaneseq
        %v2626 = vshrl.u32 %v2625, 7
        %v2627 = vsub.s32 1, %v2626
        %v2628 = vrot.slane %v2451, %v2627
        %v2630 = vsel %vm893, %v2609, 0
        %2632 = vmatprep.subr.mxu0 0.0
        %2633 = vmatpush1.msra.mxu0 %v2613
        %2634 = vmatprep.subr.mxu0 0.0
        %2635 = vmatpush1.msra.mxu0 %v2614
        %2636 = vmatprep.subr.mxu0 0.0
        %2637 = vmatpush1.msra.mxu0 %v2615
        %2638 = vmatprep.subr.mxu0 0.0
        %2639 = vmatpush1.msra.mxu0 %v2616
        %2640 = vmatprep.subr.mxu0 0.0
        %2641 = vmatpush1.msra.mxu0 %v2617
        %2642 = vmatprep.subr.mxu0 0.0
        %2643 = vmatpush1.msra.mxu0 %v2618
        %2644 = vmatprep.subr.mxu0 0.0
        %2645 = vmatpush1.msra.mxu0 %v2619
        %2646 = vmatprep.subr.mxu0 0.0
        %2647 = vmatpush1.msra.mxu0 %v2620
        %2648 = vmatprep.subr.mxu0 0.0
        %2649 = vmatpush1.msra.mxu0 %v2621
        %2650 = vmatprep.subr.mxu0 0.0
        %2651 = vmatpush1.msra.mxu0 %v2622
        %2652 = vmatprep.subr.mxu0 0.0
        %2653 = vmatpush1.msra.mxu0 %v2623
        %2654 = vmatprep.subr.mxu0 0.0
        %2655 = vmatpush1.msra.mxu0 %v2624
        %2656 = vmatprep.subr.mxu0 0.0
        %2657 = vmatpush1.msra.mxu0 0.0
        %2658 = vmatprep.subr.mxu0 0.0
        %2659 = vmatpush1.msra.mxu0 0.0
        %2660 = vmatprep.subr.mxu0 0.0
        %2661 = vmatpush1.msra.mxu0 0.0
        %2662 = vmatprep.subr.mxu0 0.0
        %2663 = vmatpush1.msra.mxu0 0.0
        %2664 = vmatprep.subr.mxu0 0.0
        %2665 = vmatpush1.msra.mxu0 0.0
        %2666 = vmatprep.subr.mxu0 0.0
        %2667 = vmatpush1.msra.mxu0 0.0
        %2668 = vmatprep.subr.mxu0 0.0
        %2669 = vmatpush1.msra.mxu0 0.0
        %2670 = vmatprep.subr.mxu0 0.0
        %2671 = vmatpush1.msra.mxu0 0.0
        %2672 = vmatprep.subr.mxu0 0.0
        %2673 = vmatpush1.msra.mxu0 0.0
        %2674 = vmatprep.subr.mxu0 0.0
        %2675 = vmatpush1.msra.mxu0 0.0
        %2676 = vmatprep.subr.mxu0 0.0
        %2677 = vmatpush1.msra.mxu0 0.0
        %2678 = vmatprep.subr.mxu0 0.0
        %2679 = vmatpush1.msra.mxu0 0.0
        %2680 = vmatprep.subr.mxu0 0.0
        %2681 = vmatpush1.msra.mxu0 0.0
        %2682 = vmatprep.subr.mxu0 0.0
        %2683 = vmatpush1.msra.mxu0 0.0
        %2684 = vmatprep.subr.mxu0 0.0
        %2685 = vmatpush1.msra.mxu0 0.0
        %2686 = vmatprep.subr.mxu0 0.0
        %2687 = vmatpush1.msra.mxu0 0.0
        %2688 = vmatprep.subr.mxu0 0.0
        %2689 = vmatpush1.msra.mxu0 0.0
        %2690 = vmatprep.subr.mxu0 0.0
        %2691 = vmatpush1.msra.mxu0 0.0
        %2692 = vmatprep.subr.mxu0 0.0
        %2693 = vmatpush1.msra.mxu0 0.0
        %2694 = vmatprep.subr.mxu0 0.0
        %2695 = vmatpush1.msra.mxu0 0.0
        %2696 = vmatprep.mubr.f32.mxu0 0.0
        %2697 = vmatmul.mubr.f32.gmra.mrb[0].mxu0 %v2630
        %v2698 = vpop.f32.mrb[0].mxu0
        %v2699 = vadd.f32 %v2628, %v2698
        %v2700 = vpop.f32.mrb[0].mxu0
        %2701 = vdwg.mxu0
        %v2702 = vadd.f32 %v2699, %v1938
        %v2703 = vsel %vm893, %v2702, 0.0
        %2704 = vadd.xlane.f32.xlu0 %v2703
        %v2705 = vpop.xlane.xlu0 %2704
        %v2706 = vmul.f32 %v2705, %v1131
        %v2707 = vsub.f32 %v2702, %v2706
        %v2708 = vmul.f32 %v2707, %v2707
        %v2709 = vsel %vm893, %v2708, 0.0
        %2710 = vadd.xlane.f32.xlu0 %v2709
        %v2711 = vpop.xlane.xlu0 %2710
        %v2712 = vmul.f32 %v2711, %v1131
        %v2713 = vadd.f32 %v2712, 1e-05
        %v2714 = vrsqrt.pop %v2713
        %v2715 = vmul.f32 %v2707, %v2714
        %v2716 = vlaneseq
        %v2717 = vshrl.u32 %v2716, 7
        %v2718 = vsub.s32 2, %v2717
        %v2719 = vrot.slane %v2451, %v2718
        %v2720 = vmul.f32 %v2715, %v2719
        %v2721 = vlaneseq
        %v2722 = vshrl.u32 %v2721, 7
        %v2723 = vsub.s32 3, %v2722
        %v2724 = vrot.slane %v2451, %v2723
        %v2725 = vadd.f32 %v2720, %v2724
        %s2726 = scalar_lea.vmem %s3, 24
        %v2727 = vld [vmem:[%s2726] sm:$0x3f]
        %s2728 = scalar_lea.vmem [#allocation2], 384
        %v2729 = vld [vmem:[%s2728] sm:$0xff]
        %v2730 = vld [vmem:[%s2728 + $0x8] sm:$0xff]
        %v2731 = vld [vmem:[%s2728 + $0x10] sm:$0xff]
        %v2732 = vld [vmem:[%s2728 + $0x18] sm:$0xff]
        %v2733 = vlaneseq
        %v2734 = vshrl.u32 %v2733, 7
        %v2735 = vsub.s32 0, %v2734
        %v2736 = vrot.slane %v2727, %v2735
        %v2738 = vsel %vm373, %v2449, 0
        %2740 = vmatprep.subr.mxu0 0.0
        %2741 = vmatpush1.msra.mxu0 %v2729
        %2742 = vmatprep.subr.mxu0 0.0
        %2743 = vmatpush1.msra.mxu0 %v2730
        %2744 = vmatprep.subr.mxu0 0.0
        %2745 = vmatpush1.msra.mxu0 %v2731
        %2746 = vmatprep.subr.mxu0 0.0
        %2747 = vmatpush1.msra.mxu0 %v2732
        %2748 = vmatprep.subr.mxu0 0.0
        %2749 = vmatpush1.msra.mxu0 0.0
        %2750 = vmatprep.subr.mxu0 0.0
        %2751 = vmatpush1.msra.mxu0 0.0
        %2752 = vmatprep.subr.mxu0 0.0
        %2753 = vmatpush1.msra.mxu0 0.0
        %2754 = vmatprep.subr.mxu0 0.0
        %2755 = vmatpush1.msra.mxu0 0.0
        %2756 = vmatprep.subr.mxu0 0.0
        %2757 = vmatpush1.msra.mxu0 0.0
        %2758 = vmatprep.subr.mxu0 0.0
        %2759 = vmatpush1.msra.mxu0 0.0
        %2760 = vmatprep.subr.mxu0 0.0
        %2761 = vmatpush1.msra.mxu0 0.0
        %2762 = vmatprep.subr.mxu0 0.0
        %2763 = vmatpush1.msra.mxu0 0.0
        %2764 = vmatprep.subr.mxu0 0.0
        %2765 = vmatpush1.msra.mxu0 0.0
        %2766 = vmatprep.subr.mxu0 0.0
        %2767 = vmatpush1.msra.mxu0 0.0
        %2768 = vmatprep.subr.mxu0 0.0
        %2769 = vmatpush1.msra.mxu0 0.0
        %2770 = vmatprep.subr.mxu0 0.0
        %2771 = vmatpush1.msra.mxu0 0.0
        %2772 = vmatprep.subr.mxu0 0.0
        %2773 = vmatpush1.msra.mxu0 0.0
        %2774 = vmatprep.subr.mxu0 0.0
        %2775 = vmatpush1.msra.mxu0 0.0
        %2776 = vmatprep.subr.mxu0 0.0
        %2777 = vmatpush1.msra.mxu0 0.0
        %2778 = vmatprep.subr.mxu0 0.0
        %2779 = vmatpush1.msra.mxu0 0.0
        %2780 = vmatprep.subr.mxu0 0.0
        %2781 = vmatpush1.msra.mxu0 0.0
        %2782 = vmatprep.subr.mxu0 0.0
        %2783 = vmatpush1.msra.mxu0 0.0
        %2784 = vmatprep.subr.mxu0 0.0
        %2785 = vmatpush1.msra.mxu0 0.0
        %2786 = vmatprep.subr.mxu0 0.0
        %2787 = vmatpush1.msra.mxu0 0.0
        %2788 = vmatprep.subr.mxu0 0.0
        %2789 = vmatpush1.msra.mxu0 0.0
        %2790 = vmatprep.subr.mxu0 0.0
        %2791 = vmatpush1.msra.mxu0 0.0
        %2792 = vmatprep.subr.mxu0 0.0
        %2793 = vmatpush1.msra.mxu0 0.0
        %2794 = vmatprep.subr.mxu0 0.0
        %2795 = vmatpush1.msra.mxu0 0.0
        %2796 = vmatprep.subr.mxu0 0.0
        %2797 = vmatpush1.msra.mxu0 0.0
        %2798 = vmatprep.subr.mxu0 0.0
        %2799 = vmatpush1.msra.mxu0 0.0
        %2800 = vmatprep.subr.mxu0 0.0
        %2801 = vmatpush1.msra.mxu0 0.0
        %2802 = vmatprep.subr.mxu0 0.0
        %2803 = vmatpush1.msra.mxu0 0.0
        %2804 = vmatprep.mubr.f32.mxu0 0.0
        %2805 = vmatmul.mubr.f32.gmra.mrb[0].mxu0 %v2738
        %v2806 = vpop.f32.mrb[0].mxu0
        %v2807 = vadd.f32 %v2736, %v2806
        %v2808 = vpop.f32.mrb[0].mxu0
        %2809 = vdwg.mxu0
        %s2810 = scalar_lea.vmem [#allocation2], 416
        %v2811 = vld [vmem:[%s2810] sm:$0xff]
        %v2812 = vld [vmem:[%s2810 + $0x8] sm:$0xff]
        %v2813 = vld [vmem:[%s2810 + $0x10] sm:$0xff]
        %v2814 = vld [vmem:[%s2810 + $0x18] sm:$0xff]
        %v2815 = vlaneseq
        %v2816 = vshrl.u32 %v2815, 7
        %v2817 = vsub.s32 1, %v2816
        %v2818 = vrot.slane %v2727, %v2817
        %2819 = vmatprep.subr.mxu0 0.0
        %2820 = vmatpush1.msra.mxu0 %v2811
        %2821 = vmatprep.subr.mxu0 0.0
        %2822 = vmatpush1.msra.mxu0 %v2812
        %2823 = vmatprep.subr.mxu0 0.0
        %2824 = vmatpush1.msra.mxu0 %v2813
        %2825 = vmatprep.subr.mxu0 0.0
        %2826 = vmatpush1.msra.mxu0 %v2814
        %2827 = vmatprep.subr.mxu0 0.0
        %2828 = vmatpush1.msra.mxu0 0.0
        %2829 = vmatprep.subr.mxu0 0.0
        %2830 = vmatpush1.msra.mxu0 0.0
        %2831 = vmatprep.subr.mxu0 0.0
        %2832 = vmatpush1.msra.mxu0 0.0
        %2833 = vmatprep.subr.mxu0 0.0
        %2834 = vmatpush1.msra.mxu0 0.0
        %2835 = vmatprep.subr.mxu0 0.0
        %2836 = vmatpush1.msra.mxu0 0.0
        %2837 = vmatprep.subr.mxu0 0.0
        %2838 = vmatpush1.msra.mxu0 0.0
        %2839 = vmatprep.subr.mxu0 0.0
        %2840 = vmatpush1.msra.mxu0 0.0
        %2841 = vmatprep.subr.mxu0 0.0
        %2842 = vmatpush1.msra.mxu0 0.0
        %2843 = vmatprep.subr.mxu0 0.0
        %2844 = vmatpush1.msra.mxu0 0.0
        %2845 = vmatprep.subr.mxu0 0.0
        %2846 = vmatpush1.msra.mxu0 0.0
        %2847 = vmatprep.subr.mxu0 0.0
        %2848 = vmatpush1.msra.mxu0 0.0
        %2849 = vmatprep.subr.mxu0 0.0
        %2850 = vmatpush1.msra.mxu0 0.0
        %2851 = vmatprep.subr.mxu0 0.0
        %2852 = vmatpush1.msra.mxu0 0.0
        %2853 = vmatprep.subr.mxu0 0.0
        %2854 = vmatpush1.msra.mxu0 0.0
        %2855 = vmatprep.subr.mxu0 0.0
        %2856 = vmatpush1.msra.mxu0 0.0
        %2857 = vmatprep.subr.mxu0 0.0
        %2858 = vmatpush1.msra.mxu0 0.0
        %2859 = vmatprep.subr.mxu0 0.0
        %2860 = vmatpush1.msra.mxu0 0.0
        %2861 = vmatprep.subr.mxu0 0.0
        %2862 = vmatpush1.msra.mxu0 0.0
        %2863 = vmatprep.subr.mxu0 0.0
        %2864 = vmatpush1.msra.mxu0 0.0
        %2865 = vmatprep.subr.mxu0 0.0
        %2866 = vmatpush1.msra.mxu0 0.0
        %2867 = vmatprep.subr.mxu0 0.0
        %2868 = vmatpush1.msra.mxu0 0.0
        %2869 = vmatprep.subr.mxu0 0.0
        %2870 = vmatpush1.msra.mxu0 0.0
        %2871 = vmatprep.subr.mxu0 0.0
        %2872 = vmatpush1.msra.mxu0 0.0
        %2873 = vmatprep.subr.mxu0 0.0
        %2874 = vmatpush1.msra.mxu0 0.0
        %2875 = vmatprep.subr.mxu0 0.0
        %2876 = vmatpush1.msra.mxu0 0.0
        %2877 = vmatprep.subr.mxu0 0.0
        %2878 = vmatpush1.msra.mxu0 0.0
        %2879 = vmatprep.subr.mxu0 0.0
        %2880 = vmatpush1.msra.mxu0 0.0
        %2881 = vmatprep.subr.mxu0 0.0
        %2882 = vmatpush1.msra.mxu0 0.0
        %2883 = vmatprep.mubr.f32.mxu0 0.0
        %2884 = vmatmul.mubr.f32.gmra.mrb[0].mxu0 %v2738
        %v2885 = vpop.f32.mrb[0].mxu0
        %v2886 = vadd.f32 %v2818, %v2885
        %v2887 = vpop.f32.mrb[0].mxu0
        %2888 = vdwg.mxu0
        %v2890 = vsel %vm373, %v2807, 0
        %v2893 = vsel %vm373, %v2886, 0
        %2895 = vmatprep.subr.mxu0 0.0
        %2896 = vmatpush1.xpose.msra.mxu0 %v2893
        %2897 = vmatprep.subr.mxu0 0.0
        %2898 = vmatpush1.xpose.msra.mxu0 0.0
        %2899 = vmatprep.subr.mxu0 0.0
        %2900 = vmatpush1.xpose.msra.mxu0 0.0
        %2901 = vmatprep.subr.mxu0 0.0
        %2902 = vmatpush1.xpose.msra.mxu0 0.0
        %2903 = vmatprep.subr.mxu0 0.0
        %2904 = vmatpush1.xpose.msra.mxu0 0.0
        %2905 = vmatprep.subr.mxu0 0.0
        %2906 = vmatpush1.xpose.msra.mxu0 0.0
        %2907 = vmatprep.subr.mxu0 0.0
        %2908 = vmatpush1.xpose.msra.mxu0 0.0
        %2909 = vmatprep.subr.mxu0 0.0
        %2910 = vmatpush1.xpose.msra.mxu0 0.0
        %2911 = vmatprep.subr.mxu0 0.0
        %2912 = vmatpush1.xpose.msra.mxu0 0.0
        %2913 = vmatprep.subr.mxu0 0.0
        %2914 = vmatpush1.xpose.msra.mxu0 0.0
        %2915 = vmatprep.subr.mxu0 0.0
        %2916 = vmatpush1.xpose.msra.mxu0 0.0
        %2917 = vmatprep.subr.mxu0 0.0
        %2918 = vmatpush1.xpose.msra.mxu0 0.0
        %2919 = vmatprep.subr.mxu0 0.0
        %2920 = vmatpush1.xpose.msra.mxu0 0.0
        %2921 = vmatprep.subr.mxu0 0.0
        %2922 = vmatpush1.xpose.msra.mxu0 0.0
        %2923 = vmatprep.subr.mxu0 0.0
        %2924 = vmatpush1.xpose.msra.mxu0 0.0
        %2925 = vmatprep.subr.mxu0 0.0
        %2926 = vmatpush1.xpose.msra.mxu0 0.0
        %2927 = vmatprep.subr.mxu0 0.0
        %2928 = vmatpush1.xpose.msra.mxu0 0.0
        %2929 = vmatprep.subr.mxu0 0.0
        %2930 = vmatpush1.xpose.msra.mxu0 0.0
        %2931 = vmatprep.subr.mxu0 0.0
        %2932 = vmatpush1.xpose.msra.mxu0 0.0
        %2933 = vmatprep.subr.mxu0 0.0
        %2934 = vmatpush1.xpose.msra.mxu0 0.0
        %2935 = vmatprep.subr.mxu0 0.0
        %2936 = vmatpush1.xpose.msra.mxu0 0.0
        %2937 = vmatprep.subr.mxu0 0.0
        %2938 = vmatpush1.xpose.msra.mxu0 0.0
        %2939 = vmatprep.subr.mxu0 0.0
        %2940 = vmatpush1.xpose.msra.mxu0 0.0
        %2941 = vmatprep.subr.mxu0 0.0
        %2942 = vmatpush1.xpose.msra.mxu0 0.0
        %2943 = vmatprep.subr.mxu0 0.0
        %2944 = vmatpush1.xpose.msra.mxu0 0.0
        %2945 = vmatprep.subr.mxu0 0.0
        %2946 = vmatpush1.xpose.msra.mxu0 0.0
        %2947 = vmatprep.subr.mxu0 0.0
        %2948 = vmatpush1.xpose.msra.mxu0 0.0
        %2949 = vmatprep.subr.mxu0 0.0
        %2950 = vmatpush1.xpose.msra.mxu0 0.0
        %2951 = vmatprep.subr.mxu0 0.0
        %2952 = vmatpush1.xpose.msra.mxu0 0.0
        %2953 = vmatprep.subr.mxu0 0.0
        %2954 = vmatpush1.xpose.msra.mxu0 0.0
        %2955 = vmatprep.subr.mxu0 0.0
        %2956 = vmatpush1.xpose.msra.mxu0 0.0
        %2957 = vmatprep.subr.mxu0 0.0
        %2958 = vmatpush1.xpose.msra.mxu0 0.0
        %2959 = vmatprep.mubr.f32.mxu0 0.0
        %2960 = vmatmul.mubr.f32.gmra.mrb[0].mxu0 %v2890
        %v2961 = vpop.f32.mrb[0].mxu0
        %v2962 = vadd.f32 0.0, %v2961
        %v2963 = vpop.f32.mrb[0].mxu0
        %2964 = vdwg.mxu0
        %v2965 = vsel %vm602, %v2962, -inf
        %2966 = vmax.xlane.f32.xlu0 %v2965
        %v2967 = vpop.xlane.xlu0 %2966
        %v2968 = vsub.f32 %v2962, %v2967
        %v2969 = vmul.f32 %v2968, 1.442695
        %v2970 = vpow.pop %v2969
        %v2971 = vsel %vm602, %v2970, 0.0
        %2972 = vadd.xlane.f32.xlu0 %v2971
        %v2973 = vpop.xlane.xlu0 %2972
        %v2974 = vrcp.pop %v2973
        %v2975 = vmul.f32 %v2973, %v2974
        %v2976 = vsub.f32 2.0, %v2975
        %v2977 = vmul.f32 %v2974, %v2976
        %v2978 = vmul.f32 %v2970, %v2977
        %s2979 = scalar_lea.vmem %s5, 12
        %v2980 = vld [vmem:[%s2979] sm:$0xf]
        %s2981 = scalar_lea.vmem [#allocation5], 576
        %v2982 = vld [vmem:[%s2981] sm:$0xff]
        %v2983 = vld [vmem:[%s2981 + $0x8] sm:$0xff]
        %v2984 = vld [vmem:[%s2981 + $0x10] sm:$0xff]
        %v2985 = vld [vmem:[%s2981 + $0x18] sm:$0xff]
        %v2986 = vld [vmem:[%s2981 + $0x20] sm:$0xff]
        %v2987 = vld [vmem:[%s2981 + $0x28] sm:$0xff]
        %v2988 = vld [vmem:[%s2981 + $0x30] sm:$0xff]
        %v2989 = vld [vmem:[%s2981 + $0x38] sm:$0xff]
        %v2990 = vld [vmem:[%s2981 + $0x40] sm:$0xff]
        %v2991 = vld [vmem:[%s2981 + $0x48] sm:$0xff]
        %v2992 = vld [vmem:[%s2981 + $0x50] sm:$0xff]
        %v2993 = vld [vmem:[%s2981 + $0x58] sm:$0xff]
        %v2994 = vlaneseq
        %v2995 = vshrl.u32 %v2994, 7
        %v2996 = vsub.s32 0, %v2995
        %v2997 = vrot.slane %v2980, %v2996
        %v2999 = vsel %vm893, %v2725, 0
        %3001 = vmatprep.subr.mxu0 0.0
        %3002 = vmatpush1.msra.mxu0 %v2982
        %3003 = vmatprep.subr.mxu0 0.0
        %3004 = vmatpush1.msra.mxu0 %v2983
        %3005 = vmatprep.subr.mxu0 0.0
        %3006 = vmatpush1.msra.mxu0 %v2984
        %3007 = vmatprep.subr.mxu0 0.0
        %3008 = vmatpush1.msra.mxu0 %v2985
        %3009 = vmatprep.subr.mxu0 0.0
        %3010 = vmatpush1.msra.mxu0 %v2986
        %3011 = vmatprep.subr.mxu0 0.0
        %3012 = vmatpush1.msra.mxu0 %v2987
        %3013 = vmatprep.subr.mxu0 0.0
        %3014 = vmatpush1.msra.mxu0 %v2988
        %3015 = vmatprep.subr.mxu0 0.0
        %3016 = vmatpush1.msra.mxu0 %v2989
        %3017 = vmatprep.subr.mxu0 0.0
        %3018 = vmatpush1.msra.mxu0 %v2990
        %3019 = vmatprep.subr.mxu0 0.0
        %3020 = vmatpush1.msra.mxu0 %v2991
        %3021 = vmatprep.subr.mxu0 0.0
        %3022 = vmatpush1.msra.mxu0 %v2992
        %3023 = vmatprep.subr.mxu0 0.0
        %3024 = vmatpush1.msra.mxu0 %v2993
        %3025 = vmatprep.subr.mxu0 0.0
        %3026 = vmatpush1.msra.mxu0 0.0
        %3027 = vmatprep.subr.mxu0 0.0
        %3028 = vmatpush1.msra.mxu0 0.0
        %3029 = vmatprep.subr.mxu0 0.0
        %3030 = vmatpush1.msra.mxu0 0.0
        %3031 = vmatprep.subr.mxu0 0.0
        %3032 = vmatpush1.msra.mxu0 0.0
        %3033 = vmatprep.subr.mxu0 0.0
        %3034 = vmatpush1.msra.mxu0 0.0
        %3035 = vmatprep.subr.mxu0 0.0
        %3036 = vmatpush1.msra.mxu0 0.0
        %3037 = vmatprep.subr.mxu0 0.0
        %3038 = vmatpush1.msra.mxu0 0.0
        %3039 = vmatprep.subr.mxu0 0.0
        %3040 = vmatpush1.msra.mxu0 0.0
        %3041 = vmatprep.subr.mxu0 0.0
        %3042 = vmatpush1.msra.mxu0 0.0
        %3043 = vmatprep.subr.mxu0 0.0
        %3044 = vmatpush1.msra.mxu0 0.0
        %3045 = vmatprep.subr.mxu0 0.0
        %3046 = vmatpush1.msra.mxu0 0.0
        %3047 = vmatprep.subr.mxu0 0.0
        %3048 = vmatpush1.msra.mxu0 0.0
        %3049 = vmatprep.subr.mxu0 0.0
        %3050 = vmatpush1.msra.mxu0 0.0
        %3051 = vmatprep.subr.mxu0 0.0
        %3052 = vmatpush1.msra.mxu0 0.0
        %3053 = vmatprep.subr.mxu0 0.0
        %3054 = vmatpush1.msra.mxu0 0.0
        %3055 = vmatprep.subr.mxu0 0.0
        %3056 = vmatpush1.msra.mxu0 0.0
        %3057 = vmatprep.subr.mxu0 0.0
        %3058 = vmatpush1.msra.mxu0 0.0
        %3059 = vmatprep.subr.mxu0 0.0
        %3060 = vmatpush1.msra.mxu0 0.0
        %3061 = vmatprep.subr.mxu0 0.0
        %3062 = vmatpush1.msra.mxu0 0.0
        %3063 = vmatprep.subr.mxu0 0.0
        %3064 = vmatpush1.msra.mxu0 0.0
        %3065 = vmatprep.mubr.f32.mxu0 0.0
        %3066 = vmatmul.mubr.f32.gmra.mrb[0].mxu0 %v2999
        %v3067 = vpop.f32.mrb[0].mxu0
        %v3068 = vadd.f32 %v2997, %v3067
        %v3069 = vpop.f32.mrb[0].mxu0
        %3070 = vdwg.mxu0
        %v3072 = vsel %vm602, %v2978, 0
        %3074 = vmatprep.subr.mxu0 0.0
        %3075 = vmatpush1.msra.mxu0 %v3068
        %3076 = vmatprep.subr.mxu0 0.0
        %3077 = vmatpush1.msra.mxu0 0.0
        %3078 = vmatprep.subr.mxu0 0.0
        %3079 = vmatpush1.msra.mxu0 0.0
        %3080 = vmatprep.subr.mxu0 0.0
        %3081 = vmatpush1.msra.mxu0 0.0
        %3082 = vmatprep.subr.mxu0 0.0
        %3083 = vmatpush1.msra.mxu0 0.0
        %3084 = vmatprep.subr.mxu0 0.0
        %3085 = vmatpush1.msra.mxu0 0.0
        %3086 = vmatprep.subr.mxu0 0.0
        %3087 = vmatpush1.msra.mxu0 0.0
        %3088 = vmatprep.subr.mxu0 0.0
        %3089 = vmatpush1.msra.mxu0 0.0
        %3090 = vmatprep.subr.mxu0 0.0
        %3091 = vmatpush1.msra.mxu0 0.0
        %3092 = vmatprep.subr.mxu0 0.0
        %3093 = vmatpush1.msra.mxu0 0.0
        %3094 = vmatprep.subr.mxu0 0.0
        %3095 = vmatpush1.msra.mxu0 0.0
        %3096 = vmatprep.subr.mxu0 0.0
        %3097 = vmatpush1.msra.mxu0 0.0
        %3098 = vmatprep.subr.mxu0 0.0
        %3099 = vmatpush1.msra.mxu0 0.0
        %3100 = vmatprep.subr.mxu0 0.0
        %3101 = vmatpush1.msra.mxu0 0.0
        %3102 = vmatprep.subr.mxu0 0.0
        %3103 = vmatpush1.msra.mxu0 0.0
        %3104 = vmatprep.subr.mxu0 0.0
        %3105 = vmatpush1.msra.mxu0 0.0
        %3106 = vmatprep.subr.mxu0 0.0
        %3107 = vmatpush1.msra.mxu0 0.0
        %3108 = vmatprep.subr.mxu0 0.0
        %3109 = vmatpush1.msra.mxu0 0.0
        %3110 = vmatprep.subr.mxu0 0.0
        %3111 = vmatpush1.msra.mxu0 0.0
        %3112 = vmatprep.subr.mxu0 0.0
        %3113 = vmatpush1.msra.mxu0 0.0
        %3114 = vmatprep.subr.mxu0 0.0
        %3115 = vmatpush1.msra.mxu0 0.0
        %3116 = vmatprep.subr.mxu0 0.0
        %3117 = vmatpush1.msra.mxu0 0.0
        %3118 = vmatprep.subr.mxu0 0.0
        %3119 = vmatpush1.msra.mxu0 0.0
        %3120 = vmatprep.subr.mxu0 0.0
        %3121 = vmatpush1.msra.mxu0 0.0
        %3122 = vmatprep.subr.mxu0 0.0
        %3123 = vmatpush1.msra.mxu0 0.0
        %3124 = vmatprep.subr.mxu0 0.0
        %3125 = vmatpush1.msra.mxu0 0.0
        %3126 = vmatprep.subr.mxu0 0.0
        %3127 = vmatpush1.msra.mxu0 0.0
        %3128 = vmatprep.subr.mxu0 0.0
        %3129 = vmatpush1.msra.mxu0 0.0
        %3130 = vmatprep.subr.mxu0 0.0
        %3131 = vmatpush1.msra.mxu0 0.0
        %3132 = vmatprep.subr.mxu0 0.0
        %3133 = vmatpush1.msra.mxu0 0.0
        %3134 = vmatprep.subr.mxu0 0.0
        %3135 = vmatpush1.msra.mxu0 0.0
        %3136 = vmatprep.subr.mxu0 0.0
        %3137 = vmatpush1.msra.mxu0 0.0
        %3138 = vmatprep.mubr.f32.mxu0 0.0
        %3139 = vmatmul.mubr.f32.gmra.mrb[0].mxu0 %v3072
        %v3140 = vpop.f32.mrb[0].mxu0
        %v3141 = vadd.f32 0.0, %v3140
        %v3142 = vpop.f32.mrb[0].mxu0
        %3143 = vdwg.mxu0
        %s3144 = scalar_lea.vmem [#allocation5], 672
        %v3145 = vld [vmem:[%s3144] sm:$0xff]
        %v3146 = vld [vmem:[%s3144 + $0x8] sm:$0xff]
        %v3147 = vld [vmem:[%s3144 + $0x10] sm:$0xff]
        %v3148 = vld [vmem:[%s3144 + $0x18] sm:$0xff]
        %v3149 = vld [vmem:[%s3144 + $0x20] sm:$0xff]
        %v3150 = vld [vmem:[%s3144 + $0x28] sm:$0xff]
        %v3151 = vld [vmem:[%s3144 + $0x30] sm:$0xff]
        %v3152 = vld [vmem:[%s3144 + $0x38] sm:$0xff]
        %v3153 = vld [vmem:[%s3144 + $0x40] sm:$0xff]
        %v3154 = vld [vmem:[%s3144 + $0x48] sm:$0xff]
        %v3155 = vld [vmem:[%s3144 + $0x50] sm:$0xff]
        %v3156 = vld [vmem:[%s3144 + $0x58] sm:$0xff]
        %v3157 = vlaneseq
        %v3158 = vshrl.u32 %v3157, 7
        %v3159 = vsub.s32 1, %v3158
        %v3160 = vrot.slane %v2980, %v3159
        %v3162 = vsel %vm893, %v3141, 0
        %3164 = vmatprep.subr.mxu0 0.0
        %3165 = vmatpush1.msra.mxu0 %v3145
        %3166 = vmatprep.subr.mxu0 0.0
        %3167 = vmatpush1.msra.mxu0 %v3146
        %3168 = vmatprep.subr.mxu0 0.0
        %3169 = vmatpush1.msra.mxu0 %v3147
        %3170 = vmatprep.subr.mxu0 0.0
        %3171 = vmatpush1.msra.mxu0 %v3148
        %3172 = vmatprep.subr.mxu0 0.0
        %3173 = vmatpush1.msra.mxu0 %v3149
        %3174 = vmatprep.subr.mxu0 0.0
        %3175 = vmatpush1.msra.mxu0 %v3150
        %3176 = vmatprep.subr.mxu0 0.0
        %3177 = vmatpush1.msra.mxu0 %v3151
        %3178 = vmatprep.subr.mxu0 0.0
        %3179 = vmatpush1.msra.mxu0 %v3152
        %3180 = vmatprep.subr.mxu0 0.0
        %3181 = vmatpush1.msra.mxu0 %v3153
        %3182 = vmatprep.subr.mxu0 0.0
        %3183 = vmatpush1.msra.mxu0 %v3154
        %3184 = vmatprep.subr.mxu0 0.0
        %3185 = vmatpush1.msra.mxu0 %v3155
        %3186 = vmatprep.subr.mxu0 0.0
        %3187 = vmatpush1.msra.mxu0 %v3156
        %3188 = vmatprep.subr.mxu0 0.0
        %3189 = vmatpush1.msra.mxu0 0.0
        %3190 = vmatprep.subr.mxu0 0.0
        %3191 = vmatpush1.msra.mxu0 0.0
        %3192 = vmatprep.subr.mxu0 0.0
        %3193 = vmatpush1.msra.mxu0 0.0
        %3194 = vmatprep.subr.mxu0 0.0
        %3195 = vmatpush1.msra.mxu0 0.0
        %3196 = vmatprep.subr.mxu0 0.0
        %3197 = vmatpush1.msra.mxu0 0.0
        %3198 = vmatprep.subr.mxu0 0.0
        %3199 = vmatpush1.msra.mxu0 0.0
        %3200 = vmatprep.subr.mxu0 0.0
        %3201 = vmatpush1.msra.mxu0 0.0
        %3202 = vmatprep.subr.mxu0 0.0
        %3203 = vmatpush1.msra.mxu0 0.0
        %3204 = vmatprep.subr.mxu0 0.0
        %3205 = vmatpush1.msra.mxu0 0.0
        %3206 = vmatprep.subr.mxu0 0.0
        %3207 = vmatpush1.msra.mxu0 0.0
        %3208 = vmatprep.subr.mxu0 0.0
        %3209 = vmatpush1.msra.mxu0 0.0
        %3210 = vmatprep.subr.mxu0 0.0
        %3211 = vmatpush1.msra.mxu0 0.0
        %3212 = vmatprep.subr.mxu0 0.0
        %3213 = vmatpush1.msra.mxu0 0.0
        %3214 = vmatprep.subr.mxu0 0.0
        %3215 = vmatpush1.msra.mxu0 0.0
        %3216 = vmatprep.subr.mxu0 0.0
        %3217 = vmatpush1.msra.mxu0 0.0
        %3218 = vmatprep.subr.mxu0 0.0
        %3219 = vmatpush1.msra.mxu0 0.0
        %3220 = vmatprep.subr.mxu0 0.0
        %3221 = vmatpush1.msra.mxu0 0.0
        %3222 = vmatprep.subr.mxu0 0.0
        %3223 = vmatpush1.msra.mxu0 0.0
        %3224 = vmatprep.subr.mxu0 0.0
        %3225 = vmatpush1.msra.mxu0 0.0
        %3226 = vmatprep.subr.mxu0 0.0
        %3227 = vmatpush1.msra.mxu0 0.0
        %3228 = vmatprep.mubr.f32.mxu0 0.0
        %3229 = vmatmul.mubr.f32.gmra.mrb[0].mxu0 %v3162
        %v3230 = vpop.f32.mrb[0].mxu0
        %v3231 = vadd.f32 %v3160, %v3230
        %v3232 = vpop.f32.mrb[0].mxu0
        %3233 = vdwg.mxu0
        %v3234 = vadd.f32 %v3231, %v2725
        %v3235 = vsel %vm893, %v3234, 0.0
        %3236 = vadd.xlane.f32.xlu0 %v3235
        %v3237 = vpop.xlane.xlu0 %3236
        %v3238 = vmul.f32 %v3237, %v1131
        %v3239 = vsub.f32 %v3234, %v3238
        %v3240 = vmul.f32 %v3239, %v3239
        %v3241 = vsel %vm893, %v3240, 0.0
        %3242 = vadd.xlane.f32.xlu0 %v3241
        %v3243 = vpop.xlane.xlu0 %3242
        %v3244 = vmul.f32 %v3243, %v1131
        %v3245 = vadd.f32 %v3244, 1e-05
        %v3246 = vrsqrt.pop %v3245
        %v3247 = vmul.f32 %v3239, %v3246
        %v3248 = vlaneseq
        %v3249 = vshrl.u32 %v3248, 7
        %v3250 = vsub.s32 2, %v3249
        %v3251 = vrot.slane %v2980, %v3250
        %v3252 = vmul.f32 %v3247, %v3251
        %v3253 = vlaneseq
        %v3254 = vshrl.u32 %v3253, 7
        %v3255 = vsub.s32 3, %v3254
        %v3256 = vrot.slane %v2980, %v3255
        %v3257 = vadd.f32 %v3252, %v3256
        %v3258 = vld [vmem:[%s7] sm:$0xf]
        %v3259 = vld [vmem:[#allocation7] sm:$0xff]
        %v3260 = vld [vmem:[#allocation7 + $0x8] sm:$0xff]
        %v3261 = vld [vmem:[#allocation7 + $0x10] sm:$0xff]
        %v3262 = vld [vmem:[#allocation7 + $0x18] sm:$0xff]
        %v3263 = vld [vmem:[#allocation7 + $0x20] sm:$0xff]
        %v3264 = vld [vmem:[#allocation7 + $0x28] sm:$0xff]
        %v3265 = vld [vmem:[#allocation7 + $0x30] sm:$0xff]
        %v3266 = vld [vmem:[#allocation7 + $0x38] sm:$0xff]
        %v3267 = vld [vmem:[#allocation7 + $0x40] sm:$0xff]
        %v3268 = vld [vmem:[#allocation7 + $0x48] sm:$0xff]
        %v3269 = vld [vmem:[#allocation7 + $0x50] sm:$0xff]
        %v3270 = vld [vmem:[#allocation7 + $0x58] sm:$0xff]
        %v3271 = vlaneseq
        %v3272 = vshrl.u32 %v3271, 7
        %v3273 = vsub.s32 0, %v3272
        %v3274 = vrot.slane %v3258, %v3273
        %v3276 = vsel %vm893, %v3257, 0
        %3278 = vmatprep.subr.mxu0 0.0
        %3279 = vmatpush1.msra.mxu0 %v3259
        %3280 = vmatprep.subr.mxu0 0.0
        %3281 = vmatpush1.msra.mxu0 %v3260
        %3282 = vmatprep.subr.mxu0 0.0
        %3283 = vmatpush1.msra.mxu0 %v3261
        %3284 = vmatprep.subr.mxu0 0.0
        %3285 = vmatpush1.msra.mxu0 %v3262
        %3286 = vmatprep.subr.mxu0 0.0
        %3287 = vmatpush1.msra.mxu0 %v3263
        %3288 = vmatprep.subr.mxu0 0.0
        %3289 = vmatpush1.msra.mxu0 %v3264
        %3290 = vmatprep.subr.mxu0 0.0
        %3291 = vmatpush1.msra.mxu0 %v3265
        %3292 = vmatprep.subr.mxu0 0.0
        %3293 = vmatpush1.msra.mxu0 %v3266
        %3294 = vmatprep.subr.mxu0 0.0
        %3295 = vmatpush1.msra.mxu0 %v3267
        %3296 = vmatprep.subr.mxu0 0.0
        %3297 = vmatpush1.msra.mxu0 %v3268
        %3298 = vmatprep.subr.mxu0 0.0
        %3299 = vmatpush1.msra.mxu0 %v3269
        %3300 = vmatprep.subr.mxu0 0.0
        %3301 = vmatpush1.msra.mxu0 %v3270
        %3302 = vmatprep.subr.mxu0 0.0
        %3303 = vmatpush1.msra.mxu0 0.0
        %3304 = vmatprep.subr.mxu0 0.0
        %3305 = vmatpush1.msra.mxu0 0.0
        %3306 = vmatprep.subr.mxu0 0.0
        %3307 = vmatpush1.msra.mxu0 0.0
        %3308 = vmatprep.subr.mxu0 0.0
        %3309 = vmatpush1.msra.mxu0 0.0
        %3310 = vmatprep.subr.mxu0 0.0
        %3311 = vmatpush1.msra.mxu0 0.0
        %3312 = vmatprep.subr.mxu0 0.0
        %3313 = vmatpush1.msra.mxu0 0.0
        %3314 = vmatprep.subr.mxu0 0.0
        %3315 = vmatpush1.msra.mxu0 0.0
        %3316 = vmatprep.subr.mxu0 0.0
        %3317 = vmatpush1.msra.mxu0 0.0
        %3318 = vmatprep.subr.mxu0 0.0
        %3319 = vmatpush1.msra.mxu0 0.0
        %3320 = vmatprep.subr.mxu0 0.0
        %3321 = vmatpush1.msra.mxu0 0.0
        %3322 = vmatprep.subr.mxu0 0.0
        %3323 = vmatpush1.msra.mxu0 0.0
        %3324 = vmatprep.subr.mxu0 0.0
        %3325 = vmatpush1.msra.mxu0 0.0
        %3326 = vmatprep.subr.mxu0 0.0
        %3327 = vmatpush1.msra.mxu0 0.0
        %3328 = vmatprep.subr.mxu0 0.0
        %3329 = vmatpush1.msra.mxu0 0.0
        %3330 = vmatprep.subr.mxu0 0.0
        %3331 = vmatpush1.msra.mxu0 0.0
        %3332 = vmatprep.subr.mxu0 0.0
        %3333 = vmatpush1.msra.mxu0 0.0
        %3334 = vmatprep.subr.mxu0 0.0
        %3335 = vmatpush1.msra.mxu0 0.0
        %3336 = vmatprep.subr.mxu0 0.0
        %3337 = vmatpush1.msra.mxu0 0.0
        %3338 = vmatprep.subr.mxu0 0.0
        %3339 = vmatpush1.msra.mxu0 0.0
        %3340 = vmatprep.subr.mxu0 0.0
        %3341 = vmatpush1.msra.mxu0 0.0
        %3342 = vmatprep.mubr.f32.mxu0 0.0
        %3343 = vmatmul.mubr.f32.gmra.mrb[0].mxu0 %v3276
        %v3344 = vpop.f32.mrb[0].mxu0
        %v3345 = vadd.f32 %v3274, %v3344
        %v3346 = vpop.f32.mrb[0].mxu0
        %3347 = vdwg.mxu0
        %s3348 = scalar_lea.vmem [#allocation7], 96
        %v3349 = vld [vmem:[%s3348] sm:$0xff]
        %v3350 = vld [vmem:[%s3348 + $0x8] sm:$0xff]
        %v3351 = vld [vmem:[%s3348 + $0x10] sm:$0xff]
        %v3352 = vld [vmem:[%s3348 + $0x18] sm:$0xff]
        %v3353 = vld [vmem:[%s3348 + $0x20] sm:$0xff]
        %v3354 = vld [vmem:[%s3348 + $0x28] sm:$0xff]
        %v3355 = vld [vmem:[%s3348 + $0x30] sm:$0xff]
        %v3356 = vld [vmem:[%s3348 + $0x38] sm:$0xff]
        %v3357 = vld [vmem:[%s3348 + $0x40] sm:$0xff]
        %v3358 = vld [vmem:[%s3348 + $0x48] sm:$0xff]
        %v3359 = vld [vmem:[%s3348 + $0x50] sm:$0xff]
        %v3360 = vld [vmem:[%s3348 + $0x58] sm:$0xff]
        %v3361 = vlaneseq
        %v3362 = vshrl.u32 %v3361, 7
        %v3363 = vsub.s32 1, %v3362
        %v3364 = vrot.slane %v3258, %v3363
        %3365 = vmatprep.subr.mxu0 0.0
        %3366 = vmatpush1.msra.mxu0 %v3349
        %3367 = vmatprep.subr.mxu0 0.0
        %3368 = vmatpush1.msra.mxu0 %v3350
        %3369 = vmatprep.subr.mxu0 0.0
        %3370 = vmatpush1.msra.mxu0 %v3351
        %3371 = vmatprep.subr.mxu0 0.0
        %3372 = vmatpush1.msra.mxu0 %v3352
        %3373 = vmatprep.subr.mxu0 0.0
        %3374 = vmatpush1.msra.mxu0 %v3353
        %3375 = vmatprep.subr.mxu0 0.0
        %3376 = vmatpush1.msra.mxu0 %v3354
        %3377 = vmatprep.subr.mxu0 0.0
        %3378 = vmatpush1.msra.mxu0 %v3355
        %3379 = vmatprep.subr.mxu0 0.0
        %3380 = vmatpush1.msra.mxu0 %v3356
        %3381 = vmatprep.subr.mxu0 0.0
        %3382 = vmatpush1.msra.mxu0 %v3357
        %3383 = vmatprep.subr.mxu0 0.0
        %3384 = vmatpush1.msra.mxu0 %v3358
        %3385 = vmatprep.subr.mxu0 0.0
        %3386 = vmatpush1.msra.mxu0 %v3359
        %3387 = vmatprep.subr.mxu0 0.0
        %3388 = vmatpush1.msra.mxu0 %v3360
        %3389 = vmatprep.subr.mxu0 0.0
        %3390 = vmatpush1.msra.mxu0 0.0
        %3391 = vmatprep.subr.mxu0 0.0
        %3392 = vmatpush1.msra.mxu0 0.0
        %3393 = vmatprep.subr.mxu0 0.0
        %3394 = vmatpush1.msra.mxu0 0.0
        %3395 = vmatprep.subr.mxu0 0.0
        %3396 = vmatpush1.msra.mxu0 0.0
        %3397 = vmatprep.subr.mxu0 0.0
        %3398 = vmatpush1.msra.mxu0 0.0
        %3399 = vmatprep.subr.mxu0 0.0
        %3400 = vmatpush1.msra.mxu0 0.0
        %3401 = vmatprep.subr.mxu0 0.0
        %3402 = vmatpush1.msra.mxu0 0.0
        %3403 = vmatprep.subr.mxu0 0.0
        %3404 = vmatpush1.msra.mxu0 0.0
        %3405 = vmatprep.subr.mxu0 0.0
        %3406 = vmatpush1.msra.mxu0 0.0
        %3407 = vmatprep.subr.mxu0 0.0
        %3408 = vmatpush1.msra.mxu0 0.0
        %3409 = vmatprep.subr.mxu0 0.0
        %3410 = vmatpush1.msra.mxu0 0.0
        %3411 = vmatprep.subr.mxu0 0.0
        %3412 = vmatpush1.msra.mxu0 0.0
        %3413 = vmatprep.subr.mxu0 0.0
        %3414 = vmatpush1.msra.mxu0 0.0
        %3415 = vmatprep.subr.mxu0 0.0
        %3416 = vmatpush1.msra.mxu0 0.0
        %3417 = vmatprep.subr.mxu0 0.0
        %3418 = vmatpush1.msra.mxu0 0.0
        %3419 = vmatprep.subr.mxu0 0.0
        %3420 = vmatpush1.msra.mxu0 0.0
        %3421 = vmatprep.subr.mxu0 0.0
        %3422 = vmatpush1.msra.mxu0 0.0
        %3423 = vmatprep.subr.mxu0 0.0
        %3424 = vmatpush1.msra.mxu0 0.0
        %3425 = vmatprep.subr.mxu0 0.0
        %3426 = vmatpush1.msra.mxu0 0.0
        %3427 = vmatprep.subr.mxu0 0.0
        %3428 = vmatpush1.msra.mxu0 0.0
        %3429 = vmatprep.mubr.f32.mxu0 0.0
        %3430 = vmatmul.mubr.f32.gmra.mrb[0].mxu0 %v3276
        %v3431 = vpop.f32.mrb[0].mxu0
        %v3432 = vadd.f32 %v3364, %v3431
        %v3433 = vpop.f32.mrb[0].mxu0
        %3434 = vdwg.mxu0
        %s3435 = scalar_lea.vmem [#allocation7], 192
        %v3436 = vld [vmem:[%s3435] sm:$0xff]
        %v3437 = vld [vmem:[%s3435 + $0x8] sm:$0xff]
        %v3438 = vld [vmem:[%s3435 + $0x10] sm:$0xff]
        %v3439 = vld [vmem:[%s3435 + $0x18] sm:$0xff]
        %v3440 = vld [vmem:[%s3435 + $0x20] sm:$0xff]
        %v3441 = vld [vmem:[%s3435 + $0x28] sm:$0xff]
        %v3442 = vld [vmem:[%s3435 + $0x30] sm:$0xff]
        %v3443 = vld [vmem:[%s3435 + $0x38] sm:$0xff]
        %v3444 = vld [vmem:[%s3435 + $0x40] sm:$0xff]
        %v3445 = vld [vmem:[%s3435 + $0x48] sm:$0xff]
        %v3446 = vld [vmem:[%s3435 + $0x50] sm:$0xff]
        %v3447 = vld [vmem:[%s3435 + $0x58] sm:$0xff]
        %v3448 = vlaneseq
        %v3449 = vshrl.u32 %v3448, 7
        %v3450 = vsub.s32 2, %v3449
        %v3451 = vrot.slane %v3258, %v3450
        %3452 = vmatprep.subr.mxu0 0.0
        %3453 = vmatpush1.msra.mxu0 %v3436
        %3454 = vmatprep.subr.mxu0 0.0
        %3455 = vmatpush1.msra.mxu0 %v3437
        %3456 = vmatprep.subr.mxu0 0.0
        %3457 = vmatpush1.msra.mxu0 %v3438
        %3458 = vmatprep.subr.mxu0 0.0
        %3459 = vmatpush1.msra.mxu0 %v3439
        %3460 = vmatprep.subr.mxu0 0.0
        %3461 = vmatpush1.msra.mxu0 %v3440
        %3462 = vmatprep.subr.mxu0 0.0
        %3463 = vmatpush1.msra.mxu0 %v3441
        %3464 = vmatprep.subr.mxu0 0.0
        %3465 = vmatpush1.msra.mxu0 %v3442
        %3466 = vmatprep.subr.mxu0 0.0
        %3467 = vmatpush1.msra.mxu0 %v3443
        %3468 = vmatprep.subr.mxu0 0.0
        %3469 = vmatpush1.msra.mxu0 %v3444
        %3470 = vmatprep.subr.mxu0 0.0
        %3471 = vmatpush1.msra.mxu0 %v3445
        %3472 = vmatprep.subr.mxu0 0.0
        %3473 = vmatpush1.msra.mxu0 %v3446
        %3474 = vmatprep.subr.mxu0 0.0
        %3475 = vmatpush1.msra.mxu0 %v3447
        %3476 = vmatprep.subr.mxu0 0.0
        %3477 = vmatpush1.msra.mxu0 0.0
        %3478 = vmatprep.subr.mxu0 0.0
        %3479 = vmatpush1.msra.mxu0 0.0
        %3480 = vmatprep.subr.mxu0 0.0
        %3481 = vmatpush1.msra.mxu0 0.0
        %3482 = vmatprep.subr.mxu0 0.0
        %3483 = vmatpush1.msra.mxu0 0.0
        %3484 = vmatprep.subr.mxu0 0.0
        %3485 = vmatpush1.msra.mxu0 0.0
        %3486 = vmatprep.subr.mxu0 0.0
        %3487 = vmatpush1.msra.mxu0 0.0
        %3488 = vmatprep.subr.mxu0 0.0
        %3489 = vmatpush1.msra.mxu0 0.0
        %3490 = vmatprep.subr.mxu0 0.0
        %3491 = vmatpush1.msra.mxu0 0.0
        %3492 = vmatprep.subr.mxu0 0.0
        %3493 = vmatpush1.msra.mxu0 0.0
        %3494 = vmatprep.subr.mxu0 0.0
        %3495 = vmatpush1.msra.mxu0 0.0
        %3496 = vmatprep.subr.mxu0 0.0
        %3497 = vmatpush1.msra.mxu0 0.0
        %3498 = vmatprep.subr.mxu0 0.0
        %3499 = vmatpush1.msra.mxu0 0.0
        %3500 = vmatprep.subr.mxu0 0.0
        %3501 = vmatpush1.msra.mxu0 0.0
        %3502 = vmatprep.subr.mxu0 0.0
        %3503 = vmatpush1.msra.mxu0 0.0
        %3504 = vmatprep.subr.mxu0 0.0
        %3505 = vmatpush1.msra.mxu0 0.0
        %3506 = vmatprep.subr.mxu0 0.0
        %3507 = vmatpush1.msra.mxu0 0.0
        %3508 = vmatprep.subr.mxu0 0.0
        %3509 = vmatpush1.msra.mxu0 0.0
        %3510 = vmatprep.subr.mxu0 0.0
        %3511 = vmatpush1.msra.mxu0 0.0
        %3512 = vmatprep.subr.mxu0 0.0
        %3513 = vmatpush1.msra.mxu0 0.0
        %3514 = vmatprep.subr.mxu0 0.0
        %3515 = vmatpush1.msra.mxu0 0.0
        %3516 = vmatprep.mubr.f32.mxu0 0.0
        %3517 = vmatmul.mubr.f32.gmra.mrb[0].mxu0 %v3276
        %v3518 = vpop.f32.mrb[0].mxu0
        %v3519 = vadd.f32 %v3451, %v3518
        %v3520 = vpop.f32.mrb[0].mxu0
        %3521 = vdwg.mxu0
        %v3523 = vsel %vm602, %v3345, 0
        %v3526 = vsel %vm602, %v3432, 0
        %3528 = vmatprep.subr.mxu0 0.0
        %3529 = vmatpush1.xpose.msra.mxu0 %v3526
        %3530 = vmatprep.subr.mxu0 0.0
        %3531 = vmatpush1.xpose.msra.mxu0 0.0
        %3532 = vmatprep.subr.mxu0 0.0
        %3533 = vmatpush1.xpose.msra.mxu0 0.0
        %3534 = vmatprep.subr.mxu0 0.0
        %3535 = vmatpush1.xpose.msra.mxu0 0.0
        %3536 = vmatprep.subr.mxu0 0.0
        %3537 = vmatpush1.xpose.msra.mxu0 0.0
        %3538 = vmatprep.subr.mxu0 0.0
        %3539 = vmatpush1.xpose.msra.mxu0 0.0
        %3540 = vmatprep.subr.mxu0 0.0
        %3541 = vmatpush1.xpose.msra.mxu0 0.0
        %3542 = vmatprep.subr.mxu0 0.0
        %3543 = vmatpush1.xpose.msra.mxu0 0.0
        %3544 = vmatprep.subr.mxu0 0.0
        %3545 = vmatpush1.xpose.msra.mxu0 0.0
        %3546 = vmatprep.subr.mxu0 0.0
        %3547 = vmatpush1.xpose.msra.mxu0 0.0
        %3548 = vmatprep.subr.mxu0 0.0
        %3549 = vmatpush1.xpose.msra.mxu0 0.0
        %3550 = vmatprep.subr.mxu0 0.0
        %3551 = vmatpush1.xpose.msra.mxu0 0.0
        %3552 = vmatprep.subr.mxu0 0.0
        %3553 = vmatpush1.xpose.msra.mxu0 0.0
        %3554 = vmatprep.subr.mxu0 0.0
        %3555 = vmatpush1.xpose.msra.mxu0 0.0
        %3556 = vmatprep.subr.mxu0 0.0
        %3557 = vmatpush1.xpose.msra.mxu0 0.0
        %3558 = vmatprep.subr.mxu0 0.0
        %3559 = vmatpush1.xpose.msra.mxu0 0.0
        %3560 = vmatprep.subr.mxu0 0.0
        %3561 = vmatpush1.xpose.msra.mxu0 0.0
        %3562 = vmatprep.subr.mxu0 0.0
        %3563 = vmatpush1.xpose.msra.mxu0 0.0
        %3564 = vmatprep.subr.mxu0 0.0
        %3565 = vmatpush1.xpose.msra.mxu0 0.0
        %3566 = vmatprep.subr.mxu0 0.0
        %3567 = vmatpush1.xpose.msra.mxu0 0.0
        %3568 = vmatprep.subr.mxu0 0.0
        %3569 = vmatpush1.xpose.msra.mxu0 0.0
        %3570 = vmatprep.subr.mxu0 0.0
        %3571 = vmatpush1.xpose.msra.mxu0 0.0
        %3572 = vmatprep.subr.mxu0 0.0
        %3573 = vmatpush1.xpose.msra.mxu0 0.0
        %3574 = vmatprep.subr.mxu0 0.0
        %3575 = vmatpush1.xpose.msra.mxu0 0.0
        %3576 = vmatprep.subr.mxu0 0.0
        %3577 = vmatpush1.xpose.msra.mxu0 0.0
        %3578 = vmatprep.subr.mxu0 0.0
        %3579 = vmatpush1.xpose.msra.mxu0 0.0
        %3580 = vmatprep.subr.mxu0 0.0
        %3581 = vmatpush1.xpose.msra.mxu0 0.0
        %3582 = vmatprep.subr.mxu0 0.0
        %3583 = vmatpush1.xpose.msra.mxu0 0.0
        %3584 = vmatprep.subr.mxu0 0.0
        %3585 = vmatpush1.xpose.msra.mxu0 0.0
        %3586 = vmatprep.subr.mxu0 0.0
        %3587 = vmatpush1.xpose.msra.mxu0 0.0
        %3588 = vmatprep.subr.mxu0 0.0
        %3589 = vmatpush1.xpose.msra.mxu0 0.0
        %3590 = vmatprep.subr.mxu0 0.0
        %3591 = vmatpush1.xpose.msra.mxu0 0.0
        %3592 = vmatprep.mubr.f32.mxu0 0.0
        %3593 = vmatmul.mubr.f32.gmra.mrb[0].mxu0 %v3523
        %v3594 = vpop.f32.mrb[0].mxu0
        %v3595 = vadd.f32 0.0, %v3594
        %v3596 = vpop.f32.mrb[0].mxu0
        %3597 = vdwg.mxu0
        %v3598 = vsel %vm602, %v3595, -inf
        %3599 = vmax.xlane.f32.xlu0 %v3598
        %v3600 = vpop.xlane.xlu0 %3599
        %v3601 = vsub.f32 %v3595, %v3600
        %v3602 = vmul.f32 %v3601, 1.442695
        %v3603 = vpow.pop %v3602
        %v3604 = vsel %vm602, %v3603, 0.0
        %3605 = vadd.xlane.f32.xlu0 %v3604
        %v3606 = vpop.xlane.xlu0 %3605
        %v3607 = vrcp.pop %v3606
        %v3608 = vmul.f32 %v3606, %v3607
        %v3609 = vsub.f32 2.0, %v3608
        %v3610 = vmul.f32 %v3607, %v3609
        %v3611 = vmul.f32 %v3603, %v3610
        %v3613 = vsel %vm602, %v3611, 0
        %3615 = vmatprep.subr.mxu0 0.0
        %3616 = vmatpush1.msra.mxu0 %v3519
        %3617 = vmatprep.subr.mxu0 0.0
        %3618 = vmatpush1.msra.mxu0 0.0
        %3619 = vmatprep.subr.mxu0 0.0
        %3620 = vmatpush1.msra.mxu0 0.0
        %3621 = vmatprep.subr.mxu0 0.0
        %3622 = vmatpush1.msra.mxu0 0.0
        %3623 = vmatprep.subr.mxu0 0.0
        %3624 = vmatpush1.msra.mxu0 0.0
        %3625 = vmatprep.subr.mxu0 0.0
        %3626 = vmatpush1.msra.mxu0 0.0
        %3627 = vmatprep.subr.mxu0 0.0
        %3628 = vmatpush1.msra.mxu0 0.0
        %3629 = vmatprep.subr.mxu0 0.0
        %3630 = vmatpush1.msra.mxu0 0.0
        %3631 = vmatprep.subr.mxu0 0.0
        %3632 = vmatpush1.msra.mxu0 0.0
        %3633 = vmatprep.subr.mxu0 0.0
        %3634 = vmatpush1.msra.mxu0 0.0
        %3635 = vmatprep.subr.mxu0 0.0
        %3636 = vmatpush1.msra.mxu0 0.0
        %3637 = vmatprep.subr.mxu0 0.0
        %3638 = vmatpush1.msra.mxu0 0.0
        %3639 = vmatprep.subr.mxu0 0.0
        %3640 = vmatpush1.msra.mxu0 0.0
        %3641 = vmatprep.subr.mxu0 0.0
        %3642 = vmatpush1.msra.mxu0 0.0
        %3643 = vmatprep.subr.mxu0 0.0
        %3644 = vmatpush1.msra.mxu0 0.0
        %3645 = vmatprep.subr.mxu0 0.0
        %3646 = vmatpush1.msra.mxu0 0.0
        %3647 = vmatprep.subr.mxu0 0.0
        %3648 = vmatpush1.msra.mxu0 0.0
        %3649 = vmatprep.subr.mxu0 0.0
        %3650 = vmatpush1.msra.mxu0 0.0
        %3651 = vmatprep.subr.mxu0 0.0
        %3652 = vmatpush1.msra.mxu0 0.0
        %3653 = vmatprep.subr.mxu0 0.0
        %3654 = vmatpush1.msra.mxu0 0.0
        %3655 = vmatprep.subr.mxu0 0.0
        %3656 = vmatpush1.msra.mxu0 0.0
        %3657 = vmatprep.subr.mxu0 0.0
        %3658 = vmatpush1.msra.mxu0 0.0
        %3659 = vmatprep.subr.mxu0 0.0
        %3660 = vmatpush1.msra.mxu0 0.0
        %3661 = vmatprep.subr.mxu0 0.0
        %3662 = vmatpush1.msra.mxu0 0.0
        %3663 = vmatprep.subr.mxu0 0.0
        %3664 = vmatpush1.msra.mxu0 0.0
        %3665 = vmatprep.subr.mxu0 0.0
        %3666 = vmatpush1.msra.mxu0 0.0
        %3667 = vmatprep.subr.mxu0 0.0
        %3668 = vmatpush1.msra.mxu0 0.0
        %3669 = vmatprep.subr.mxu0 0.0
        %3670 = vmatpush1.msra.mxu0 0.0
        %3671 = vmatprep.subr.mxu0 0.0
        %3672 = vmatpush1.msra.mxu0 0.0
        %3673 = vmatprep.subr.mxu0 0.0
        %3674 = vmatpush1.msra.mxu0 0.0
        %3675 = vmatprep.subr.mxu0 0.0
        %3676 = vmatpush1.msra.mxu0 0.0
        %3677 = vmatprep.subr.mxu0 0.0
        %3678 = vmatpush1.msra.mxu0 0.0
        %3679 = vmatprep.mubr.f32.mxu0 0.0
        %3680 = vmatmul.mubr.f32.gmra.mrb[0].mxu0 %v3613
        %v3681 = vpop.f32.mrb[0].mxu0
        %v3682 = vadd.f32 0.0, %v3681
        %v3683 = vpop.f32.mrb[0].mxu0
        %3684 = vdwg.mxu0
        %3685 = vrot.lane.b32.xlu0 %v3345, 120
        %v3686 = vpop.permute.xlu0 %3685
        %3687 = vrot.lane.b32.xlu0 %v3432, 120
        %v3688 = vpop.permute.xlu0 %3687
        %v3689 = vsel %vm602, %v3686, 0
        %v3691 = vsel %vm602, %v3688, 0
        %3693 = vmatprep.subr.mxu0 0.0
        %3694 = vmatpush1.xpose.msra.mxu0 %v3691
        %3695 = vmatprep.subr.mxu0 0.0
        %3696 = vmatpush1.xpose.msra.mxu0 0.0
        %3697 = vmatprep.subr.mxu0 0.0
        %3698 = vmatpush1.xpose.msra.mxu0 0.0
        %3699 = vmatprep.subr.mxu0 0.0
        %3700 = vmatpush1.xpose.msra.mxu0 0.0
        %3701 = vmatprep.subr.mxu0 0.0
        %3702 = vmatpush1.xpose.msra.mxu0 0.0
        %3703 = vmatprep.subr.mxu0 0.0
        %3704 = vmatpush1.xpose.msra.mxu0 0.0
        %3705 = vmatprep.subr.mxu0 0.0
        %3706 = vmatpush1.xpose.msra.mxu0 0.0
        %3707 = vmatprep.subr.mxu0 0.0
        %3708 = vmatpush1.xpose.msra.mxu0 0.0
        %3709 = vmatprep.subr.mxu0 0.0
        %3710 = vmatpush1.xpose.msra.mxu0 0.0
        %3711 = vmatprep.subr.mxu0 0.0
        %3712 = vmatpush1.xpose.msra.mxu0 0.0
        %3713 = vmatprep.subr.mxu0 0.0
        %3714 = vmatpush1.xpose.msra.mxu0 0.0
        %3715 = vmatprep.subr.mxu0 0.0
        %3716 = vmatpush1.xpose.msra.mxu0 0.0
        %3717 = vmatprep.subr.mxu0 0.0
        %3718 = vmatpush1.xpose.msra.mxu0 0.0
        %3719 = vmatprep.subr.mxu0 0.0
        %3720 = vmatpush1.xpose.msra.mxu0 0.0
        %3721 = vmatprep.subr.mxu0 0.0
        %3722 = vmatpush1.xpose.msra.mxu0 0.0
        %3723 = vmatprep.subr.mxu0 0.0
        %3724 = vmatpush1.xpose.msra.mxu0 0.0
        %3725 = vmatprep.subr.mxu0 0.0
        %3726 = vmatpush1.xpose.msra.mxu0 0.0
        %3727 = vmatprep.subr.mxu0 0.0
        %3728 = vmatpush1.xpose.msra.mxu0 0.0
        %3729 = vmatprep.subr.mxu0 0.0
        %3730 = vmatpush1.xpose.msra.mxu0 0.0
        %3731 = vmatprep.subr.mxu0 0.0
        %3732 = vmatpush1.xpose.msra.mxu0 0.0
        %3733 = vmatprep.subr.mxu0 0.0
        %3734 = vmatpush1.xpose.msra.mxu0 0.0
        %3735 = vmatprep.subr.mxu0 0.0
        %3736 = vmatpush1.xpose.msra.mxu0 0.0
        %3737 = vmatprep.subr.mxu0 0.0
        %3738 = vmatpush1.xpose.msra.mxu0 0.0
        %3739 = vmatprep.subr.mxu0 0.0
        %3740 = vmatpush1.xpose.msra.mxu0 0.0
        %3741 = vmatprep.subr.mxu0 0.0
        %3742 = vmatpush1.xpose.msra.mxu0 0.0
        %3743 = vmatprep.subr.mxu0 0.0
        %3744 = vmatpush1.xpose.msra.mxu0 0.0
        %3745 = vmatprep.subr.mxu0 0.0
        %3746 = vmatpush1.xpose.msra.mxu0 0.0
        %3747 = vmatprep.subr.mxu0 0.0
        %3748 = vmatpush1.xpose.msra.mxu0 0.0
        %3749 = vmatprep.subr.mxu0 0.0
        %3750 = vmatpush1.xpose.msra.mxu0 0.0
        %3751 = vmatprep.subr.mxu0 0.0
        %3752 = vmatpush1.xpose.msra.mxu0 0.0
        %3753 = vmatprep.subr.mxu0 0.0
        %3754 = vmatpush1.xpose.msra.mxu0 0.0
        %3755 = vmatprep.subr.mxu0 0.0
        %3756 = vmatpush1.xpose.msra.mxu0 0.0
        %3757 = vmatprep.mubr.f32.mxu0 0.0
        %3758 = vmatmul.mubr.f32.gmra.mrb[0].mxu0 %v3689
        %v3759 = vpop.f32.mrb[0].mxu0
        %v3760 = vadd.f32 0.0, %v3759
        %v3761 = vpop.f32.mrb[0].mxu0
        %3762 = vdwg.mxu0
        %v3763 = vsel %vm602, %v3760, -inf
        %3764 = vmax.xlane.f32.xlu0 %v3763
        %v3765 = vpop.xlane.xlu0 %3764
        %v3766 = vsub.f32 %v3760, %v3765
        %v3767 = vmul.f32 %v3766, 1.442695
        %v3768 = vpow.pop %v3767
        %v3769 = vsel %vm602, %v3768, 0.0
        %3770 = vadd.xlane.f32.xlu0 %v3769
        %v3771 = vpop.xlane.xlu0 %3770
        %v3772 = vrcp.pop %v3771
        %v3773 = vmul.f32 %v3771, %v3772
        %v3774 = vsub.f32 2.0, %v3773
        %v3775 = vmul.f32 %v3772, %v3774
        %v3776 = vmul.f32 %v3768, %v3775
        %3778 = vrot.lane.b32.xlu0 %v3519, 120
        %v3779 = vpop.permute.xlu0 %3778
        %v3782 = vsel %vm602, %v3776, 0
        %3784 = vmatprep.subr.mxu0 0.0
        %3785 = vmatpush1.msra.mxu0 %v3779
        %3786 = vmatprep.subr.mxu0 0.0
        %3787 = vmatpush1.msra.mxu0 0.0
        %3788 = vmatprep.subr.mxu0 0.0
        %3789 = vmatpush1.msra.mxu0 0.0
        %3790 = vmatprep.subr.mxu0 0.0
        %3791 = vmatpush1.msra.mxu0 0.0
        %3792 = vmatprep.subr.mxu0 0.0
        %3793 = vmatpush1.msra.mxu0 0.0
        %3794 = vmatprep.subr.mxu0 0.0
        %3795 = vmatpush1.msra.mxu0 0.0
        %3796 = vmatprep.subr.mxu0 0.0
        %3797 = vmatpush1.msra.mxu0 0.0
        %3798 = vmatprep.subr.mxu0 0.0
        %3799 = vmatpush1.msra.mxu0 0.0
        %3800 = vmatprep.subr.mxu0 0.0
        %3801 = vmatpush1.msra.mxu0 0.0
        %3802 = vmatprep.subr.mxu0 0.0
        %3803 = vmatpush1.msra.mxu0 0.0
        %3804 = vmatprep.subr.mxu0 0.0
        %3805 = vmatpush1.msra.mxu0 0.0
        %3806 = vmatprep.subr.mxu0 0.0
        %3807 = vmatpush1.msra.mxu0 0.0
        %3808 = vmatprep.subr.mxu0 0.0
        %3809 = vmatpush1.msra.mxu0 0.0
        %3810 = vmatprep.subr.mxu0 0.0
        %3811 = vmatpush1.msra.mxu0 0.0
        %3812 = vmatprep.subr.mxu0 0.0
        %3813 = vmatpush1.msra.mxu0 0.0
        %3814 = vmatprep.subr.mxu0 0.0
        %3815 = vmatpush1.msra.mxu0 0.0
        %3816 = vmatprep.subr.mxu0 0.0
        %3817 = vmatpush1.msra.mxu0 0.0
        %3818 = vmatprep.subr.mxu0 0.0
        %3819 = vmatpush1.msra.mxu0 0.0
        %3820 = vmatprep.subr.mxu0 0.0
        %3821 = vmatpush1.msra.mxu0 0.0
        %3822 = vmatprep.subr.mxu0 0.0
        %3823 = vmatpush1.msra.mxu0 0.0
        %3824 = vmatprep.subr.mxu0 0.0
        %3825 = vmatpush1.msra.mxu0 0.0
        %3826 = vmatprep.subr.mxu0 0.0
        %3827 = vmatpush1.msra.mxu0 0.0
        %3828 = vmatprep.subr.mxu0 0.0
        %3829 = vmatpush1.msra.mxu0 0.0
        %3830 = vmatprep.subr.mxu0 0.0
        %3831 = vmatpush1.msra.mxu0 0.0
        %3832 = vmatprep.subr.mxu0 0.0
        %3833 = vmatpush1.msra.mxu0 0.0
        %3834 = vmatprep.subr.mxu0 0.0
        %3835 = vmatpush1.msra.mxu0 0.0
        %3836 = vmatprep.subr.mxu0 0.0
        %3837 = vmatpush1.msra.mxu0 0.0
        %3838 = vmatprep.subr.mxu0 0.0
        %3839 = vmatpush1.msra.mxu0 0.0
        %3840 = vmatprep.subr.mxu0 0.0
        %3841 = vmatpush1.msra.mxu0 0.0
        %3842 = vmatprep.subr.mxu0 0.0
        %3843 = vmatpush1.msra.mxu0 0.0
        %3844 = vmatprep.subr.mxu0 0.0
        %3845 = vmatpush1.msra.mxu0 0.0
        %3846 = vmatprep.subr.mxu0 0.0
        %3847 = vmatpush1.msra.mxu0 0.0
        %3848 = vmatprep.mubr.f32.mxu0 0.0
        %3849 = vmatmul.mubr.f32.gmra.mrb[0].mxu0 %v3782
        %v3850 = vpop.f32.mrb[0].mxu0
        %v3851 = vadd.f32 0.0, %v3850
        %v3852 = vpop.f32.mrb[0].mxu0
        %3853 = vdwg.mxu0
        %3854 = vrot.lane.b32.xlu0 %v3345, 112
        %v3855 = vpop.permute.xlu0 %3854
        %3856 = vrot.lane.b32.xlu0 %v3432, 112
        %v3857 = vpop.permute.xlu0 %3856
        %v3858 = vsel %vm602, %v3855, 0
        %v3860 = vsel %vm602, %v3857, 0
        %3862 = vmatprep.subr.mxu0 0.0
        %3863 = vmatpush1.xpose.msra.mxu0 %v3860
        %3864 = vmatprep.subr.mxu0 0.0
        %3865 = vmatpush1.xpose.msra.mxu0 0.0
        %3866 = vmatprep.subr.mxu0 0.0
        %3867 = vmatpush1.xpose.msra.mxu0 0.0
        %3868 = vmatprep.subr.mxu0 0.0
        %3869 = vmatpush1.xpose.msra.mxu0 0.0
        %3870 = vmatprep.subr.mxu0 0.0
        %3871 = vmatpush1.xpose.msra.mxu0 0.0
        %3872 = vmatprep.subr.mxu0 0.0
        %3873 = vmatpush1.xpose.msra.mxu0 0.0
        %3874 = vmatprep.subr.mxu0 0.0
        %3875 = vmatpush1.xpose.msra.mxu0 0.0
        %3876 = vmatprep.subr.mxu0 0.0
        %3877 = vmatpush1.xpose.msra.mxu0 0.0
        %3878 = vmatprep.subr.mxu0 0.0
        %3879 = vmatpush1.xpose.msra.mxu0 0.0
        %3880 = vmatprep.subr.mxu0 0.0
        %3881 = vmatpush1.xpose.msra.mxu0 0.0
        %3882 = vmatprep.subr.mxu0 0.0
        %3883 = vmatpush1.xpose.msra.mxu0 0.0
        %3884 = vmatprep.subr.mxu0 0.0
        %3885 = vmatpush1.xpose.msra.mxu0 0.0
        %3886 = vmatprep.subr.mxu0 0.0
        %3887 = vmatpush1.xpose.msra.mxu0 0.0
        %3888 = vmatprep.subr.mxu0 0.0
        %3889 = vmatpush1.xpose.msra.mxu0 0.0
        %3890 = vmatprep.subr.mxu0 0.0
        %3891 = vmatpush1.xpose.msra.mxu0 0.0
        %3892 = vmatprep.subr.mxu0 0.0
        %3893 = vmatpush1.xpose.msra.mxu0 0.0
        %3894 = vmatprep.subr.mxu0 0.0
        %3895 = vmatpush1.xpose.msra.mxu0 0.0
        %3896 = vmatprep.subr.mxu0 0.0
        %3897 = vmatpush1.xpose.msra.mxu0 0.0
        %3898 = vmatprep.subr.mxu0 0.0
        %3899 = vmatpush1.xpose.msra.mxu0 0.0
        %3900 = vmatprep.subr.mxu0 0.0
        %3901 = vmatpush1.xpose.msra.mxu0 0.0
        %3902 = vmatprep.subr.mxu0 0.0
        %3903 = vmatpush1.xpose.msra.mxu0 0.0
        %3904 = vmatprep.subr.mxu0 0.0
        %3905 = vmatpush1.xpose.msra.mxu0 0.0
        %3906 = vmatprep.subr.mxu0 0.0
        %3907 = vmatpush1.xpose.msra.mxu0 0.0
        %3908 = vmatprep.subr.mxu0 0.0
        %3909 = vmatpush1.xpose.msra.mxu0 0.0
        %3910 = vmatprep.subr.mxu0 0.0
        %3911 = vmatpush1.xpose.msra.mxu0 0.0
        %3912 = vmatprep.subr.mxu0 0.0
        %3913 = vmatpush1.xpose.msra.mxu0 0.0
        %3914 = vmatprep.subr.mxu0 0.0
        %3915 = vmatpush1.xpose.msra.mxu0 0.0
        %3916 = vmatprep.subr.mxu0 0.0
        %3917 = vmatpush1.xpose.msra.mxu0 0.0
        %3918 = vmatprep.subr.mxu0 0.0
        %3919 = vmatpush1.xpose.msra.mxu0 0.0
        %3920 = vmatprep.subr.mxu0 0.0
        %3921 = vmatpush1.xpose.msra.mxu0 0.0
        %3922 = vmatprep.subr.mxu0 0.0
        %3923 = vmatpush1.xpose.msra.mxu0 0.0
        %3924 = vmatprep.subr.mxu0 0.0
        %3925 = vmatpush1.xpose.msra.mxu0 0.0
        %3926 = vmatprep.mubr.f32.mxu0 0.0
        %3927 = vmatmul.mubr.f32.gmra.mrb[0].mxu0 %v3858
        %v3928 = vpop.f32.mrb[0].mxu0
        %v3929 = vadd.f32 0.0, %v3928
        %v3930 = vpop.f32.mrb[0].mxu0
        %3931 = vdwg.mxu0
        %v3932 = vsel %vm602, %v3929, -inf
        %3933 = vmax.xlane.f32.xlu0 %v3932
        %v3934 = vpop.xlane.xlu0 %3933
        %v3935 = vsub.f32 %v3929, %v3934
        %v3936 = vmul.f32 %v3935, 1.442695
        %v3937 = vpow.pop %v3936
        %v3938 = vsel %vm602, %v3937, 0.0
        %3939 = vadd.xlane.f32.xlu0 %v3938
        %v3940 = vpop.xlane.xlu0 %3939
        %v3941 = vrcp.pop %v3940
        %v3942 = vmul.f32 %v3940, %v3941
        %v3943 = vsub.f32 2.0, %v3942
        %v3944 = vmul.f32 %v3941, %v3943
        %v3945 = vmul.f32 %v3937, %v3944
        %3946 = vrot.lane.b32.xlu0 %v3519, 112
        %v3947 = vpop.permute.xlu0 %3946
        %v3950 = vsel %vm602, %v3945, 0
        %3952 = vmatprep.subr.mxu0 0.0
        %3953 = vmatpush1.msra.mxu0 %v3947
        %3954 = vmatprep.subr.mxu0 0.0
        %3955 = vmatpush1.msra.mxu0 0.0
        %3956 = vmatprep.subr.mxu0 0.0
        %3957 = vmatpush1.msra.mxu0 0.0
        %3958 = vmatprep.subr.mxu0 0.0
        %3959 = vmatpush1.msra.mxu0 0.0
        %3960 = vmatprep.subr.mxu0 0.0
        %3961 = vmatpush1.msra.mxu0 0.0
        %3962 = vmatprep.subr.mxu0 0.0
        %3963 = vmatpush1.msra.mxu0 0.0
        %3964 = vmatprep.subr.mxu0 0.0
        %3965 = vmatpush1.msra.mxu0 0.0
        %3966 = vmatprep.subr.mxu0 0.0
        %3967 = vmatpush1.msra.mxu0 0.0
        %3968 = vmatprep.subr.mxu0 0.0
        %3969 = vmatpush1.msra.mxu0 0.0
        %3970 = vmatprep.subr.mxu0 0.0
        %3971 = vmatpush1.msra.mxu0 0.0
        %3972 = vmatprep.subr.mxu0 0.0
        %3973 = vmatpush1.msra.mxu0 0.0
        %3974 = vmatprep.subr.mxu0 0.0
        %3975 = vmatpush1.msra.mxu0 0.0
        %3976 = vmatprep.subr.mxu0 0.0
        %3977 = vmatpush1.msra.mxu0 0.0
        %3978 = vmatprep.subr.mxu0 0.0
        %3979 = vmatpush1.msra.mxu0 0.0
        %3980 = vmatprep.subr.mxu0 0.0
        %3981 = vmatpush1.msra.mxu0 0.0
        %3982 = vmatprep.subr.mxu0 0.0
        %3983 = vmatpush1.msra.mxu0 0.0
        %3984 = vmatprep.subr.mxu0 0.0
        %3985 = vmatpush1.msra.mxu0 0.0
        %3986 = vmatprep.subr.mxu0 0.0
        %3987 = vmatpush1.msra.mxu0 0.0
        %3988 = vmatprep.subr.mxu0 0.0
        %3989 = vmatpush1.msra.mxu0 0.0
        %3990 = vmatprep.subr.mxu0 0.0
        %3991 = vmatpush1.msra.mxu0 0.0
        %3992 = vmatprep.subr.mxu0 0.0
        %3993 = vmatpush1.msra.mxu0 0.0
        %3994 = vmatprep.subr.mxu0 0.0
        %3995 = vmatpush1.msra.mxu0 0.0
        %3996 = vmatprep.subr.mxu0 0.0
        %3997 = vmatpush1.msra.mxu0 0.0
        %3998 = vmatprep.subr.mxu0 0.0
        %3999 = vmatpush1.msra.mxu0 0.0
        %4000 = vmatprep.subr.mxu0 0.0
        %4001 = vmatpush1.msra.mxu0 0.0
        %4002 = vmatprep.subr.mxu0 0.0
        %4003 = vmatpush1.msra.mxu0 0.0
        %4004 = vmatprep.subr.mxu0 0.0
        %4005 = vmatpush1.msra.mxu0 0.0
        %4006 = vmatprep.subr.mxu0 0.0
        %4007 = vmatpush1.msra.mxu0 0.0
        %4008 = vmatprep.subr.mxu0 0.0
        %4009 = vmatpush1.msra.mxu0 0.0
        %4010 = vmatprep.subr.mxu0 0.0
        %4011 = vmatpush1.msra.mxu0 0.0
        %4012 = vmatprep.subr.mxu0 0.0
        %4013 = vmatpush1.msra.mxu0 0.0
        %4014 = vmatprep.subr.mxu0 0.0
        %4015 = vmatpush1.msra.mxu0 0.0
        %4016 = vmatprep.mubr.f32.mxu0 0.0
        %4017 = vmatmul.mubr.f32.gmra.mrb[0].mxu0 %v3950
        %v4018 = vpop.f32.mrb[0].mxu0
        %v4019 = vadd.f32 0.0, %v4018
        %v4020 = vpop.f32.mrb[0].mxu0
        %4021 = vdwg.mxu0
        %4022 = vrot.lane.b32.xlu0 %v3345, 104
        %v4023 = vpop.permute.xlu0 %4022
        %4024 = vrot.lane.b32.xlu0 %v3432, 104
        %v4025 = vpop.permute.xlu0 %4024
        %v4026 = vsel %vm602, %v4023, 0
        %v4028 = vsel %vm602, %v4025, 0
        %4030 = vmatprep.subr.mxu0 0.0
        %4031 = vmatpush1.xpose.msra.mxu0 %v4028
        %4032 = vmatprep.subr.mxu0 0.0
        %4033 = vmatpush1.xpose.msra.mxu0 0.0
        %4034 = vmatprep.subr.mxu0 0.0
        %4035 = vmatpush1.xpose.msra.mxu0 0.0
        %4036 = vmatprep.subr.mxu0 0.0
        %4037 = vmatpush1.xpose.msra.mxu0 0.0
        %4038 = vmatprep.subr.mxu0 0.0
        %4039 = vmatpush1.xpose.msra.mxu0 0.0
        %4040 = vmatprep.subr.mxu0 0.0
        %4041 = vmatpush1.xpose.msra.mxu0 0.0
        %4042 = vmatprep.subr.mxu0 0.0
        %4043 = vmatpush1.xpose.msra.mxu0 0.0
        %4044 = vmatprep.subr.mxu0 0.0
        %4045 = vmatpush1.xpose.msra.mxu0 0.0
        %4046 = vmatprep.subr.mxu0 0.0
        %4047 = vmatpush1.xpose.msra.mxu0 0.0
        %4048 = vmatprep.subr.mxu0 0.0
        %4049 = vmatpush1.xpose.msra.mxu0 0.0
        %4050 = vmatprep.subr.mxu0 0.0
        %4051 = vmatpush1.xpose.msra.mxu0 0.0
        %4052 = vmatprep.subr.mxu0 0.0
        %4053 = vmatpush1.xpose.msra.mxu0 0.0
        %4054 = vmatprep.subr.mxu0 0.0
        %4055 = vmatpush1.xpose.msra.mxu0 0.0
        %4056 = vmatprep.subr.mxu0 0.0
        %4057 = vmatpush1.xpose.msra.mxu0 0.0
        %4058 = vmatprep.subr.mxu0 0.0
        %4059 = vmatpush1.xpose.msra.mxu0 0.0
        %4060 = vmatprep.subr.mxu0 0.0
        %4061 = vmatpush1.xpose.msra.mxu0 0.0
        %4062 = vmatprep.subr.mxu0 0.0
        %4063 = vmatpush1.xpose.msra.mxu0 0.0
        %4064 = vmatprep.subr.mxu0 0.0
        %4065 = vmatpush1.xpose.msra.mxu0 0.0
        %4066 = vmatprep.subr.mxu0 0.0
        %4067 = vmatpush1.xpose.msra.mxu0 0.0
        %4068 = vmatprep.subr.mxu0 0.0
        %4069 = vmatpush1.xpose.msra.mxu0 0.0
        %4070 = vmatprep.subr.mxu0 0.0
        %4071 = vmatpush1.xpose.msra.mxu0 0.0
        %4072 = vmatprep.subr.mxu0 0.0
        %4073 = vmatpush1.xpose.msra.mxu0 0.0
        %4074 = vmatprep.subr.mxu0 0.0
        %4075 = vmatpush1.xpose.msra.mxu0 0.0
        %4076 = vmatprep.subr.mxu0 0.0
        %4077 = vmatpush1.xpose.msra.mxu0 0.0
        %4078 = vmatprep.subr.mxu0 0.0
        %4079 = vmatpush1.xpose.msra.mxu0 0.0
        %4080 = vmatprep.subr.mxu0 0.0
        %4081 = vmatpush1.xpose.msra.mxu0 0.0
        %4082 = vmatprep.subr.mxu0 0.0
        %4083 = vmatpush1.xpose.msra.mxu0 0.0
        %4084 = vmatprep.subr.mxu0 0.0
        %4085 = vmatpush1.xpose.msra.mxu0 0.0
        %4086 = vmatprep.subr.mxu0 0.0
        %4087 = vmatpush1.xpose.msra.mxu0 0.0
        %4088 = vmatprep.subr.mxu0 0.0
        %4089 = vmatpush1.xpose.msra.mxu0 0.0
        %4090 = vmatprep.subr.mxu0 0.0
        %4091 = vmatpush1.xpose.msra.mxu0 0.0
        %4092 = vmatprep.subr.mxu0 0.0
        %4093 = vmatpush1.xpose.msra.mxu0 0.0
        %4094 = vmatprep.mubr.f32.mxu0 0.0
        %4095 = vmatmul.mubr.f32.gmra.mrb[0].mxu0 %v4026
        %v4096 = vpop.f32.mrb[0].mxu0
        %v4097 = vadd.f32 0.0, %v4096
        %v4098 = vpop.f32.mrb[0].mxu0
        %4099 = vdwg.mxu0
        %v4100 = vsel %vm602, %v4097, -inf
        %4101 = vmax.xlane.f32.xlu0 %v4100
        %v4102 = vpop.xlane.xlu0 %4101
        %v4103 = vsub.f32 %v4097, %v4102
        %v4104 = vmul.f32 %v4103, 1.442695
        %v4105 = vpow.pop %v4104
        %v4106 = vsel %vm602, %v4105, 0.0
        %4107 = vadd.xlane.f32.xlu0 %v4106
        %v4108 = vpop.xlane.xlu0 %4107
        %v4109 = vrcp.pop %v4108
        %v4110 = vmul.f32 %v4108, %v4109
        %v4111 = vsub.f32 2.0, %v4110
        %v4112 = vmul.f32 %v4109, %v4111
        %v4113 = vmul.f32 %v4105, %v4112
        %4114 = vrot.lane.b32.xlu0 %v3519, 104
        %v4115 = vpop.permute.xlu0 %4114
        %v4118 = vsel %vm602, %v4113, 0
        %4120 = vmatprep.subr.mxu0 0.0
        %4121 = vmatpush1.msra.mxu0 %v4115
        %4122 = vmatprep.subr.mxu0 0.0
        %4123 = vmatpush1.msra.mxu0 0.0
        %4124 = vmatprep.subr.mxu0 0.0
        %4125 = vmatpush1.msra.mxu0 0.0
        %4126 = vmatprep.subr.mxu0 0.0
        %4127 = vmatpush1.msra.mxu0 0.0
        %4128 = vmatprep.subr.mxu0 0.0
        %4129 = vmatpush1.msra.mxu0 0.0
        %4130 = vmatprep.subr.mxu0 0.0
        %4131 = vmatpush1.msra.mxu0 0.0
        %4132 = vmatprep.subr.mxu0 0.0
        %4133 = vmatpush1.msra.mxu0 0.0
        %4134 = vmatprep.subr.mxu0 0.0
        %4135 = vmatpush1.msra.mxu0 0.0
        %4136 = vmatprep.subr.mxu0 0.0
        %4137 = vmatpush1.msra.mxu0 0.0
        %4138 = vmatprep.subr.mxu0 0.0
        %4139 = vmatpush1.msra.mxu0 0.0
        %4140 = vmatprep.subr.mxu0 0.0
        %4141 = vmatpush1.msra.mxu0 0.0
        %4142 = vmatprep.subr.mxu0 0.0
        %4143 = vmatpush1.msra.mxu0 0.0
        %4144 = vmatprep.subr.mxu0 0.0
        %4145 = vmatpush1.msra.mxu0 0.0
        %4146 = vmatprep.subr.mxu0 0.0
        %4147 = vmatpush1.msra.mxu0 0.0
        %4148 = vmatprep.subr.mxu0 0.0
        %4149 = vmatpush1.msra.mxu0 0.0
        %4150 = vmatprep.subr.mxu0 0.0
        %4151 = vmatpush1.msra.mxu0 0.0
        %4152 = vmatprep.subr.mxu0 0.0
        %4153 = vmatpush1.msra.mxu0 0.0
        %4154 = vmatprep.subr.mxu0 0.0
        %4155 = vmatpush1.msra.mxu0 0.0
        %4156 = vmatprep.subr.mxu0 0.0
        %4157 = vmatpush1.msra.mxu0 0.0
        %4158 = vmatprep.subr.mxu0 0.0
        %4159 = vmatpush1.msra.mxu0 0.0
        %4160 = vmatprep.subr.mxu0 0.0
        %4161 = vmatpush1.msra.mxu0 0.0
        %4162 = vmatprep.subr.mxu0 0.0
        %4163 = vmatpush1.msra.mxu0 0.0
        %4164 = vmatprep.subr.mxu0 0.0
        %4165 = vmatpush1.msra.mxu0 0.0
        %4166 = vmatprep.subr.mxu0 0.0
        %4167 = vmatpush1.msra.mxu0 0.0
        %4168 = vmatprep.subr.mxu0 0.0
        %4169 = vmatpush1.msra.mxu0 0.0
        %4170 = vmatprep.subr.mxu0 0.0
        %4171 = vmatpush1.msra.mxu0 0.0
        %4172 = vmatprep.subr.mxu0 0.0
        %4173 = vmatpush1.msra.mxu0 0.0
        %4174 = vmatprep.subr.mxu0 0.0
        %4175 = vmatpush1.msra.mxu0 0.0
        %4176 = vmatprep.subr.mxu0 0.0
        %4177 = vmatpush1.msra.mxu0 0.0
        %4178 = vmatprep.subr.mxu0 0.0
        %4179 = vmatpush1.msra.mxu0 0.0
        %4180 = vmatprep.subr.mxu0 0.0
        %4181 = vmatpush1.msra.mxu0 0.0
        %4182 = vmatprep.subr.mxu0 0.0
        %4183 = vmatpush1.msra.mxu0 0.0
        %4184 = vmatprep.mubr.f32.mxu0 0.0
        %4185 = vmatmul.mubr.f32.gmra.mrb[0].mxu0 %v4118
        %v4186 = vpop.f32.mrb[0].mxu0
        %v4187 = vadd.f32 0.0, %v4186
        %v4188 = vpop.f32.mrb[0].mxu0
        %4189 = vdwg.mxu0
        %4190 = vrot.lane.b32.xlu0 %v3345, 96
        %v4191 = vpop.permute.xlu0 %4190
        %4192 = vrot.lane.b32.xlu0 %v3432, 96
        %v4193 = vpop.permute.xlu0 %4192
        %v4194 = vsel %vm602, %v4191, 0
        %v4196 = vsel %vm602, %v4193, 0
        %4198 = vmatprep.subr.mxu0 0.0
        %4199 = vmatpush1.xpose.msra.mxu0 %v4196
        %4200 = vmatprep.subr.mxu0 0.0
        %4201 = vmatpush1.xpose.msra.mxu0 0.0
        %4202 = vmatprep.subr.mxu0 0.0
        %4203 = vmatpush1.xpose.msra.mxu0 0.0
        %4204 = vmatprep.subr.mxu0 0.0
        %4205 = vmatpush1.xpose.msra.mxu0 0.0
        %4206 = vmatprep.subr.mxu0 0.0
        %4207 = vmatpush1.xpose.msra.mxu0 0.0
        %4208 = vmatprep.subr.mxu0 0.0
        %4209 = vmatpush1.xpose.msra.mxu0 0.0
        %4210 = vmatprep.subr.mxu0 0.0
        %4211 = vmatpush1.xpose.msra.mxu0 0.0
        %4212 = vmatprep.subr.mxu0 0.0
        %4213 = vmatpush1.xpose.msra.mxu0 0.0
        %4214 = vmatprep.subr.mxu0 0.0
        %4215 = vmatpush1.xpose.msra.mxu0 0.0
        %4216 = vmatprep.subr.mxu0 0.0
        %4217 = vmatpush1.xpose.msra.mxu0 0.0
        %4218 = vmatprep.subr.mxu0 0.0
        %4219 = vmatpush1.xpose.msra.mxu0 0.0
        %4220 = vmatprep.subr.mxu0 0.0
        %4221 = vmatpush1.xpose.msra.mxu0 0.0
        %4222 = vmatprep.subr.mxu0 0.0
        %4223 = vmatpush1.xpose.msra.mxu0 0.0
        %4224 = vmatprep.subr.mxu0 0.0
        %4225 = vmatpush1.xpose.msra.mxu0 0.0
        %4226 = vmatprep.subr.mxu0 0.0
        %4227 = vmatpush1.xpose.msra.mxu0 0.0
        %4228 = vmatprep.subr.mxu0 0.0
        %4229 = vmatpush1.xpose.msra.mxu0 0.0
        %4230 = vmatprep.subr.mxu0 0.0
        %4231 = vmatpush1.xpose.msra.mxu0 0.0
        %4232 = vmatprep.subr.mxu0 0.0
        %4233 = vmatpush1.xpose.msra.mxu0 0.0
        %4234 = vmatprep.subr.mxu0 0.0
        %4235 = vmatpush1.xpose.msra.mxu0 0.0
        %4236 = vmatprep.subr.mxu0 0.0
        %4237 = vmatpush1.xpose.msra.mxu0 0.0
        %4238 = vmatprep.subr.mxu0 0.0
        %4239 = vmatpush1.xpose.msra.mxu0 0.0
        %4240 = vmatprep.subr.mxu0 0.0
        %4241 = vmatpush1.xpose.msra.mxu0 0.0
        %4242 = vmatprep.subr.mxu0 0.0
        %4243 = vmatpush1.xpose.msra.mxu0 0.0
        %4244 = vmatprep.subr.mxu0 0.0
        %4245 = vmatpush1.xpose.msra.mxu0 0.0
        %4246 = vmatprep.subr.mxu0 0.0
        %4247 = vmatpush1.xpose.msra.mxu0 0.0
        %4248 = vmatprep.subr.mxu0 0.0
        %4249 = vmatpush1.xpose.msra.mxu0 0.0
        %4250 = vmatprep.subr.mxu0 0.0
        %4251 = vmatpush1.xpose.msra.mxu0 0.0
        %4252 = vmatprep.subr.mxu0 0.0
        %4253 = vmatpush1.xpose.msra.mxu0 0.0
        %4254 = vmatprep.subr.mxu0 0.0
        %4255 = vmatpush1.xpose.msra.mxu0 0.0
        %4256 = vmatprep.subr.mxu0 0.0
        %4257 = vmatpush1.xpose.msra.mxu0 0.0
        %4258 = vmatprep.subr.mxu0 0.0
        %4259 = vmatpush1.xpose.msra.mxu0 0.0
        %4260 = vmatprep.subr.mxu0 0.0
        %4261 = vmatpush1.xpose.msra.mxu0 0.0
        %4262 = vmatprep.mubr.f32.mxu0 0.0
        %4263 = vmatmul.mubr.f32.gmra.mrb[0].mxu0 %v4194
        %v4264 = vpop.f32.mrb[0].mxu0
        %v4265 = vadd.f32 0.0, %v4264
        %v4266 = vpop.f32.mrb[0].mxu0
        %4267 = vdwg.mxu0
        %v4268 = vsel %vm602, %v4265, -inf
        %4269 = vmax.xlane.f32.xlu0 %v4268
        %v4270 = vpop.xlane.xlu0 %4269
        %v4271 = vsub.f32 %v4265, %v4270
        %v4272 = vmul.f32 %v4271, 1.442695
        %v4273 = vpow.pop %v4272
        %v4274 = vsel %vm602, %v4273, 0.0
        %4275 = vadd.xlane.f32.xlu0 %v4274
        %v4276 = vpop.xlane.xlu0 %4275
        %v4277 = vrcp.pop %v4276
        %v4278 = vmul.f32 %v4276, %v4277
        %v4279 = vsub.f32 2.0, %v4278
        %v4280 = vmul.f32 %v4277, %v4279
        %v4281 = vmul.f32 %v4273, %v4280
        %4282 = vrot.lane.b32.xlu0 %v3519, 96
        %v4283 = vpop.permute.xlu0 %4282
        %v4286 = vsel %vm602, %v4281, 0
        %4288 = vmatprep.subr.mxu0 0.0
        %4289 = vmatpush1.msra.mxu0 %v4283
        %4290 = vmatprep.subr.mxu0 0.0
        %4291 = vmatpush1.msra.mxu0 0.0
        %4292 = vmatprep.subr.mxu0 0.0
        %4293 = vmatpush1.msra.mxu0 0.0
        %4294 = vmatprep.subr.mxu0 0.0
        %4295 = vmatpush1.msra.mxu0 0.0
        %4296 = vmatprep.subr.mxu0 0.0
        %4297 = vmatpush1.msra.mxu0 0.0
        %4298 = vmatprep.subr.mxu0 0.0
        %4299 = vmatpush1.msra.mxu0 0.0
        %4300 = vmatprep.subr.mxu0 0.0
        %4301 = vmatpush1.msra.mxu0 0.0
        %4302 = vmatprep.subr.mxu0 0.0
        %4303 = vmatpush1.msra.mxu0 0.0
        %4304 = vmatprep.subr.mxu0 0.0
        %4305 = vmatpush1.msra.mxu0 0.0
        %4306 = vmatprep.subr.mxu0 0.0
        %4307 = vmatpush1.msra.mxu0 0.0
        %4308 = vmatprep.subr.mxu0 0.0
        %4309 = vmatpush1.msra.mxu0 0.0
        %4310 = vmatprep.subr.mxu0 0.0
        %4311 = vmatpush1.msra.mxu0 0.0
        %4312 = vmatprep.subr.mxu0 0.0
        %4313 = vmatpush1.msra.mxu0 0.0
        %4314 = vmatprep.subr.mxu0 0.0
        %4315 = vmatpush1.msra.mxu0 0.0
        %4316 = vmatprep.subr.mxu0 0.0
        %4317 = vmatpush1.msra.mxu0 0.0
        %4318 = vmatprep.subr.mxu0 0.0
        %4319 = vmatpush1.msra.mxu0 0.0
        %4320 = vmatprep.subr.mxu0 0.0
        %4321 = vmatpush1.msra.mxu0 0.0
        %4322 = vmatprep.subr.mxu0 0.0
        %4323 = vmatpush1.msra.mxu0 0.0
        %4324 = vmatprep.subr.mxu0 0.0
        %4325 = vmatpush1.msra.mxu0 0.0
        %4326 = vmatprep.subr.mxu0 0.0
        %4327 = vmatpush1.msra.mxu0 0.0
        %4328 = vmatprep.subr.mxu0 0.0
        %4329 = vmatpush1.msra.mxu0 0.0
        %4330 = vmatprep.subr.mxu0 0.0
        %4331 = vmatpush1.msra.mxu0 0.0
        %4332 = vmatprep.subr.mxu0 0.0
        %4333 = vmatpush1.msra.mxu0 0.0
        %4334 = vmatprep.subr.mxu0 0.0
        %4335 = vmatpush1.msra.mxu0 0.0
        %4336 = vmatprep.subr.mxu0 0.0
        %4337 = vmatpush1.msra.mxu0 0.0
        %4338 = vmatprep.subr.mxu0 0.0
        %4339 = vmatpush1.msra.mxu0 0.0
        %4340 = vmatprep.subr.mxu0 0.0
        %4341 = vmatpush1.msra.mxu0 0.0
        %4342 = vmatprep.subr.mxu0 0.0
        %4343 = vmatpush1.msra.mxu0 0.0
        %4344 = vmatprep.subr.mxu0 0.0
        %4345 = vmatpush1.msra.mxu0 0.0
        %4346 = vmatprep.subr.mxu0 0.0
        %4347 = vmatpush1.msra.mxu0 0.0
        %4348 = vmatprep.subr.mxu0 0.0
        %4349 = vmatpush1.msra.mxu0 0.0
        %4350 = vmatprep.subr.mxu0 0.0
        %4351 = vmatpush1.msra.mxu0 0.0
        %4352 = vmatprep.mubr.f32.mxu0 0.0
        %4353 = vmatmul.mubr.f32.gmra.mrb[0].mxu0 %v4286
        %v4354 = vpop.f32.mrb[0].mxu0
        %v4355 = vadd.f32 0.0, %v4354
        %v4356 = vpop.f32.mrb[0].mxu0
        %4357 = vdwg.mxu0
        %4358 = vrot.lane.b32.xlu0 %v3345, 88
        %v4359 = vpop.permute.xlu0 %4358
        %4360 = vrot.lane.b32.xlu0 %v3432, 88
        %v4361 = vpop.permute.xlu0 %4360
        %v4362 = vsel %vm602, %v4359, 0
        %v4364 = vsel %vm602, %v4361, 0
        %4366 = vmatprep.subr.mxu0 0.0
        %4367 = vmatpush1.xpose.msra.mxu0 %v4364
        %4368 = vmatprep.subr.mxu0 0.0
        %4369 = vmatpush1.xpose.msra.mxu0 0.0
        %4370 = vmatprep.subr.mxu0 0.0
        %4371 = vmatpush1.xpose.msra.mxu0 0.0
        %4372 = vmatprep.subr.mxu0 0.0
        %4373 = vmatpush1.xpose.msra.mxu0 0.0
        %4374 = vmatprep.subr.mxu0 0.0
        %4375 = vmatpush1.xpose.msra.mxu0 0.0
        %4376 = vmatprep.subr.mxu0 0.0
        %4377 = vmatpush1.xpose.msra.mxu0 0.0
        %4378 = vmatprep.subr.mxu0 0.0
        %4379 = vmatpush1.xpose.msra.mxu0 0.0
        %4380 = vmatprep.subr.mxu0 0.0
        %4381 = vmatpush1.xpose.msra.mxu0 0.0
        %4382 = vmatprep.subr.mxu0 0.0
        %4383 = vmatpush1.xpose.msra.mxu0 0.0
        %4384 = vmatprep.subr.mxu0 0.0
        %4385 = vmatpush1.xpose.msra.mxu0 0.0
        %4386 = vmatprep.subr.mxu0 0.0
        %4387 = vmatpush1.xpose.msra.mxu0 0.0
        %4388 = vmatprep.subr.mxu0 0.0
        %4389 = vmatpush1.xpose.msra.mxu0 0.0
        %4390 = vmatprep.subr.mxu0 0.0
        %4391 = vmatpush1.xpose.msra.mxu0 0.0
        %4392 = vmatprep.subr.mxu0 0.0
        %4393 = vmatpush1.xpose.msra.mxu0 0.0
        %4394 = vmatprep.subr.mxu0 0.0
        %4395 = vmatpush1.xpose.msra.mxu0 0.0
        %4396 = vmatprep.subr.mxu0 0.0
        %4397 = vmatpush1.xpose.msra.mxu0 0.0
        %4398 = vmatprep.subr.mxu0 0.0
        %4399 = vmatpush1.xpose.msra.mxu0 0.0
        %4400 = vmatprep.subr.mxu0 0.0
        %4401 = vmatpush1.xpose.msra.mxu0 0.0
        %4402 = vmatprep.subr.mxu0 0.0
        %4403 = vmatpush1.xpose.msra.mxu0 0.0
        %4404 = vmatprep.subr.mxu0 0.0
        %4405 = vmatpush1.xpose.msra.mxu0 0.0
        %4406 = vmatprep.subr.mxu0 0.0
        %4407 = vmatpush1.xpose.msra.mxu0 0.0
        %4408 = vmatprep.subr.mxu0 0.0
        %4409 = vmatpush1.xpose.msra.mxu0 0.0
        %4410 = vmatprep.subr.mxu0 0.0
        %4411 = vmatpush1.xpose.msra.mxu0 0.0
        %4412 = vmatprep.subr.mxu0 0.0
        %4413 = vmatpush1.xpose.msra.mxu0 0.0
        %4414 = vmatprep.subr.mxu0 0.0
        %4415 = vmatpush1.xpose.msra.mxu0 0.0
        %4416 = vmatprep.subr.mxu0 0.0
        %4417 = vmatpush1.xpose.msra.mxu0 0.0
        %4418 = vmatprep.subr.mxu0 0.0
        %4419 = vmatpush1.xpose.msra.mxu0 0.0
        %4420 = vmatprep.subr.mxu0 0.0
        %4421 = vmatpush1.xpose.msra.mxu0 0.0
        %4422 = vmatprep.subr.mxu0 0.0
        %4423 = vmatpush1.xpose.msra.mxu0 0.0
        %4424 = vmatprep.subr.mxu0 0.0
        %4425 = vmatpush1.xpose.msra.mxu0 0.0
        %4426 = vmatprep.subr.mxu0 0.0
        %4427 = vmatpush1.xpose.msra.mxu0 0.0
        %4428 = vmatprep.subr.mxu0 0.0
        %4429 = vmatpush1.xpose.msra.mxu0 0.0
        %4430 = vmatprep.mubr.f32.mxu0 0.0
        %4431 = vmatmul.mubr.f32.gmra.mrb[0].mxu0 %v4362
        %v4432 = vpop.f32.mrb[0].mxu0
        %v4433 = vadd.f32 0.0, %v4432
        %v4434 = vpop.f32.mrb[0].mxu0
        %4435 = vdwg.mxu0
        %v4436 = vsel %vm602, %v4433, -inf
        %4437 = vmax.xlane.f32.xlu0 %v4436
        %v4438 = vpop.xlane.xlu0 %4437
        %v4439 = vsub.f32 %v4433, %v4438
        %v4440 = vmul.f32 %v4439, 1.442695
        %v4441 = vpow.pop %v4440
        %v4442 = vsel %vm602, %v4441, 0.0
        %4443 = vadd.xlane.f32.xlu0 %v4442
        %v4444 = vpop.xlane.xlu0 %4443
        %v4445 = vrcp.pop %v4444
        %v4446 = vmul.f32 %v4444, %v4445
        %v4447 = vsub.f32 2.0, %v4446
        %v4448 = vmul.f32 %v4445, %v4447
        %v4449 = vmul.f32 %v4441, %v4448
        %4450 = vrot.lane.b32.xlu0 %v3519, 88
        %v4451 = vpop.permute.xlu0 %4450
        %v4454 = vsel %vm602, %v4449, 0
        %4456 = vmatprep.subr.mxu0 0.0
        %4457 = vmatpush1.msra.mxu0 %v4451
        %4458 = vmatprep.subr.mxu0 0.0
        %4459 = vmatpush1.msra.mxu0 0.0
        %4460 = vmatprep.subr.mxu0 0.0
        %4461 = vmatpush1.msra.mxu0 0.0
        %4462 = vmatprep.subr.mxu0 0.0
        %4463 = vmatpush1.msra.mxu0 0.0
        %4464 = vmatprep.subr.mxu0 0.0
        %4465 = vmatpush1.msra.mxu0 0.0
        %4466 = vmatprep.subr.mxu0 0.0
        %4467 = vmatpush1.msra.mxu0 0.0
        %4468 = vmatprep.subr.mxu0 0.0
        %4469 = vmatpush1.msra.mxu0 0.0
        %4470 = vmatprep.subr.mxu0 0.0
        %4471 = vmatpush1.msra.mxu0 0.0
        %4472 = vmatprep.subr.mxu0 0.0
        %4473 = vmatpush1.msra.mxu0 0.0
        %4474 = vmatprep.subr.mxu0 0.0
        %4475 = vmatpush1.msra.mxu0 0.0
        %4476 = vmatprep.subr.mxu0 0.0
        %4477 = vmatpush1.msra.mxu0 0.0
        %4478 = vmatprep.subr.mxu0 0.0
        %4479 = vmatpush1.msra.mxu0 0.0
        %4480 = vmatprep.subr.mxu0 0.0
        %4481 = vmatpush1.msra.mxu0 0.0
        %4482 = vmatprep.subr.mxu0 0.0
        %4483 = vmatpush1.msra.mxu0 0.0
        %4484 = vmatprep.subr.mxu0 0.0
        %4485 = vmatpush1.msra.mxu0 0.0
        %4486 = vmatprep.subr.mxu0 0.0
        %4487 = vmatpush1.msra.mxu0 0.0
        %4488 = vmatprep.subr.mxu0 0.0
        %4489 = vmatpush1.msra.mxu0 0.0
        %4490 = vmatprep.subr.mxu0 0.0
        %4491 = vmatpush1.msra.mxu0 0.0
        %4492 = vmatprep.subr.mxu0 0.0
        %4493 = vmatpush1.msra.mxu0 0.0
        %4494 = vmatprep.subr.mxu0 0.0
        %4495 = vmatpush1.msra.mxu0 0.0
        %4496 = vmatprep.subr.mxu0 0.0
        %4497 = vmatpush1.msra.mxu0 0.0
        %4498 = vmatprep.subr.mxu0 0.0
        %4499 = vmatpush1.msra.mxu0 0.0
        %4500 = vmatprep.subr.mxu0 0.0
        %4501 = vmatpush1.msra.mxu0 0.0
        %4502 = vmatprep.subr.mxu0 0.0
        %4503 = vmatpush1.msra.mxu0 0.0
        %4504 = vmatprep.subr.mxu0 0.0
        %4505 = vmatpush1.msra.mxu0 0.0
        %4506 = vmatprep.subr.mxu0 0.0
        %4507 = vmatpush1.msra.mxu0 0.0
        %4508 = vmatprep.subr.mxu0 0.0
        %4509 = vmatpush1.msra.mxu0 0.0
        %4510 = vmatprep.subr.mxu0 0.0
        %4511 = vmatpush1.msra.mxu0 0.0
        %4512 = vmatprep.subr.mxu0 0.0
        %4513 = vmatpush1.msra.mxu0 0.0
        %4514 = vmatprep.subr.mxu0 0.0
        %4515 = vmatpush1.msra.mxu0 0.0
        %4516 = vmatprep.subr.mxu0 0.0
        %4517 = vmatpush1.msra.mxu0 0.0
        %4518 = vmatprep.subr.mxu0 0.0
        %4519 = vmatpush1.msra.mxu0 0.0
        %4520 = vmatprep.mubr.f32.mxu0 0.0
        %4521 = vmatmul.mubr.f32.gmra.mrb[0].mxu0 %v4454
        %v4522 = vpop.f32.mrb[0].mxu0
        %v4523 = vadd.f32 0.0, %v4522
        %v4524 = vpop.f32.mrb[0].mxu0
        %4525 = vdwg.mxu0
        %4526 = vrot.lane.b32.xlu0 %v3345, 80
        %v4527 = vpop.permute.xlu0 %4526
        %4528 = vrot.lane.b32.xlu0 %v3432, 80
        %v4529 = vpop.permute.xlu0 %4528
        %v4530 = vsel %vm602, %v4527, 0
        %v4532 = vsel %vm602, %v4529, 0
        %4534 = vmatprep.subr.mxu0 0.0
        %4535 = vmatpush1.xpose.msra.mxu0 %v4532
        %4536 = vmatprep.subr.mxu0 0.0
        %4537 = vmatpush1.xpose.msra.mxu0 0.0
        %4538 = vmatprep.subr.mxu0 0.0
        %4539 = vmatpush1.xpose.msra.mxu0 0.0
        %4540 = vmatprep.subr.mxu0 0.0
        %4541 = vmatpush1.xpose.msra.mxu0 0.0
        %4542 = vmatprep.subr.mxu0 0.0
        %4543 = vmatpush1.xpose.msra.mxu0 0.0
        %4544 = vmatprep.subr.mxu0 0.0
        %4545 = vmatpush1.xpose.msra.mxu0 0.0
        %4546 = vmatprep.subr.mxu0 0.0
        %4547 = vmatpush1.xpose.msra.mxu0 0.0
        %4548 = vmatprep.subr.mxu0 0.0
        %4549 = vmatpush1.xpose.msra.mxu0 0.0
        %4550 = vmatprep.subr.mxu0 0.0
        %4551 = vmatpush1.xpose.msra.mxu0 0.0
        %4552 = vmatprep.subr.mxu0 0.0
        %4553 = vmatpush1.xpose.msra.mxu0 0.0
        %4554 = vmatprep.subr.mxu0 0.0
        %4555 = vmatpush1.xpose.msra.mxu0 0.0
        %4556 = vmatprep.subr.mxu0 0.0
        %4557 = vmatpush1.xpose.msra.mxu0 0.0
        %4558 = vmatprep.subr.mxu0 0.0
        %4559 = vmatpush1.xpose.msra.mxu0 0.0
        %4560 = vmatprep.subr.mxu0 0.0
        %4561 = vmatpush1.xpose.msra.mxu0 0.0
        %4562 = vmatprep.subr.mxu0 0.0
        %4563 = vmatpush1.xpose.msra.mxu0 0.0
        %4564 = vmatprep.subr.mxu0 0.0
        %4565 = vmatpush1.xpose.msra.mxu0 0.0
        %4566 = vmatprep.subr.mxu0 0.0
        %4567 = vmatpush1.xpose.msra.mxu0 0.0
        %4568 = vmatprep.subr.mxu0 0.0
        %4569 = vmatpush1.xpose.msra.mxu0 0.0
        %4570 = vmatprep.subr.mxu0 0.0
        %4571 = vmatpush1.xpose.msra.mxu0 0.0
        %4572 = vmatprep.subr.mxu0 0.0
        %4573 = vmatpush1.xpose.msra.mxu0 0.0
        %4574 = vmatprep.subr.mxu0 0.0
        %4575 = vmatpush1.xpose.msra.mxu0 0.0
        %4576 = vmatprep.subr.mxu0 0.0
        %4577 = vmatpush1.xpose.msra.mxu0 0.0
        %4578 = vmatprep.subr.mxu0 0.0
        %4579 = vmatpush1.xpose.msra.mxu0 0.0
        %4580 = vmatprep.subr.mxu0 0.0
        %4581 = vmatpush1.xpose.msra.mxu0 0.0
        %4582 = vmatprep.subr.mxu0 0.0
        %4583 = vmatpush1.xpose.msra.mxu0 0.0
        %4584 = vmatprep.subr.mxu0 0.0
        %4585 = vmatpush1.xpose.msra.mxu0 0.0
        %4586 = vmatprep.subr.mxu0 0.0
        %4587 = vmatpush1.xpose.msra.mxu0 0.0
        %4588 = vmatprep.subr.mxu0 0.0
        %4589 = vmatpush1.xpose.msra.mxu0 0.0
        %4590 = vmatprep.subr.mxu0 0.0
        %4591 = vmatpush1.xpose.msra.mxu0 0.0
        %4592 = vmatprep.subr.mxu0 0.0
        %4593 = vmatpush1.xpose.msra.mxu0 0.0
        %4594 = vmatprep.subr.mxu0 0.0
        %4595 = vmatpush1.xpose.msra.mxu0 0.0
        %4596 = vmatprep.subr.mxu0 0.0
        %4597 = vmatpush1.xpose.msra.mxu0 0.0
        %4598 = vmatprep.mubr.f32.mxu0 0.0
        %4599 = vmatmul.mubr.f32.gmra.mrb[0].mxu0 %v4530
        %v4600 = vpop.f32.mrb[0].mxu0
        %v4601 = vadd.f32 0.0, %v4600
        %v4602 = vpop.f32.mrb[0].mxu0
        %4603 = vdwg.mxu0
        %v4604 = vsel %vm602, %v4601, -inf
        %4605 = vmax.xlane.f32.xlu0 %v4604
        %v4606 = vpop.xlane.xlu0 %4605
        %v4607 = vsub.f32 %v4601, %v4606
        %v4608 = vmul.f32 %v4607, 1.442695
        %v4609 = vpow.pop %v4608
        %v4610 = vsel %vm602, %v4609, 0.0
        %4611 = vadd.xlane.f32.xlu0 %v4610
        %v4612 = vpop.xlane.xlu0 %4611
        %v4613 = vrcp.pop %v4612
        %v4614 = vmul.f32 %v4612, %v4613
        %v4615 = vsub.f32 2.0, %v4614
        %v4616 = vmul.f32 %v4613, %v4615
        %v4617 = vmul.f32 %v4609, %v4616
        %4618 = vrot.lane.b32.xlu0 %v3519, 80
        %v4619 = vpop.permute.xlu0 %4618
        %v4622 = vsel %vm602, %v4617, 0
        %4624 = vmatprep.subr.mxu0 0.0
        %4625 = vmatpush1.msra.mxu0 %v4619
        %4626 = vmatprep.subr.mxu0 0.0
        %4627 = vmatpush1.msra.mxu0 0.0
        %4628 = vmatprep.subr.mxu0 0.0
        %4629 = vmatpush1.msra.mxu0 0.0
        %4630 = vmatprep.subr.mxu0 0.0
        %4631 = vmatpush1.msra.mxu0 0.0
        %4632 = vmatprep.subr.mxu0 0.0
        %4633 = vmatpush1.msra.mxu0 0.0
        %4634 = vmatprep.subr.mxu0 0.0
        %4635 = vmatpush1.msra.mxu0 0.0
        %4636 = vmatprep.subr.mxu0 0.0
        %4637 = vmatpush1.msra.mxu0 0.0
        %4638 = vmatprep.subr.mxu0 0.0
        %4639 = vmatpush1.msra.mxu0 0.0
        %4640 = vmatprep.subr.mxu0 0.0
        %4641 = vmatpush1.msra.mxu0 0.0
        %4642 = vmatprep.subr.mxu0 0.0
        %4643 = vmatpush1.msra.mxu0 0.0
        %4644 = vmatprep.subr.mxu0 0.0
        %4645 = vmatpush1.msra.mxu0 0.0
        %4646 = vmatprep.subr.mxu0 0.0
        %4647 = vmatpush1.msra.mxu0 0.0
        %4648 = vmatprep.subr.mxu0 0.0
        %4649 = vmatpush1.msra.mxu0 0.0
        %4650 = vmatprep.subr.mxu0 0.0
        %4651 = vmatpush1.msra.mxu0 0.0
        %4652 = vmatprep.subr.mxu0 0.0
        %4653 = vmatpush1.msra.mxu0 0.0
        %4654 = vmatprep.subr.mxu0 0.0
        %4655 = vmatpush1.msra.mxu0 0.0
        %4656 = vmatprep.subr.mxu0 0.0
        %4657 = vmatpush1.msra.mxu0 0.0
        %4658 = vmatprep.subr.mxu0 0.0
        %4659 = vmatpush1.msra.mxu0 0.0
        %4660 = vmatprep.subr.mxu0 0.0
        %4661 = vmatpush1.msra.mxu0 0.0
        %4662 = vmatprep.subr.mxu0 0.0
        %4663 = vmatpush1.msra.mxu0 0.0
        %4664 = vmatprep.subr.mxu0 0.0
        %4665 = vmatpush1.msra.mxu0 0.0
        %4666 = vmatprep.subr.mxu0 0.0
        %4667 = vmatpush1.msra.mxu0 0.0
        %4668 = vmatprep.subr.mxu0 0.0
        %4669 = vmatpush1.msra.mxu0 0.0
        %4670 = vmatprep.subr.mxu0 0.0
        %4671 = vmatpush1.msra.mxu0 0.0
        %4672 = vmatprep.subr.mxu0 0.0
        %4673 = vmatpush1.msra.mxu0 0.0
        %4674 = vmatprep.subr.mxu0 0.0
        %4675 = vmatpush1.msra.mxu0 0.0
        %4676 = vmatprep.subr.mxu0 0.0
        %4677 = vmatpush1.msra.mxu0 0.0
        %4678 = vmatprep.subr.mxu0 0.0
        %4679 = vmatpush1.msra.mxu0 0.0
        %4680 = vmatprep.subr.mxu0 0.0
        %4681 = vmatpush1.msra.mxu0 0.0
        %4682 = vmatprep.subr.mxu0 0.0
        %4683 = vmatpush1.msra.mxu0 0.0
        %4684 = vmatprep.subr.mxu0 0.0
        %4685 = vmatpush1.msra.mxu0 0.0
        %4686 = vmatprep.subr.mxu0 0.0
        %4687 = vmatpush1.msra.mxu0 0.0
        %4688 = vmatprep.mubr.f32.mxu0 0.0
        %4689 = vmatmul.mubr.f32.gmra.mrb[0].mxu0 %v4622
        %v4690 = vpop.f32.mrb[0].mxu0
        %v4691 = vadd.f32 0.0, %v4690
        %v4692 = vpop.f32.mrb[0].mxu0
        %4693 = vdwg.mxu0
        %4694 = vrot.lane.b32.xlu0 %v3345, 72
        %v4695 = vpop.permute.xlu0 %4694
        %4696 = vrot.lane.b32.xlu0 %v3432, 72
        %v4697 = vpop.permute.xlu0 %4696
        %v4698 = vsel %vm602, %v4695, 0
        %v4700 = vsel %vm602, %v4697, 0
        %4702 = vmatprep.subr.mxu0 0.0
        %4703 = vmatpush1.xpose.msra.mxu0 %v4700
        %4704 = vmatprep.subr.mxu0 0.0
        %4705 = vmatpush1.xpose.msra.mxu0 0.0
        %4706 = vmatprep.subr.mxu0 0.0
        %4707 = vmatpush1.xpose.msra.mxu0 0.0
        %4708 = vmatprep.subr.mxu0 0.0
        %4709 = vmatpush1.xpose.msra.mxu0 0.0
        %4710 = vmatprep.subr.mxu0 0.0
        %4711 = vmatpush1.xpose.msra.mxu0 0.0
        %4712 = vmatprep.subr.mxu0 0.0
        %4713 = vmatpush1.xpose.msra.mxu0 0.0
        %4714 = vmatprep.subr.mxu0 0.0
        %4715 = vmatpush1.xpose.msra.mxu0 0.0
        %4716 = vmatprep.subr.mxu0 0.0
        %4717 = vmatpush1.xpose.msra.mxu0 0.0
        %4718 = vmatprep.subr.mxu0 0.0
        %4719 = vmatpush1.xpose.msra.mxu0 0.0
        %4720 = vmatprep.subr.mxu0 0.0
        %4721 = vmatpush1.xpose.msra.mxu0 0.0
        %4722 = vmatprep.subr.mxu0 0.0
        %4723 = vmatpush1.xpose.msra.mxu0 0.0
        %4724 = vmatprep.subr.mxu0 0.0
        %4725 = vmatpush1.xpose.msra.mxu0 0.0
        %4726 = vmatprep.subr.mxu0 0.0
        %4727 = vmatpush1.xpose.msra.mxu0 0.0
        %4728 = vmatprep.subr.mxu0 0.0
        %4729 = vmatpush1.xpose.msra.mxu0 0.0
        %4730 = vmatprep.subr.mxu0 0.0
        %4731 = vmatpush1.xpose.msra.mxu0 0.0
        %4732 = vmatprep.subr.mxu0 0.0
        %4733 = vmatpush1.xpose.msra.mxu0 0.0
        %4734 = vmatprep.subr.mxu0 0.0
        %4735 = vmatpush1.xpose.msra.mxu0 0.0
        %4736 = vmatprep.subr.mxu0 0.0
        %4737 = vmatpush1.xpose.msra.mxu0 0.0
        %4738 = vmatprep.subr.mxu0 0.0
        %4739 = vmatpush1.xpose.msra.mxu0 0.0
        %4740 = vmatprep.subr.mxu0 0.0
        %4741 = vmatpush1.xpose.msra.mxu0 0.0
        %4742 = vmatprep.subr.mxu0 0.0
        %4743 = vmatpush1.xpose.msra.mxu0 0.0
        %4744 = vmatprep.subr.mxu0 0.0
        %4745 = vmatpush1.xpose.msra.mxu0 0.0
        %4746 = vmatprep.subr.mxu0 0.0
        %4747 = vmatpush1.xpose.msra.mxu0 0.0
        %4748 = vmatprep.subr.mxu0 0.0
        %4749 = vmatpush1.xpose.msra.mxu0 0.0
        %4750 = vmatprep.subr.mxu0 0.0
        %4751 = vmatpush1.xpose.msra.mxu0 0.0
        %4752 = vmatprep.subr.mxu0 0.0
        %4753 = vmatpush1.xpose.msra.mxu0 0.0
        %4754 = vmatprep.subr.mxu0 0.0
        %4755 = vmatpush1.xpose.msra.mxu0 0.0
        %4756 = vmatprep.subr.mxu0 0.0
        %4757 = vmatpush1.xpose.msra.mxu0 0.0
        %4758 = vmatprep.subr.mxu0 0.0
        %4759 = vmatpush1.xpose.msra.mxu0 0.0
        %4760 = vmatprep.subr.mxu0 0.0
        %4761 = vmatpush1.xpose.msra.mxu0 0.0
        %4762 = vmatprep.subr.mxu0 0.0
        %4763 = vmatpush1.xpose.msra.mxu0 0.0
        %4764 = vmatprep.subr.mxu0 0.0
        %4765 = vmatpush1.xpose.msra.mxu0 0.0
        %4766 = vmatprep.mubr.f32.mxu0 0.0
        %4767 = vmatmul.mubr.f32.gmra.mrb[0].mxu0 %v4698
        %v4768 = vpop.f32.mrb[0].mxu0
        %v4769 = vadd.f32 0.0, %v4768
        %v4770 = vpop.f32.mrb[0].mxu0
        %4771 = vdwg.mxu0
        %v4772 = vsel %vm602, %v4769, -inf
        %4773 = vmax.xlane.f32.xlu0 %v4772
        %v4774 = vpop.xlane.xlu0 %4773
        %v4775 = vsub.f32 %v4769, %v4774
        %v4776 = vmul.f32 %v4775, 1.442695
        %v4777 = vpow.pop %v4776
        %v4778 = vsel %vm602, %v4777, 0.0
        %4779 = vadd.xlane.f32.xlu0 %v4778
        %v4780 = vpop.xlane.xlu0 %4779
        %v4781 = vrcp.pop %v4780
        %v4782 = vmul.f32 %v4780, %v4781
        %v4783 = vsub.f32 2.0, %v4782
        %v4784 = vmul.f32 %v4781, %v4783
        %v4785 = vmul.f32 %v4777, %v4784
        %4786 = vrot.lane.b32.xlu0 %v3519, 72
        %v4787 = vpop.permute.xlu0 %4786
        %v4790 = vsel %vm602, %v4785, 0
        %4792 = vmatprep.subr.mxu0 0.0
        %4793 = vmatpush1.msra.mxu0 %v4787
        %4794 = vmatprep.subr.mxu0 0.0
        %4795 = vmatpush1.msra.mxu0 0.0
        %4796 = vmatprep.subr.mxu0 0.0
        %4797 = vmatpush1.msra.mxu0 0.0
        %4798 = vmatprep.subr.mxu0 0.0
        %4799 = vmatpush1.msra.mxu0 0.0
        %4800 = vmatprep.subr.mxu0 0.0
        %4801 = vmatpush1.msra.mxu0 0.0
        %4802 = vmatprep.subr.mxu0 0.0
        %4803 = vmatpush1.msra.mxu0 0.0
        %4804 = vmatprep.subr.mxu0 0.0
        %4805 = vmatpush1.msra.mxu0 0.0
        %4806 = vmatprep.subr.mxu0 0.0
        %4807 = vmatpush1.msra.mxu0 0.0
        %4808 = vmatprep.subr.mxu0 0.0
        %4809 = vmatpush1.msra.mxu0 0.0
        %4810 = vmatprep.subr.mxu0 0.0
        %4811 = vmatpush1.msra.mxu0 0.0
        %4812 = vmatprep.subr.mxu0 0.0
        %4813 = vmatpush1.msra.mxu0 0.0
        %4814 = vmatprep.subr.mxu0 0.0
        %4815 = vmatpush1.msra.mxu0 0.0
        %4816 = vmatprep.subr.mxu0 0.0
        %4817 = vmatpush1.msra.mxu0 0.0
        %4818 = vmatprep.subr.mxu0 0.0
        %4819 = vmatpush1.msra.mxu0 0.0
        %4820 = vmatprep.subr.mxu0 0.0
        %4821 = vmatpush1.msra.mxu0 0.0
        %4822 = vmatprep.subr.mxu0 0.0
        %4823 = vmatpush1.msra.mxu0 0.0
        %4824 = vmatprep.subr.mxu0 0.0
        %4825 = vmatpush1.msra.mxu0 0.0
        %4826 = vmatprep.subr.mxu0 0.0
        %4827 = vmatpush1.msra.mxu0 0.0
        %4828 = vmatprep.subr.mxu0 0.0
        %4829 = vmatpush1.msra.mxu0 0.0
        %4830 = vmatprep.subr.mxu0 0.0
        %4831 = vmatpush1.msra.mxu0 0.0
        %4832 = vmatprep.subr.mxu0 0.0
        %4833 = vmatpush1.msra.mxu0 0.0
        %4834 = vmatprep.subr.mxu0 0.0
        %4835 = vmatpush1.msra.mxu0 0.0
        %4836 = vmatprep.subr.mxu0 0.0
        %4837 = vmatpush1.msra.mxu0 0.0
        %4838 = vmatprep.subr.mxu0 0.0
        %4839 = vmatpush1.msra.mxu0 0.0
        %4840 = vmatprep.subr.mxu0 0.0
        %4841 = vmatpush1.msra.mxu0 0.0
        %4842 = vmatprep.subr.mxu0 0.0
        %4843 = vmatpush1.msra.mxu0 0.0
        %4844 = vmatprep.subr.mxu0 0.0
        %4845 = vmatpush1.msra.mxu0 0.0
        %4846 = vmatprep.subr.mxu0 0.0
        %4847 = vmatpush1.msra.mxu0 0.0
        %4848 = vmatprep.subr.mxu0 0.0
        %4849 = vmatpush1.msra.mxu0 0.0
        %4850 = vmatprep.subr.mxu0 0.0
        %4851 = vmatpush1.msra.mxu0 0.0
        %4852 = vmatprep.subr.mxu0 0.0
        %4853 = vmatpush1.msra.mxu0 0.0
        %4854 = vmatprep.subr.mxu0 0.0
        %4855 = vmatpush1.msra.mxu0 0.0
        %4856 = vmatprep.mubr.f32.mxu0 0.0
        %4857 = vmatmul.mubr.f32.gmra.mrb[0].mxu0 %v4790
        %v4858 = vpop.f32.mrb[0].mxu0
        %v4859 = vadd.f32 0.0, %v4858
        %v4860 = vpop.f32.mrb[0].mxu0
        %4861 = vdwg.mxu0
        %4862 = vrot.lane.b32.xlu0 %v3345, 64
        %v4863 = vpop.permute.xlu0 %4862
        %4864 = vrot.lane.b32.xlu0 %v3432, 64
        %v4865 = vpop.permute.xlu0 %4864
        %v4866 = vsel %vm602, %v4863, 0
        %v4868 = vsel %vm602, %v4865, 0
        %4870 = vmatprep.subr.mxu0 0.0
        %4871 = vmatpush1.xpose.msra.mxu0 %v4868
        %4872 = vmatprep.subr.mxu0 0.0
        %4873 = vmatpush1.xpose.msra.mxu0 0.0
        %4874 = vmatprep.subr.mxu0 0.0
        %4875 = vmatpush1.xpose.msra.mxu0 0.0
        %4876 = vmatprep.subr.mxu0 0.0
        %4877 = vmatpush1.xpose.msra.mxu0 0.0
        %4878 = vmatprep.subr.mxu0 0.0
        %4879 = vmatpush1.xpose.msra.mxu0 0.0
        %4880 = vmatprep.subr.mxu0 0.0
        %4881 = vmatpush1.xpose.msra.mxu0 0.0
        %4882 = vmatprep.subr.mxu0 0.0
        %4883 = vmatpush1.xpose.msra.mxu0 0.0
        %4884 = vmatprep.subr.mxu0 0.0
        %4885 = vmatpush1.xpose.msra.mxu0 0.0
        %4886 = vmatprep.subr.mxu0 0.0
        %4887 = vmatpush1.xpose.msra.mxu0 0.0
        %4888 = vmatprep.subr.mxu0 0.0
        %4889 = vmatpush1.xpose.msra.mxu0 0.0
        %4890 = vmatprep.subr.mxu0 0.0
        %4891 = vmatpush1.xpose.msra.mxu0 0.0
        %4892 = vmatprep.subr.mxu0 0.0
        %4893 = vmatpush1.xpose.msra.mxu0 0.0
        %4894 = vmatprep.subr.mxu0 0.0
        %4895 = vmatpush1.xpose.msra.mxu0 0.0
        %4896 = vmatprep.subr.mxu0 0.0
        %4897 = vmatpush1.xpose.msra.mxu0 0.0
        %4898 = vmatprep.subr.mxu0 0.0
        %4899 = vmatpush1.xpose.msra.mxu0 0.0
        %4900 = vmatprep.subr.mxu0 0.0
        %4901 = vmatpush1.xpose.msra.mxu0 0.0
        %4902 = vmatprep.subr.mxu0 0.0
        %4903 = vmatpush1.xpose.msra.mxu0 0.0
        %4904 = vmatprep.subr.mxu0 0.0
        %4905 = vmatpush1.xpose.msra.mxu0 0.0
        %4906 = vmatprep.subr.mxu0 0.0
        %4907 = vmatpush1.xpose.msra.mxu0 0.0
        %4908 = vmatprep.subr.mxu0 0.0
        %4909 = vmatpush1.xpose.msra.mxu0 0.0
        %4910 = vmatprep.subr.mxu0 0.0
        %4911 = vmatpush1.xpose.msra.mxu0 0.0
        %4912 = vmatprep.subr.mxu0 0.0
        %4913 = vmatpush1.xpose.msra.mxu0 0.0
        %4914 = vmatprep.subr.mxu0 0.0
        %4915 = vmatpush1.xpose.msra.mxu0 0.0
        %4916 = vmatprep.subr.mxu0 0.0
        %4917 = vmatpush1.xpose.msra.mxu0 0.0
        %4918 = vmatprep.subr.mxu0 0.0
        %4919 = vmatpush1.xpose.msra.mxu0 0.0
        %4920 = vmatprep.subr.mxu0 0.0
        %4921 = vmatpush1.xpose.msra.mxu0 0.0
        %4922 = vmatprep.subr.mxu0 0.0
        %4923 = vmatpush1.xpose.msra.mxu0 0.0
        %4924 = vmatprep.subr.mxu0 0.0
        %4925 = vmatpush1.xpose.msra.mxu0 0.0
        %4926 = vmatprep.subr.mxu0 0.0
        %4927 = vmatpush1.xpose.msra.mxu0 0.0
        %4928 = vmatprep.subr.mxu0 0.0
        %4929 = vmatpush1.xpose.msra.mxu0 0.0
        %4930 = vmatprep.subr.mxu0 0.0
        %4931 = vmatpush1.xpose.msra.mxu0 0.0
        %4932 = vmatprep.subr.mxu0 0.0
        %4933 = vmatpush1.xpose.msra.mxu0 0.0
        %4934 = vmatprep.mubr.f32.mxu0 0.0
        %4935 = vmatmul.mubr.f32.gmra.mrb[0].mxu0 %v4866
        %v4936 = vpop.f32.mrb[0].mxu0
        %v4937 = vadd.f32 0.0, %v4936
        %v4938 = vpop.f32.mrb[0].mxu0
        %4939 = vdwg.mxu0
        %v4940 = vsel %vm602, %v4937, -inf
        %4941 = vmax.xlane.f32.xlu0 %v4940
        %v4942 = vpop.xlane.xlu0 %4941
        %v4943 = vsub.f32 %v4937, %v4942
        %v4944 = vmul.f32 %v4943, 1.442695
        %v4945 = vpow.pop %v4944
        %v4946 = vsel %vm602, %v4945, 0.0
        %4947 = vadd.xlane.f32.xlu0 %v4946
        %v4948 = vpop.xlane.xlu0 %4947
        %v4949 = vrcp.pop %v4948
        %v4950 = vmul.f32 %v4948, %v4949
        %v4951 = vsub.f32 2.0, %v4950
        %v4952 = vmul.f32 %v4949, %v4951
        %v4953 = vmul.f32 %v4945, %v4952
        %4954 = vrot.lane.b32.xlu0 %v3519, 64
        %v4955 = vpop.permute.xlu0 %4954
        %v4958 = vsel %vm602, %v4953, 0
        %4960 = vmatprep.subr.mxu0 0.0
        %4961 = vmatpush1.msra.mxu0 %v4955
        %4962 = vmatprep.subr.mxu0 0.0
        %4963 = vmatpush1.msra.mxu0 0.0
        %4964 = vmatprep.subr.mxu0 0.0
        %4965 = vmatpush1.msra.mxu0 0.0
        %4966 = vmatprep.subr.mxu0 0.0
        %4967 = vmatpush1.msra.mxu0 0.0
        %4968 = vmatprep.subr.mxu0 0.0
        %4969 = vmatpush1.msra.mxu0 0.0
        %4970 = vmatprep.subr.mxu0 0.0
        %4971 = vmatpush1.msra.mxu0 0.0
        %4972 = vmatprep.subr.mxu0 0.0
        %4973 = vmatpush1.msra.mxu0 0.0
        %4974 = vmatprep.subr.mxu0 0.0
        %4975 = vmatpush1.msra.mxu0 0.0
        %4976 = vmatprep.subr.mxu0 0.0
        %4977 = vmatpush1.msra.mxu0 0.0
        %4978 = vmatprep.subr.mxu0 0.0
        %4979 = vmatpush1.msra.mxu0 0.0
        %4980 = vmatprep.subr.mxu0 0.0
        %4981 = vmatpush1.msra.mxu0 0.0
        %4982 = vmatprep.subr.mxu0 0.0
        %4983 = vmatpush1.msra.mxu0 0.0
        %4984 = vmatprep.subr.mxu0 0.0
        %4985 = vmatpush1.msra.mxu0 0.0
        %4986 = vmatprep.subr.mxu0 0.0
        %4987 = vmatpush1.msra.mxu0 0.0
        %4988 = vmatprep.subr.mxu0 0.0
        %4989 = vmatpush1.msra.mxu0 0.0
        %4990 = vmatprep.subr.mxu0 0.0
        %4991 = vmatpush1.msra.mxu0 0.0
        %4992 = vmatprep.subr.mxu0 0.0
        %4993 = vmatpush1.msra.mxu0 0.0
        %4994 = vmatprep.subr.mxu0 0.0
        %4995 = vmatpush1.msra.mxu0 0.0
        %4996 = vmatprep.subr.mxu0 0.0
        %4997 = vmatpush1.msra.mxu0 0.0
        %4998 = vmatprep.subr.mxu0 0.0
        %4999 = vmatpush1.msra.mxu0 0.0
        %5000 = vmatprep.subr.mxu0 0.0
        %5001 = vmatpush1.msra.mxu0 0.0
        %5002 = vmatprep.subr.mxu0 0.0
        %5003 = vmatpush1.msra.mxu0 0.0
        %5004 = vmatprep.subr.mxu0 0.0
        %5005 = vmatpush1.msra.mxu0 0.0
        %5006 = vmatprep.subr.mxu0 0.0
        %5007 = vmatpush1.msra.mxu0 0.0
        %5008 = vmatprep.subr.mxu0 0.0
        %5009 = vmatpush1.msra.mxu0 0.0
        %5010 = vmatprep.subr.mxu0 0.0
        %5011 = vmatpush1.msra.mxu0 0.0
        %5012 = vmatprep.subr.mxu0 0.0
        %5013 = vmatpush1.msra.mxu0 0.0
        %5014 = vmatprep.subr.mxu0 0.0
        %5015 = vmatpush1.msra.mxu0 0.0
        %5016 = vmatprep.subr.mxu0 0.0
        %5017 = vmatpush1.msra.mxu0 0.0
        %5018 = vmatprep.subr.mxu0 0.0
        %5019 = vmatpush1.msra.mxu0 0.0
        %5020 = vmatprep.subr.mxu0 0.0
        %5021 = vmatpush1.msra.mxu0 0.0
        %5022 = vmatprep.subr.mxu0 0.0
        %5023 = vmatpush1.msra.mxu0 0.0
        %5024 = vmatprep.mubr.f32.mxu0 0.0
        %5025 = vmatmul.mubr.f32.gmra.mrb[0].mxu0 %v4958
        %v5026 = vpop.f32.mrb[0].mxu0
        %v5027 = vadd.f32 0.0, %v5026
        %v5028 = vpop.f32.mrb[0].mxu0
        %5029 = vdwg.mxu0
        %5030 = vrot.lane.b32.xlu0 %v3345, 56
        %v5031 = vpop.permute.xlu0 %5030
        %5032 = vrot.lane.b32.xlu0 %v3432, 56
        %v5033 = vpop.permute.xlu0 %5032
        %v5034 = vsel %vm602, %v5031, 0
        %v5036 = vsel %vm602, %v5033, 0
        %5038 = vmatprep.subr.mxu0 0.0
        %5039 = vmatpush1.xpose.msra.mxu0 %v5036
        %5040 = vmatprep.subr.mxu0 0.0
        %5041 = vmatpush1.xpose.msra.mxu0 0.0
        %5042 = vmatprep.subr.mxu0 0.0
        %5043 = vmatpush1.xpose.msra.mxu0 0.0
        %5044 = vmatprep.subr.mxu0 0.0
        %5045 = vmatpush1.xpose.msra.mxu0 0.0
        %5046 = vmatprep.subr.mxu0 0.0
        %5047 = vmatpush1.xpose.msra.mxu0 0.0
        %5048 = vmatprep.subr.mxu0 0.0
        %5049 = vmatpush1.xpose.msra.mxu0 0.0
        %5050 = vmatprep.subr.mxu0 0.0
        %5051 = vmatpush1.xpose.msra.mxu0 0.0
        %5052 = vmatprep.subr.mxu0 0.0
        %5053 = vmatpush1.xpose.msra.mxu0 0.0
        %5054 = vmatprep.subr.mxu0 0.0
        %5055 = vmatpush1.xpose.msra.mxu0 0.0
        %5056 = vmatprep.subr.mxu0 0.0
        %5057 = vmatpush1.xpose.msra.mxu0 0.0
        %5058 = vmatprep.subr.mxu0 0.0
        %5059 = vmatpush1.xpose.msra.mxu0 0.0
        %5060 = vmatprep.subr.mxu0 0.0
        %5061 = vmatpush1.xpose.msra.mxu0 0.0
        %5062 = vmatprep.subr.mxu0 0.0
        %5063 = vmatpush1.xpose.msra.mxu0 0.0
        %5064 = vmatprep.subr.mxu0 0.0
        %5065 = vmatpush1.xpose.msra.mxu0 0.0
        %5066 = vmatprep.subr.mxu0 0.0
        %5067 = vmatpush1.xpose.msra.mxu0 0.0
        %5068 = vmatprep.subr.mxu0 0.0
        %5069 = vmatpush1.xpose.msra.mxu0 0.0
        %5070 = vmatprep.subr.mxu0 0.0
        %5071 = vmatpush1.xpose.msra.mxu0 0.0
        %5072 = vmatprep.subr.mxu0 0.0
        %5073 = vmatpush1.xpose.msra.mxu0 0.0
        %5074 = vmatprep.subr.mxu0 0.0
        %5075 = vmatpush1.xpose.msra.mxu0 0.0
        %5076 = vmatprep.subr.mxu0 0.0
        %5077 = vmatpush1.xpose.msra.mxu0 0.0
        %5078 = vmatprep.subr.mxu0 0.0
        %5079 = vmatpush1.xpose.msra.mxu0 0.0
        %5080 = vmatprep.subr.mxu0 0.0
        %5081 = vmatpush1.xpose.msra.mxu0 0.0
        %5082 = vmatprep.subr.mxu0 0.0
        %5083 = vmatpush1.xpose.msra.mxu0 0.0
        %5084 = vmatprep.subr.mxu0 0.0
        %5085 = vmatpush1.xpose.msra.mxu0 0.0
        %5086 = vmatprep.subr.mxu0 0.0
        %5087 = vmatpush1.xpose.msra.mxu0 0.0
        %5088 = vmatprep.subr.mxu0 0.0
        %5089 = vmatpush1.xpose.msra.mxu0 0.0
        %5090 = vmatprep.subr.mxu0 0.0
        %5091 = vmatpush1.xpose.msra.mxu0 0.0
        %5092 = vmatprep.subr.mxu0 0.0
        %5093 = vmatpush1.xpose.msra.mxu0 0.0
        %5094 = vmatprep.subr.mxu0 0.0
        %5095 = vmatpush1.xpose.msra.mxu0 0.0
        %5096 = vmatprep.subr.mxu0 0.0
        %5097 = vmatpush1.xpose.msra.mxu0 0.0
        %5098 = vmatprep.subr.mxu0 0.0
        %5099 = vmatpush1.xpose.msra.mxu0 0.0
        %5100 = vmatprep.subr.mxu0 0.0
        %5101 = vmatpush1.xpose.msra.mxu0 0.0
        %5102 = vmatprep.mubr.f32.mxu0 0.0
        %5103 = vmatmul.mubr.f32.gmra.mrb[0].mxu0 %v5034
        %v5104 = vpop.f32.mrb[0].mxu0
        %v5105 = vadd.f32 0.0, %v5104
        %v5106 = vpop.f32.mrb[0].mxu0
        %5107 = vdwg.mxu0
        %v5108 = vsel %vm602, %v5105, -inf
        %5109 = vmax.xlane.f32.xlu0 %v5108
        %v5110 = vpop.xlane.xlu0 %5109
        %v5111 = vsub.f32 %v5105, %v5110
        %v5112 = vmul.f32 %v5111, 1.442695
        %v5113 = vpow.pop %v5112
        %v5114 = vsel %vm602, %v5113, 0.0
        %5115 = vadd.xlane.f32.xlu0 %v5114
        %v5116 = vpop.xlane.xlu0 %5115
        %v5117 = vrcp.pop %v5116
        %v5118 = vmul.f32 %v5116, %v5117
        %v5119 = vsub.f32 2.0, %v5118
        %v5120 = vmul.f32 %v5117, %v5119
        %v5121 = vmul.f32 %v5113, %v5120
        %5122 = vrot.lane.b32.xlu0 %v3519, 56
        %v5123 = vpop.permute.xlu0 %5122
        %v5126 = vsel %vm602, %v5121, 0
        %5128 = vmatprep.subr.mxu0 0.0
        %5129 = vmatpush1.msra.mxu0 %v5123
        %5130 = vmatprep.subr.mxu0 0.0
        %5131 = vmatpush1.msra.mxu0 0.0
        %5132 = vmatprep.subr.mxu0 0.0
        %5133 = vmatpush1.msra.mxu0 0.0
        %5134 = vmatprep.subr.mxu0 0.0
        %5135 = vmatpush1.msra.mxu0 0.0
        %5136 = vmatprep.subr.mxu0 0.0
        %5137 = vmatpush1.msra.mxu0 0.0
        %5138 = vmatprep.subr.mxu0 0.0
        %5139 = vmatpush1.msra.mxu0 0.0
        %5140 = vmatprep.subr.mxu0 0.0
        %5141 = vmatpush1.msra.mxu0 0.0
        %5142 = vmatprep.subr.mxu0 0.0
        %5143 = vmatpush1.msra.mxu0 0.0
        %5144 = vmatprep.subr.mxu0 0.0
        %5145 = vmatpush1.msra.mxu0 0.0
        %5146 = vmatprep.subr.mxu0 0.0
        %5147 = vmatpush1.msra.mxu0 0.0
        %5148 = vmatprep.subr.mxu0 0.0
        %5149 = vmatpush1.msra.mxu0 0.0
        %5150 = vmatprep.subr.mxu0 0.0
        %5151 = vmatpush1.msra.mxu0 0.0
        %5152 = vmatprep.subr.mxu0 0.0
        %5153 = vmatpush1.msra.mxu0 0.0
        %5154 = vmatprep.subr.mxu0 0.0
        %5155 = vmatpush1.msra.mxu0 0.0
        %5156 = vmatprep.subr.mxu0 0.0
        %5157 = vmatpush1.msra.mxu0 0.0
        %5158 = vmatprep.subr.mxu0 0.0
        %5159 = vmatpush1.msra.mxu0 0.0
        %5160 = vmatprep.subr.mxu0 0.0
        %5161 = vmatpush1.msra.mxu0 0.0
        %5162 = vmatprep.subr.mxu0 0.0
        %5163 = vmatpush1.msra.mxu0 0.0
        %5164 = vmatprep.subr.mxu0 0.0
        %5165 = vmatpush1.msra.mxu0 0.0
        %5166 = vmatprep.subr.mxu0 0.0
        %5167 = vmatpush1.msra.mxu0 0.0
        %5168 = vmatprep.subr.mxu0 0.0
        %5169 = vmatpush1.msra.mxu0 0.0
        %5170 = vmatprep.subr.mxu0 0.0
        %5171 = vmatpush1.msra.mxu0 0.0
        %5172 = vmatprep.subr.mxu0 0.0
        %5173 = vmatpush1.msra.mxu0 0.0
        %5174 = vmatprep.subr.mxu0 0.0
        %5175 = vmatpush1.msra.mxu0 0.0
        %5176 = vmatprep.subr.mxu0 0.0
        %5177 = vmatpush1.msra.mxu0 0.0
        %5178 = vmatprep.subr.mxu0 0.0
        %5179 = vmatpush1.msra.mxu0 0.0
        %5180 = vmatprep.subr.mxu0 0.0
        %5181 = vmatpush1.msra.mxu0 0.0
        %5182 = vmatprep.subr.mxu0 0.0
        %5183 = vmatpush1.msra.mxu0 0.0
        %5184 = vmatprep.subr.mxu0 0.0
        %5185 = vmatpush1.msra.mxu0 0.0
        %5186 = vmatprep.subr.mxu0 0.0
        %5187 = vmatpush1.msra.mxu0 0.0
        %5188 = vmatprep.subr.mxu0 0.0
        %5189 = vmatpush1.msra.mxu0 0.0
        %5190 = vmatprep.subr.mxu0 0.0
        %5191 = vmatpush1.msra.mxu0 0.0
        %5192 = vmatprep.mubr.f32.mxu0 0.0
        %5193 = vmatmul.mubr.f32.gmra.mrb[0].mxu0 %v5126
        %v5194 = vpop.f32.mrb[0].mxu0
        %v5195 = vadd.f32 0.0, %v5194
        %v5196 = vpop.f32.mrb[0].mxu0
        %5197 = vdwg.mxu0
        %5198 = vrot.lane.b32.xlu0 %v3345, 48
        %v5199 = vpop.permute.xlu0 %5198
        %5200 = vrot.lane.b32.xlu0 %v3432, 48
        %v5201 = vpop.permute.xlu0 %5200
        %v5202 = vsel %vm602, %v5199, 0
        %v5204 = vsel %vm602, %v5201, 0
        %5206 = vmatprep.subr.mxu0 0.0
        %5207 = vmatpush1.xpose.msra.mxu0 %v5204
        %5208 = vmatprep.subr.mxu0 0.0
        %5209 = vmatpush1.xpose.msra.mxu0 0.0
        %5210 = vmatprep.subr.mxu0 0.0
        %5211 = vmatpush1.xpose.msra.mxu0 0.0
        %5212 = vmatprep.subr.mxu0 0.0
        %5213 = vmatpush1.xpose.msra.mxu0 0.0
        %5214 = vmatprep.subr.mxu0 0.0
        %5215 = vmatpush1.xpose.msra.mxu0 0.0
        %5216 = vmatprep.subr.mxu0 0.0
        %5217 = vmatpush1.xpose.msra.mxu0 0.0
        %5218 = vmatprep.subr.mxu0 0.0
        %5219 = vmatpush1.xpose.msra.mxu0 0.0
        %5220 = vmatprep.subr.mxu0 0.0
        %5221 = vmatpush1.xpose.msra.mxu0 0.0
        %5222 = vmatprep.subr.mxu0 0.0
        %5223 = vmatpush1.xpose.msra.mxu0 0.0
        %5224 = vmatprep.subr.mxu0 0.0
        %5225 = vmatpush1.xpose.msra.mxu0 0.0
        %5226 = vmatprep.subr.mxu0 0.0
        %5227 = vmatpush1.xpose.msra.mxu0 0.0
        %5228 = vmatprep.subr.mxu0 0.0
        %5229 = vmatpush1.xpose.msra.mxu0 0.0
        %5230 = vmatprep.subr.mxu0 0.0
        %5231 = vmatpush1.xpose.msra.mxu0 0.0
        %5232 = vmatprep.subr.mxu0 0.0
        %5233 = vmatpush1.xpose.msra.mxu0 0.0
        %5234 = vmatprep.subr.mxu0 0.0
        %5235 = vmatpush1.xpose.msra.mxu0 0.0
        %5236 = vmatprep.subr.mxu0 0.0
        %5237 = vmatpush1.xpose.msra.mxu0 0.0
        %5238 = vmatprep.subr.mxu0 0.0
        %5239 = vmatpush1.xpose.msra.mxu0 0.0
        %5240 = vmatprep.subr.mxu0 0.0
        %5241 = vmatpush1.xpose.msra.mxu0 0.0
        %5242 = vmatprep.subr.mxu0 0.0
        %5243 = vmatpush1.xpose.msra.mxu0 0.0
        %5244 = vmatprep.subr.mxu0 0.0
        %5245 = vmatpush1.xpose.msra.mxu0 0.0
        %5246 = vmatprep.subr.mxu0 0.0
        %5247 = vmatpush1.xpose.msra.mxu0 0.0
        %5248 = vmatprep.subr.mxu0 0.0
        %5249 = vmatpush1.xpose.msra.mxu0 0.0
        %5250 = vmatprep.subr.mxu0 0.0
        %5251 = vmatpush1.xpose.msra.mxu0 0.0
        %5252 = vmatprep.subr.mxu0 0.0
        %5253 = vmatpush1.xpose.msra.mxu0 0.0
        %5254 = vmatprep.subr.mxu0 0.0
        %5255 = vmatpush1.xpose.msra.mxu0 0.0
        %5256 = vmatprep.subr.mxu0 0.0
        %5257 = vmatpush1.xpose.msra.mxu0 0.0
        %5258 = vmatprep.subr.mxu0 0.0
        %5259 = vmatpush1.xpose.msra.mxu0 0.0
        %5260 = vmatprep.subr.mxu0 0.0
        %5261 = vmatpush1.xpose.msra.mxu0 0.0
        %5262 = vmatprep.subr.mxu0 0.0
        %5263 = vmatpush1.xpose.msra.mxu0 0.0
        %5264 = vmatprep.subr.mxu0 0.0
        %5265 = vmatpush1.xpose.msra.mxu0 0.0
        %5266 = vmatprep.subr.mxu0 0.0
        %5267 = vmatpush1.xpose.msra.mxu0 0.0
        %5268 = vmatprep.subr.mxu0 0.0
        %5269 = vmatpush1.xpose.msra.mxu0 0.0
        %5270 = vmatprep.mubr.f32.mxu0 0.0
        %5271 = vmatmul.mubr.f32.gmra.mrb[0].mxu0 %v5202
        %v5272 = vpop.f32.mrb[0].mxu0
        %v5273 = vadd.f32 0.0, %v5272
        %v5274 = vpop.f32.mrb[0].mxu0
        %5275 = vdwg.mxu0
        %v5276 = vsel %vm602, %v5273, -inf
        %5277 = vmax.xlane.f32.xlu0 %v5276
        %v5278 = vpop.xlane.xlu0 %5277
        %v5279 = vsub.f32 %v5273, %v5278
        %v5280 = vmul.f32 %v5279, 1.442695
        %v5281 = vpow.pop %v5280
        %v5282 = vsel %vm602, %v5281, 0.0
        %5283 = vadd.xlane.f32.xlu0 %v5282
        %v5284 = vpop.xlane.xlu0 %5283
        %v5285 = vrcp.pop %v5284
        %v5286 = vmul.f32 %v5284, %v5285
        %v5287 = vsub.f32 2.0, %v5286
        %v5288 = vmul.f32 %v5285, %v5287
        %v5289 = vmul.f32 %v5281, %v5288
        %5290 = vrot.lane.b32.xlu0 %v3519, 48
        %v5291 = vpop.permute.xlu0 %5290
        %v5294 = vsel %vm602, %v5289, 0
        %5296 = vmatprep.subr.mxu0 0.0
        %5297 = vmatpush1.msra.mxu0 %v5291
        %5298 = vmatprep.subr.mxu0 0.0
        %5299 = vmatpush1.msra.mxu0 0.0
        %5300 = vmatprep.subr.mxu0 0.0
        %5301 = vmatpush1.msra.mxu0 0.0
        %5302 = vmatprep.subr.mxu0 0.0
        %5303 = vmatpush1.msra.mxu0 0.0
        %5304 = vmatprep.subr.mxu0 0.0
        %5305 = vmatpush1.msra.mxu0 0.0
        %5306 = vmatprep.subr.mxu0 0.0
        %5307 = vmatpush1.msra.mxu0 0.0
        %5308 = vmatprep.subr.mxu0 0.0
        %5309 = vmatpush1.msra.mxu0 0.0
        %5310 = vmatprep.subr.mxu0 0.0
        %5311 = vmatpush1.msra.mxu0 0.0
        %5312 = vmatprep.subr.mxu0 0.0
        %5313 = vmatpush1.msra.mxu0 0.0
        %5314 = vmatprep.subr.mxu0 0.0
        %5315 = vmatpush1.msra.mxu0 0.0
        %5316 = vmatprep.subr.mxu0 0.0
        %5317 = vmatpush1.msra.mxu0 0.0
        %5318 = vmatprep.subr.mxu0 0.0
        %5319 = vmatpush1.msra.mxu0 0.0
        %5320 = vmatprep.subr.mxu0 0.0
        %5321 = vmatpush1.msra.mxu0 0.0
        %5322 = vmatprep.subr.mxu0 0.0
        %5323 = vmatpush1.msra.mxu0 0.0
        %5324 = vmatprep.subr.mxu0 0.0
        %5325 = vmatpush1.msra.mxu0 0.0
        %5326 = vmatprep.subr.mxu0 0.0
        %5327 = vmatpush1.msra.mxu0 0.0
        %5328 = vmatprep.subr.mxu0 0.0
        %5329 = vmatpush1.msra.mxu0 0.0
        %5330 = vmatprep.subr.mxu0 0.0
        %5331 = vmatpush1.msra.mxu0 0.0
        %5332 = vmatprep.subr.mxu0 0.0
        %5333 = vmatpush1.msra.mxu0 0.0
        %5334 = vmatprep.subr.mxu0 0.0
        %5335 = vmatpush1.msra.mxu0 0.0
        %5336 = vmatprep.subr.mxu0 0.0
        %5337 = vmatpush1.msra.mxu0 0.0
        %5338 = vmatprep.subr.mxu0 0.0
        %5339 = vmatpush1.msra.mxu0 0.0
        %5340 = vmatprep.subr.mxu0 0.0
        %5341 = vmatpush1.msra.mxu0 0.0
        %5342 = vmatprep.subr.mxu0 0.0
        %5343 = vmatpush1.msra.mxu0 0.0
        %5344 = vmatprep.subr.mxu0 0.0
        %5345 = vmatpush1.msra.mxu0 0.0
        %5346 = vmatprep.subr.mxu0 0.0
        %5347 = vmatpush1.msra.mxu0 0.0
        %5348 = vmatprep.subr.mxu0 0.0
        %5349 = vmatpush1.msra.mxu0 0.0
        %5350 = vmatprep.subr.mxu0 0.0
        %5351 = vmatpush1.msra.mxu0 0.0
        %5352 = vmatprep.subr.mxu0 0.0
        %5353 = vmatpush1.msra.mxu0 0.0
        %5354 = vmatprep.subr.mxu0 0.0
        %5355 = vmatpush1.msra.mxu0 0.0
        %5356 = vmatprep.subr.mxu0 0.0
        %5357 = vmatpush1.msra.mxu0 0.0
        %5358 = vmatprep.subr.mxu0 0.0
        %5359 = vmatpush1.msra.mxu0 0.0
        %5360 = vmatprep.mubr.f32.mxu0 0.0
        %5361 = vmatmul.mubr.f32.gmra.mrb[0].mxu0 %v5294
        %v5362 = vpop.f32.mrb[0].mxu0
        %v5363 = vadd.f32 0.0, %v5362
        %v5364 = vpop.f32.mrb[0].mxu0
        %5365 = vdwg.mxu0
        %5366 = vrot.lane.b32.xlu0 %v3345, 40
        %v5367 = vpop.permute.xlu0 %5366
        %5368 = vrot.lane.b32.xlu0 %v3432, 40
        %v5369 = vpop.permute.xlu0 %5368
        %v5370 = vsel %vm602, %v5367, 0
        %v5372 = vsel %vm602, %v5369, 0
        %5374 = vmatprep.subr.mxu0 0.0
        %5375 = vmatpush1.xpose.msra.mxu0 %v5372
        %5376 = vmatprep.subr.mxu0 0.0
        %5377 = vmatpush1.xpose.msra.mxu0 0.0
        %5378 = vmatprep.subr.mxu0 0.0
        %5379 = vmatpush1.xpose.msra.mxu0 0.0
        %5380 = vmatprep.subr.mxu0 0.0
        %5381 = vmatpush1.xpose.msra.mxu0 0.0
        %5382 = vmatprep.subr.mxu0 0.0
        %5383 = vmatpush1.xpose.msra.mxu0 0.0
        %5384 = vmatprep.subr.mxu0 0.0
        %5385 = vmatpush1.xpose.msra.mxu0 0.0
        %5386 = vmatprep.subr.mxu0 0.0
        %5387 = vmatpush1.xpose.msra.mxu0 0.0
        %5388 = vmatprep.subr.mxu0 0.0
        %5389 = vmatpush1.xpose.msra.mxu0 0.0
        %5390 = vmatprep.subr.mxu0 0.0
        %5391 = vmatpush1.xpose.msra.mxu0 0.0
        %5392 = vmatprep.subr.mxu0 0.0
        %5393 = vmatpush1.xpose.msra.mxu0 0.0
        %5394 = vmatprep.subr.mxu0 0.0
        %5395 = vmatpush1.xpose.msra.mxu0 0.0
        %5396 = vmatprep.subr.mxu0 0.0
        %5397 = vmatpush1.xpose.msra.mxu0 0.0
        %5398 = vmatprep.subr.mxu0 0.0
        %5399 = vmatpush1.xpose.msra.mxu0 0.0
        %5400 = vmatprep.subr.mxu0 0.0
        %5401 = vmatpush1.xpose.msra.mxu0 0.0
        %5402 = vmatprep.subr.mxu0 0.0
        %5403 = vmatpush1.xpose.msra.mxu0 0.0
        %5404 = vmatprep.subr.mxu0 0.0
        %5405 = vmatpush1.xpose.msra.mxu0 0.0
        %5406 = vmatprep.subr.mxu0 0.0
        %5407 = vmatpush1.xpose.msra.mxu0 0.0
        %5408 = vmatprep.subr.mxu0 0.0
        %5409 = vmatpush1.xpose.msra.mxu0 0.0
        %5410 = vmatprep.subr.mxu0 0.0
        %5411 = vmatpush1.xpose.msra.mxu0 0.0
        %5412 = vmatprep.subr.mxu0 0.0
        %5413 = vmatpush1.xpose.msra.mxu0 0.0
        %5414 = vmatprep.subr.mxu0 0.0
        %5415 = vmatpush1.xpose.msra.mxu0 0.0
        %5416 = vmatprep.subr.mxu0 0.0
        %5417 = vmatpush1.xpose.msra.mxu0 0.0
        %5418 = vmatprep.subr.mxu0 0.0
        %5419 = vmatpush1.xpose.msra.mxu0 0.0
        %5420 = vmatprep.subr.mxu0 0.0
        %5421 = vmatpush1.xpose.msra.mxu0 0.0
        %5422 = vmatprep.subr.mxu0 0.0
        %5423 = vmatpush1.xpose.msra.mxu0 0.0
        %5424 = vmatprep.subr.mxu0 0.0
        %5425 = vmatpush1.xpose.msra.mxu0 0.0
        %5426 = vmatprep.subr.mxu0 0.0
        %5427 = vmatpush1.xpose.msra.mxu0 0.0
        %5428 = vmatprep.subr.mxu0 0.0
        %5429 = vmatpush1.xpose.msra.mxu0 0.0
        %5430 = vmatprep.subr.mxu0 0.0
        %5431 = vmatpush1.xpose.msra.mxu0 0.0
        %5432 = vmatprep.subr.mxu0 0.0
        %5433 = vmatpush1.xpose.msra.mxu0 0.0
        %5434 = vmatprep.subr.mxu0 0.0
        %5435 = vmatpush1.xpose.msra.mxu0 0.0
        %5436 = vmatprep.subr.mxu0 0.0
        %5437 = vmatpush1.xpose.msra.mxu0 0.0
        %5438 = vmatprep.mubr.f32.mxu0 0.0
        %5439 = vmatmul.mubr.f32.gmra.mrb[0].mxu0 %v5370
        %v5440 = vpop.f32.mrb[0].mxu0
        %v5441 = vadd.f32 0.0, %v5440
        %v5442 = vpop.f32.mrb[0].mxu0
        %5443 = vdwg.mxu0
        %v5444 = vsel %vm602, %v5441, -inf
        %5445 = vmax.xlane.f32.xlu0 %v5444
        %v5446 = vpop.xlane.xlu0 %5445
        %v5447 = vsub.f32 %v5441, %v5446
        %v5448 = vmul.f32 %v5447, 1.442695
        %v5449 = vpow.pop %v5448
        %v5450 = vsel %vm602, %v5449, 0.0
        %5451 = vadd.xlane.f32.xlu0 %v5450
        %v5452 = vpop.xlane.xlu0 %5451
        %v5453 = vrcp.pop %v5452
        %v5454 = vmul.f32 %v5452, %v5453
        %v5455 = vsub.f32 2.0, %v5454
        %v5456 = vmul.f32 %v5453, %v5455
        %v5457 = vmul.f32 %v5449, %v5456
        %5458 = vrot.lane.b32.xlu0 %v3519, 40
        %v5459 = vpop.permute.xlu0 %5458
        %v5462 = vsel %vm602, %v5457, 0
        %5464 = vmatprep.subr.mxu0 0.0
        %5465 = vmatpush1.msra.mxu0 %v5459
        %5466 = vmatprep.subr.mxu0 0.0
        %5467 = vmatpush1.msra.mxu0 0.0
        %5468 = vmatprep.subr.mxu0 0.0
        %5469 = vmatpush1.msra.mxu0 0.0
        %5470 = vmatprep.subr.mxu0 0.0
        %5471 = vmatpush1.msra.mxu0 0.0
        %5472 = vmatprep.subr.mxu0 0.0
        %5473 = vmatpush1.msra.mxu0 0.0
        %5474 = vmatprep.subr.mxu0 0.0
        %5475 = vmatpush1.msra.mxu0 0.0
        %5476 = vmatprep.subr.mxu0 0.0
        %5477 = vmatpush1.msra.mxu0 0.0
        %5478 = vmatprep.subr.mxu0 0.0
        %5479 = vmatpush1.msra.mxu0 0.0
        %5480 = vmatprep.subr.mxu0 0.0
        %5481 = vmatpush1.msra.mxu0 0.0
        %5482 = vmatprep.subr.mxu0 0.0
        %5483 = vmatpush1.msra.mxu0 0.0
        %5484 = vmatprep.subr.mxu0 0.0
        %5485 = vmatpush1.msra.mxu0 0.0
        %5486 = vmatprep.subr.mxu0 0.0
        %5487 = vmatpush1.msra.mxu0 0.0
        %5488 = vmatprep.subr.mxu0 0.0
        %5489 = vmatpush1.msra.mxu0 0.0
        %5490 = vmatprep.subr.mxu0 0.0
        %5491 = vmatpush1.msra.mxu0 0.0
        %5492 = vmatprep.subr.mxu0 0.0
        %5493 = vmatpush1.msra.mxu0 0.0
        %5494 = vmatprep.subr.mxu0 0.0
        %5495 = vmatpush1.msra.mxu0 0.0
        %5496 = vmatprep.subr.mxu0 0.0
        %5497 = vmatpush1.msra.mxu0 0.0
        %5498 = vmatprep.subr.mxu0 0.0
        %5499 = vmatpush1.msra.mxu0 0.0
        %5500 = vmatprep.subr.mxu0 0.0
        %5501 = vmatpush1.msra.mxu0 0.0
        %5502 = vmatprep.subr.mxu0 0.0
        %5503 = vmatpush1.msra.mxu0 0.0
        %5504 = vmatprep.subr.mxu0 0.0
        %5505 = vmatpush1.msra.mxu0 0.0
        %5506 = vmatprep.subr.mxu0 0.0
        %5507 = vmatpush1.msra.mxu0 0.0
        %5508 = vmatprep.subr.mxu0 0.0
        %5509 = vmatpush1.msra.mxu0 0.0
        %5510 = vmatprep.subr.mxu0 0.0
        %5511 = vmatpush1.msra.mxu0 0.0
        %5512 = vmatprep.subr.mxu0 0.0
        %5513 = vmatpush1.msra.mxu0 0.0
        %5514 = vmatprep.subr.mxu0 0.0
        %5515 = vmatpush1.msra.mxu0 0.0
        %5516 = vmatprep.subr.mxu0 0.0
        %5517 = vmatpush1.msra.mxu0 0.0
        %5518 = vmatprep.subr.mxu0 0.0
        %5519 = vmatpush1.msra.mxu0 0.0
        %5520 = vmatprep.subr.mxu0 0.0
        %5521 = vmatpush1.msra.mxu0 0.0
        %5522 = vmatprep.subr.mxu0 0.0
        %5523 = vmatpush1.msra.mxu0 0.0
        %5524 = vmatprep.subr.mxu0 0.0
        %5525 = vmatpush1.msra.mxu0 0.0
        %5526 = vmatprep.subr.mxu0 0.0
        %5527 = vmatpush1.msra.mxu0 0.0
        %5528 = vmatprep.mubr.f32.mxu0 0.0
        %5529 = vmatmul.mubr.f32.gmra.mrb[0].mxu0 %v5462
        %v5530 = vpop.f32.mrb[0].mxu0
        %v5531 = vadd.f32 0.0, %v5530
        %v5532 = vpop.f32.mrb[0].mxu0
        %5533 = vdwg.mxu0
        %5535 = vrot.lane.b32.xlu0 %v3851, 8
        %v5536 = vpop.permute.xlu0 %5535
        %5539 = vrot.lane.b32.xlu0 %v4019, 16
        %v5540 = vpop.permute.xlu0 %5539
        %5543 = vrot.lane.b32.xlu0 %v4187, 24
        %v5544 = vpop.permute.xlu0 %5543
        %5547 = vrot.lane.b32.xlu0 %v4355, 32
        %v5548 = vpop.permute.xlu0 %5547
        %5551 = vrot.lane.b32.xlu0 %v4523, 40
        %v5552 = vpop.permute.xlu0 %5551
        %5555 = vrot.lane.b32.xlu0 %v4691, 48
        %v5556 = vpop.permute.xlu0 %5555
        %5559 = vrot.lane.b32.xlu0 %v4859, 56
        %v5560 = vpop.permute.xlu0 %5559
        %5563 = vrot.lane.b32.xlu0 %v5027, 64
        %v5564 = vpop.permute.xlu0 %5563
        %5567 = vrot.lane.b32.xlu0 %v5195, 72
        %v5568 = vpop.permute.xlu0 %5567
        %5571 = vrot.lane.b32.xlu0 %v5363, 80
        %v5572 = vpop.permute.xlu0 %5571
        %5575 = vrot.lane.b32.xlu0 %v5531, 88
        %v5576 = vpop.permute.xlu0 %5575
        %v5578 = vsel %vm602, %v3682, %v5536
        %vm5579 = vcmask 130048
        %v5580 = vsel %vm5579, %v5578, %v5540
        %vm5581 = vcmask 195584
        %v5582 = vsel %vm5581, %v5580, %v5544
        %v5583 = vsel %vm373, %v5582, %v5548
        %vm5584 = vcmask 326656
        %v5585 = vsel %vm5584, %v5583, %v5552
        %vm5586 = vcmask 392192
        %v5587 = vsel %vm5586, %v5585, %v5556
        %vm5588 = vcmask 457728
        %v5589 = vsel %vm5588, %v5587, %v5560
        %vm5590 = vcmask 523264
        %v5591 = vsel %vm5590, %v5589, %v5564
        %vm5592 = vcmask 588800
        %v5593 = vsel %vm5592, %v5591, %v5568
        %vm5594 = vcmask 654336
        %v5595 = vsel %vm5594, %v5593, %v5572
        %vm5596 = vcmask 719872
        %v5597 = vsel %vm5596, %v5595, %v5576
        %s5598 = scalar_lea.vmem [#allocation7], 288
        %v5599 = vld [vmem:[%s5598] sm:$0xff]
        %v5600 = vld [vmem:[%s5598 + $0x8] sm:$0xff]
        %v5601 = vld [vmem:[%s5598 + $0x10] sm:$0xff]
        %v5602 = vld [vmem:[%s5598 + $0x18] sm:$0xff]
        %v5603 = vld [vmem:[%s5598 + $0x20] sm:$0xff]
        %v5604 = vld [vmem:[%s5598 + $0x28] sm:$0xff]
        %v5605 = vld [vmem:[%s5598 + $0x30] sm:$0xff]
        %v5606 = vld [vmem:[%s5598 + $0x38] sm:$0xff]
        %v5607 = vld [vmem:[%s5598 + $0x40] sm:$0xff]
        %v5608 = vld [vmem:[%s5598 + $0x48] sm:$0xff]
        %v5609 = vld [vmem:[%s5598 + $0x50] sm:$0xff]
        %v5610 = vld [vmem:[%s5598 + $0x58] sm:$0xff]
        %v5611 = vlaneseq
        %v5612 = vshrl.u32 %v5611, 7
        %v5613 = vsub.s32 3, %v5612
        %v5614 = vrot.slane %v3258, %v5613
        %v5616 = vsel %vm893, %v5597, 0
        %5618 = vmatprep.subr.mxu0 0.0
        %5619 = vmatpush1.msra.mxu0 %v5599
        %5620 = vmatprep.subr.mxu0 0.0
        %5621 = vmatpush1.msra.mxu0 %v5600
        %5622 = vmatprep.subr.mxu0 0.0
        %5623 = vmatpush1.msra.mxu0 %v5601
        %5624 = vmatprep.subr.mxu0 0.0
        %5625 = vmatpush1.msra.mxu0 %v5602
        %5626 = vmatprep.subr.mxu0 0.0
        %5627 = vmatpush1.msra.mxu0 %v5603
        %5628 = vmatprep.subr.mxu0 0.0
        %5629 = vmatpush1.msra.mxu0 %v5604
        %5630 = vmatprep.subr.mxu0 0.0
        %5631 = vmatpush1.msra.mxu0 %v5605
        %5632 = vmatprep.subr.mxu0 0.0
        %5633 = vmatpush1.msra.mxu0 %v5606
        %5634 = vmatprep.subr.mxu0 0.0
        %5635 = vmatpush1.msra.mxu0 %v5607
        %5636 = vmatprep.subr.mxu0 0.0
        %5637 = vmatpush1.msra.mxu0 %v5608
        %5638 = vmatprep.subr.mxu0 0.0
        %5639 = vmatpush1.msra.mxu0 %v5609
        %5640 = vmatprep.subr.mxu0 0.0
        %5641 = vmatpush1.msra.mxu0 %v5610
        %5642 = vmatprep.subr.mxu0 0.0
        %5643 = vmatpush1.msra.mxu0 0.0
        %5644 = vmatprep.subr.mxu0 0.0
        %5645 = vmatpush1.msra.mxu0 0.0
        %5646 = vmatprep.subr.mxu0 0.0
        %5647 = vmatpush1.msra.mxu0 0.0
        %5648 = vmatprep.subr.mxu0 0.0
        %5649 = vmatpush1.msra.mxu0 0.0
        %5650 = vmatprep.subr.mxu0 0.0
        %5651 = vmatpush1.msra.mxu0 0.0
        %5652 = vmatprep.subr.mxu0 0.0
        %5653 = vmatpush1.msra.mxu0 0.0
        %5654 = vmatprep.subr.mxu0 0.0
        %5655 = vmatpush1.msra.mxu0 0.0
        %5656 = vmatprep.subr.mxu0 0.0
        %5657 = vmatpush1.msra.mxu0 0.0
        %5658 = vmatprep.subr.mxu0 0.0
        %5659 = vmatpush1.msra.mxu0 0.0
        %5660 = vmatprep.subr.mxu0 0.0
        %5661 = vmatpush1.msra.mxu0 0.0
        %5662 = vmatprep.subr.mxu0 0.0
        %5663 = vmatpush1.msra.mxu0 0.0
        %5664 = vmatprep.subr.mxu0 0.0
        %5665 = vmatpush1.msra.mxu0 0.0
        %5666 = vmatprep.subr.mxu0 0.0
        %5667 = vmatpush1.msra.mxu0 0.0
        %5668 = vmatprep.subr.mxu0 0.0
        %5669 = vmatpush1.msra.mxu0 0.0
        %5670 = vmatprep.subr.mxu0 0.0
        %5671 = vmatpush1.msra.mxu0 0.0
        %5672 = vmatprep.subr.mxu0 0.0
        %5673 = vmatpush1.msra.mxu0 0.0
        %5674 = vmatprep.subr.mxu0 0.0
        %5675 = vmatpush1.msra.mxu0 0.0
        %5676 = vmatprep.subr.mxu0 0.0
        %5677 = vmatpush1.msra.mxu0 0.0
        %5678 = vmatprep.subr.mxu0 0.0
        %5679 = vmatpush1.msra.mxu0 0.0
        %5680 = vmatprep.subr.mxu0 0.0
        %5681 = vmatpush1.msra.mxu0 0.0
        %5682 = vmatprep.mubr.f32.mxu0 0.0
        %5683 = vmatmul.mubr.f32.gmra.mrb[0].mxu0 %v5616
        %v5684 = vpop.f32.mrb[0].mxu0
        %v5685 = vadd.f32 %v5614, %v5684
        %v5686 = vpop.f32.mrb[0].mxu0
        %5687 = vdwg.mxu0
        %v5688 = vadd.f32 %v3257, %v5685
        %s5689 = scalar_lea.vmem %s7, 4
        %v5690 = vld [vmem:[%s5689] sm:$0xf]
        %s5691 = scalar_lea.vmem [#allocation7], 384
        %v5692 = vld [vmem:[%s5691] sm:$0xff]
        %v5693 = vld [vmem:[%s5691 + $0x8] sm:$0xff]
        %v5694 = vld [vmem:[%s5691 + $0x10] sm:$0xff]
        %v5695 = vld [vmem:[%s5691 + $0x18] sm:$0xff]
        %v5696 = vld [vmem:[%s5691 + $0x20] sm:$0xff]
        %v5697 = vld [vmem:[%s5691 + $0x28] sm:$0xff]
        %v5698 = vld [vmem:[%s5691 + $0x30] sm:$0xff]
        %v5699 = vld [vmem:[%s5691 + $0x38] sm:$0xff]
        %v5700 = vld [vmem:[%s5691 + $0x40] sm:$0xff]
        %v5701 = vld [vmem:[%s5691 + $0x48] sm:$0xff]
        %v5702 = vld [vmem:[%s5691 + $0x50] sm:$0xff]
        %v5703 = vld [vmem:[%s5691 + $0x58] sm:$0xff]
        %v5704 = vlaneseq
        %v5705 = vshrl.u32 %v5704, 7
        %v5706 = vsub.s32 0, %v5705
        %v5707 = vrot.slane %v5690, %v5706
        %v5709 = vsel %vm893, %v5688, 0
        %5711 = vmatprep.subr.mxu0 0.0
        %5712 = vmatpush1.msra.mxu0 %v5692
        %5713 = vmatprep.subr.mxu0 0.0
        %5714 = vmatpush1.msra.mxu0 %v5693
        %5715 = vmatprep.subr.mxu0 0.0
        %5716 = vmatpush1.msra.mxu0 %v5694
        %5717 = vmatprep.subr.mxu0 0.0
        %5718 = vmatpush1.msra.mxu0 %v5695
        %5719 = vmatprep.subr.mxu0 0.0
        %5720 = vmatpush1.msra.mxu0 %v5696
        %5721 = vmatprep.subr.mxu0 0.0
        %5722 = vmatpush1.msra.mxu0 %v5697
        %5723 = vmatprep.subr.mxu0 0.0
        %5724 = vmatpush1.msra.mxu0 %v5698
        %5725 = vmatprep.subr.mxu0 0.0
        %5726 = vmatpush1.msra.mxu0 %v5699
        %5727 = vmatprep.subr.mxu0 0.0
        %5728 = vmatpush1.msra.mxu0 %v5700
        %5729 = vmatprep.subr.mxu0 0.0
        %5730 = vmatpush1.msra.mxu0 %v5701
        %5731 = vmatprep.subr.mxu0 0.0
        %5732 = vmatpush1.msra.mxu0 %v5702
        %5733 = vmatprep.subr.mxu0 0.0
        %5734 = vmatpush1.msra.mxu0 %v5703
        %5735 = vmatprep.subr.mxu0 0.0
        %5736 = vmatpush1.msra.mxu0 0.0
        %5737 = vmatprep.subr.mxu0 0.0
        %5738 = vmatpush1.msra.mxu0 0.0
        %5739 = vmatprep.subr.mxu0 0.0
        %5740 = vmatpush1.msra.mxu0 0.0
        %5741 = vmatprep.subr.mxu0 0.0
        %5742 = vmatpush1.msra.mxu0 0.0
        %5743 = vmatprep.subr.mxu0 0.0
        %5744 = vmatpush1.msra.mxu0 0.0
        %5745 = vmatprep.subr.mxu0 0.0
        %5746 = vmatpush1.msra.mxu0 0.0
        %5747 = vmatprep.subr.mxu0 0.0
        %5748 = vmatpush1.msra.mxu0 0.0
        %5749 = vmatprep.subr.mxu0 0.0
        %5750 = vmatpush1.msra.mxu0 0.0
        %5751 = vmatprep.subr.mxu0 0.0
        %5752 = vmatpush1.msra.mxu0 0.0
        %5753 = vmatprep.subr.mxu0 0.0
        %5754 = vmatpush1.msra.mxu0 0.0
        %5755 = vmatprep.subr.mxu0 0.0
        %5756 = vmatpush1.msra.mxu0 0.0
        %5757 = vmatprep.subr.mxu0 0.0
        %5758 = vmatpush1.msra.mxu0 0.0
        %5759 = vmatprep.subr.mxu0 0.0
        %5760 = vmatpush1.msra.mxu0 0.0
        %5761 = vmatprep.subr.mxu0 0.0
        %5762 = vmatpush1.msra.mxu0 0.0
        %5763 = vmatprep.subr.mxu0 0.0
        %5764 = vmatpush1.msra.mxu0 0.0
        %5765 = vmatprep.subr.mxu0 0.0
        %5766 = vmatpush1.msra.mxu0 0.0
        %5767 = vmatprep.subr.mxu0 0.0
        %5768 = vmatpush1.msra.mxu0 0.0
        %5769 = vmatprep.subr.mxu0 0.0
        %5770 = vmatpush1.msra.mxu0 0.0
        %5771 = vmatprep.subr.mxu0 0.0
        %5772 = vmatpush1.msra.mxu0 0.0
        %5773 = vmatprep.subr.mxu0 0.0
        %5774 = vmatpush1.msra.mxu0 0.0
        %5775 = vmatprep.mubr.f32.mxu0 0.0
        %5776 = vmatmul.mubr.f32.gmra.mrb[0].mxu0 %v5709
        %v5777 = vpop.f32.mrb[0].mxu0
        %v5778 = vadd.f32 %v5707, %v5777
        %v5779 = vpop.f32.mrb[0].mxu0
        %5780 = vdwg.mxu0
        %s5781 = scalar_lea.vmem [#allocation7], 480
        %v5782 = vld [vmem:[%s5781] sm:$0xff]
        %v5783 = vld [vmem:[%s5781 + $0x8] sm:$0xff]
        %v5784 = vld [vmem:[%s5781 + $0x10] sm:$0xff]
        %v5785 = vld [vmem:[%s5781 + $0x18] sm:$0xff]
        %v5786 = vld [vmem:[%s5781 + $0x20] sm:$0xff]
        %v5787 = vld [vmem:[%s5781 + $0x28] sm:$0xff]
        %v5788 = vld [vmem:[%s5781 + $0x30] sm:$0xff]
        %v5789 = vld [vmem:[%s5781 + $0x38] sm:$0xff]
        %v5790 = vld [vmem:[%s5781 + $0x40] sm:$0xff]
        %v5791 = vld [vmem:[%s5781 + $0x48] sm:$0xff]
        %v5792 = vld [vmem:[%s5781 + $0x50] sm:$0xff]
        %v5793 = vld [vmem:[%s5781 + $0x58] sm:$0xff]
        %v5794 = vlaneseq
        %v5795 = vshrl.u32 %v5794, 7
        %v5796 = vsub.s32 1, %v5795
        %v5797 = vrot.slane %v5690, %v5796
        %5798 = vmatprep.subr.mxu0 0.0
        %5799 = vmatpush1.msra.mxu0 %v5782
        %5800 = vmatprep.subr.mxu0 0.0
        %5801 = vmatpush1.msra.mxu0 %v5783
        %5802 = vmatprep.subr.mxu0 0.0
        %5803 = vmatpush1.msra.mxu0 %v5784
        %5804 = vmatprep.subr.mxu0 0.0
        %5805 = vmatpush1.msra.mxu0 %v5785
        %5806 = vmatprep.subr.mxu0 0.0
        %5807 = vmatpush1.msra.mxu0 %v5786
        %5808 = vmatprep.subr.mxu0 0.0
        %5809 = vmatpush1.msra.mxu0 %v5787
        %5810 = vmatprep.subr.mxu0 0.0
        %5811 = vmatpush1.msra.mxu0 %v5788
        %5812 = vmatprep.subr.mxu0 0.0
        %5813 = vmatpush1.msra.mxu0 %v5789
        %5814 = vmatprep.subr.mxu0 0.0
        %5815 = vmatpush1.msra.mxu0 %v5790
        %5816 = vmatprep.subr.mxu0 0.0
        %5817 = vmatpush1.msra.mxu0 %v5791
        %5818 = vmatprep.subr.mxu0 0.0
        %5819 = vmatpush1.msra.mxu0 %v5792
        %5820 = vmatprep.subr.mxu0 0.0
        %5821 = vmatpush1.msra.mxu0 %v5793
        %5822 = vmatprep.subr.mxu0 0.0
        %5823 = vmatpush1.msra.mxu0 0.0
        %5824 = vmatprep.subr.mxu0 0.0
        %5825 = vmatpush1.msra.mxu0 0.0
        %5826 = vmatprep.subr.mxu0 0.0
        %5827 = vmatpush1.msra.mxu0 0.0
        %5828 = vmatprep.subr.mxu0 0.0
        %5829 = vmatpush1.msra.mxu0 0.0
        %5830 = vmatprep.subr.mxu0 0.0
        %5831 = vmatpush1.msra.mxu0 0.0
        %5832 = vmatprep.subr.mxu0 0.0
        %5833 = vmatpush1.msra.mxu0 0.0
        %5834 = vmatprep.subr.mxu0 0.0
        %5835 = vmatpush1.msra.mxu0 0.0
        %5836 = vmatprep.subr.mxu0 0.0
        %5837 = vmatpush1.msra.mxu0 0.0
        %5838 = vmatprep.subr.mxu0 0.0
        %5839 = vmatpush1.msra.mxu0 0.0
        %5840 = vmatprep.subr.mxu0 0.0
        %5841 = vmatpush1.msra.mxu0 0.0
        %5842 = vmatprep.subr.mxu0 0.0
        %5843 = vmatpush1.msra.mxu0 0.0
        %5844 = vmatprep.subr.mxu0 0.0
        %5845 = vmatpush1.msra.mxu0 0.0
        %5846 = vmatprep.subr.mxu0 0.0
        %5847 = vmatpush1.msra.mxu0 0.0
        %5848 = vmatprep.subr.mxu0 0.0
        %5849 = vmatpush1.msra.mxu0 0.0
        %5850 = vmatprep.subr.mxu0 0.0
        %5851 = vmatpush1.msra.mxu0 0.0
        %5852 = vmatprep.subr.mxu0 0.0
        %5853 = vmatpush1.msra.mxu0 0.0
        %5854 = vmatprep.subr.mxu0 0.0
        %5855 = vmatpush1.msra.mxu0 0.0
        %5856 = vmatprep.subr.mxu0 0.0
        %5857 = vmatpush1.msra.mxu0 0.0
        %5858 = vmatprep.subr.mxu0 0.0
        %5859 = vmatpush1.msra.mxu0 0.0
        %5860 = vmatprep.subr.mxu0 0.0
        %5861 = vmatpush1.msra.mxu0 0.0
        %5862 = vmatprep.mubr.f32.mxu0 0.0
        %5863 = vmatmul.mubr.f32.gmra.mrb[0].mxu0 %v5709
        %v5864 = vpop.f32.mrb[0].mxu0
        %v5865 = vadd.f32 %v5797, %v5864
        %v5866 = vpop.f32.mrb[0].mxu0
        %5867 = vdwg.mxu0
        %s5868 = scalar_lea.vmem [#allocation7], 576
        %v5869 = vld [vmem:[%s5868] sm:$0xff]
        %v5870 = vld [vmem:[%s5868 + $0x8] sm:$0xff]
        %v5871 = vld [vmem:[%s5868 + $0x10] sm:$0xff]
        %v5872 = vld [vmem:[%s5868 + $0x18] sm:$0xff]
        %v5873 = vld [vmem:[%s5868 + $0x20] sm:$0xff]
        %v5874 = vld [vmem:[%s5868 + $0x28] sm:$0xff]
        %v5875 = vld [vmem:[%s5868 + $0x30] sm:$0xff]
        %v5876 = vld [vmem:[%s5868 + $0x38] sm:$0xff]
        %v5877 = vld [vmem:[%s5868 + $0x40] sm:$0xff]
        %v5878 = vld [vmem:[%s5868 + $0x48] sm:$0xff]
        %v5879 = vld [vmem:[%s5868 + $0x50] sm:$0xff]
        %v5880 = vld [vmem:[%s5868 + $0x58] sm:$0xff]
        %v5881 = vlaneseq
        %v5882 = vshrl.u32 %v5881, 7
        %v5883 = vsub.s32 2, %v5882
        %v5884 = vrot.slane %v5690, %v5883
        %5885 = vmatprep.subr.mxu0 0.0
        %5886 = vmatpush1.msra.mxu0 %v5869
        %5887 = vmatprep.subr.mxu0 0.0
        %5888 = vmatpush1.msra.mxu0 %v5870
        %5889 = vmatprep.subr.mxu0 0.0
        %5890 = vmatpush1.msra.mxu0 %v5871
        %5891 = vmatprep.subr.mxu0 0.0
        %5892 = vmatpush1.msra.mxu0 %v5872
        %5893 = vmatprep.subr.mxu0 0.0
        %5894 = vmatpush1.msra.mxu0 %v5873
        %5895 = vmatprep.subr.mxu0 0.0
        %5896 = vmatpush1.msra.mxu0 %v5874
        %5897 = vmatprep.subr.mxu0 0.0
        %5898 = vmatpush1.msra.mxu0 %v5875
        %5899 = vmatprep.subr.mxu0 0.0
        %5900 = vmatpush1.msra.mxu0 %v5876
        %5901 = vmatprep.subr.mxu0 0.0
        %5902 = vmatpush1.msra.mxu0 %v5877
        %5903 = vmatprep.subr.mxu0 0.0
        %5904 = vmatpush1.msra.mxu0 %v5878
        %5905 = vmatprep.subr.mxu0 0.0
        %5906 = vmatpush1.msra.mxu0 %v5879
        %5907 = vmatprep.subr.mxu0 0.0
        %5908 = vmatpush1.msra.mxu0 %v5880
        %5909 = vmatprep.subr.mxu0 0.0
        %5910 = vmatpush1.msra.mxu0 0.0
        %5911 = vmatprep.subr.mxu0 0.0
        %5912 = vmatpush1.msra.mxu0 0.0
        %5913 = vmatprep.subr.mxu0 0.0
        %5914 = vmatpush1.msra.mxu0 0.0
        %5915 = vmatprep.subr.mxu0 0.0
        %5916 = vmatpush1.msra.mxu0 0.0
        %5917 = vmatprep.subr.mxu0 0.0
        %5918 = vmatpush1.msra.mxu0 0.0
        %5919 = vmatprep.subr.mxu0 0.0
        %5920 = vmatpush1.msra.mxu0 0.0
        %5921 = vmatprep.subr.mxu0 0.0
        %5922 = vmatpush1.msra.mxu0 0.0
        %5923 = vmatprep.subr.mxu0 0.0
        %5924 = vmatpush1.msra.mxu0 0.0
        %5925 = vmatprep.subr.mxu0 0.0
        %5926 = vmatpush1.msra.mxu0 0.0
        %5927 = vmatprep.subr.mxu0 0.0
        %5928 = vmatpush1.msra.mxu0 0.0
        %5929 = vmatprep.subr.mxu0 0.0
        %5930 = vmatpush1.msra.mxu0 0.0
        %5931 = vmatprep.subr.mxu0 0.0
        %5932 = vmatpush1.msra.mxu0 0.0
        %5933 = vmatprep.subr.mxu0 0.0
        %5934 = vmatpush1.msra.mxu0 0.0
        %5935 = vmatprep.subr.mxu0 0.0
        %5936 = vmatpush1.msra.mxu0 0.0
        %5937 = vmatprep.subr.mxu0 0.0
        %5938 = vmatpush1.msra.mxu0 0.0
        %5939 = vmatprep.subr.mxu0 0.0
        %5940 = vmatpush1.msra.mxu0 0.0
        %5941 = vmatprep.subr.mxu0 0.0
        %5942 = vmatpush1.msra.mxu0 0.0
        %5943 = vmatprep.subr.mxu0 0.0
        %5944 = vmatpush1.msra.mxu0 0.0
        %5945 = vmatprep.subr.mxu0 0.0
        %5946 = vmatpush1.msra.mxu0 0.0
        %5947 = vmatprep.subr.mxu0 0.0
        %5948 = vmatpush1.msra.mxu0 0.0
        %5949 = vmatprep.mubr.f32.mxu0 0.0
        %5950 = vmatmul.mubr.f32.gmra.mrb[0].mxu0 %v5709
        %v5951 = vpop.f32.mrb[0].mxu0
        %v5952 = vadd.f32 %v5884, %v5951
        %v5953 = vpop.f32.mrb[0].mxu0
        %5954 = vdwg.mxu0
        %v5956 = vsel %vm602, %v5778, 0
        %v5959 = vsel %vm602, %v5865, 0
        %5961 = vmatprep.subr.mxu0 0.0
        %5962 = vmatpush1.xpose.msra.mxu0 %v5959
        %5963 = vmatprep.subr.mxu0 0.0
        %5964 = vmatpush1.xpose.msra.mxu0 0.0
        %5965 = vmatprep.subr.mxu0 0.0
        %5966 = vmatpush1.xpose.msra.mxu0 0.0
        %5967 = vmatprep.subr.mxu0 0.0
        %5968 = vmatpush1.xpose.msra.mxu0 0.0
        %5969 = vmatprep.subr.mxu0 0.0
        %5970 = vmatpush1.xpose.msra.mxu0 0.0
        %5971 = vmatprep.subr.mxu0 0.0
        %5972 = vmatpush1.xpose.msra.mxu0 0.0
        %5973 = vmatprep.subr.mxu0 0.0
        %5974 = vmatpush1.xpose.msra.mxu0 0.0
        %5975 = vmatprep.subr.mxu0 0.0
        %5976 = vmatpush1.xpose.msra.mxu0 0.0
        %5977 = vmatprep.subr.mxu0 0.0
        %5978 = vmatpush1.xpose.msra.mxu0 0.0
        %5979 = vmatprep.subr.mxu0 0.0
        %5980 = vmatpush1.xpose.msra.mxu0 0.0
        %5981 = vmatprep.subr.mxu0 0.0
        %5982 = vmatpush1.xpose.msra.mxu0 0.0
        %5983 = vmatprep.subr.mxu0 0.0
        %5984 = vmatpush1.xpose.msra.mxu0 0.0
        %5985 = vmatprep.subr.mxu0 0.0
        %5986 = vmatpush1.xpose.msra.mxu0 0.0
        %5987 = vmatprep.subr.mxu0 0.0
        %5988 = vmatpush1.xpose.msra.mxu0 0.0
        %5989 = vmatprep.subr.mxu0 0.0
        %5990 = vmatpush1.xpose.msra.mxu0 0.0
        %5991 = vmatprep.subr.mxu0 0.0
        %5992 = vmatpush1.xpose.msra.mxu0 0.0
        %5993 = vmatprep.subr.mxu0 0.0
        %5994 = vmatpush1.xpose.msra.mxu0 0.0
        %5995 = vmatprep.subr.mxu0 0.0
        %5996 = vmatpush1.xpose.msra.mxu0 0.0
        %5997 = vmatprep.subr.mxu0 0.0
        %5998 = vmatpush1.xpose.msra.mxu0 0.0
        %5999 = vmatprep.subr.mxu0 0.0
        %6000 = vmatpush1.xpose.msra.mxu0 0.0
        %6001 = vmatprep.subr.mxu0 0.0
        %6002 = vmatpush1.xpose.msra.mxu0 0.0
        %6003 = vmatprep.subr.mxu0 0.0
        %6004 = vmatpush1.xpose.msra.mxu0 0.0
        %6005 = vmatprep.subr.mxu0 0.0
        %6006 = vmatpush1.xpose.msra.mxu0 0.0
        %6007 = vmatprep.subr.mxu0 0.0
        %6008 = vmatpush1.xpose.msra.mxu0 0.0
        %6009 = vmatprep.subr.mxu0 0.0
        %6010 = vmatpush1.xpose.msra.mxu0 0.0
        %6011 = vmatprep.subr.mxu0 0.0
        %6012 = vmatpush1.xpose.msra.mxu0 0.0
        %6013 = vmatprep.subr.mxu0 0.0
        %6014 = vmatpush1.xpose.msra.mxu0 0.0
        %6015 = vmatprep.subr.mxu0 0.0
        %6016 = vmatpush1.xpose.msra.mxu0 0.0
        %6017 = vmatprep.subr.mxu0 0.0
        %6018 = vmatpush1.xpose.msra.mxu0 0.0
        %6019 = vmatprep.subr.mxu0 0.0
        %6020 = vmatpush1.xpose.msra.mxu0 0.0
        %6021 = vmatprep.subr.mxu0 0.0
        %6022 = vmatpush1.xpose.msra.mxu0 0.0
        %6023 = vmatprep.subr.mxu0 0.0
        %6024 = vmatpush1.xpose.msra.mxu0 0.0
        %6025 = vmatprep.mubr.f32.mxu0 0.0
        %6026 = vmatmul.mubr.f32.gmra.mrb[0].mxu0 %v5956
        %v6027 = vpop.f32.mrb[0].mxu0
        %v6028 = vadd.f32 0.0, %v6027
        %v6029 = vpop.f32.mrb[0].mxu0
        %6030 = vdwg.mxu0
        %v6031 = vsel %vm602, %v6028, -inf
        %6032 = vmax.xlane.f32.xlu0 %v6031
        %v6033 = vpop.xlane.xlu0 %6032
        %v6034 = vsub.f32 %v6028, %v6033
        %v6035 = vmul.f32 %v6034, 1.442695
        %v6036 = vpow.pop %v6035
        %v6037 = vsel %vm602, %v6036, 0.0
        %6038 = vadd.xlane.f32.xlu0 %v6037
        %v6039 = vpop.xlane.xlu0 %6038
        %v6040 = vrcp.pop %v6039
        %v6041 = vmul.f32 %v6039, %v6040
        %v6042 = vsub.f32 2.0, %v6041
        %v6043 = vmul.f32 %v6040, %v6042
        %v6044 = vmul.f32 %v6036, %v6043
        %v6046 = vsel %vm602, %v6044, 0
        %6048 = vmatprep.subr.mxu0 0.0
        %6049 = vmatpush1.msra.mxu0 %v5952
        %6050 = vmatprep.subr.mxu0 0.0
        %6051 = vmatpush1.msra.mxu0 0.0
        %6052 = vmatprep.subr.mxu0 0.0
        %6053 = vmatpush1.msra.mxu0 0.0
        %6054 = vmatprep.subr.mxu0 0.0
        %6055 = vmatpush1.msra.mxu0 0.0
        %6056 = vmatprep.subr.mxu0 0.0
        %6057 = vmatpush1.msra.mxu0 0.0
        %6058 = vmatprep.subr.mxu0 0.0
        %6059 = vmatpush1.msra.mxu0 0.0
        %6060 = vmatprep.subr.mxu0 0.0
        %6061 = vmatpush1.msra.mxu0 0.0
        %6062 = vmatprep.subr.mxu0 0.0
        %6063 = vmatpush1.msra.mxu0 0.0
        %6064 = vmatprep.subr.mxu0 0.0
        %6065 = vmatpush1.msra.mxu0 0.0
        %6066 = vmatprep.subr.mxu0 0.0
        %6067 = vmatpush1.msra.mxu0 0.0
        %6068 = vmatprep.subr.mxu0 0.0
        %6069 = vmatpush1.msra.mxu0 0.0
        %6070 = vmatprep.subr.mxu0 0.0
        %6071 = vmatpush1.msra.mxu0 0.0
        %6072 = vmatprep.subr.mxu0 0.0
        %6073 = vmatpush1.msra.mxu0 0.0
        %6074 = vmatprep.subr.mxu0 0.0
        %6075 = vmatpush1.msra.mxu0 0.0
        %6076 = vmatprep.subr.mxu0 0.0
        %6077 = vmatpush1.msra.mxu0 0.0
        %6078 = vmatprep.subr.mxu0 0.0
        %6079 = vmatpush1.msra.mxu0 0.0
        %6080 = vmatprep.subr.mxu0 0.0
        %6081 = vmatpush1.msra.mxu0 0.0
        %6082 = vmatprep.subr.mxu0 0.0
        %6083 = vmatpush1.msra.mxu0 0.0
        %6084 = vmatprep.subr.mxu0 0.0
        %6085 = vmatpush1.msra.mxu0 0.0
        %6086 = vmatprep.subr.mxu0 0.0
        %6087 = vmatpush1.msra.mxu0 0.0
        %6088 = vmatprep.subr.mxu0 0.0
        %6089 = vmatpush1.msra.mxu0 0.0
        %6090 = vmatprep.subr.mxu0 0.0
        %6091 = vmatpush1.msra.mxu0 0.0
        %6092 = vmatprep.subr.mxu0 0.0
        %6093 = vmatpush1.msra.mxu0 0.0
        %6094 = vmatprep.subr.mxu0 0.0
        %6095 = vmatpush1.msra.mxu0 0.0
        %6096 = vmatprep.subr.mxu0 0.0
        %6097 = vmatpush1.msra.mxu0 0.0
        %6098 = vmatprep.subr.mxu0 0.0
        %6099 = vmatpush1.msra.mxu0 0.0
        %6100 = vmatprep.subr.mxu0 0.0
        %6101 = vmatpush1.msra.mxu0 0.0
        %6102 = vmatprep.subr.mxu0 0.0
        %6103 = vmatpush1.msra.mxu0 0.0
        %6104 = vmatprep.subr.mxu0 0.0
        %6105 = vmatpush1.msra.mxu0 0.0
        %6106 = vmatprep.subr.mxu0 0.0
        %6107 = vmatpush1.msra.mxu0 0.0
        %6108 = vmatprep.subr.mxu0 0.0
        %6109 = vmatpush1.msra.mxu0 0.0
        %6110 = vmatprep.subr.mxu0 0.0
        %6111 = vmatpush1.msra.mxu0 0.0
        %6112 = vmatprep.mubr.f32.mxu0 0.0
        %6113 = vmatmul.mubr.f32.gmra.mrb[0].mxu0 %v6046
        %v6114 = vpop.f32.mrb[0].mxu0
        %v6115 = vadd.f32 0.0, %v6114
        %v6116 = vpop.f32.mrb[0].mxu0
        %6117 = vdwg.mxu0
        %6118 = vrot.lane.b32.xlu0 %v5778, 120
        %v6119 = vpop.permute.xlu0 %6118
        %6120 = vrot.lane.b32.xlu0 %v5865, 120
        %v6121 = vpop.permute.xlu0 %6120
        %v6122 = vsel %vm602, %v6119, 0
        %v6124 = vsel %vm602, %v6121, 0
        %6126 = vmatprep.subr.mxu0 0.0
        %6127 = vmatpush1.xpose.msra.mxu0 %v6124
        %6128 = vmatprep.subr.mxu0 0.0
        %6129 = vmatpush1.xpose.msra.mxu0 0.0
        %6130 = vmatprep.subr.mxu0 0.0
        %6131 = vmatpush1.xpose.msra.mxu0 0.0
        %6132 = vmatprep.subr.mxu0 0.0
        %6133 = vmatpush1.xpose.msra.mxu0 0.0
        %6134 = vmatprep.subr.mxu0 0.0
        %6135 = vmatpush1.xpose.msra.mxu0 0.0
        %6136 = vmatprep.subr.mxu0 0.0
        %6137 = vmatpush1.xpose.msra.mxu0 0.0
        %6138 = vmatprep.subr.mxu0 0.0
        %6139 = vmatpush1.xpose.msra.mxu0 0.0
        %6140 = vmatprep.subr.mxu0 0.0
        %6141 = vmatpush1.xpose.msra.mxu0 0.0
        %6142 = vmatprep.subr.mxu0 0.0
        %6143 = vmatpush1.xpose.msra.mxu0 0.0
        %6144 = vmatprep.subr.mxu0 0.0
        %6145 = vmatpush1.xpose.msra.mxu0 0.0
        %6146 = vmatprep.subr.mxu0 0.0
        %6147 = vmatpush1.xpose.msra.mxu0 0.0
        %6148 = vmatprep.subr.mxu0 0.0
        %6149 = vmatpush1.xpose.msra.mxu0 0.0
        %6150 = vmatprep.subr.mxu0 0.0
        %6151 = vmatpush1.xpose.msra.mxu0 0.0
        %6152 = vmatprep.subr.mxu0 0.0
        %6153 = vmatpush1.xpose.msra.mxu0 0.0
        %6154 = vmatprep.subr.mxu0 0.0
        %6155 = vmatpush1.xpose.msra.mxu0 0.0
        %6156 = vmatprep.subr.mxu0 0.0
        %6157 = vmatpush1.xpose.msra.mxu0 0.0
        %6158 = vmatprep.subr.mxu0 0.0
        %6159 = vmatpush1.xpose.msra.mxu0 0.0
        %6160 = vmatprep.subr.mxu0 0.0
        %6161 = vmatpush1.xpose.msra.mxu0 0.0
        %6162 = vmatprep.subr.mxu0 0.0
        %6163 = vmatpush1.xpose.msra.mxu0 0.0
        %6164 = vmatprep.subr.mxu0 0.0
        %6165 = vmatpush1.xpose.msra.mxu0 0.0
        %6166 = vmatprep.subr.mxu0 0.0
        %6167 = vmatpush1.xpose.msra.mxu0 0.0
        %6168 = vmatprep.subr.mxu0 0.0
        %6169 = vmatpush1.xpose.msra.mxu0 0.0
        %6170 = vmatprep.subr.mxu0 0.0
        %6171 = vmatpush1.xpose.msra.mxu0 0.0
        %6172 = vmatprep.subr.mxu0 0.0
        %6173 = vmatpush1.xpose.msra.mxu0 0.0
        %6174 = vmatprep.subr.mxu0 0.0
        %6175 = vmatpush1.xpose.msra.mxu0 0.0
        %6176 = vmatprep.subr.mxu0 0.0
        %6177 = vmatpush1.xpose.msra.mxu0 0.0
        %6178 = vmatprep.subr.mxu0 0.0
        %6179 = vmatpush1.xpose.msra.mxu0 0.0
        %6180 = vmatprep.subr.mxu0 0.0
        %6181 = vmatpush1.xpose.msra.mxu0 0.0
        %6182 = vmatprep.subr.mxu0 0.0
        %6183 = vmatpush1.xpose.msra.mxu0 0.0
        %6184 = vmatprep.subr.mxu0 0.0
        %6185 = vmatpush1.xpose.msra.mxu0 0.0
        %6186 = vmatprep.subr.mxu0 0.0
        %6187 = vmatpush1.xpose.msra.mxu0 0.0
        %6188 = vmatprep.subr.mxu0 0.0
        %6189 = vmatpush1.xpose.msra.mxu0 0.0
        %6190 = vmatprep.mubr.f32.mxu0 0.0
        %6191 = vmatmul.mubr.f32.gmra.mrb[0].mxu0 %v6122
        %v6192 = vpop.f32.mrb[0].mxu0
        %v6193 = vadd.f32 0.0, %v6192
        %v6194 = vpop.f32.mrb[0].mxu0
        %6195 = vdwg.mxu0
        %v6196 = vsel %vm602, %v6193, -inf
        %6197 = vmax.xlane.f32.xlu0 %v6196
        %v6198 = vpop.xlane.xlu0 %6197
        %v6199 = vsub.f32 %v6193, %v6198
        %v6200 = vmul.f32 %v6199, 1.442695
        %v6201 = vpow.pop %v6200
        %v6202 = vsel %vm602, %v6201, 0.0
        %6203 = vadd.xlane.f32.xlu0 %v6202
        %v6204 = vpop.xlane.xlu0 %6203
        %v6205 = vrcp.pop %v6204
        %v6206 = vmul.f32 %v6204, %v6205
        %v6207 = vsub.f32 2.0, %v6206
        %v6208 = vmul.f32 %v6205, %v6207
        %v6209 = vmul.f32 %v6201, %v6208
        %6211 = vrot.lane.b32.xlu0 %v5952, 120
        %v6212 = vpop.permute.xlu0 %6211
        %v6215 = vsel %vm602, %v6209, 0
        %6217 = vmatprep.subr.mxu0 0.0
        %6218 = vmatpush1.msra.mxu0 %v6212
        %6219 = vmatprep.subr.mxu0 0.0
        %6220 = vmatpush1.msra.mxu0 0.0
        %6221 = vmatprep.subr.mxu0 0.0
        %6222 = vmatpush1.msra.mxu0 0.0
        %6223 = vmatprep.subr.mxu0 0.0
        %6224 = vmatpush1.msra.mxu0 0.0
        %6225 = vmatprep.subr.mxu0 0.0
        %6226 = vmatpush1.msra.mxu0 0.0
        %6227 = vmatprep.subr.mxu0 0.0
        %6228 = vmatpush1.msra.mxu0 0.0
        %6229 = vmatprep.subr.mxu0 0.0
        %6230 = vmatpush1.msra.mxu0 0.0
        %6231 = vmatprep.subr.mxu0 0.0
        %6232 = vmatpush1.msra.mxu0 0.0
        %6233 = vmatprep.subr.mxu0 0.0
        %6234 = vmatpush1.msra.mxu0 0.0
        %6235 = vmatprep.subr.mxu0 0.0
        %6236 = vmatpush1.msra.mxu0 0.0
        %6237 = vmatprep.subr.mxu0 0.0
        %6238 = vmatpush1.msra.mxu0 0.0
        %6239 = vmatprep.subr.mxu0 0.0
        %6240 = vmatpush1.msra.mxu0 0.0
        %6241 = vmatprep.subr.mxu0 0.0
        %6242 = vmatpush1.msra.mxu0 0.0
        %6243 = vmatprep.subr.mxu0 0.0
        %6244 = vmatpush1.msra.mxu0 0.0
        %6245 = vmatprep.subr.mxu0 0.0
        %6246 = vmatpush1.msra.mxu0 0.0
        %6247 = vmatprep.subr.mxu0 0.0
        %6248 = vmatpush1.msra.mxu0 0.0
        %6249 = vmatprep.subr.mxu0 0.0
        %6250 = vmatpush1.msra.mxu0 0.0
        %6251 = vmatprep.subr.mxu0 0.0
        %6252 = vmatpush1.msra.mxu0 0.0
        %6253 = vmatprep.subr.mxu0 0.0
        %6254 = vmatpush1.msra.mxu0 0.0
        %6255 = vmatprep.subr.mxu0 0.0
        %6256 = vmatpush1.msra.mxu0 0.0
        %6257 = vmatprep.subr.mxu0 0.0
        %6258 = vmatpush1.msra.mxu0 0.0
        %6259 = vmatprep.subr.mxu0 0.0
        %6260 = vmatpush1.msra.mxu0 0.0
        %6261 = vmatprep.subr.mxu0 0.0
        %6262 = vmatpush1.msra.mxu0 0.0
        %6263 = vmatprep.subr.mxu0 0.0
        %6264 = vmatpush1.msra.mxu0 0.0
        %6265 = vmatprep.subr.mxu0 0.0
        %6266 = vmatpush1.msra.mxu0 0.0
        %6267 = vmatprep.subr.mxu0 0.0
        %6268 = vmatpush1.msra.mxu0 0.0
        %6269 = vmatprep.subr.mxu0 0.0
        %6270 = vmatpush1.msra.mxu0 0.0
        %6271 = vmatprep.subr.mxu0 0.0
        %6272 = vmatpush1.msra.mxu0 0.0
        %6273 = vmatprep.subr.mxu0 0.0
        %6274 = vmatpush1.msra.mxu0 0.0
        %6275 = vmatprep.subr.mxu0 0.0
        %6276 = vmatpush1.msra.mxu0 0.0
        %6277 = vmatprep.subr.mxu0 0.0
        %6278 = vmatpush1.msra.mxu0 0.0
        %6279 = vmatprep.subr.mxu0 0.0
        %6280 = vmatpush1.msra.mxu0 0.0
        %6281 = vmatprep.mubr.f32.mxu0 0.0
        %6282 = vmatmul.mubr.f32.gmra.mrb[0].mxu0 %v6215
        %v6283 = vpop.f32.mrb[0].mxu0
        %v6284 = vadd.f32 0.0, %v6283
        %v6285 = vpop.f32.mrb[0].mxu0
        %6286 = vdwg.mxu0
        %6287 = vrot.lane.b32.xlu0 %v5778, 112
        %v6288 = vpop.permute.xlu0 %6287
        %6289 = vrot.lane.b32.xlu0 %v5865, 112
        %v6290 = vpop.permute.xlu0 %6289
        %v6291 = vsel %vm602, %v6288, 0
        %v6293 = vsel %vm602, %v6290, 0
        %6295 = vmatprep.subr.mxu0 0.0
        %6296 = vmatpush1.xpose.msra.mxu0 %v6293
        %6297 = vmatprep.subr.mxu0 0.0
        %6298 = vmatpush1.xpose.msra.mxu0 0.0
        %6299 = vmatprep.subr.mxu0 0.0
        %6300 = vmatpush1.xpose.msra.mxu0 0.0
        %6301 = vmatprep.subr.mxu0 0.0
        %6302 = vmatpush1.xpose.msra.mxu0 0.0
        %6303 = vmatprep.subr.mxu0 0.0
        %6304 = vmatpush1.xpose.msra.mxu0 0.0
        %6305 = vmatprep.subr.mxu0 0.0
        %6306 = vmatpush1.xpose.msra.mxu0 0.0
        %6307 = vmatprep.subr.mxu0 0.0
        %6308 = vmatpush1.xpose.msra.mxu0 0.0
        %6309 = vmatprep.subr.mxu0 0.0
        %6310 = vmatpush1.xpose.msra.mxu0 0.0
        %6311 = vmatprep.subr.mxu0 0.0
        %6312 = vmatpush1.xpose.msra.mxu0 0.0
        %6313 = vmatprep.subr.mxu0 0.0
        %6314 = vmatpush1.xpose.msra.mxu0 0.0
        %6315 = vmatprep.subr.mxu0 0.0
        %6316 = vmatpush1.xpose.msra.mxu0 0.0
        %6317 = vmatprep.subr.mxu0 0.0
        %6318 = vmatpush1.xpose.msra.mxu0 0.0
        %6319 = vmatprep.subr.mxu0 0.0
        %6320 = vmatpush1.xpose.msra.mxu0 0.0
        %6321 = vmatprep.subr.mxu0 0.0
        %6322 = vmatpush1.xpose.msra.mxu0 0.0
        %6323 = vmatprep.subr.mxu0 0.0
        %6324 = vmatpush1.xpose.msra.mxu0 0.0
        %6325 = vmatprep.subr.mxu0 0.0
        %6326 = vmatpush1.xpose.msra.mxu0 0.0
        %6327 = vmatprep.subr.mxu0 0.0
        %6328 = vmatpush1.xpose.msra.mxu0 0.0
        %6329 = vmatprep.subr.mxu0 0.0
        %6330 = vmatpush1.xpose.msra.mxu0 0.0
        %6331 = vmatprep.subr.mxu0 0.0
        %6332 = vmatpush1.xpose.msra.mxu0 0.0
        %6333 = vmatprep.subr.mxu0 0.0
        %6334 = vmatpush1.xpose.msra.mxu0 0.0
        %6335 = vmatprep.subr.mxu0 0.0
        %6336 = vmatpush1.xpose.msra.mxu0 0.0
        %6337 = vmatprep.subr.mxu0 0.0
        %6338 = vmatpush1.xpose.msra.mxu0 0.0
        %6339 = vmatprep.subr.mxu0 0.0
        %6340 = vmatpush1.xpose.msra.mxu0 0.0
        %6341 = vmatprep.subr.mxu0 0.0
        %6342 = vmatpush1.xpose.msra.mxu0 0.0
        %6343 = vmatprep.subr.mxu0 0.0
        %6344 = vmatpush1.xpose.msra.mxu0 0.0
        %6345 = vmatprep.subr.mxu0 0.0
        %6346 = vmatpush1.xpose.msra.mxu0 0.0
        %6347 = vmatprep.subr.mxu0 0.0
        %6348 = vmatpush1.xpose.msra.mxu0 0.0
        %6349 = vmatprep.subr.mxu0 0.0
        %6350 = vmatpush1.xpose.msra.mxu0 0.0
        %6351 = vmatprep.subr.mxu0 0.0
        %6352 = vmatpush1.xpose.msra.mxu0 0.0
        %6353 = vmatprep.subr.mxu0 0.0
        %6354 = vmatpush1.xpose.msra.mxu0 0.0
        %6355 = vmatprep.subr.mxu0 0.0
        %6356 = vmatpush1.xpose.msra.mxu0 0.0
        %6357 = vmatprep.subr.mxu0 0.0
        %6358 = vmatpush1.xpose.msra.mxu0 0.0
        %6359 = vmatprep.mubr.f32.mxu0 0.0
        %6360 = vmatmul.mubr.f32.gmra.mrb[0].mxu0 %v6291
        %v6361 = vpop.f32.mrb[0].mxu0
        %v6362 = vadd.f32 0.0, %v6361
        %v6363 = vpop.f32.mrb[0].mxu0
        %6364 = vdwg.mxu0
        %v6365 = vsel %vm602, %v6362, -inf
        %6366 = vmax.xlane.f32.xlu0 %v6365
        %v6367 = vpop.xlane.xlu0 %6366
        %v6368 = vsub.f32 %v6362, %v6367
        %v6369 = vmul.f32 %v6368, 1.442695
        %v6370 = vpow.pop %v6369
        %v6371 = vsel %vm602, %v6370, 0.0
        %6372 = vadd.xlane.f32.xlu0 %v6371
        %v6373 = vpop.xlane.xlu0 %6372
        %v6374 = vrcp.pop %v6373
        %v6375 = vmul.f32 %v6373, %v6374
        %v6376 = vsub.f32 2.0, %v6375
        %v6377 = vmul.f32 %v6374, %v6376
        %v6378 = vmul.f32 %v6370, %v6377
        %6379 = vrot.lane.b32.xlu0 %v5952, 112
        %v6380 = vpop.permute.xlu0 %6379
        %v6383 = vsel %vm602, %v6378, 0
        %6385 = vmatprep.subr.mxu0 0.0
        %6386 = vmatpush1.msra.mxu0 %v6380
        %6387 = vmatprep.subr.mxu0 0.0
        %6388 = vmatpush1.msra.mxu0 0.0
        %6389 = vmatprep.subr.mxu0 0.0
        %6390 = vmatpush1.msra.mxu0 0.0
        %6391 = vmatprep.subr.mxu0 0.0
        %6392 = vmatpush1.msra.mxu0 0.0
        %6393 = vmatprep.subr.mxu0 0.0
        %6394 = vmatpush1.msra.mxu0 0.0
        %6395 = vmatprep.subr.mxu0 0.0
        %6396 = vmatpush1.msra.mxu0 0.0
        %6397 = vmatprep.subr.mxu0 0.0
        %6398 = vmatpush1.msra.mxu0 0.0
        %6399 = vmatprep.subr.mxu0 0.0
        %6400 = vmatpush1.msra.mxu0 0.0
        %6401 = vmatprep.subr.mxu0 0.0
        %6402 = vmatpush1.msra.mxu0 0.0
        %6403 = vmatprep.subr.mxu0 0.0
        %6404 = vmatpush1.msra.mxu0 0.0
        %6405 = vmatprep.subr.mxu0 0.0
        %6406 = vmatpush1.msra.mxu0 0.0
        %6407 = vmatprep.subr.mxu0 0.0
        %6408 = vmatpush1.msra.mxu0 0.0
        %6409 = vmatprep.subr.mxu0 0.0
        %6410 = vmatpush1.msra.mxu0 0.0
        %6411 = vmatprep.subr.mxu0 0.0
        %6412 = vmatpush1.msra.mxu0 0.0
        %6413 = vmatprep.subr.mxu0 0.0
        %6414 = vmatpush1.msra.mxu0 0.0
        %6415 = vmatprep.subr.mxu0 0.0
        %6416 = vmatpush1.msra.mxu0 0.0
        %6417 = vmatprep.subr.mxu0 0.0
        %6418 = vmatpush1.msra.mxu0 0.0
        %6419 = vmatprep.subr.mxu0 0.0
        %6420 = vmatpush1.msra.mxu0 0.0
        %6421 = vmatprep.subr.mxu0 0.0
        %6422 = vmatpush1.msra.mxu0 0.0
        %6423 = vmatprep.subr.mxu0 0.0
        %6424 = vmatpush1.msra.mxu0 0.0
        %6425 = vmatprep.subr.mxu0 0.0
        %6426 = vmatpush1.msra.mxu0 0.0
        %6427 = vmatprep.subr.mxu0 0.0
        %6428 = vmatpush1.msra.mxu0 0.0
        %6429 = vmatprep.subr.mxu0 0.0
        %6430 = vmatpush1.msra.mxu0 0.0
        %6431 = vmatprep.subr.mxu0 0.0
        %6432 = vmatpush1.msra.mxu0 0.0
        %6433 = vmatprep.subr.mxu0 0.0
        %6434 = vmatpush1.msra.mxu0 0.0
        %6435 = vmatprep.subr.mxu0 0.0
        %6436 = vmatpush1.msra.mxu0 0.0
        %6437 = vmatprep.subr.mxu0 0.0
        %6438 = vmatpush1.msra.mxu0 0.0
        %6439 = vmatprep.subr.mxu0 0.0
        %6440 = vmatpush1.msra.mxu0 0.0
        %6441 = vmatprep.subr.mxu0 0.0
        %6442 = vmatpush1.msra.mxu0 0.0
        %6443 = vmatprep.subr.mxu0 0.0
        %6444 = vmatpush1.msra.mxu0 0.0
        %6445 = vmatprep.subr.mxu0 0.0
        %6446 = vmatpush1.msra.mxu0 0.0
        %6447 = vmatprep.subr.mxu0 0.0
        %6448 = vmatpush1.msra.mxu0 0.0
        %6449 = vmatprep.mubr.f32.mxu0 0.0
        %6450 = vmatmul.mubr.f32.gmra.mrb[0].mxu0 %v6383
        %v6451 = vpop.f32.mrb[0].mxu0
        %v6452 = vadd.f32 0.0, %v6451
        %v6453 = vpop.f32.mrb[0].mxu0
        %6454 = vdwg.mxu0
        %6455 = vrot.lane.b32.xlu0 %v5778, 104
        %v6456 = vpop.permute.xlu0 %6455
        %6457 = vrot.lane.b32.xlu0 %v5865, 104
        %v6458 = vpop.permute.xlu0 %6457
        %v6459 = vsel %vm602, %v6456, 0
        %v6461 = vsel %vm602, %v6458, 0
        %6463 = vmatprep.subr.mxu0 0.0
        %6464 = vmatpush1.xpose.msra.mxu0 %v6461
        %6465 = vmatprep.subr.mxu0 0.0
        %6466 = vmatpush1.xpose.msra.mxu0 0.0
        %6467 = vmatprep.subr.mxu0 0.0
        %6468 = vmatpush1.xpose.msra.mxu0 0.0
        %6469 = vmatprep.subr.mxu0 0.0
        %6470 = vmatpush1.xpose.msra.mxu0 0.0
        %6471 = vmatprep.subr.mxu0 0.0
        %6472 = vmatpush1.xpose.msra.mxu0 0.0
        %6473 = vmatprep.subr.mxu0 0.0
        %6474 = vmatpush1.xpose.msra.mxu0 0.0
        %6475 = vmatprep.subr.mxu0 0.0
        %6476 = vmatpush1.xpose.msra.mxu0 0.0
        %6477 = vmatprep.subr.mxu0 0.0
        %6478 = vmatpush1.xpose.msra.mxu0 0.0
        %6479 = vmatprep.subr.mxu0 0.0
        %6480 = vmatpush1.xpose.msra.mxu0 0.0
        %6481 = vmatprep.subr.mxu0 0.0
        %6482 = vmatpush1.xpose.msra.mxu0 0.0
        %6483 = vmatprep.subr.mxu0 0.0
        %6484 = vmatpush1.xpose.msra.mxu0 0.0
        %6485 = vmatprep.subr.mxu0 0.0
        %6486 = vmatpush1.xpose.msra.mxu0 0.0
        %6487 = vmatprep.subr.mxu0 0.0
        %6488 = vmatpush1.xpose.msra.mxu0 0.0
        %6489 = vmatprep.subr.mxu0 0.0
        %6490 = vmatpush1.xpose.msra.mxu0 0.0
        %6491 = vmatprep.subr.mxu0 0.0
        %6492 = vmatpush1.xpose.msra.mxu0 0.0
        %6493 = vmatprep.subr.mxu0 0.0
        %6494 = vmatpush1.xpose.msra.mxu0 0.0
        %6495 = vmatprep.subr.mxu0 0.0
        %6496 = vmatpush1.xpose.msra.mxu0 0.0
        %6497 = vmatprep.subr.mxu0 0.0
        %6498 = vmatpush1.xpose.msra.mxu0 0.0
        %6499 = vmatprep.subr.mxu0 0.0
        %6500 = vmatpush1.xpose.msra.mxu0 0.0
        %6501 = vmatprep.subr.mxu0 0.0
        %6502 = vmatpush1.xpose.msra.mxu0 0.0
        %6503 = vmatprep.subr.mxu0 0.0
        %6504 = vmatpush1.xpose.msra.mxu0 0.0
        %6505 = vmatprep.subr.mxu0 0.0
        %6506 = vmatpush1.xpose.msra.mxu0 0.0
        %6507 = vmatprep.subr.mxu0 0.0
        %6508 = vmatpush1.xpose.msra.mxu0 0.0
        %6509 = vmatprep.subr.mxu0 0.0
        %6510 = vmatpush1.xpose.msra.mxu0 0.0
        %6511 = vmatprep.subr.mxu0 0.0
        %6512 = vmatpush1.xpose.msra.mxu0 0.0
        %6513 = vmatprep.subr.mxu0 0.0
        %6514 = vmatpush1.xpose.msra.mxu0 0.0
        %6515 = vmatprep.subr.mxu0 0.0
        %6516 = vmatpush1.xpose.msra.mxu0 0.0
        %6517 = vmatprep.subr.mxu0 0.0
        %6518 = vmatpush1.xpose.msra.mxu0 0.0
        %6519 = vmatprep.subr.mxu0 0.0
        %6520 = vmatpush1.xpose.msra.mxu0 0.0
        %6521 = vmatprep.subr.mxu0 0.0
        %6522 = vmatpush1.xpose.msra.mxu0 0.0
        %6523 = vmatprep.subr.mxu0 0.0
        %6524 = vmatpush1.xpose.msra.mxu0 0.0
        %6525 = vmatprep.subr.mxu0 0.0
        %6526 = vmatpush1.xpose.msra.mxu0 0.0
        %6527 = vmatprep.mubr.f32.mxu0 0.0
        %6528 = vmatmul.mubr.f32.gmra.mrb[0].mxu0 %v6459
        %v6529 = vpop.f32.mrb[0].mxu0
        %v6530 = vadd.f32 0.0, %v6529
        %v6531 = vpop.f32.mrb[0].mxu0
        %6532 = vdwg.mxu0
        %v6533 = vsel %vm602, %v6530, -inf
        %6534 = vmax.xlane.f32.xlu0 %v6533
        %v6535 = vpop.xlane.xlu0 %6534
        %v6536 = vsub.f32 %v6530, %v6535
        %v6537 = vmul.f32 %v6536, 1.442695
        %v6538 = vpow.pop %v6537
        %v6539 = vsel %vm602, %v6538, 0.0
        %6540 = vadd.xlane.f32.xlu0 %v6539
        %v6541 = vpop.xlane.xlu0 %6540
        %v6542 = vrcp.pop %v6541
        %v6543 = vmul.f32 %v6541, %v6542
        %v6544 = vsub.f32 2.0, %v6543
        %v6545 = vmul.f32 %v6542, %v6544
        %v6546 = vmul.f32 %v6538, %v6545
        %6547 = vrot.lane.b32.xlu0 %v5952, 104
        %v6548 = vpop.permute.xlu0 %6547
        %v6551 = vsel %vm602, %v6546, 0
        %6553 = vmatprep.subr.mxu0 0.0
        %6554 = vmatpush1.msra.mxu0 %v6548
        %6555 = vmatprep.subr.mxu0 0.0
        %6556 = vmatpush1.msra.mxu0 0.0
        %6557 = vmatprep.subr.mxu0 0.0
        %6558 = vmatpush1.msra.mxu0 0.0
        %6559 = vmatprep.subr.mxu0 0.0
        %6560 = vmatpush1.msra.mxu0 0.0
        %6561 = vmatprep.subr.mxu0 0.0
        %6562 = vmatpush1.msra.mxu0 0.0
        %6563 = vmatprep.subr.mxu0 0.0
        %6564 = vmatpush1.msra.mxu0 0.0
        %6565 = vmatprep.subr.mxu0 0.0
        %6566 = vmatpush1.msra.mxu0 0.0
        %6567 = vmatprep.subr.mxu0 0.0
        %6568 = vmatpush1.msra.mxu0 0.0
        %6569 = vmatprep.subr.mxu0 0.0
        %6570 = vmatpush1.msra.mxu0 0.0
        %6571 = vmatprep.subr.mxu0 0.0
        %6572 = vmatpush1.msra.mxu0 0.0
        %6573 = vmatprep.subr.mxu0 0.0
        %6574 = vmatpush1.msra.mxu0 0.0
        %6575 = vmatprep.subr.mxu0 0.0
        %6576 = vmatpush1.msra.mxu0 0.0
        %6577 = vmatprep.subr.mxu0 0.0
        %6578 = vmatpush1.msra.mxu0 0.0
        %6579 = vmatprep.subr.mxu0 0.0
        %6580 = vmatpush1.msra.mxu0 0.0
        %6581 = vmatprep.subr.mxu0 0.0
        %6582 = vmatpush1.msra.mxu0 0.0
        %6583 = vmatprep.subr.mxu0 0.0
        %6584 = vmatpush1.msra.mxu0 0.0
        %6585 = vmatprep.subr.mxu0 0.0
        %6586 = vmatpush1.msra.mxu0 0.0
        %6587 = vmatprep.subr.mxu0 0.0
        %6588 = vmatpush1.msra.mxu0 0.0
        %6589 = vmatprep.subr.mxu0 0.0
        %6590 = vmatpush1.msra.mxu0 0.0
        %6591 = vmatprep.subr.mxu0 0.0
        %6592 = vmatpush1.msra.mxu0 0.0
        %6593 = vmatprep.subr.mxu0 0.0
        %6594 = vmatpush1.msra.mxu0 0.0
        %6595 = vmatprep.subr.mxu0 0.0
        %6596 = vmatpush1.msra.mxu0 0.0
        %6597 = vmatprep.subr.mxu0 0.0
        %6598 = vmatpush1.msra.mxu0 0.0
        %6599 = vmatprep.subr.mxu0 0.0
        %6600 = vmatpush1.msra.mxu0 0.0
        %6601 = vmatprep.subr.mxu0 0.0
        %6602 = vmatpush1.msra.mxu0 0.0
        %6603 = vmatprep.subr.mxu0 0.0
        %6604 = vmatpush1.msra.mxu0 0.0
        %6605 = vmatprep.subr.mxu0 0.0
        %6606 = vmatpush1.msra.mxu0 0.0
        %6607 = vmatprep.subr.mxu0 0.0
        %6608 = vmatpush1.msra.mxu0 0.0
        %6609 = vmatprep.subr.mxu0 0.0
        %6610 = vmatpush1.msra.mxu0 0.0
        %6611 = vmatprep.subr.mxu0 0.0
        %6612 = vmatpush1.msra.mxu0 0.0
        %6613 = vmatprep.subr.mxu0 0.0
        %6614 = vmatpush1.msra.mxu0 0.0
        %6615 = vmatprep.subr.mxu0 0.0
        %6616 = vmatpush1.msra.mxu0 0.0
        %6617 = vmatprep.mubr.f32.mxu0 0.0
        %6618 = vmatmul.mubr.f32.gmra.mrb[0].mxu0 %v6551
        %v6619 = vpop.f32.mrb[0].mxu0
        %v6620 = vadd.f32 0.0, %v6619
        %v6621 = vpop.f32.mrb[0].mxu0
        %6622 = vdwg.mxu0
        %6623 = vrot.lane.b32.xlu0 %v5778, 96
        %v6624 = vpop.permute.xlu0 %6623
        %6625 = vrot.lane.b32.xlu0 %v5865, 96
        %v6626 = vpop.permute.xlu0 %6625
        %v6627 = vsel %vm602, %v6624, 0
        %v6629 = vsel %vm602, %v6626, 0
        %6631 = vmatprep.subr.mxu0 0.0
        %6632 = vmatpush1.xpose.msra.mxu0 %v6629
        %6633 = vmatprep.subr.mxu0 0.0
        %6634 = vmatpush1.xpose.msra.mxu0 0.0
        %6635 = vmatprep.subr.mxu0 0.0
        %6636 = vmatpush1.xpose.msra.mxu0 0.0
        %6637 = vmatprep.subr.mxu0 0.0
        %6638 = vmatpush1.xpose.msra.mxu0 0.0
        %6639 = vmatprep.subr.mxu0 0.0
        %6640 = vmatpush1.xpose.msra.mxu0 0.0
        %6641 = vmatprep.subr.mxu0 0.0
        %6642 = vmatpush1.xpose.msra.mxu0 0.0
        %6643 = vmatprep.subr.mxu0 0.0
        %6644 = vmatpush1.xpose.msra.mxu0 0.0
        %6645 = vmatprep.subr.mxu0 0.0
        %6646 = vmatpush1.xpose.msra.mxu0 0.0
        %6647 = vmatprep.subr.mxu0 0.0
        %6648 = vmatpush1.xpose.msra.mxu0 0.0
        %6649 = vmatprep.subr.mxu0 0.0
        %6650 = vmatpush1.xpose.msra.mxu0 0.0
        %6651 = vmatprep.subr.mxu0 0.0
        %6652 = vmatpush1.xpose.msra.mxu0 0.0
        %6653 = vmatprep.subr.mxu0 0.0
        %6654 = vmatpush1.xpose.msra.mxu0 0.0
        %6655 = vmatprep.subr.mxu0 0.0
        %6656 = vmatpush1.xpose.msra.mxu0 0.0
        %6657 = vmatprep.subr.mxu0 0.0
        %6658 = vmatpush1.xpose.msra.mxu0 0.0
        %6659 = vmatprep.subr.mxu0 0.0
        %6660 = vmatpush1.xpose.msra.mxu0 0.0
        %6661 = vmatprep.subr.mxu0 0.0
        %6662 = vmatpush1.xpose.msra.mxu0 0.0
        %6663 = vmatprep.subr.mxu0 0.0
        %6664 = vmatpush1.xpose.msra.mxu0 0.0
        %6665 = vmatprep.subr.mxu0 0.0
        %6666 = vmatpush1.xpose.msra.mxu0 0.0
        %6667 = vmatprep.subr.mxu0 0.0
        %6668 = vmatpush1.xpose.msra.mxu0 0.0
        %6669 = vmatprep.subr.mxu0 0.0
        %6670 = vmatpush1.xpose.msra.mxu0 0.0
        %6671 = vmatprep.subr.mxu0 0.0
        %6672 = vmatpush1.xpose.msra.mxu0 0.0
        %6673 = vmatprep.subr.mxu0 0.0
        %6674 = vmatpush1.xpose.msra.mxu0 0.0
        %6675 = vmatprep.subr.mxu0 0.0
        %6676 = vmatpush1.xpose.msra.mxu0 0.0
        %6677 = vmatprep.subr.mxu0 0.0
        %6678 = vmatpush1.xpose.msra.mxu0 0.0
        %6679 = vmatprep.subr.mxu0 0.0
        %6680 = vmatpush1.xpose.msra.mxu0 0.0
        %6681 = vmatprep.subr.mxu0 0.0
        %6682 = vmatpush1.xpose.msra.mxu0 0.0
        %6683 = vmatprep.subr.mxu0 0.0
        %6684 = vmatpush1.xpose.msra.mxu0 0.0
        %6685 = vmatprep.subr.mxu0 0.0
        %6686 = vmatpush1.xpose.msra.mxu0 0.0
        %6687 = vmatprep.subr.mxu0 0.0
        %6688 = vmatpush1.xpose.msra.mxu0 0.0
        %6689 = vmatprep.subr.mxu0 0.0
        %6690 = vmatpush1.xpose.msra.mxu0 0.0
        %6691 = vmatprep.subr.mxu0 0.0
        %6692 = vmatpush1.xpose.msra.mxu0 0.0
        %6693 = vmatprep.subr.mxu0 0.0
        %6694 = vmatpush1.xpose.msra.mxu0 0.0
        %6695 = vmatprep.mubr.f32.mxu0 0.0
        %6696 = vmatmul.mubr.f32.gmra.mrb[0].mxu0 %v6627
        %v6697 = vpop.f32.mrb[0].mxu0
        %v6698 = vadd.f32 0.0, %v6697
        %v6699 = vpop.f32.mrb[0].mxu0
        %6700 = vdwg.mxu0
        %v6701 = vsel %vm602, %v6698, -inf
        %6702 = vmax.xlane.f32.xlu0 %v6701
        %v6703 = vpop.xlane.xlu0 %6702
        %v6704 = vsub.f32 %v6698, %v6703
        %v6705 = vmul.f32 %v6704, 1.442695
        %v6706 = vpow.pop %v6705
        %v6707 = vsel %vm602, %v6706, 0.0
        %6708 = vadd.xlane.f32.xlu0 %v6707
        %v6709 = vpop.xlane.xlu0 %6708
        %v6710 = vrcp.pop %v6709
        %v6711 = vmul.f32 %v6709, %v6710
        %v6712 = vsub.f32 2.0, %v6711
        %v6713 = vmul.f32 %v6710, %v6712
        %v6714 = vmul.f32 %v6706, %v6713
        %6715 = vrot.lane.b32.xlu0 %v5952, 96
        %v6716 = vpop.permute.xlu0 %6715
        %v6719 = vsel %vm602, %v6714, 0
        %6721 = vmatprep.subr.mxu0 0.0
        %6722 = vmatpush1.msra.mxu0 %v6716
        %6723 = vmatprep.subr.mxu0 0.0
        %6724 = vmatpush1.msra.mxu0 0.0
        %6725 = vmatprep.subr.mxu0 0.0
        %6726 = vmatpush1.msra.mxu0 0.0
        %6727 = vmatprep.subr.mxu0 0.0
        %6728 = vmatpush1.msra.mxu0 0.0
        %6729 = vmatprep.subr.mxu0 0.0
        %6730 = vmatpush1.msra.mxu0 0.0
        %6731 = vmatprep.subr.mxu0 0.0
        %6732 = vmatpush1.msra.mxu0 0.0
        %6733 = vmatprep.subr.mxu0 0.0
        %6734 = vmatpush1.msra.mxu0 0.0
        %6735 = vmatprep.subr.mxu0 0.0
        %6736 = vmatpush1.msra.mxu0 0.0
        %6737 = vmatprep.subr.mxu0 0.0
        %6738 = vmatpush1.msra.mxu0 0.0
        %6739 = vmatprep.subr.mxu0 0.0
        %6740 = vmatpush1.msra.mxu0 0.0
        %6741 = vmatprep.subr.mxu0 0.0
        %6742 = vmatpush1.msra.mxu0 0.0
        %6743 = vmatprep.subr.mxu0 0.0
        %6744 = vmatpush1.msra.mxu0 0.0
        %6745 = vmatprep.subr.mxu0 0.0
        %6746 = vmatpush1.msra.mxu0 0.0
        %6747 = vmatprep.subr.mxu0 0.0
        %6748 = vmatpush1.msra.mxu0 0.0
        %6749 = vmatprep.subr.mxu0 0.0
        %6750 = vmatpush1.msra.mxu0 0.0
        %6751 = vmatprep.subr.mxu0 0.0
        %6752 = vmatpush1.msra.mxu0 0.0
        %6753 = vmatprep.subr.mxu0 0.0
        %6754 = vmatpush1.msra.mxu0 0.0
        %6755 = vmatprep.subr.mxu0 0.0
        %6756 = vmatpush1.msra.mxu0 0.0
        %6757 = vmatprep.subr.mxu0 0.0
        %6758 = vmatpush1.msra.mxu0 0.0
        %6759 = vmatprep.subr.mxu0 0.0
        %6760 = vmatpush1.msra.mxu0 0.0
        %6761 = vmatprep.subr.mxu0 0.0
        %6762 = vmatpush1.msra.mxu0 0.0
        %6763 = vmatprep.subr.mxu0 0.0
        %6764 = vmatpush1.msra.mxu0 0.0
        %6765 = vmatprep.subr.mxu0 0.0
        %6766 = vmatpush1.msra.mxu0 0.0
        %6767 = vmatprep.subr.mxu0 0.0
        %6768 = vmatpush1.msra.mxu0 0.0
        %6769 = vmatprep.subr.mxu0 0.0
        %6770 = vmatpush1.msra.mxu0 0.0
        %6771 = vmatprep.subr.mxu0 0.0
        %6772 = vmatpush1.msra.mxu0 0.0
        %6773 = vmatprep.subr.mxu0 0.0
        %6774 = vmatpush1.msra.mxu0 0.0
        %6775 = vmatprep.subr.mxu0 0.0
        %6776 = vmatpush1.msra.mxu0 0.0
        %6777 = vmatprep.subr.mxu0 0.0
        %6778 = vmatpush1.msra.mxu0 0.0
        %6779 = vmatprep.subr.mxu0 0.0
        %6780 = vmatpush1.msra.mxu0 0.0
        %6781 = vmatprep.subr.mxu0 0.0
        %6782 = vmatpush1.msra.mxu0 0.0
        %6783 = vmatprep.subr.mxu0 0.0
        %6784 = vmatpush1.msra.mxu0 0.0
        %6785 = vmatprep.mubr.f32.mxu0 0.0
        %6786 = vmatmul.mubr.f32.gmra.mrb[0].mxu0 %v6719
        %v6787 = vpop.f32.mrb[0].mxu0
        %v6788 = vadd.f32 0.0, %v6787
        %v6789 = vpop.f32.mrb[0].mxu0
        %6790 = vdwg.mxu0
        %6791 = vrot.lane.b32.xlu0 %v5778, 88
        %v6792 = vpop.permute.xlu0 %6791
        %6793 = vrot.lane.b32.xlu0 %v5865, 88
        %v6794 = vpop.permute.xlu0 %6793
        %v6795 = vsel %vm602, %v6792, 0
        %v6797 = vsel %vm602, %v6794, 0
        %6799 = vmatprep.subr.mxu0 0.0
        %6800 = vmatpush1.xpose.msra.mxu0 %v6797
        %6801 = vmatprep.subr.mxu0 0.0
        %6802 = vmatpush1.xpose.msra.mxu0 0.0
        %6803 = vmatprep.subr.mxu0 0.0
        %6804 = vmatpush1.xpose.msra.mxu0 0.0
        %6805 = vmatprep.subr.mxu0 0.0
        %6806 = vmatpush1.xpose.msra.mxu0 0.0
        %6807 = vmatprep.subr.mxu0 0.0
        %6808 = vmatpush1.xpose.msra.mxu0 0.0
        %6809 = vmatprep.subr.mxu0 0.0
        %6810 = vmatpush1.xpose.msra.mxu0 0.0
        %6811 = vmatprep.subr.mxu0 0.0
        %6812 = vmatpush1.xpose.msra.mxu0 0.0
        %6813 = vmatprep.subr.mxu0 0.0
        %6814 = vmatpush1.xpose.msra.mxu0 0.0
        %6815 = vmatprep.subr.mxu0 0.0
        %6816 = vmatpush1.xpose.msra.mxu0 0.0
        %6817 = vmatprep.subr.mxu0 0.0
        %6818 = vmatpush1.xpose.msra.mxu0 0.0
        %6819 = vmatprep.subr.mxu0 0.0
        %6820 = vmatpush1.xpose.msra.mxu0 0.0
        %6821 = vmatprep.subr.mxu0 0.0
        %6822 = vmatpush1.xpose.msra.mxu0 0.0
        %6823 = vmatprep.subr.mxu0 0.0
        %6824 = vmatpush1.xpose.msra.mxu0 0.0
        %6825 = vmatprep.subr.mxu0 0.0
        %6826 = vmatpush1.xpose.msra.mxu0 0.0
        %6827 = vmatprep.subr.mxu0 0.0
        %6828 = vmatpush1.xpose.msra.mxu0 0.0
        %6829 = vmatprep.subr.mxu0 0.0
        %6830 = vmatpush1.xpose.msra.mxu0 0.0
        %6831 = vmatprep.subr.mxu0 0.0
        %6832 = vmatpush1.xpose.msra.mxu0 0.0
        %6833 = vmatprep.subr.mxu0 0.0
        %6834 = vmatpush1.xpose.msra.mxu0 0.0
        %6835 = vmatprep.subr.mxu0 0.0
        %6836 = vmatpush1.xpose.msra.mxu0 0.0
        %6837 = vmatprep.subr.mxu0 0.0
        %6838 = vmatpush1.xpose.msra.mxu0 0.0
        %6839 = vmatprep.subr.mxu0 0.0
        %6840 = vmatpush1.xpose.msra.mxu0 0.0
        %6841 = vmatprep.subr.mxu0 0.0
        %6842 = vmatpush1.xpose.msra.mxu0 0.0
        %6843 = vmatprep.subr.mxu0 0.0
        %6844 = vmatpush1.xpose.msra.mxu0 0.0
        %6845 = vmatprep.subr.mxu0 0.0
        %6846 = vmatpush1.xpose.msra.mxu0 0.0
        %6847 = vmatprep.subr.mxu0 0.0
        %6848 = vmatpush1.xpose.msra.mxu0 0.0
        %6849 = vmatprep.subr.mxu0 0.0
        %6850 = vmatpush1.xpose.msra.mxu0 0.0
        %6851 = vmatprep.subr.mxu0 0.0
        %6852 = vmatpush1.xpose.msra.mxu0 0.0
        %6853 = vmatprep.subr.mxu0 0.0
        %6854 = vmatpush1.xpose.msra.mxu0 0.0
        %6855 = vmatprep.subr.mxu0 0.0
        %6856 = vmatpush1.xpose.msra.mxu0 0.0
        %6857 = vmatprep.subr.mxu0 0.0
        %6858 = vmatpush1.xpose.msra.mxu0 0.0
        %6859 = vmatprep.subr.mxu0 0.0
        %6860 = vmatpush1.xpose.msra.mxu0 0.0
        %6861 = vmatprep.subr.mxu0 0.0
        %6862 = vmatpush1.xpose.msra.mxu0 0.0
        %6863 = vmatprep.mubr.f32.mxu0 0.0
        %6864 = vmatmul.mubr.f32.gmra.mrb[0].mxu0 %v6795
        %v6865 = vpop.f32.mrb[0].mxu0
        %v6866 = vadd.f32 0.0, %v6865
        %v6867 = vpop.f32.mrb[0].mxu0
        %6868 = vdwg.mxu0
        %v6869 = vsel %vm602, %v6866, -inf
        %6870 = vmax.xlane.f32.xlu0 %v6869
        %v6871 = vpop.xlane.xlu0 %6870
        %v6872 = vsub.f32 %v6866, %v6871
        %v6873 = vmul.f32 %v6872, 1.442695
        %v6874 = vpow.pop %v6873
        %v6875 = vsel %vm602, %v6874, 0.0
        %6876 = vadd.xlane.f32.xlu0 %v6875
        %v6877 = vpop.xlane.xlu0 %6876
        %v6878 = vrcp.pop %v6877
        %v6879 = vmul.f32 %v6877, %v6878
        %v6880 = vsub.f32 2.0, %v6879
        %v6881 = vmul.f32 %v6878, %v6880
        %v6882 = vmul.f32 %v6874, %v6881
        %6883 = vrot.lane.b32.xlu0 %v5952, 88
        %v6884 = vpop.permute.xlu0 %6883
        %v6887 = vsel %vm602, %v6882, 0
        %6889 = vmatprep.subr.mxu0 0.0
        %6890 = vmatpush1.msra.mxu0 %v6884
        %6891 = vmatprep.subr.mxu0 0.0
        %6892 = vmatpush1.msra.mxu0 0.0
        %6893 = vmatprep.subr.mxu0 0.0
        %6894 = vmatpush1.msra.mxu0 0.0
        %6895 = vmatprep.subr.mxu0 0.0
        %6896 = vmatpush1.msra.mxu0 0.0
        %6897 = vmatprep.subr.mxu0 0.0
        %6898 = vmatpush1.msra.mxu0 0.0
        %6899 = vmatprep.subr.mxu0 0.0
        %6900 = vmatpush1.msra.mxu0 0.0
        %6901 = vmatprep.subr.mxu0 0.0
        %6902 = vmatpush1.msra.mxu0 0.0
        %6903 = vmatprep.subr.mxu0 0.0
        %6904 = vmatpush1.msra.mxu0 0.0
        %6905 = vmatprep.subr.mxu0 0.0
        %6906 = vmatpush1.msra.mxu0 0.0
        %6907 = vmatprep.subr.mxu0 0.0
        %6908 = vmatpush1.msra.mxu0 0.0
        %6909 = vmatprep.subr.mxu0 0.0
        %6910 = vmatpush1.msra.mxu0 0.0
        %6911 = vmatprep.subr.mxu0 0.0
        %6912 = vmatpush1.msra.mxu0 0.0
        %6913 = vmatprep.subr.mxu0 0.0
        %6914 = vmatpush1.msra.mxu0 0.0
        %6915 = vmatprep.subr.mxu0 0.0
        %6916 = vmatpush1.msra.mxu0 0.0
        %6917 = vmatprep.subr.mxu0 0.0
        %6918 = vmatpush1.msra.mxu0 0.0
        %6919 = vmatprep.subr.mxu0 0.0
        %6920 = vmatpush1.msra.mxu0 0.0
        %6921 = vmatprep.subr.mxu0 0.0
        %6922 = vmatpush1.msra.mxu0 0.0
        %6923 = vmatprep.subr.mxu0 0.0
        %6924 = vmatpush1.msra.mxu0 0.0
        %6925 = vmatprep.subr.mxu0 0.0
        %6926 = vmatpush1.msra.mxu0 0.0
        %6927 = vmatprep.subr.mxu0 0.0
        %6928 = vmatpush1.msra.mxu0 0.0
        %6929 = vmatprep.subr.mxu0 0.0
        %6930 = vmatpush1.msra.mxu0 0.0
        %6931 = vmatprep.subr.mxu0 0.0
        %6932 = vmatpush1.msra.mxu0 0.0
        %6933 = vmatprep.subr.mxu0 0.0
        %6934 = vmatpush1.msra.mxu0 0.0
        %6935 = vmatprep.subr.mxu0 0.0
        %6936 = vmatpush1.msra.mxu0 0.0
        %6937 = vmatprep.subr.mxu0 0.0
        %6938 = vmatpush1.msra.mxu0 0.0
        %6939 = vmatprep.subr.mxu0 0.0
        %6940 = vmatpush1.msra.mxu0 0.0
        %6941 = vmatprep.subr.mxu0 0.0
        %6942 = vmatpush1.msra.mxu0 0.0
        %6943 = vmatprep.subr.mxu0 0.0
        %6944 = vmatpush1.msra.mxu0 0.0
        %6945 = vmatprep.subr.mxu0 0.0
        %6946 = vmatpush1.msra.mxu0 0.0
        %6947 = vmatprep.subr.mxu0 0.0
        %6948 = vmatpush1.msra.mxu0 0.0
        %6949 = vmatprep.subr.mxu0 0.0
        %6950 = vmatpush1.msra.mxu0 0.0
        %6951 = vmatprep.subr.mxu0 0.0
        %6952 = vmatpush1.msra.mxu0 0.0
        %6953 = vmatprep.mubr.f32.mxu0 0.0
        %6954 = vmatmul.mubr.f32.gmra.mrb[0].mxu0 %v6887
        %v6955 = vpop.f32.mrb[0].mxu0
        %v6956 = vadd.f32 0.0, %v6955
        %v6957 = vpop.f32.mrb[0].mxu0
        %6958 = vdwg.mxu0
        %6959 = vrot.lane.b32.xlu0 %v5778, 80
        %v6960 = vpop.permute.xlu0 %6959
        %6961 = vrot.lane.b32.xlu0 %v5865, 80
        %v6962 = vpop.permute.xlu0 %6961
        %v6963 = vsel %vm602, %v6960, 0
        %v6965 = vsel %vm602, %v6962, 0
        %6967 = vmatprep.subr.mxu0 0.0
        %6968 = vmatpush1.xpose.msra.mxu0 %v6965
        %6969 = vmatprep.subr.mxu0 0.0
        %6970 = vmatpush1.xpose.msra.mxu0 0.0
        %6971 = vmatprep.subr.mxu0 0.0
        %6972 = vmatpush1.xpose.msra.mxu0 0.0
        %6973 = vmatprep.subr.mxu0 0.0
        %6974 = vmatpush1.xpose.msra.mxu0 0.0
        %6975 = vmatprep.subr.mxu0 0.0
        %6976 = vmatpush1.xpose.msra.mxu0 0.0
        %6977 = vmatprep.subr.mxu0 0.0
        %6978 = vmatpush1.xpose.msra.mxu0 0.0
        %6979 = vmatprep.subr.mxu0 0.0
        %6980 = vmatpush1.xpose.msra.mxu0 0.0
        %6981 = vmatprep.subr.mxu0 0.0
        %6982 = vmatpush1.xpose.msra.mxu0 0.0
        %6983 = vmatprep.subr.mxu0 0.0
        %6984 = vmatpush1.xpose.msra.mxu0 0.0
        %6985 = vmatprep.subr.mxu0 0.0
        %6986 = vmatpush1.xpose.msra.mxu0 0.0
        %6987 = vmatprep.subr.mxu0 0.0
        %6988 = vmatpush1.xpose.msra.mxu0 0.0
        %6989 = vmatprep.subr.mxu0 0.0
        %6990 = vmatpush1.xpose.msra.mxu0 0.0
        %6991 = vmatprep.subr.mxu0 0.0
        %6992 = vmatpush1.xpose.msra.mxu0 0.0
        %6993 = vmatprep.subr.mxu0 0.0
        %6994 = vmatpush1.xpose.msra.mxu0 0.0
        %6995 = vmatprep.subr.mxu0 0.0
        %6996 = vmatpush1.xpose.msra.mxu0 0.0
        %6997 = vmatprep.subr.mxu0 0.0
        %6998 = vmatpush1.xpose.msra.mxu0 0.0
        %6999 = vmatprep.subr.mxu0 0.0
        %7000 = vmatpush1.xpose.msra.mxu0 0.0
        %7001 = vmatprep.subr.mxu0 0.0
        %7002 = vmatpush1.xpose.msra.mxu0 0.0
        %7003 = vmatprep.subr.mxu0 0.0
        %7004 = vmatpush1.xpose.msra.mxu0 0.0
        %7005 = vmatprep.subr.mxu0 0.0
        %7006 = vmatpush1.xpose.msra.mxu0 0.0
        %7007 = vmatprep.subr.mxu0 0.0
        %7008 = vmatpush1.xpose.msra.mxu0 0.0
        %7009 = vmatprep.subr.mxu0 0.0
        %7010 = vmatpush1.xpose.msra.mxu0 0.0
        %7011 = vmatprep.subr.mxu0 0.0
        %7012 = vmatpush1.xpose.msra.mxu0 0.0
        %7013 = vmatprep.subr.mxu0 0.0
        %7014 = vmatpush1.xpose.msra.mxu0 0.0
        %7015 = vmatprep.subr.mxu0 0.0
        %7016 = vmatpush1.xpose.msra.mxu0 0.0
        %7017 = vmatprep.subr.mxu0 0.0
        %7018 = vmatpush1.xpose.msra.mxu0 0.0
        %7019 = vmatprep.subr.mxu0 0.0
        %7020 = vmatpush1.xpose.msra.mxu0 0.0
        %7021 = vmatprep.subr.mxu0 0.0
        %7022 = vmatpush1.xpose.msra.mxu0 0.0
        %7023 = vmatprep.subr.mxu0 0.0
        %7024 = vmatpush1.xpose.msra.mxu0 0.0
        %7025 = vmatprep.subr.mxu0 0.0
        %7026 = vmatpush1.xpose.msra.mxu0 0.0
        %7027 = vmatprep.subr.mxu0 0.0
        %7028 = vmatpush1.xpose.msra.mxu0 0.0
        %7029 = vmatprep.subr.mxu0 0.0
        %7030 = vmatpush1.xpose.msra.mxu0 0.0
        %7031 = vmatprep.mubr.f32.mxu0 0.0
        %7032 = vmatmul.mubr.f32.gmra.mrb[0].mxu0 %v6963
        %v7033 = vpop.f32.mrb[0].mxu0
        %v7034 = vadd.f32 0.0, %v7033
        %v7035 = vpop.f32.mrb[0].mxu0
        %7036 = vdwg.mxu0
        %v7037 = vsel %vm602, %v7034, -inf
        %7038 = vmax.xlane.f32.xlu0 %v7037
        %v7039 = vpop.xlane.xlu0 %7038
        %v7040 = vsub.f32 %v7034, %v7039
        %v7041 = vmul.f32 %v7040, 1.442695
        %v7042 = vpow.pop %v7041
        %v7043 = vsel %vm602, %v7042, 0.0
        %7044 = vadd.xlane.f32.xlu0 %v7043
        %v7045 = vpop.xlane.xlu0 %7044
        %v7046 = vrcp.pop %v7045
        %v7047 = vmul.f32 %v7045, %v7046
        %v7048 = vsub.f32 2.0, %v7047
        %v7049 = vmul.f32 %v7046, %v7048
        %v7050 = vmul.f32 %v7042, %v7049
        %7051 = vrot.lane.b32.xlu0 %v5952, 80
        %v7052 = vpop.permute.xlu0 %7051
        %v7055 = vsel %vm602, %v7050, 0
        %7057 = vmatprep.subr.mxu0 0.0
        %7058 = vmatpush1.msra.mxu0 %v7052
        %7059 = vmatprep.subr.mxu0 0.0
        %7060 = vmatpush1.msra.mxu0 0.0
        %7061 = vmatprep.subr.mxu0 0.0
        %7062 = vmatpush1.msra.mxu0 0.0
        %7063 = vmatprep.subr.mxu0 0.0
        %7064 = vmatpush1.msra.mxu0 0.0
        %7065 = vmatprep.subr.mxu0 0.0
        %7066 = vmatpush1.msra.mxu0 0.0
        %7067 = vmatprep.subr.mxu0 0.0
        %7068 = vmatpush1.msra.mxu0 0.0
        %7069 = vmatprep.subr.mxu0 0.0
        %7070 = vmatpush1.msra.mxu0 0.0
        %7071 = vmatprep.subr.mxu0 0.0
        %7072 = vmatpush1.msra.mxu0 0.0
        %7073 = vmatprep.subr.mxu0 0.0
        %7074 = vmatpush1.msra.mxu0 0.0
        %7075 = vmatprep.subr.mxu0 0.0
        %7076 = vmatpush1.msra.mxu0 0.0
        %7077 = vmatprep.subr.mxu0 0.0
        %7078 = vmatpush1.msra.mxu0 0.0
        %7079 = vmatprep.subr.mxu0 0.0
        %7080 = vmatpush1.msra.mxu0 0.0
        %7081 = vmatprep.subr.mxu0 0.0
        %7082 = vmatpush1.msra.mxu0 0.0
        %7083 = vmatprep.subr.mxu0 0.0
        %7084 = vmatpush1.msra.mxu0 0.0
        %7085 = vmatprep.subr.mxu0 0.0
        %7086 = vmatpush1.msra.mxu0 0.0
        %7087 = vmatprep.subr.mxu0 0.0
        %7088 = vmatpush1.msra.mxu0 0.0
        %7089 = vmatprep.subr.mxu0 0.0
        %7090 = vmatpush1.msra.mxu0 0.0
        %7091 = vmatprep.subr.mxu0 0.0
        %7092 = vmatpush1.msra.mxu0 0.0
        %7093 = vmatprep.subr.mxu0 0.0
        %7094 = vmatpush1.msra.mxu0 0.0
        %7095 = vmatprep.subr.mxu0 0.0
        %7096 = vmatpush1.msra.mxu0 0.0
        %7097 = vmatprep.subr.mxu0 0.0
        %7098 = vmatpush1.msra.mxu0 0.0
        %7099 = vmatprep.subr.mxu0 0.0
        %7100 = vmatpush1.msra.mxu0 0.0
        %7101 = vmatprep.subr.mxu0 0.0
        %7102 = vmatpush1.msra.mxu0 0.0
        %7103 = vmatprep.subr.mxu0 0.0
        %7104 = vmatpush1.msra.mxu0 0.0
        %7105 = vmatprep.subr.mxu0 0.0
        %7106 = vmatpush1.msra.mxu0 0.0
        %7107 = vmatprep.subr.mxu0 0.0
        %7108 = vmatpush1.msra.mxu0 0.0
        %7109 = vmatprep.subr.mxu0 0.0
        %7110 = vmatpush1.msra.mxu0 0.0
        %7111 = vmatprep.subr.mxu0 0.0
        %7112 = vmatpush1.msra.mxu0 0.0
        %7113 = vmatprep.subr.mxu0 0.0
        %7114 = vmatpush1.msra.mxu0 0.0
        %7115 = vmatprep.subr.mxu0 0.0
        %7116 = vmatpush1.msra.mxu0 0.0
        %7117 = vmatprep.subr.mxu0 0.0
        %7118 = vmatpush1.msra.mxu0 0.0
        %7119 = vmatprep.subr.mxu0 0.0
        %7120 = vmatpush1.msra.mxu0 0.0
        %7121 = vmatprep.mubr.f32.mxu0 0.0
        %7122 = vmatmul.mubr.f32.gmra.mrb[0].mxu0 %v7055
        %v7123 = vpop.f32.mrb[0].mxu0
        %v7124 = vadd.f32 0.0, %v7123
        %v7125 = vpop.f32.mrb[0].mxu0
        %7126 = vdwg.mxu0
        %7127 = vrot.lane.b32.xlu0 %v5778, 72
        %v7128 = vpop.permute.xlu0 %7127
        %7129 = vrot.lane.b32.xlu0 %v5865, 72
        %v7130 = vpop.permute.xlu0 %7129
        %v7131 = vsel %vm602, %v7128, 0
        %v7133 = vsel %vm602, %v7130, 0
        %7135 = vmatprep.subr.mxu0 0.0
        %7136 = vmatpush1.xpose.msra.mxu0 %v7133
        %7137 = vmatprep.subr.mxu0 0.0
        %7138 = vmatpush1.xpose.msra.mxu0 0.0
        %7139 = vmatprep.subr.mxu0 0.0
        %7140 = vmatpush1.xpose.msra.mxu0 0.0
        %7141 = vmatprep.subr.mxu0 0.0
        %7142 = vmatpush1.xpose.msra.mxu0 0.0
        %7143 = vmatprep.subr.mxu0 0.0
        %7144 = vmatpush1.xpose.msra.mxu0 0.0
        %7145 = vmatprep.subr.mxu0 0.0
        %7146 = vmatpush1.xpose.msra.mxu0 0.0
        %7147 = vmatprep.subr.mxu0 0.0
        %7148 = vmatpush1.xpose.msra.mxu0 0.0
        %7149 = vmatprep.subr.mxu0 0.0
        %7150 = vmatpush1.xpose.msra.mxu0 0.0
        %7151 = vmatprep.subr.mxu0 0.0
        %7152 = vmatpush1.xpose.msra.mxu0 0.0
        %7153 = vmatprep.subr.mxu0 0.0
        %7154 = vmatpush1.xpose.msra.mxu0 0.0
        %7155 = vmatprep.subr.mxu0 0.0
        %7156 = vmatpush1.xpose.msra.mxu0 0.0
        %7157 = vmatprep.subr.mxu0 0.0
        %7158 = vmatpush1.xpose.msra.mxu0 0.0
        %7159 = vmatprep.subr.mxu0 0.0
        %7160 = vmatpush1.xpose.msra.mxu0 0.0
        %7161 = vmatprep.subr.mxu0 0.0
        %7162 = vmatpush1.xpose.msra.mxu0 0.0
        %7163 = vmatprep.subr.mxu0 0.0
        %7164 = vmatpush1.xpose.msra.mxu0 0.0
        %7165 = vmatprep.subr.mxu0 0.0
        %7166 = vmatpush1.xpose.msra.mxu0 0.0
        %7167 = vmatprep.subr.mxu0 0.0
        %7168 = vmatpush1.xpose.msra.mxu0 0.0
        %7169 = vmatprep.subr.mxu0 0.0
        %7170 = vmatpush1.xpose.msra.mxu0 0.0
        %7171 = vmatprep.subr.mxu0 0.0
        %7172 = vmatpush1.xpose.msra.mxu0 0.0
        %7173 = vmatprep.subr.mxu0 0.0
        %7174 = vmatpush1.xpose.msra.mxu0 0.0
        %7175 = vmatprep.subr.mxu0 0.0
        %7176 = vmatpush1.xpose.msra.mxu0 0.0
        %7177 = vmatprep.subr.mxu0 0.0
        %7178 = vmatpush1.xpose.msra.mxu0 0.0
        %7179 = vmatprep.subr.mxu0 0.0
        %7180 = vmatpush1.xpose.msra.mxu0 0.0
        %7181 = vmatprep.subr.mxu0 0.0
        %7182 = vmatpush1.xpose.msra.mxu0 0.0
        %7183 = vmatprep.subr.mxu0 0.0
        %7184 = vmatpush1.xpose.msra.mxu0 0.0
        %7185 = vmatprep.subr.mxu0 0.0
        %7186 = vmatpush1.xpose.msra.mxu0 0.0
        %7187 = vmatprep.subr.mxu0 0.0
        %7188 = vmatpush1.xpose.msra.mxu0 0.0
        %7189 = vmatprep.subr.mxu0 0.0
        %7190 = vmatpush1.xpose.msra.mxu0 0.0
        %7191 = vmatprep.subr.mxu0 0.0
        %7192 = vmatpush1.xpose.msra.mxu0 0.0
        %7193 = vmatprep.subr.mxu0 0.0
        %7194 = vmatpush1.xpose.msra.mxu0 0.0
        %7195 = vmatprep.subr.mxu0 0.0
        %7196 = vmatpush1.xpose.msra.mxu0 0.0
        %7197 = vmatprep.subr.mxu0 0.0
        %7198 = vmatpush1.xpose.msra.mxu0 0.0
        %7199 = vmatprep.mubr.f32.mxu0 0.0
        %7200 = vmatmul.mubr.f32.gmra.mrb[0].mxu0 %v7131
        %v7201 = vpop.f32.mrb[0].mxu0
        %v7202 = vadd.f32 0.0, %v7201
        %v7203 = vpop.f32.mrb[0].mxu0
        %7204 = vdwg.mxu0
        %v7205 = vsel %vm602, %v7202, -inf
        %7206 = vmax.xlane.f32.xlu0 %v7205
        %v7207 = vpop.xlane.xlu0 %7206
        %v7208 = vsub.f32 %v7202, %v7207
        %v7209 = vmul.f32 %v7208, 1.442695
        %v7210 = vpow.pop %v7209
        %v7211 = vsel %vm602, %v7210, 0.0
        %7212 = vadd.xlane.f32.xlu0 %v7211
        %v7213 = vpop.xlane.xlu0 %7212
        %v7214 = vrcp.pop %v7213
        %v7215 = vmul.f32 %v7213, %v7214
        %v7216 = vsub.f32 2.0, %v7215
        %v7217 = vmul.f32 %v7214, %v7216
        %v7218 = vmul.f32 %v7210, %v7217
        %7219 = vrot.lane.b32.xlu0 %v5952, 72
        %v7220 = vpop.permute.xlu0 %7219
        %v7223 = vsel %vm602, %v7218, 0
        %7225 = vmatprep.subr.mxu0 0.0
        %7226 = vmatpush1.msra.mxu0 %v7220
        %7227 = vmatprep.subr.mxu0 0.0
        %7228 = vmatpush1.msra.mxu0 0.0
        %7229 = vmatprep.subr.mxu0 0.0
        %7230 = vmatpush1.msra.mxu0 0.0
        %7231 = vmatprep.subr.mxu0 0.0
        %7232 = vmatpush1.msra.mxu0 0.0
        %7233 = vmatprep.subr.mxu0 0.0
        %7234 = vmatpush1.msra.mxu0 0.0
        %7235 = vmatprep.subr.mxu0 0.0
        %7236 = vmatpush1.msra.mxu0 0.0
        %7237 = vmatprep.subr.mxu0 0.0
        %7238 = vmatpush1.msra.mxu0 0.0
        %7239 = vmatprep.subr.mxu0 0.0
        %7240 = vmatpush1.msra.mxu0 0.0
        %7241 = vmatprep.subr.mxu0 0.0
        %7242 = vmatpush1.msra.mxu0 0.0
        %7243 = vmatprep.subr.mxu0 0.0
        %7244 = vmatpush1.msra.mxu0 0.0
        %7245 = vmatprep.subr.mxu0 0.0
        %7246 = vmatpush1.msra.mxu0 0.0
        %7247 = vmatprep.subr.mxu0 0.0
        %7248 = vmatpush1.msra.mxu0 0.0
        %7249 = vmatprep.subr.mxu0 0.0
        %7250 = vmatpush1.msra.mxu0 0.0
        %7251 = vmatprep.subr.mxu0 0.0
        %7252 = vmatpush1.msra.mxu0 0.0
        %7253 = vmatprep.subr.mxu0 0.0
        %7254 = vmatpush1.msra.mxu0 0.0
        %7255 = vmatprep.subr.mxu0 0.0
        %7256 = vmatpush1.msra.mxu0 0.0
        %7257 = vmatprep.subr.mxu0 0.0
        %7258 = vmatpush1.msra.mxu0 0.0
        %7259 = vmatprep.subr.mxu0 0.0
        %7260 = vmatpush1.msra.mxu0 0.0
        %7261 = vmatprep.subr.mxu0 0.0
        %7262 = vmatpush1.msra.mxu0 0.0
        %7263 = vmatprep.subr.mxu0 0.0
        %7264 = vmatpush1.msra.mxu0 0.0
        %7265 = vmatprep.subr.mxu0 0.0
        %7266 = vmatpush1.msra.mxu0 0.0
        %7267 = vmatprep.subr.mxu0 0.0
        %7268 = vmatpush1.msra.mxu0 0.0
        %7269 = vmatprep.subr.mxu0 0.0
        %7270 = vmatpush1.msra.mxu0 0.0
        %7271 = vmatprep.subr.mxu0 0.0
        %7272 = vmatpush1.msra.mxu0 0.0
        %7273 = vmatprep.subr.mxu0 0.0
        %7274 = vmatpush1.msra.mxu0 0.0
        %7275 = vmatprep.subr.mxu0 0.0
        %7276 = vmatpush1.msra.mxu0 0.0
        %7277 = vmatprep.subr.mxu0 0.0
        %7278 = vmatpush1.msra.mxu0 0.0
        %7279 = vmatprep.subr.mxu0 0.0
        %7280 = vmatpush1.msra.mxu0 0.0
        %7281 = vmatprep.subr.mxu0 0.0
        %7282 = vmatpush1.msra.mxu0 0.0
        %7283 = vmatprep.subr.mxu0 0.0
        %7284 = vmatpush1.msra.mxu0 0.0
        %7285 = vmatprep.subr.mxu0 0.0
        %7286 = vmatpush1.msra.mxu0 0.0
        %7287 = vmatprep.subr.mxu0 0.0
        %7288 = vmatpush1.msra.mxu0 0.0
        %7289 = vmatprep.mubr.f32.mxu0 0.0
        %7290 = vmatmul.mubr.f32.gmra.mrb[0].mxu0 %v7223
        %v7291 = vpop.f32.mrb[0].mxu0
        %v7292 = vadd.f32 0.0, %v7291
        %v7293 = vpop.f32.mrb[0].mxu0
        %7294 = vdwg.mxu0
        %7295 = vrot.lane.b32.xlu0 %v5778, 64
        %v7296 = vpop.permute.xlu0 %7295
        %7297 = vrot.lane.b32.xlu0 %v5865, 64
        %v7298 = vpop.permute.xlu0 %7297
        %v7299 = vsel %vm602, %v7296, 0
        %v7301 = vsel %vm602, %v7298, 0
        %7303 = vmatprep.subr.mxu0 0.0
        %7304 = vmatpush1.xpose.msra.mxu0 %v7301
        %7305 = vmatprep.subr.mxu0 0.0
        %7306 = vmatpush1.xpose.msra.mxu0 0.0
        %7307 = vmatprep.subr.mxu0 0.0
        %7308 = vmatpush1.xpose.msra.mxu0 0.0
        %7309 = vmatprep.subr.mxu0 0.0
        %7310 = vmatpush1.xpose.msra.mxu0 0.0
        %7311 = vmatprep.subr.mxu0 0.0
        %7312 = vmatpush1.xpose.msra.mxu0 0.0
        %7313 = vmatprep.subr.mxu0 0.0
        %7314 = vmatpush1.xpose.msra.mxu0 0.0
        %7315 = vmatprep.subr.mxu0 0.0
        %7316 = vmatpush1.xpose.msra.mxu0 0.0
        %7317 = vmatprep.subr.mxu0 0.0
        %7318 = vmatpush1.xpose.msra.mxu0 0.0
        %7319 = vmatprep.subr.mxu0 0.0
        %7320 = vmatpush1.xpose.msra.mxu0 0.0
        %7321 = vmatprep.subr.mxu0 0.0
        %7322 = vmatpush1.xpose.msra.mxu0 0.0
        %7323 = vmatprep.subr.mxu0 0.0
        %7324 = vmatpush1.xpose.msra.mxu0 0.0
        %7325 = vmatprep.subr.mxu0 0.0
        %7326 = vmatpush1.xpose.msra.mxu0 0.0
        %7327 = vmatprep.subr.mxu0 0.0
        %7328 = vmatpush1.xpose.msra.mxu0 0.0
        %7329 = vmatprep.subr.mxu0 0.0
        %7330 = vmatpush1.xpose.msra.mxu0 0.0
        %7331 = vmatprep.subr.mxu0 0.0
        %7332 = vmatpush1.xpose.msra.mxu0 0.0
        %7333 = vmatprep.subr.mxu0 0.0
        %7334 = vmatpush1.xpose.msra.mxu0 0.0
        %7335 = vmatprep.subr.mxu0 0.0
        %7336 = vmatpush1.xpose.msra.mxu0 0.0
        %7337 = vmatprep.subr.mxu0 0.0
        %7338 = vmatpush1.xpose.msra.mxu0 0.0
        %7339 = vmatprep.subr.mxu0 0.0
        %7340 = vmatpush1.xpose.msra.mxu0 0.0
        %7341 = vmatprep.subr.mxu0 0.0
        %7342 = vmatpush1.xpose.msra.mxu0 0.0
        %7343 = vmatprep.subr.mxu0 0.0
        %7344 = vmatpush1.xpose.msra.mxu0 0.0
        %7345 = vmatprep.subr.mxu0 0.0
        %7346 = vmatpush1.xpose.msra.mxu0 0.0
        %7347 = vmatprep.subr.mxu0 0.0
        %7348 = vmatpush1.xpose.msra.mxu0 0.0
        %7349 = vmatprep.subr.mxu0 0.0
        %7350 = vmatpush1.xpose.msra.mxu0 0.0
        %7351 = vmatprep.subr.mxu0 0.0
        %7352 = vmatpush1.xpose.msra.mxu0 0.0
        %7353 = vmatprep.subr.mxu0 0.0
        %7354 = vmatpush1.xpose.msra.mxu0 0.0
        %7355 = vmatprep.subr.mxu0 0.0
        %7356 = vmatpush1.xpose.msra.mxu0 0.0
        %7357 = vmatprep.subr.mxu0 0.0
        %7358 = vmatpush1.xpose.msra.mxu0 0.0
        %7359 = vmatprep.subr.mxu0 0.0
        %7360 = vmatpush1.xpose.msra.mxu0 0.0
        %7361 = vmatprep.subr.mxu0 0.0
        %7362 = vmatpush1.xpose.msra.mxu0 0.0
        %7363 = vmatprep.subr.mxu0 0.0
        %7364 = vmatpush1.xpose.msra.mxu0 0.0
        %7365 = vmatprep.subr.mxu0 0.0
        %7366 = vmatpush1.xpose.msra.mxu0 0.0
        %7367 = vmatprep.mubr.f32.mxu0 0.0
        %7368 = vmatmul.mubr.f32.gmra.mrb[0].mxu0 %v7299
        %v7369 = vpop.f32.mrb[0].mxu0
        %v7370 = vadd.f32 0.0, %v7369
        %v7371 = vpop.f32.mrb[0].mxu0
        %7372 = vdwg.mxu0
        %v7373 = vsel %vm602, %v7370, -inf
        %7374 = vmax.xlane.f32.xlu0 %v7373
        %v7375 = vpop.xlane.xlu0 %7374
        %v7376 = vsub.f32 %v7370, %v7375
        %v7377 = vmul.f32 %v7376, 1.442695
        %v7378 = vpow.pop %v7377
        %v7379 = vsel %vm602, %v7378, 0.0
        %7380 = vadd.xlane.f32.xlu0 %v7379
        %v7381 = vpop.xlane.xlu0 %7380
        %v7382 = vrcp.pop %v7381
        %v7383 = vmul.f32 %v7381, %v7382
        %v7384 = vsub.f32 2.0, %v7383
        %v7385 = vmul.f32 %v7382, %v7384
        %v7386 = vmul.f32 %v7378, %v7385
        %7387 = vrot.lane.b32.xlu0 %v5952, 64
        %v7388 = vpop.permute.xlu0 %7387
        %v7391 = vsel %vm602, %v7386, 0
        %7393 = vmatprep.subr.mxu0 0.0
        %7394 = vmatpush1.msra.mxu0 %v7388
        %7395 = vmatprep.subr.mxu0 0.0
        %7396 = vmatpush1.msra.mxu0 0.0
        %7397 = vmatprep.subr.mxu0 0.0
        %7398 = vmatpush1.msra.mxu0 0.0
        %7399 = vmatprep.subr.mxu0 0.0
        %7400 = vmatpush1.msra.mxu0 0.0
        %7401 = vmatprep.subr.mxu0 0.0
        %7402 = vmatpush1.msra.mxu0 0.0
        %7403 = vmatprep.subr.mxu0 0.0
        %7404 = vmatpush1.msra.mxu0 0.0
        %7405 = vmatprep.subr.mxu0 0.0
        %7406 = vmatpush1.msra.mxu0 0.0
        %7407 = vmatprep.subr.mxu0 0.0
        %7408 = vmatpush1.msra.mxu0 0.0
        %7409 = vmatprep.subr.mxu0 0.0
        %7410 = vmatpush1.msra.mxu0 0.0
        %7411 = vmatprep.subr.mxu0 0.0
        %7412 = vmatpush1.msra.mxu0 0.0
        %7413 = vmatprep.subr.mxu0 0.0
        %7414 = vmatpush1.msra.mxu0 0.0
        %7415 = vmatprep.subr.mxu0 0.0
        %7416 = vmatpush1.msra.mxu0 0.0
        %7417 = vmatprep.subr.mxu0 0.0
        %7418 = vmatpush1.msra.mxu0 0.0
        %7419 = vmatprep.subr.mxu0 0.0
        %7420 = vmatpush1.msra.mxu0 0.0
        %7421 = vmatprep.subr.mxu0 0.0
        %7422 = vmatpush1.msra.mxu0 0.0
        %7423 = vmatprep.subr.mxu0 0.0
        %7424 = vmatpush1.msra.mxu0 0.0
        %7425 = vmatprep.subr.mxu0 0.0
        %7426 = vmatpush1.msra.mxu0 0.0
        %7427 = vmatprep.subr.mxu0 0.0
        %7428 = vmatpush1.msra.mxu0 0.0
        %7429 = vmatprep.subr.mxu0 0.0
        %7430 = vmatpush1.msra.mxu0 0.0
        %7431 = vmatprep.subr.mxu0 0.0
        %7432 = vmatpush1.msra.mxu0 0.0
        %7433 = vmatprep.subr.mxu0 0.0
        %7434 = vmatpush1.msra.mxu0 0.0
        %7435 = vmatprep.subr.mxu0 0.0
        %7436 = vmatpush1.msra.mxu0 0.0
        %7437 = vmatprep.subr.mxu0 0.0
        %7438 = vmatpush1.msra.mxu0 0.0
        %7439 = vmatprep.subr.mxu0 0.0
        %7440 = vmatpush1.msra.mxu0 0.0
        %7441 = vmatprep.subr.mxu0 0.0
        %7442 = vmatpush1.msra.mxu0 0.0
        %7443 = vmatprep.subr.mxu0 0.0
        %7444 = vmatpush1.msra.mxu0 0.0
        %7445 = vmatprep.subr.mxu0 0.0
        %7446 = vmatpush1.msra.mxu0 0.0
        %7447 = vmatprep.subr.mxu0 0.0
        %7448 = vmatpush1.msra.mxu0 0.0
        %7449 = vmatprep.subr.mxu0 0.0
        %7450 = vmatpush1.msra.mxu0 0.0
        %7451 = vmatprep.subr.mxu0 0.0
        %7452 = vmatpush1.msra.mxu0 0.0
        %7453 = vmatprep.subr.mxu0 0.0
        %7454 = vmatpush1.msra.mxu0 0.0
        %7455 = vmatprep.subr.mxu0 0.0
        %7456 = vmatpush1.msra.mxu0 0.0
        %7457 = vmatprep.mubr.f32.mxu0 0.0
        %7458 = vmatmul.mubr.f32.gmra.mrb[0].mxu0 %v7391
        %v7459 = vpop.f32.mrb[0].mxu0
        %v7460 = vadd.f32 0.0, %v7459
        %v7461 = vpop.f32.mrb[0].mxu0
        %7462 = vdwg.mxu0
        %7463 = vrot.lane.b32.xlu0 %v5778, 56
        %v7464 = vpop.permute.xlu0 %7463
        %7465 = vrot.lane.b32.xlu0 %v5865, 56
        %v7466 = vpop.permute.xlu0 %7465
        %v7467 = vsel %vm602, %v7464, 0
        %v7469 = vsel %vm602, %v7466, 0
        %7471 = vmatprep.subr.mxu0 0.0
        %7472 = vmatpush1.xpose.msra.mxu0 %v7469
        %7473 = vmatprep.subr.mxu0 0.0
        %7474 = vmatpush1.xpose.msra.mxu0 0.0
        %7475 = vmatprep.subr.mxu0 0.0
        %7476 = vmatpush1.xpose.msra.mxu0 0.0
        %7477 = vmatprep.subr.mxu0 0.0
        %7478 = vmatpush1.xpose.msra.mxu0 0.0
        %7479 = vmatprep.subr.mxu0 0.0
        %7480 = vmatpush1.xpose.msra.mxu0 0.0
        %7481 = vmatprep.subr.mxu0 0.0
        %7482 = vmatpush1.xpose.msra.mxu0 0.0
        %7483 = vmatprep.subr.mxu0 0.0
        %7484 = vmatpush1.xpose.msra.mxu0 0.0
        %7485 = vmatprep.subr.mxu0 0.0
        %7486 = vmatpush1.xpose.msra.mxu0 0.0
        %7487 = vmatprep.subr.mxu0 0.0
        %7488 = vmatpush1.xpose.msra.mxu0 0.0
        %7489 = vmatprep.subr.mxu0 0.0
        %7490 = vmatpush1.xpose.msra.mxu0 0.0
        %7491 = vmatprep.subr.mxu0 0.0
        %7492 = vmatpush1.xpose.msra.mxu0 0.0
        %7493 = vmatprep.subr.mxu0 0.0
        %7494 = vmatpush1.xpose.msra.mxu0 0.0
        %7495 = vmatprep.subr.mxu0 0.0
        %7496 = vmatpush1.xpose.msra.mxu0 0.0
        %7497 = vmatprep.subr.mxu0 0.0
        %7498 = vmatpush1.xpose.msra.mxu0 0.0
        %7499 = vmatprep.subr.mxu0 0.0
        %7500 = vmatpush1.xpose.msra.mxu0 0.0
        %7501 = vmatprep.subr.mxu0 0.0
        %7502 = vmatpush1.xpose.msra.mxu0 0.0
        %7503 = vmatprep.subr.mxu0 0.0
        %7504 = vmatpush1.xpose.msra.mxu0 0.0
        %7505 = vmatprep.subr.mxu0 0.0
        %7506 = vmatpush1.xpose.msra.mxu0 0.0
        %7507 = vmatprep.subr.mxu0 0.0
        %7508 = vmatpush1.xpose.msra.mxu0 0.0
        %7509 = vmatprep.subr.mxu0 0.0
        %7510 = vmatpush1.xpose.msra.mxu0 0.0
        %7511 = vmatprep.subr.mxu0 0.0
        %7512 = vmatpush1.xpose.msra.mxu0 0.0
        %7513 = vmatprep.subr.mxu0 0.0
        %7514 = vmatpush1.xpose.msra.mxu0 0.0
        %7515 = vmatprep.subr.mxu0 0.0
        %7516 = vmatpush1.xpose.msra.mxu0 0.0
        %7517 = vmatprep.subr.mxu0 0.0
        %7518 = vmatpush1.xpose.msra.mxu0 0.0
        %7519 = vmatprep.subr.mxu0 0.0
        %7520 = vmatpush1.xpose.msra.mxu0 0.0
        %7521 = vmatprep.subr.mxu0 0.0
        %7522 = vmatpush1.xpose.msra.mxu0 0.0
        %7523 = vmatprep.subr.mxu0 0.0
        %7524 = vmatpush1.xpose.msra.mxu0 0.0
        %7525 = vmatprep.subr.mxu0 0.0
        %7526 = vmatpush1.xpose.msra.mxu0 0.0
        %7527 = vmatprep.subr.mxu0 0.0
        %7528 = vmatpush1.xpose.msra.mxu0 0.0
        %7529 = vmatprep.subr.mxu0 0.0
        %7530 = vmatpush1.xpose.msra.mxu0 0.0
        %7531 = vmatprep.subr.mxu0 0.0
        %7532 = vmatpush1.xpose.msra.mxu0 0.0
        %7533 = vmatprep.subr.mxu0 0.0
        %7534 = vmatpush1.xpose.msra.mxu0 0.0
        %7535 = vmatprep.mubr.f32.mxu0 0.0
        %7536 = vmatmul.mubr.f32.gmra.mrb[0].mxu0 %v7467
        %v7537 = vpop.f32.mrb[0].mxu0
        %v7538 = vadd.f32 0.0, %v7537
        %v7539 = vpop.f32.mrb[0].mxu0
        %7540 = vdwg.mxu0
        %v7541 = vsel %vm602, %v7538, -inf
        %7542 = vmax.xlane.f32.xlu0 %v7541
        %v7543 = vpop.xlane.xlu0 %7542
        %v7544 = vsub.f32 %v7538, %v7543
        %v7545 = vmul.f32 %v7544, 1.442695
        %v7546 = vpow.pop %v7545
        %v7547 = vsel %vm602, %v7546, 0.0
        %7548 = vadd.xlane.f32.xlu0 %v7547
        %v7549 = vpop.xlane.xlu0 %7548
        %v7550 = vrcp.pop %v7549
        %v7551 = vmul.f32 %v7549, %v7550
        %v7552 = vsub.f32 2.0, %v7551
        %v7553 = vmul.f32 %v7550, %v7552
        %v7554 = vmul.f32 %v7546, %v7553
        %7555 = vrot.lane.b32.xlu0 %v5952, 56
        %v7556 = vpop.permute.xlu0 %7555
        %v7559 = vsel %vm602, %v7554, 0
        %7561 = vmatprep.subr.mxu0 0.0
        %7562 = vmatpush1.msra.mxu0 %v7556
        %7563 = vmatprep.subr.mxu0 0.0
        %7564 = vmatpush1.msra.mxu0 0.0
        %7565 = vmatprep.subr.mxu0 0.0
        %7566 = vmatpush1.msra.mxu0 0.0
        %7567 = vmatprep.subr.mxu0 0.0
        %7568 = vmatpush1.msra.mxu0 0.0
        %7569 = vmatprep.subr.mxu0 0.0
        %7570 = vmatpush1.msra.mxu0 0.0
        %7571 = vmatprep.subr.mxu0 0.0
        %7572 = vmatpush1.msra.mxu0 0.0
        %7573 = vmatprep.subr.mxu0 0.0
        %7574 = vmatpush1.msra.mxu0 0.0
        %7575 = vmatprep.subr.mxu0 0.0
        %7576 = vmatpush1.msra.mxu0 0.0
        %7577 = vmatprep.subr.mxu0 0.0
        %7578 = vmatpush1.msra.mxu0 0.0
        %7579 = vmatprep.subr.mxu0 0.0
        %7580 = vmatpush1.msra.mxu0 0.0
        %7581 = vmatprep.subr.mxu0 0.0
        %7582 = vmatpush1.msra.mxu0 0.0
        %7583 = vmatprep.subr.mxu0 0.0
        %7584 = vmatpush1.msra.mxu0 0.0
        %7585 = vmatprep.subr.mxu0 0.0
        %7586 = vmatpush1.msra.mxu0 0.0
        %7587 = vmatprep.subr.mxu0 0.0
        %7588 = vmatpush1.msra.mxu0 0.0
        %7589 = vmatprep.subr.mxu0 0.0
        %7590 = vmatpush1.msra.mxu0 0.0
        %7591 = vmatprep.subr.mxu0 0.0
        %7592 = vmatpush1.msra.mxu0 0.0
        %7593 = vmatprep.subr.mxu0 0.0
        %7594 = vmatpush1.msra.mxu0 0.0
        %7595 = vmatprep.subr.mxu0 0.0
        %7596 = vmatpush1.msra.mxu0 0.0
        %7597 = vmatprep.subr.mxu0 0.0
        %7598 = vmatpush1.msra.mxu0 0.0
        %7599 = vmatprep.subr.mxu0 0.0
        %7600 = vmatpush1.msra.mxu0 0.0
        %7601 = vmatprep.subr.mxu0 0.0
        %7602 = vmatpush1.msra.mxu0 0.0
        %7603 = vmatprep.subr.mxu0 0.0
        %7604 = vmatpush1.msra.mxu0 0.0
        %7605 = vmatprep.subr.mxu0 0.0
        %7606 = vmatpush1.msra.mxu0 0.0
        %7607 = vmatprep.subr.mxu0 0.0
        %7608 = vmatpush1.msra.mxu0 0.0
        %7609 = vmatprep.subr.mxu0 0.0
        %7610 = vmatpush1.msra.mxu0 0.0
        %7611 = vmatprep.subr.mxu0 0.0
        %7612 = vmatpush1.msra.mxu0 0.0
        %7613 = vmatprep.subr.mxu0 0.0
        %7614 = vmatpush1.msra.mxu0 0.0
        %7615 = vmatprep.subr.mxu0 0.0
        %7616 = vmatpush1.msra.mxu0 0.0
        %7617 = vmatprep.subr.mxu0 0.0
        %7618 = vmatpush1.msra.mxu0 0.0
        %7619 = vmatprep.subr.mxu0 0.0
        %7620 = vmatpush1.msra.mxu0 0.0
        %7621 = vmatprep.subr.mxu0 0.0
        %7622 = vmatpush1.msra.mxu0 0.0
        %7623 = vmatprep.subr.mxu0 0.0
        %7624 = vmatpush1.msra.mxu0 0.0
        %7625 = vmatprep.mubr.f32.mxu0 0.0
        %7626 = vmatmul.mubr.f32.gmra.mrb[0].mxu0 %v7559
        %v7627 = vpop.f32.mrb[0].mxu0
        %v7628 = vadd.f32 0.0, %v7627
        %v7629 = vpop.f32.mrb[0].mxu0
        %7630 = vdwg.mxu0
        %7631 = vrot.lane.b32.xlu0 %v5778, 48
        %v7632 = vpop.permute.xlu0 %7631
        %7633 = vrot.lane.b32.xlu0 %v5865, 48
        %v7634 = vpop.permute.xlu0 %7633
        %v7635 = vsel %vm602, %v7632, 0
        %v7637 = vsel %vm602, %v7634, 0
        %7639 = vmatprep.subr.mxu0 0.0
        %7640 = vmatpush1.xpose.msra.mxu0 %v7637
        %7641 = vmatprep.subr.mxu0 0.0
        %7642 = vmatpush1.xpose.msra.mxu0 0.0
        %7643 = vmatprep.subr.mxu0 0.0
        %7644 = vmatpush1.xpose.msra.mxu0 0.0
        %7645 = vmatprep.subr.mxu0 0.0
        %7646 = vmatpush1.xpose.msra.mxu0 0.0
        %7647 = vmatprep.subr.mxu0 0.0
        %7648 = vmatpush1.xpose.msra.mxu0 0.0
        %7649 = vmatprep.subr.mxu0 0.0
        %7650 = vmatpush1.xpose.msra.mxu0 0.0
        %7651 = vmatprep.subr.mxu0 0.0
        %7652 = vmatpush1.xpose.msra.mxu0 0.0
        %7653 = vmatprep.subr.mxu0 0.0
        %7654 = vmatpush1.xpose.msra.mxu0 0.0
        %7655 = vmatprep.subr.mxu0 0.0
        %7656 = vmatpush1.xpose.msra.mxu0 0.0
        %7657 = vmatprep.subr.mxu0 0.0
        %7658 = vmatpush1.xpose.msra.mxu0 0.0
        %7659 = vmatprep.subr.mxu0 0.0
        %7660 = vmatpush1.xpose.msra.mxu0 0.0
        %7661 = vmatprep.subr.mxu0 0.0
        %7662 = vmatpush1.xpose.msra.mxu0 0.0
        %7663 = vmatprep.subr.mxu0 0.0
        %7664 = vmatpush1.xpose.msra.mxu0 0.0
        %7665 = vmatprep.subr.mxu0 0.0
        %7666 = vmatpush1.xpose.msra.mxu0 0.0
        %7667 = vmatprep.subr.mxu0 0.0
        %7668 = vmatpush1.xpose.msra.mxu0 0.0
        %7669 = vmatprep.subr.mxu0 0.0
        %7670 = vmatpush1.xpose.msra.mxu0 0.0
        %7671 = vmatprep.subr.mxu0 0.0
        %7672 = vmatpush1.xpose.msra.mxu0 0.0
        %7673 = vmatprep.subr.mxu0 0.0
        %7674 = vmatpush1.xpose.msra.mxu0 0.0
        %7675 = vmatprep.subr.mxu0 0.0
        %7676 = vmatpush1.xpose.msra.mxu0 0.0
        %7677 = vmatprep.subr.mxu0 0.0
        %7678 = vmatpush1.xpose.msra.mxu0 0.0
        %7679 = vmatprep.subr.mxu0 0.0
        %7680 = vmatpush1.xpose.msra.mxu0 0.0
        %7681 = vmatprep.subr.mxu0 0.0
        %7682 = vmatpush1.xpose.msra.mxu0 0.0
        %7683 = vmatprep.subr.mxu0 0.0
        %7684 = vmatpush1.xpose.msra.mxu0 0.0
        %7685 = vmatprep.subr.mxu0 0.0
        %7686 = vmatpush1.xpose.msra.mxu0 0.0
        %7687 = vmatprep.subr.mxu0 0.0
        %7688 = vmatpush1.xpose.msra.mxu0 0.0
        %7689 = vmatprep.subr.mxu0 0.0
        %7690 = vmatpush1.xpose.msra.mxu0 0.0
        %7691 = vmatprep.subr.mxu0 0.0
        %7692 = vmatpush1.xpose.msra.mxu0 0.0
        %7693 = vmatprep.subr.mxu0 0.0
        %7694 = vmatpush1.xpose.msra.mxu0 0.0
        %7695 = vmatprep.subr.mxu0 0.0
        %7696 = vmatpush1.xpose.msra.mxu0 0.0
        %7697 = vmatprep.subr.mxu0 0.0
        %7698 = vmatpush1.xpose.msra.mxu0 0.0
        %7699 = vmatprep.subr.mxu0 0.0
        %7700 = vmatpush1.xpose.msra.mxu0 0.0
        %7701 = vmatprep.subr.mxu0 0.0
        %7702 = vmatpush1.xpose.msra.mxu0 0.0
        %7703 = vmatprep.mubr.f32.mxu0 0.0
        %7704 = vmatmul.mubr.f32.gmra.mrb[0].mxu0 %v7635
        %v7705 = vpop.f32.mrb[0].mxu0
        %v7706 = vadd.f32 0.0, %v7705
        %v7707 = vpop.f32.mrb[0].mxu0
        %7708 = vdwg.mxu0
        %v7709 = vsel %vm602, %v7706, -inf
        %7710 = vmax.xlane.f32.xlu0 %v7709
        %v7711 = vpop.xlane.xlu0 %7710
        %v7712 = vsub.f32 %v7706, %v7711
        %v7713 = vmul.f32 %v7712, 1.442695
        %v7714 = vpow.pop %v7713
        %v7715 = vsel %vm602, %v7714, 0.0
        %7716 = vadd.xlane.f32.xlu0 %v7715
        %v7717 = vpop.xlane.xlu0 %7716
        %v7718 = vrcp.pop %v7717
        %v7719 = vmul.f32 %v7717, %v7718
        %v7720 = vsub.f32 2.0, %v7719
        %v7721 = vmul.f32 %v7718, %v7720
        %v7722 = vmul.f32 %v7714, %v7721
        %7723 = vrot.lane.b32.xlu0 %v5952, 48
        %v7724 = vpop.permute.xlu0 %7723
        %v7727 = vsel %vm602, %v7722, 0
        %7729 = vmatprep.subr.mxu0 0.0
        %7730 = vmatpush1.msra.mxu0 %v7724
        %7731 = vmatprep.subr.mxu0 0.0
        %7732 = vmatpush1.msra.mxu0 0.0
        %7733 = vmatprep.subr.mxu0 0.0
        %7734 = vmatpush1.msra.mxu0 0.0
        %7735 = vmatprep.subr.mxu0 0.0
        %7736 = vmatpush1.msra.mxu0 0.0
        %7737 = vmatprep.subr.mxu0 0.0
        %7738 = vmatpush1.msra.mxu0 0.0
        %7739 = vmatprep.subr.mxu0 0.0
        %7740 = vmatpush1.msra.mxu0 0.0
        %7741 = vmatprep.subr.mxu0 0.0
        %7742 = vmatpush1.msra.mxu0 0.0
        %7743 = vmatprep.subr.mxu0 0.0
        %7744 = vmatpush1.msra.mxu0 0.0
        %7745 = vmatprep.subr.mxu0 0.0
        %7746 = vmatpush1.msra.mxu0 0.0
        %7747 = vmatprep.subr.mxu0 0.0
        %7748 = vmatpush1.msra.mxu0 0.0
        %7749 = vmatprep.subr.mxu0 0.0
        %7750 = vmatpush1.msra.mxu0 0.0
        %7751 = vmatprep.subr.mxu0 0.0
        %7752 = vmatpush1.msra.mxu0 0.0
        %7753 = vmatprep.subr.mxu0 0.0
        %7754 = vmatpush1.msra.mxu0 0.0
        %7755 = vmatprep.subr.mxu0 0.0
        %7756 = vmatpush1.msra.mxu0 0.0
        %7757 = vmatprep.subr.mxu0 0.0
        %7758 = vmatpush1.msra.mxu0 0.0
        %7759 = vmatprep.subr.mxu0 0.0
        %7760 = vmatpush1.msra.mxu0 0.0
        %7761 = vmatprep.subr.mxu0 0.0
        %7762 = vmatpush1.msra.mxu0 0.0
        %7763 = vmatprep.subr.mxu0 0.0
        %7764 = vmatpush1.msra.mxu0 0.0
        %7765 = vmatprep.subr.mxu0 0.0
        %7766 = vmatpush1.msra.mxu0 0.0
        %7767 = vmatprep.subr.mxu0 0.0
        %7768 = vmatpush1.msra.mxu0 0.0
        %7769 = vmatprep.subr.mxu0 0.0
        %7770 = vmatpush1.msra.mxu0 0.0
        %7771 = vmatprep.subr.mxu0 0.0
        %7772 = vmatpush1.msra.mxu0 0.0
        %7773 = vmatprep.subr.mxu0 0.0
        %7774 = vmatpush1.msra.mxu0 0.0
        %7775 = vmatprep.subr.mxu0 0.0
        %7776 = vmatpush1.msra.mxu0 0.0
        %7777 = vmatprep.subr.mxu0 0.0
        %7778 = vmatpush1.msra.mxu0 0.0
        %7779 = vmatprep.subr.mxu0 0.0
        %7780 = vmatpush1.msra.mxu0 0.0
        %7781 = vmatprep.subr.mxu0 0.0
        %7782 = vmatpush1.msra.mxu0 0.0
        %7783 = vmatprep.subr.mxu0 0.0
        %7784 = vmatpush1.msra.mxu0 0.0
        %7785 = vmatprep.subr.mxu0 0.0
        %7786 = vmatpush1.msra.mxu0 0.0
        %7787 = vmatprep.subr.mxu0 0.0
        %7788 = vmatpush1.msra.mxu0 0.0
        %7789 = vmatprep.subr.mxu0 0.0
        %7790 = vmatpush1.msra.mxu0 0.0
        %7791 = vmatprep.subr.mxu0 0.0
        %7792 = vmatpush1.msra.mxu0 0.0
        %7793 = vmatprep.mubr.f32.mxu0 0.0
        %7794 = vmatmul.mubr.f32.gmra.mrb[0].mxu0 %v7727
        %v7795 = vpop.f32.mrb[0].mxu0
        %v7796 = vadd.f32 0.0, %v7795
        %v7797 = vpop.f32.mrb[0].mxu0
        %7798 = vdwg.mxu0
        %7799 = vrot.lane.b32.xlu0 %v5778, 40
        %v7800 = vpop.permute.xlu0 %7799
        %7801 = vrot.lane.b32.xlu0 %v5865, 40
        %v7802 = vpop.permute.xlu0 %7801
        %v7803 = vsel %vm602, %v7800, 0
        %v7805 = vsel %vm602, %v7802, 0
        %7807 = vmatprep.subr.mxu0 0.0
        %7808 = vmatpush1.xpose.msra.mxu0 %v7805
        %7809 = vmatprep.subr.mxu0 0.0
        %7810 = vmatpush1.xpose.msra.mxu0 0.0
        %7811 = vmatprep.subr.mxu0 0.0
        %7812 = vmatpush1.xpose.msra.mxu0 0.0
        %7813 = vmatprep.subr.mxu0 0.0
        %7814 = vmatpush1.xpose.msra.mxu0 0.0
        %7815 = vmatprep.subr.mxu0 0.0
        %7816 = vmatpush1.xpose.msra.mxu0 0.0
        %7817 = vmatprep.subr.mxu0 0.0
        %7818 = vmatpush1.xpose.msra.mxu0 0.0
        %7819 = vmatprep.subr.mxu0 0.0
        %7820 = vmatpush1.xpose.msra.mxu0 0.0
        %7821 = vmatprep.subr.mxu0 0.0
        %7822 = vmatpush1.xpose.msra.mxu0 0.0
        %7823 = vmatprep.subr.mxu0 0.0
        %7824 = vmatpush1.xpose.msra.mxu0 0.0
        %7825 = vmatprep.subr.mxu0 0.0
        %7826 = vmatpush1.xpose.msra.mxu0 0.0
        %7827 = vmatprep.subr.mxu0 0.0
        %7828 = vmatpush1.xpose.msra.mxu0 0.0
        %7829 = vmatprep.subr.mxu0 0.0
        %7830 = vmatpush1.xpose.msra.mxu0 0.0
        %7831 = vmatprep.subr.mxu0 0.0
        %7832 = vmatpush1.xpose.msra.mxu0 0.0
        %7833 = vmatprep.subr.mxu0 0.0
        %7834 = vmatpush1.xpose.msra.mxu0 0.0
        %7835 = vmatprep.subr.mxu0 0.0
        %7836 = vmatpush1.xpose.msra.mxu0 0.0
        %7837 = vmatprep.subr.mxu0 0.0
        %7838 = vmatpush1.xpose.msra.mxu0 0.0
        %7839 = vmatprep.subr.mxu0 0.0
        %7840 = vmatpush1.xpose.msra.mxu0 0.0
        %7841 = vmatprep.subr.mxu0 0.0
        %7842 = vmatpush1.xpose.msra.mxu0 0.0
        %7843 = vmatprep.subr.mxu0 0.0
        %7844 = vmatpush1.xpose.msra.mxu0 0.0
        %7845 = vmatprep.subr.mxu0 0.0
        %7846 = vmatpush1.xpose.msra.mxu0 0.0
        %7847 = vmatprep.subr.mxu0 0.0
        %7848 = vmatpush1.xpose.msra.mxu0 0.0
        %7849 = vmatprep.subr.mxu0 0.0
        %7850 = vmatpush1.xpose.msra.mxu0 0.0
        %7851 = vmatprep.subr.mxu0 0.0
        %7852 = vmatpush1.xpose.msra.mxu0 0.0
        %7853 = vmatprep.subr.mxu0 0.0
        %7854 = vmatpush1.xpose.msra.mxu0 0.0
        %7855 = vmatprep.subr.mxu0 0.0
        %7856 = vmatpush1.xpose.msra.mxu0 0.0
        %7857 = vmatprep.subr.mxu0 0.0
        %7858 = vmatpush1.xpose.msra.mxu0 0.0
        %7859 = vmatprep.subr.mxu0 0.0
        %7860 = vmatpush1.xpose.msra.mxu0 0.0
        %7861 = vmatprep.subr.mxu0 0.0
        %7862 = vmatpush1.xpose.msra.mxu0 0.0
        %7863 = vmatprep.subr.mxu0 0.0
        %7864 = vmatpush1.xpose.msra.mxu0 0.0
        %7865 = vmatprep.subr.mxu0 0.0
        %7866 = vmatpush1.xpose.msra.mxu0 0.0
        %7867 = vmatprep.subr.mxu0 0.0
        %7868 = vmatpush1.xpose.msra.mxu0 0.0
        %7869 = vmatprep.subr.mxu0 0.0
        %7870 = vmatpush1.xpose.msra.mxu0 0.0
        %7871 = vmatprep.mubr.f32.mxu0 0.0
        %7872 = vmatmul.mubr.f32.gmra.mrb[0].mxu0 %v7803
        %v7873 = vpop.f32.mrb[0].mxu0
        %v7874 = vadd.f32 0.0, %v7873
        %v7875 = vpop.f32.mrb[0].mxu0
        %7876 = vdwg.mxu0
        %v7877 = vsel %vm602, %v7874, -inf
        %7878 = vmax.xlane.f32.xlu0 %v7877
        %v7879 = vpop.xlane.xlu0 %7878
        %v7880 = vsub.f32 %v7874, %v7879
        %v7881 = vmul.f32 %v7880, 1.442695
        %v7882 = vpow.pop %v7881
        %v7883 = vsel %vm602, %v7882, 0.0
        %7884 = vadd.xlane.f32.xlu0 %v7883
        %v7885 = vpop.xlane.xlu0 %7884
        %v7886 = vrcp.pop %v7885
        %v7887 = vmul.f32 %v7885, %v7886
        %v7888 = vsub.f32 2.0, %v7887
        %v7889 = vmul.f32 %v7886, %v7888
        %v7890 = vmul.f32 %v7882, %v7889
        %7891 = vrot.lane.b32.xlu0 %v5952, 40
        %v7892 = vpop.permute.xlu0 %7891
        %v7895 = vsel %vm602, %v7890, 0
        %7897 = vmatprep.subr.mxu0 0.0
        %7898 = vmatpush1.msra.mxu0 %v7892
        %7899 = vmatprep.subr.mxu0 0.0
        %7900 = vmatpush1.msra.mxu0 0.0
        %7901 = vmatprep.subr.mxu0 0.0
        %7902 = vmatpush1.msra.mxu0 0.0
        %7903 = vmatprep.subr.mxu0 0.0
        %7904 = vmatpush1.msra.mxu0 0.0
        %7905 = vmatprep.subr.mxu0 0.0
        %7906 = vmatpush1.msra.mxu0 0.0
        %7907 = vmatprep.subr.mxu0 0.0
        %7908 = vmatpush1.msra.mxu0 0.0
        %7909 = vmatprep.subr.mxu0 0.0
        %7910 = vmatpush1.msra.mxu0 0.0
        %7911 = vmatprep.subr.mxu0 0.0
        %7912 = vmatpush1.msra.mxu0 0.0
        %7913 = vmatprep.subr.mxu0 0.0
        %7914 = vmatpush1.msra.mxu0 0.0
        %7915 = vmatprep.subr.mxu0 0.0
        %7916 = vmatpush1.msra.mxu0 0.0
        %7917 = vmatprep.subr.mxu0 0.0
        %7918 = vmatpush1.msra.mxu0 0.0
        %7919 = vmatprep.subr.mxu0 0.0
        %7920 = vmatpush1.msra.mxu0 0.0
        %7921 = vmatprep.subr.mxu0 0.0
        %7922 = vmatpush1.msra.mxu0 0.0
        %7923 = vmatprep.subr.mxu0 0.0
        %7924 = vmatpush1.msra.mxu0 0.0
        %7925 = vmatprep.subr.mxu0 0.0
        %7926 = vmatpush1.msra.mxu0 0.0
        %7927 = vmatprep.subr.mxu0 0.0
        %7928 = vmatpush1.msra.mxu0 0.0
        %7929 = vmatprep.subr.mxu0 0.0
        %7930 = vmatpush1.msra.mxu0 0.0
        %7931 = vmatprep.subr.mxu0 0.0
        %7932 = vmatpush1.msra.mxu0 0.0
        %7933 = vmatprep.subr.mxu0 0.0
        %7934 = vmatpush1.msra.mxu0 0.0
        %7935 = vmatprep.subr.mxu0 0.0
        %7936 = vmatpush1.msra.mxu0 0.0
        %7937 = vmatprep.subr.mxu0 0.0
        %7938 = vmatpush1.msra.mxu0 0.0
        %7939 = vmatprep.subr.mxu0 0.0
        %7940 = vmatpush1.msra.mxu0 0.0
        %7941 = vmatprep.subr.mxu0 0.0
        %7942 = vmatpush1.msra.mxu0 0.0
        %7943 = vmatprep.subr.mxu0 0.0
        %7944 = vmatpush1.msra.mxu0 0.0
        %7945 = vmatprep.subr.mxu0 0.0
        %7946 = vmatpush1.msra.mxu0 0.0
        %7947 = vmatprep.subr.mxu0 0.0
        %7948 = vmatpush1.msra.mxu0 0.0
        %7949 = vmatprep.subr.mxu0 0.0
        %7950 = vmatpush1.msra.mxu0 0.0
        %7951 = vmatprep.subr.mxu0 0.0
        %7952 = vmatpush1.msra.mxu0 0.0
        %7953 = vmatprep.subr.mxu0 0.0
        %7954 = vmatpush1.msra.mxu0 0.0
        %7955 = vmatprep.subr.mxu0 0.0
        %7956 = vmatpush1.msra.mxu0 0.0
        %7957 = vmatprep.subr.mxu0 0.0
        %7958 = vmatpush1.msra.mxu0 0.0
        %7959 = vmatprep.subr.mxu0 0.0
        %7960 = vmatpush1.msra.mxu0 0.0
        %7961 = vmatprep.mubr.f32.mxu0 0.0
        %7962 = vmatmul.mubr.f32.gmra.mrb[0].mxu0 %v7895
        %v7963 = vpop.f32.mrb[0].mxu0
        %v7964 = vadd.f32 0.0, %v7963
        %v7965 = vpop.f32.mrb[0].mxu0
        %7966 = vdwg.mxu0
        %7968 = vrot.lane.b32.xlu0 %v6284, 8
        %v7969 = vpop.permute.xlu0 %7968
        %7972 = vrot.lane.b32.xlu0 %v6452, 16
        %v7973 = vpop.permute.xlu0 %7972
        %7976 = vrot.lane.b32.xlu0 %v6620, 24
        %v7977 = vpop.permute.xlu0 %7976
        %7980 = vrot.lane.b32.xlu0 %v6788, 32
        %v7981 = vpop.permute.xlu0 %7980
        %7984 = vrot.lane.b32.xlu0 %v6956, 40
        %v7985 = vpop.permute.xlu0 %7984
        %7988 = vrot.lane.b32.xlu0 %v7124, 48
        %v7989 = vpop.permute.xlu0 %7988
        %7992 = vrot.lane.b32.xlu0 %v7292, 56
        %v7993 = vpop.permute.xlu0 %7992
        %7996 = vrot.lane.b32.xlu0 %v7460, 64
        %v7997 = vpop.permute.xlu0 %7996
        %8000 = vrot.lane.b32.xlu0 %v7628, 72
        %v8001 = vpop.permute.xlu0 %8000
        %8004 = vrot.lane.b32.xlu0 %v7796, 80
        %v8005 = vpop.permute.xlu0 %8004
        %8008 = vrot.lane.b32.xlu0 %v7964, 88
        %v8009 = vpop.permute.xlu0 %8008
        %v8011 = vsel %vm602, %v6115, %v7969
        %v8012 = vsel %vm5579, %v8011, %v7973
        %v8013 = vsel %vm5581, %v8012, %v7977
        %v8014 = vsel %vm373, %v8013, %v7981
        %v8015 = vsel %vm5584, %v8014, %v7985
        %v8016 = vsel %vm5586, %v8015, %v7989
        %v8017 = vsel %vm5588, %v8016, %v7993
        %v8018 = vsel %vm5590, %v8017, %v7997
        %v8019 = vsel %vm5592, %v8018, %v8001
        %v8020 = vsel %vm5594, %v8019, %v8005
        %v8021 = vsel %vm5596, %v8020, %v8009
        %s8022 = scalar_lea.vmem [#allocation7], 672
        %v8023 = vld [vmem:[%s8022] sm:$0xff]
        %v8024 = vld [vmem:[%s8022 + $0x8] sm:$0xff]
        %v8025 = vld [vmem:[%s8022 + $0x10] sm:$0xff]
        %v8026 = vld [vmem:[%s8022 + $0x18] sm:$0xff]
        %v8027 = vld [vmem:[%s8022 + $0x20] sm:$0xff]
        %v8028 = vld [vmem:[%s8022 + $0x28] sm:$0xff]
        %v8029 = vld [vmem:[%s8022 + $0x30] sm:$0xff]
        %v8030 = vld [vmem:[%s8022 + $0x38] sm:$0xff]
        %v8031 = vld [vmem:[%s8022 + $0x40] sm:$0xff]
        %v8032 = vld [vmem:[%s8022 + $0x48] sm:$0xff]
        %v8033 = vld [vmem:[%s8022 + $0x50] sm:$0xff]
        %v8034 = vld [vmem:[%s8022 + $0x58] sm:$0xff]
        %v8035 = vlaneseq
        %v8036 = vshrl.u32 %v8035, 7
        %v8037 = vsub.s32 3, %v8036
        %v8038 = vrot.slane %v5690, %v8037
        %v8040 = vsel %vm893, %v8021, 0
        %8042 = vmatprep.subr.mxu0 0.0
        %8043 = vmatpush1.msra.mxu0 %v8023
        %8044 = vmatprep.subr.mxu0 0.0
        %8045 = vmatpush1.msra.mxu0 %v8024
        %8046 = vmatprep.subr.mxu0 0.0
        %8047 = vmatpush1.msra.mxu0 %v8025
        %8048 = vmatprep.subr.mxu0 0.0
        %8049 = vmatpush1.msra.mxu0 %v8026
        %8050 = vmatprep.subr.mxu0 0.0
        %8051 = vmatpush1.msra.mxu0 %v8027
        %8052 = vmatprep.subr.mxu0 0.0
        %8053 = vmatpush1.msra.mxu0 %v8028
        %8054 = vmatprep.subr.mxu0 0.0
        %8055 = vmatpush1.msra.mxu0 %v8029
        %8056 = vmatprep.subr.mxu0 0.0
        %8057 = vmatpush1.msra.mxu0 %v8030
        %8058 = vmatprep.subr.mxu0 0.0
        %8059 = vmatpush1.msra.mxu0 %v8031
        %8060 = vmatprep.subr.mxu0 0.0
        %8061 = vmatpush1.msra.mxu0 %v8032
        %8062 = vmatprep.subr.mxu0 0.0
        %8063 = vmatpush1.msra.mxu0 %v8033
        %8064 = vmatprep.subr.mxu0 0.0
        %8065 = vmatpush1.msra.mxu0 %v8034
        %8066 = vmatprep.subr.mxu0 0.0
        %8067 = vmatpush1.msra.mxu0 0.0
        %8068 = vmatprep.subr.mxu0 0.0
        %8069 = vmatpush1.msra.mxu0 0.0
        %8070 = vmatprep.subr.mxu0 0.0
        %8071 = vmatpush1.msra.mxu0 0.0
        %8072 = vmatprep.subr.mxu0 0.0
        %8073 = vmatpush1.msra.mxu0 0.0
        %8074 = vmatprep.subr.mxu0 0.0
        %8075 = vmatpush1.msra.mxu0 0.0
        %8076 = vmatprep.subr.mxu0 0.0
        %8077 = vmatpush1.msra.mxu0 0.0
        %8078 = vmatprep.subr.mxu0 0.0
        %8079 = vmatpush1.msra.mxu0 0.0
        %8080 = vmatprep.subr.mxu0 0.0
        %8081 = vmatpush1.msra.mxu0 0.0
        %8082 = vmatprep.subr.mxu0 0.0
        %8083 = vmatpush1.msra.mxu0 0.0
        %8084 = vmatprep.subr.mxu0 0.0
        %8085 = vmatpush1.msra.mxu0 0.0
        %8086 = vmatprep.subr.mxu0 0.0
        %8087 = vmatpush1.msra.mxu0 0.0
        %8088 = vmatprep.subr.mxu0 0.0
        %8089 = vmatpush1.msra.mxu0 0.0
        %8090 = vmatprep.subr.mxu0 0.0
        %8091 = vmatpush1.msra.mxu0 0.0
        %8092 = vmatprep.subr.mxu0 0.0
        %8093 = vmatpush1.msra.mxu0 0.0
        %8094 = vmatprep.subr.mxu0 0.0
        %8095 = vmatpush1.msra.mxu0 0.0
        %8096 = vmatprep.subr.mxu0 0.0
        %8097 = vmatpush1.msra.mxu0 0.0
        %8098 = vmatprep.subr.mxu0 0.0
        %8099 = vmatpush1.msra.mxu0 0.0
        %8100 = vmatprep.subr.mxu0 0.0
        %8101 = vmatpush1.msra.mxu0 0.0
        %8102 = vmatprep.subr.mxu0 0.0
        %8103 = vmatpush1.msra.mxu0 0.0
        %8104 = vmatprep.subr.mxu0 0.0
        %8105 = vmatpush1.msra.mxu0 0.0
        %8106 = vmatprep.mubr.f32.mxu0 0.0
        %8107 = vmatmul.mubr.f32.gmra.mrb[0].mxu0 %v8040
        %v8108 = vpop.f32.mrb[0].mxu0
        %v8109 = vadd.f32 %v8038, %v8108
        %v8110 = vpop.f32.mrb[0].mxu0
        %8111 = vdwg.mxu0
        %v8112 = vadd.f32 %v5688, %v8109
        %8113 = vst.msk [vmem:[%s353] sm:$0xff] %vm893, %v8112
        %s8114 = sand.u32 %s210, 1
        %s8115 = scalar_lea.sflag [#allocation4], %s8114
        %s8116 = sand.u32 %s210, 1
        %s8117 = smul.addr %s8116, 8
        %s8118 = scalar_lea.vmem [#allocation8], %s8117
        // Predicated region
        $region65: #{ian_forward.1} parent=51 // pred_check
          %p8119 = pneg %p220
        $region66: #{ian_forward.1} parent=51 // pred_check_branch
          %8121 = sbr.rel (%p8119) target = $region68
        $region67: #{ian_forward.1} parent=51 // pred_region
          %s8123 = ssub.s32 128, 128
          %8124 = vsyncadd %s8115, %s8123
          %s8125 = smul.addr %s24, 128
          %s8126 = scalar_lea.hbm %s8, %s8125
          %s8128 = sshll.u32 %s8118, 4
          %s8129 = int_to_ptr.vmem [resolvable:$true] %s8128
          %8131 = dma.vmem_to_hbm [thread:$0]  %s8129, 128, %s8126, %s8115
        $region68: #{ian_forward.1} parent=51 // pred_fallthru
          _
      $region52: #{ian_forward.1} parent=5 // pred_fallthru
        _
      %p8132 = scmp.le.s32.totalorder 2, %s19
      // Predicated region
      $region69: #{ian_forward.1} parent=5 // pred_check
        %p8133 = pneg %p8132
      $region70: #{ian_forward.1} parent=5 // pred_check_branch
        %8135 = sbr.rel (%p8133) target = $region72
      $region71: #{ian_forward.1} parent=5 // pred_region
        %s8136 = ssub.s32 %s19, 2
        // Predicated region
        $region73: #{ian_forward.1} parent=71 // pred_check
          %p8137 = pneg %p226
        $region74: #{ian_forward.1} parent=71 // pred_check_branch
          %8139 = sbr.rel (%p8137) target = $region76
        $region75: #{ian_forward.1} parent=71 // pred_region
          %s8140 = sand.u32 %s211, 1
          %s8141 = scalar_lea.sflag [#allocation4], %s8140
          %s8142 = sand.u32 %s211, 1
          %s8143 = smul.addr %s8142, 8
          %s8144 = scalar_lea.vmem [#allocation8], %s8143
          %8145 = dma.done %s8141, 128
        $region76: #{ian_forward.1} parent=71 // pred_fallthru
          _
      $region72: #{ian_forward.1} parent=5 // pred_fallthru
        _
    $region6: #{ian_forward.1} parent=1 // loop_footer
      %s23 = sadd.s32 1, %s19
    $region7: #{ian_forward.1} parent=1 // loop_footer_branch
      %18 = sbr.rel target = $region3
    $region8: #{ian_forward.1} parent=1 // loop_exit
      _
    %8146 = vsyncpa [#allocation3], 1
    %s8147 = scalar_lea.sflag [#allocation3], 1
    %8148 = vsyncpa %s8147, 1
    %8149 = vsyncpa [#allocation6], 1
    %8150 = vsyncpa [#allocation4], 1
    %s8151 = scalar_lea.sflag [#allocation4], 1
    %8152 = vsyncpa %s8151, 1

</llo_original>
